<compile_context>
chip_gen: v5e
topology: v5e:2x2
jax: 0.10.0
libtpu: 0.0.40
codegen_flags: <defaults>
</compile_context>

<pallas_src>
import numpy as np
import jax
import jax.numpy as jnp
from jax import lax
from jax.experimental import pallas as pl
from jax.experimental.pallas import tpu as pltpu


# fp32 contract precision (6-pass bf16) -- DEFAULT (1-pass bf16) does not hold the
# 1e-4 post-sigmoid tolerance against the f32 reference; HIGH is not a Mosaic mode.
_MM_PRECISION = lax.Precision.HIGHEST


# (cin, cout, kernel, dilation); padding = dilation * (kernel // 2)  ('same')
_LAYER_CFG = lambda dims: [
    (dims, 8, 3, 1),
    (8,    8, 3, 1),
    (8,   16, 3, 2),
    (16,  16, 3, 2),
    (16,  32, 3, 3),
    (32,  16, 1, 1),
    (16,   1, 1, 1),
]


# ---------------------------------------------------------------------------
# Fused kernel
# ---------------------------------------------------------------------------
def _build_fused_kernel(H, W, NB, layer3_cfg, dil_index):
    """layer3_cfg: list of static (cin, cout, dil) for the 3x3 layers (cin % 8 == 0)."""
    L = NB * H * W
    n3 = len(layer3_cfg)

    def kernel(*refs):
        x_ref, masks_ref = refs[0], refs[1]
        p_refs = refs[2:2 + 2 * n3]                  # (w2d, bias) per 3x3 layer
        wf_ref = refs[2 + 2 * n3]                    # folded 1x1 tail weight (cout_f, c)
        bf_ref = refs[3 + 2 * n3]                    # folded 1x1 tail bias   (cout_f, 1)
        o_ref = refs[4 + 2 * n3]
        patch_ref = refs[5 + 2 * n3]                 # (K_max, L) im2col scratch

        act = x_ref[0]                               # (Cpad, L), lane-dense f32

        for li, (cin, cout, dil) in enumerate(layer3_cfg):
            w_ref = p_refs[2 * li]                   # (cout, 9*cin)
            b_ref = p_refs[2 * li + 1]               # (cout, 1)
            mrow0 = dil_index[dil] * 9
            for ky in range(3):
                for kx in range(3):
                    t = ky * 3 + kx
                    if ky == 1 and kx == 1:
                        tap = act                    # center tap: no shift, mask == 1
                    else:
                        # tap[i] = act[i + dy*W + dx]  (boundary pixels masked to zero)
                        s = ((ky - 1) * W + (kx - 1)) * dil
                        rolled = pltpu.roll(act, (-s) % L, 1)      # XLU lane rotate
                        m = masks_ref[mrow0 + t:mrow0 + t + 1, :]  # (1, L) 0/1 mask
                        tap = rolled * m
                    # sublane-aligned, full-lane store into the patch (cin % 8 == 0)
                    patch_ref[t * cin:(t + 1) * cin, :] = tap
            # one MXU matmul per layer: (cout, 9*cin) @ (9*cin, L) -> (cout, L)
            act = jnp.dot(w_ref[...], patch_ref[0:9 * cin, :],
                          preferred_element_type=jnp.float32,
                          precision=_MM_PRECISION)
            act = act + b_ref[...]                   # lane-broadcast bias add

        # folded 1x1 tail (32 -> 1) + sigmoid, lane-dense output
        out = jnp.dot(wf_ref[...], act,
                      preferred_element_type=jnp.float32,
                      precision=_MM_PRECISION)
        out = jax.nn.sigmoid(out + bf_ref[...])      # (cout_f, L)
        o_ref[...] = out.reshape((1,) + out.shape).astype(o_ref.dtype)

    return kernel


# ---------------------------------------------------------------------------
# Wrapper
# ---------------------------------------------------------------------------
def dilation_cnn_forward(x_nchw, params, batch_parallel=None):
    """Forward pass identical to DilationCNN.forward (NCHW in, NCHW out)."""
    N, C0, H, W = x_nchw.shape
    HW = H * W

    # Chip-aware batch strategy: split batch over the grid only on 2-TC v7x;
    # on single-TC v5e/v6e fold the batch into the lane dimension instead.
    if batch_parallel is None:
        try:
            kind = jax.devices()[0].device_kind.lower()
        except Exception:
            kind = ""
        batch_parallel = ("v7" in kind) or ("tpu7" in kind)
    NB = 1 if (batch_parallel and N > 1) else N      # images per grid step
    G = N // NB                                      # grid size
    L = NB * HW                                      # lane extent per step

    # Split the 3x3 layers from the trailing 1x1 layers.
    conv3, tail = [], []
    for (w, b, dil) in params:
        if w.shape[0] == 3:
            assert not tail, "3x3 layer after a 1x1 layer is unsupported"
            conv3.append((w, b, dil))
        else:
            tail.append((w, b))
    assert conv3 and tail

    # Fold all trailing 1x1 convs (linear, no nonlinearity between them) into one
    # affine map, in float64 so the fold itself adds no error.
    c_tail = conv3[-1][0].shape[3]
    W_eff = np.eye(c_tail, dtype=np.float64)
    b_eff = np.zeros((c_tail,), np.float64)
    for (w, b) in tail:
        wm = np.asarray(w, np.float64).reshape(w.shape[2], w.shape[3]).T   # (cout, cin)
        W_eff = wm @ W_eff
        b_eff = wm @ b_eff + np.asarray(b, np.float64)
    cout_f = W_eff.shape[0]
    W_eff = jnp.asarray(W_eff, jnp.float32)                                 # (1, 32)
    b_eff = jnp.asarray(b_eff, jnp.float32).reshape(cout_f, 1)

    # Lane-dense input (C, L); pad channels to a multiple of 8 so every im2col tap
    # store lands on a sublane-aligned offset.
    Cp = max(8, ((C0 + 7) // 8) * 8)
    x = x_nchw.reshape(N, C0, HW).astype(jnp.float32)
    if Cp != C0:
        x = jnp.pad(x, ((0, 0), (0, Cp - C0), (0, 0)))
    x = x.reshape(G, NB, Cp, HW).transpose(0, 2, 1, 3).reshape(G, Cp, L)

    # Per-dilation, per-tap 0/1 boundary masks over one image, tiled across NB images.
    dils = sorted({dil for (_, _, dil) in conv3})
    dil_index = {d: i for i, d in enumerate(dils)}
    mrows = []
    for d in dils:
        for ky in range(3):
            for kx in range(3):
                dy, dx = (ky - 1) * d, (kx - 1) * d
                hh = np.arange(H)[:, None] + dy
                ww = np.arange(W)[None, :] + dx
                valid = (hh >= 0) & (hh < H) & (ww >= 0) & (ww < W)
                mrows.append(valid.astype(np.float32).reshape(HW))
    masks = jnp.asarray(np.tile(np.stack(mrows, 0), (1, NB)))   # (len(dils)*9, L)

    # Pack 3x3 weights as (cout, 9*cin) matching patch row order t*cin + c.
    layer3_cfg = []
    flat_inputs = [x, masks]
    in_specs = [pl.BlockSpec((1, Cp, L), lambda g: (g, 0, 0)),
                pl.BlockSpec(masks.shape, lambda g: (0, 0))]
    for idx, (w, b, dil) in enumerate(conv3):
        _, _, cin, cout = w.shape
        w = jnp.asarray(w, jnp.float32)
        if idx == 0 and cin != Cp:
            w = jnp.pad(w, ((0, 0), (0, 0), (0, Cp - cin), (0, 0)))
            cin = Cp
        w2d = w.reshape(9, cin, cout).transpose(2, 0, 1).reshape(cout, 9 * cin)
        b2d = jnp.asarray(b, jnp.float32).reshape(cout, 1)
        layer3_cfg.append((cin, cout, dil))
        flat_inputs += [w2d, b2d]
        in_specs += [pl.BlockSpec(w2d.shape, lambda g: (0, 0)),
                     pl.BlockSpec(b2d.shape, lambda g: (0, 0))]
    flat_inputs += [W_eff, b_eff]
    in_specs += [pl.BlockSpec(W_eff.shape, lambda g: (0, 0)),
                 pl.BlockSpec(b_eff.shape, lambda g: (0, 0))]

    k_max = max(9 * cin for (cin, _, _) in layer3_cfg)          # im2col scratch depth
    kernel = _build_fused_kernel(H, W, NB, layer3_cfg, dil_index)

    out = pl.pallas_call(
        kernel,
        out_shape=jax.ShapeDtypeStruct((G, cout_f, L), jnp.float32),
        grid_spec=pltpu.PrefetchScalarGridSpec(
            num_scalar_prefetch=0,
            grid=(G,),
            in_specs=in_specs,
            out_specs=pl.BlockSpec((1, cout_f, L), lambda g: (g, 0, 0)),
            scratch_shapes=[pltpu.VMEM((k_max, L), jnp.float32)],
        ),
        compiler_params=pltpu.CompilerParams(
            dimension_semantics=("parallel" if G > 1 else "arbitrary",)),
    )(*flat_inputs)

    # (G, cout_f, NB*HW) -> (N, cout_f, H, W)
    out = out.reshape(G, cout_f, NB, H, W).transpose(0, 2, 1, 3, 4)
    return out.reshape(N, cout_f, H, W).astype(x_nchw.dtype)


# ---------------------------------------------------------------------------
# Parameter construction (deterministic, mimics PyTorch Conv2d default init)
# ---------------------------------------------------------------------------
def make_params(dims, key):
    params = []
    for (cin, cout, k, dil) in _LAYER_CFG(dims):
        key, kw, kb = jax.random.split(key, 3)
        fan_in = cin * k * k
        bound = 1.0 / float(fan_in) ** 0.5
        w = jax.random.uniform(kw, (k, k, cin, cout), jnp.float32, -bound, bound)
        b = jax.random.uniform(kb, (cout,), jnp.float32, -bound, bound)
        params.append((w, b, dil))
    return params


# ---------------------------------------------------------------------------
# Pure-JAX reference (for correctness check)
# ---------------------------------------------------------------------------
def reference_forward(x_nchw, params):
    x = x_nchw
    n_layers = len(params)
    for i, (w, b, dil) in enumerate(params):
        k = w.shape[0]
        pad = dil * (k // 2)
        w_oihw = jnp.transpose(w, (3, 2, 0, 1))
        x = lax.conv_general_dilated(
            x, w_oihw, window_strides=(1, 1),
            padding=((pad, pad), (pad, pad)),
            rhs_dilation=(dil, dil),
            dimension_numbers=("NCHW", "OIHW", "NCHW"),
            precision=lax.Precision.HIGHEST)
        x = x + b.reshape(1, -1, 1, 1)
        if i == n_layers - 1:
            x = jax.nn.sigmoid(x)
    return x


if __name__ == "__main__":
    dims = 4
    key = jax.random.PRNGKey(0)
    key, kx = jax.random.split(key)
    x = jax.random.normal(kx, (2, dims, 16, 16), jnp.float32)   # NCHW like PyTorch

    params = make_params(dims, key)

    out = dilation_cnn_forward(x, params)
    out = jax.block_until_ready(out)
    assert out.shape == (2, 1, 16, 16), out.shape

    ref = jax.block_until_ready(reference_forward(x, params))
    assert jnp.allclose(out, ref, atol=1e-4, rtol=1e-4), (
        float(jnp.max(jnp.abs(out - ref))))

    print("KERNEL_OK")
</pallas_src>

<mosaic_0001>
module attributes {stable_mosaic.version = 11 : i64} {
  func.func @kernel(%arg0: i32, %arg1: memref<1x8x512xf32, #tpu.memory_space<vmem>>, %arg2: memref<27x512xf32, #tpu.memory_space<vmem>>, %arg3: memref<8x72xf32, #tpu.memory_space<vmem>>, %arg4: memref<8x1xf32, #tpu.memory_space<vmem>>, %arg5: memref<8x72xf32, #tpu.memory_space<vmem>>, %arg6: memref<8x1xf32, #tpu.memory_space<vmem>>, %arg7: memref<16x72xf32, #tpu.memory_space<vmem>>, %arg8: memref<16x1xf32, #tpu.memory_space<vmem>>, %arg9: memref<16x144xf32, #tpu.memory_space<vmem>>, %arg10: memref<16x1xf32, #tpu.memory_space<vmem>>, %arg11: memref<32x144xf32, #tpu.memory_space<vmem>>, %arg12: memref<32x1xf32, #tpu.memory_space<vmem>>, %arg13: memref<1x32xf32, #tpu.memory_space<vmem>>, %arg14: memref<1x1xf32, #tpu.memory_space<vmem>>, %arg15: memref<1x1x512xf32, #tpu.memory_space<vmem>>, %arg16: memref<144x512xf32, #tpu.memory_space<vmem>>) attributes {dimension_semantics = [#tpu.dimension_semantics<arbitrary>], iteration_bounds = array<i64: 1>, scalar_prefetch = 0 : i64, scratch_operands = 1 : i64, tpu.core_type = #tpu.core_type<tc>, window_params = [{transform_indices = @transform_0, window_bounds = array<i64: 1, 8, 512>}, {pipeline_mode = #tpu.pipeline_mode<synchronous>, transform_indices = @transform_1, window_bounds = array<i64: 27, 512>}, {pipeline_mode = #tpu.pipeline_mode<synchronous>, transform_indices = @transform_2, window_bounds = array<i64: 8, 72>}, {pipeline_mode = #tpu.pipeline_mode<synchronous>, transform_indices = @transform_3, window_bounds = array<i64: 8, 1>}, {pipeline_mode = #tpu.pipeline_mode<synchronous>, transform_indices = @transform_4, window_bounds = array<i64: 8, 72>}, {pipeline_mode = #tpu.pipeline_mode<synchronous>, transform_indices = @transform_5, window_bounds = array<i64: 8, 1>}, {pipeline_mode = #tpu.pipeline_mode<synchronous>, transform_indices = @transform_6, window_bounds = array<i64: 16, 72>}, {pipeline_mode = #tpu.pipeline_mode<synchronous>, transform_indices = @transform_7, window_bounds = array<i64: 16, 1>}, {pipeline_mode = #tpu.pipeline_mode<synchronous>, transform_indices = @transform_8, window_bounds = array<i64: 16, 144>}, {pipeline_mode = #tpu.pipeline_mode<synchronous>, transform_indices = @transform_9, window_bounds = array<i64: 16, 1>}, {pipeline_mode = #tpu.pipeline_mode<synchronous>, transform_indices = @transform_10, window_bounds = array<i64: 32, 144>}, {pipeline_mode = #tpu.pipeline_mode<synchronous>, transform_indices = @transform_11, window_bounds = array<i64: 32, 1>}, {pipeline_mode = #tpu.pipeline_mode<synchronous>, transform_indices = @transform_12, window_bounds = array<i64: 1, 32>}, {pipeline_mode = #tpu.pipeline_mode<synchronous>, transform_indices = @transform_13, window_bounds = array<i64: 1, 1>}, {transform_indices = @transform_14, window_bounds = array<i64: 1, 1, 512>}]} {
    %c0 = arith.constant 0 : index
    %c0_0 = arith.constant 0 : index
    %c0_1 = arith.constant 0 : index
    %0 = vector.load %arg1[%c0, %c0_0, %c0_1] : memref<1x8x512xf32, #tpu.memory_space<vmem>>, vector<1x8x512xf32>
    %1 = vector.shape_cast %0 : vector<1x8x512xf32> to vector<8x512xf32>
    %c17_i32 = arith.constant 17 : i32
    %2 = tpu.dynamic_rotate %1 by %c17_i32 dim 1 : vector<8x512xf32>, i32 -> vector<8x512xf32>
    %c0_2 = arith.constant 0 : index
    %c0_3 = arith.constant 0 : index
    %3 = vector.load %arg2[%c0_2, %c0_3] : memref<27x512xf32, #tpu.memory_space<vmem>>, vector<1x512xf32>
    %4 = vector.broadcast %3 : vector<1x512xf32> to vector<8x512xf32>
    %5 = arith.mulf %2, %4 : vector<8x512xf32>
    %c0_4 = arith.constant 0 : index
    %c0_5 = arith.constant 0 : index
    %6 = vector.load %arg16[%c0_4, %c0_5] : memref<144x512xf32, #tpu.memory_space<vmem>>, vector<8x512xf32>
    tpu.vector_store %arg16[%c0_4, %c0_5], %5 {strides = array<i32>} : memref<144x512xf32, #tpu.memory_space<vmem>>, vector<8x512xf32>,
    %c16_i32 = arith.constant 16 : i32
    %7 = tpu.dynamic_rotate %1 by %c16_i32 dim 1 : vector<8x512xf32>, i32 -> vector<8x512xf32>
    %c1 = arith.constant 1 : index
    %c0_6 = arith.constant 0 : index
    %8 = vector.load %arg2[%c1, %c0_6] : memref<27x512xf32, #tpu.memory_space<vmem>>, vector<1x512xf32>
    %9 = vector.broadcast %8 : vector<1x512xf32> to vector<8x512xf32>
    %10 = arith.mulf %7, %9 : vector<8x512xf32>
    %c8 = arith.constant 8 : index
    %c0_7 = arith.constant 0 : index
    %11 = vector.load %arg16[%c8, %c0_7] : memref<144x512xf32, #tpu.memory_space<vmem>>, vector<8x512xf32>
    tpu.vector_store %arg16[%c8, %c0_7], %10 {strides = array<i32>} : memref<144x512xf32, #tpu.memory_space<vmem>>, vector<8x512xf32>,
    %c15_i32 = arith.constant 15 : i32
    %12 = tpu.dynamic_rotate %1 by %c15_i32 dim 1 : vector<8x512xf32>, i32 -> vector<8x512xf32>
    %c2 = arith.constant 2 : index
    %c0_8 = arith.constant 0 : index
    %13 = vector.load %arg2[%c2, %c0_8] : memref<27x512xf32, #tpu.memory_space<vmem>>, vector<1x512xf32>
    %14 = vector.broadcast %13 : vector<1x512xf32> to vector<8x512xf32>
    %15 = arith.mulf %12, %14 : vector<8x512xf32>
    %c16 = arith.constant 16 : index
    %c0_9 = arith.constant 0 : index
    %16 = vector.load %arg16[%c16, %c0_9] : memref<144x512xf32, #tpu.memory_space<vmem>>, vector<8x512xf32>
    tpu.vector_store %arg16[%c16, %c0_9], %15 {strides = array<i32>} : memref<144x512xf32, #tpu.memory_space<vmem>>, vector<8x512xf32>,
    %c1_i32 = arith.constant 1 : i32
    %17 = tpu.dynamic_rotate %1 by %c1_i32 dim 1 : vector<8x512xf32>, i32 -> vector<8x512xf32>
    %c3 = arith.constant 3 : index
    %c0_10 = arith.constant 0 : index
    %18 = vector.load %arg2[%c3, %c0_10] : memref<27x512xf32, #tpu.memory_space<vmem>>, vector<1x512xf32>
    %19 = vector.broadcast %18 : vector<1x512xf32> to vector<8x512xf32>
    %20 = arith.mulf %17, %19 : vector<8x512xf32>
    %c24 = arith.constant 24 : index
    %c0_11 = arith.constant 0 : index
    %21 = vector.load %arg16[%c24, %c0_11] : memref<144x512xf32, #tpu.memory_space<vmem>>, vector<8x512xf32>
    tpu.vector_store %arg16[%c24, %c0_11], %20 {strides = array<i32>} : memref<144x512xf32, #tpu.memory_space<vmem>>, vector<8x512xf32>,
    %c32 = arith.constant 32 : index
    %c0_12 = arith.constant 0 : index
    %22 = vector.load %arg16[%c32, %c0_12] : memref<144x512xf32, #tpu.memory_space<vmem>>, vector<8x512xf32>
    tpu.vector_store %arg16[%c32, %c0_12], %1 {strides = array<i32>} : memref<144x512xf32, #tpu.memory_space<vmem>>, vector<8x512xf32>,
    %c511_i32 = arith.constant 511 : i32
    %23 = tpu.dynamic_rotate %1 by %c511_i32 dim 1 : vector<8x512xf32>, i32 -> vector<8x512xf32>
    %c5 = arith.constant 5 : index
    %c0_13 = arith.constant 0 : index
    %24 = vector.load %arg2[%c5, %c0_13] : memref<27x512xf32, #tpu.memory_space<vmem>>, vector<1x512xf32>
    %25 = vector.broadcast %24 : vector<1x512xf32> to vector<8x512xf32>
    %26 = arith.mulf %23, %25 : vector<8x512xf32>
    %c40 = arith.constant 40 : index
    %c0_14 = arith.constant 0 : index
    %27 = vector.load %arg16[%c40, %c0_14] : memref<144x512xf32, #tpu.memory_space<vmem>>, vector<8x512xf32>
    tpu.vector_store %arg16[%c40, %c0_14], %26 {strides = array<i32>} : memref<144x512xf32, #tpu.memory_space<vmem>>, vector<8x512xf32>,
    %c497_i32 = arith.constant 497 : i32
    %28 = tpu.dynamic_rotate %1 by %c497_i32 dim 1 : vector<8x512xf32>, i32 -> vector<8x512xf32>
    %c6 = arith.constant 6 : index
    %c0_15 = arith.constant 0 : index
    %29 = vector.load %arg2[%c6, %c0_15] : memref<27x512xf32, #tpu.memory_space<vmem>>, vector<1x512xf32>
    %30 = vector.broadcast %29 : vector<1x512xf32> to vector<8x512xf32>
    %31 = arith.mulf %28, %30 : vector<8x512xf32>
    %c48 = arith.constant 48 : index
    %c0_16 = arith.constant 0 : index
    %32 = vector.load %arg16[%c48, %c0_16] : memref<144x512xf32, #tpu.memory_space<vmem>>, vector<8x512xf32>
    tpu.vector_store %arg16[%c48, %c0_16], %31 {strides = array<i32>} : memref<144x512xf32, #tpu.memory_space<vmem>>, vector<8x512xf32>,
    %c496_i32 = arith.constant 496 : i32
    %33 = tpu.dynamic_rotate %1 by %c496_i32 dim 1 : vector<8x512xf32>, i32 -> vector<8x512xf32>
    %c7 = arith.constant 7 : index
    %c0_17 = arith.constant 0 : index
    %34 = vector.load %arg2[%c7, %c0_17] : memref<27x512xf32, #tpu.memory_space<vmem>>, vector<1x512xf32>
    %35 = vector.broadcast %34 : vector<1x512xf32> to vector<8x512xf32>
    %36 = arith.mulf %33, %35 : vector<8x512xf32>
    %c56 = arith.constant 56 : index
    %c0_18 = arith.constant 0 : index
    %37 = vector.load %arg16[%c56, %c0_18] : memref<144x512xf32, #tpu.memory_space<vmem>>, vector<8x512xf32>
    tpu.vector_store %arg16[%c56, %c0_18], %36 {strides = array<i32>} : memref<144x512xf32, #tpu.memory_space<vmem>>, vector<8x512xf32>,
    %c495_i32 = arith.constant 495 : i32
    %38 = tpu.dynamic_rotate %1 by %c495_i32 dim 1 : vector<8x512xf32>, i32 -> vector<8x512xf32>
    %c8_19 = arith.constant 8 : index
    %c0_20 = arith.constant 0 : index
    %39 = vector.load %arg2[%c8_19, %c0_20] : memref<27x512xf32, #tpu.memory_space<vmem>>, vector<1x512xf32>
    %40 = vector.broadcast %39 : vector<1x512xf32> to vector<8x512xf32>
    %41 = arith.mulf %38, %40 : vector<8x512xf32>
    %c64 = arith.constant 64 : index
    %c0_21 = arith.constant 0 : index
    %42 = vector.load %arg16[%c64, %c0_21] : memref<144x512xf32, #tpu.memory_space<vmem>>, vector<8x512xf32>
    tpu.vector_store %arg16[%c64, %c0_21], %41 {strides = array<i32>} : memref<144x512xf32, #tpu.memory_space<vmem>>, vector<8x512xf32>,
    %c0_22 = arith.constant 0 : index
    %c0_23 = arith.constant 0 : index
    %43 = vector.load %arg3[%c0_22, %c0_23] : memref<8x72xf32, #tpu.memory_space<vmem>>, vector<8x72xf32>
    %c0_24 = arith.constant 0 : index
    %c0_25 = arith.constant 0 : index
    %44 = vector.load %arg16[%c0_24, %c0_25] : memref<144x512xf32, #tpu.memory_space<vmem>>, vector<72x512xf32>
    %cst = arith.constant dense<0.000000e+00> : vector<8x512xf32>
    %45 = tpu.matmul %43, %44, %cst {dimension_numbers = #tpu.dot_dimension_numbers<[1], [0], [0], [1], [0, 0, 1, 1], [], []>, precision = #tpu.contract_precision<fp32>} : vector<8x72xf32>, vector<72x512xf32>, vector<8x512xf32> -> vector<8x512xf32>
    %c0_26 = arith.constant 0 : index
    %c0_27 = arith.constant 0 : index
    %46 = vector.load %arg4[%c0_26, %c0_27] : memref<8x1xf32, #tpu.memory_space<vmem>>, vector<8x1xf32>
    %47 = vector.broadcast %46 : vector<8x1xf32> to vector<8x512xf32>
    %48 = arith.addf %45, %47 : vector<8x512xf32>
    %c17_i32_28 = arith.constant 17 : i32
    %49 = tpu.dynamic_rotate %48 by %c17_i32_28 dim 1 : vector<8x512xf32>, i32 -> vector<8x512xf32>
    %c0_29 = arith.constant 0 : index
    %c0_30 = arith.constant 0 : index
    %50 = vector.load %arg2[%c0_29, %c0_30] : memref<27x512xf32, #tpu.memory_space<vmem>>, vector<1x512xf32>
    %51 = vector.broadcast %50 : vector<1x512xf32> to vector<8x512xf32>
    %52 = arith.mulf %49, %51 : vector<8x512xf32>
    %c0_31 = arith.constant 0 : index
    %c0_32 = arith.constant 0 : index
    %53 = vector.load %arg16[%c0_31, %c0_32] : memref<144x512xf32, #tpu.memory_space<vmem>>, vector<8x512xf32>
    tpu.vector_store %arg16[%c0_31, %c0_32], %52 {strides = array<i32>} : memref<144x512xf32, #tpu.memory_space<vmem>>, vector<8x512xf32>,
    %c16_i32_33 = arith.constant 16 : i32
    %54 = tpu.dynamic_rotate %48 by %c16_i32_33 dim 1 : vector<8x512xf32>, i32 -> vector<8x512xf32>
    %c1_34 = arith.constant 1 : index
    %c0_35 = arith.constant 0 : index
    %55 = vector.load %arg2[%c1_34, %c0_35] : memref<27x512xf32, #tpu.memory_space<vmem>>, vector<1x512xf32>
    %56 = vector.broadcast %55 : vector<1x512xf32> to vector<8x512xf32>
    %57 = arith.mulf %54, %56 : vector<8x512xf32>
    %c8_36 = arith.constant 8 : index
    %c0_37 = arith.constant 0 : index
    %58 = vector.load %arg16[%c8_36, %c0_37] : memref<144x512xf32, #tpu.memory_space<vmem>>, vector<8x512xf32>
    tpu.vector_store %arg16[%c8_36, %c0_37], %57 {strides = array<i32>} : memref<144x512xf32, #tpu.memory_space<vmem>>, vector<8x512xf32>,
    %c15_i32_38 = arith.constant 15 : i32
    %59 = tpu.dynamic_rotate %48 by %c15_i32_38 dim 1 : vector<8x512xf32>, i32 -> vector<8x512xf32>
    %c2_39 = arith.constant 2 : index
    %c0_40 = arith.constant 0 : index
    %60 = vector.load %arg2[%c2_39, %c0_40] : memref<27x512xf32, #tpu.memory_space<vmem>>, vector<1x512xf32>
    %61 = vector.broadcast %60 : vector<1x512xf32> to vector<8x512xf32>
    %62 = arith.mulf %59, %61 : vector<8x512xf32>
    %c16_41 = arith.constant 16 : index
    %c0_42 = arith.constant 0 : index
    %63 = vector.load %arg16[%c16_41, %c0_42] : memref<144x512xf32, #tpu.memory_space<vmem>>, vector<8x512xf32>
    tpu.vector_store %arg16[%c16_41, %c0_42], %62 {strides = array<i32>} : memref<144x512xf32, #tpu.memory_space<vmem>>, vector<8x512xf32>,
    %c1_i32_43 = arith.constant 1 : i32
    %64 = tpu.dynamic_rotate %48 by %c1_i32_43 dim 1 : vector<8x512xf32>, i32 -> vector<8x512xf32>
    %c3_44 = arith.constant 3 : index
    %c0_45 = arith.constant 0 : index
    %65 = vector.load %arg2[%c3_44, %c0_45] : memref<27x512xf32, #tpu.memory_space<vmem>>, vector<1x512xf32>
    %66 = vector.broadcast %65 : vector<1x512xf32> to vector<8x512xf32>
    %67 = arith.mulf %64, %66 : vector<8x512xf32>
    %c24_46 = arith.constant 24 : index
    %c0_47 = arith.constant 0 : index
    %68 = vector.load %arg16[%c24_46, %c0_47] : memref<144x512xf32, #tpu.memory_space<vmem>>, vector<8x512xf32>
    tpu.vector_store %arg16[%c24_46, %c0_47], %67 {strides = array<i32>} : memref<144x512xf32, #tpu.memory_space<vmem>>, vector<8x512xf32>,
    %c32_48 = arith.constant 32 : index
    %c0_49 = arith.constant 0 : index
    %69 = vector.load %arg16[%c32_48, %c0_49] : memref<144x512xf32, #tpu.memory_space<vmem>>, vector<8x512xf32>
    tpu.vector_store %arg16[%c32_48, %c0_49], %48 {strides = array<i32>} : memref<144x512xf32, #tpu.memory_space<vmem>>, vector<8x512xf32>,
    %c511_i32_50 = arith.constant 511 : i32
    %70 = tpu.dynamic_rotate %48 by %c511_i32_50 dim 1 : vector<8x512xf32>, i32 -> vector<8x512xf32>
    %c5_51 = arith.constant 5 : index
    %c0_52 = arith.constant 0 : index
    %71 = vector.load %arg2[%c5_51, %c0_52] : memref<27x512xf32, #tpu.memory_space<vmem>>, vector<1x512xf32>
    %72 = vector.broadcast %71 : vector<1x512xf32> to vector<8x512xf32>
    %73 = arith.mulf %70, %72 : vector<8x512xf32>
    %c40_53 = arith.constant 40 : index
    %c0_54 = arith.constant 0 : index
    %74 = vector.load %arg16[%c40_53, %c0_54] : memref<144x512xf32, #tpu.memory_space<vmem>>, vector<8x512xf32>
    tpu.vector_store %arg16[%c40_53, %c0_54], %73 {strides = array<i32>} : memref<144x512xf32, #tpu.memory_space<vmem>>, vector<8x512xf32>,
    %c497_i32_55 = arith.constant 497 : i32
    %75 = tpu.dynamic_rotate %48 by %c497_i32_55 dim 1 : vector<8x512xf32>, i32 -> vector<8x512xf32>
    %c6_56 = arith.constant 6 : index
    %c0_57 = arith.constant 0 : index
    %76 = vector.load %arg2[%c6_56, %c0_57] : memref<27x512xf32, #tpu.memory_space<vmem>>, vector<1x512xf32>
    %77 = vector.broadcast %76 : vector<1x512xf32> to vector<8x512xf32>
    %78 = arith.mulf %75, %77 : vector<8x512xf32>
    %c48_58 = arith.constant 48 : index
    %c0_59 = arith.constant 0 : index
    %79 = vector.load %arg16[%c48_58, %c0_59] : memref<144x512xf32, #tpu.memory_space<vmem>>, vector<8x512xf32>
    tpu.vector_store %arg16[%c48_58, %c0_59], %78 {strides = array<i32>} : memref<144x512xf32, #tpu.memory_space<vmem>>, vector<8x512xf32>,
    %c496_i32_60 = arith.constant 496 : i32
    %80 = tpu.dynamic_rotate %48 by %c496_i32_60 dim 1 : vector<8x512xf32>, i32 -> vector<8x512xf32>
    %c7_61 = arith.constant 7 : index
    %c0_62 = arith.constant 0 : index
    %81 = vector.load %arg2[%c7_61, %c0_62] : memref<27x512xf32, #tpu.memory_space<vmem>>, vector<1x512xf32>
    %82 = vector.broadcast %81 : vector<1x512xf32> to vector<8x512xf32>
    %83 = arith.mulf %80, %82 : vector<8x512xf32>
    %c56_63 = arith.constant 56 : index
    %c0_64 = arith.constant 0 : index
    %84 = vector.load %arg16[%c56_63, %c0_64] : memref<144x512xf32, #tpu.memory_space<vmem>>, vector<8x512xf32>
    tpu.vector_store %arg16[%c56_63, %c0_64], %83 {strides = array<i32>} : memref<144x512xf32, #tpu.memory_space<vmem>>, vector<8x512xf32>,
    %c495_i32_65 = arith.constant 495 : i32
    %85 = tpu.dynamic_rotate %48 by %c495_i32_65 dim 1 : vector<8x512xf32>, i32 -> vector<8x512xf32>
    %c8_66 = arith.constant 8 : index
    %c0_67 = arith.constant 0 : index
    %86 = vector.load %arg2[%c8_66, %c0_67] : memref<27x512xf32, #tpu.memory_space<vmem>>, vector<1x512xf32>
    %87 = vector.broadcast %86 : vector<1x512xf32> to vector<8x512xf32>
    %88 = arith.mulf %85, %87 : vector<8x512xf32>
    %c64_68 = arith.constant 64 : index
    %c0_69 = arith.constant 0 : index
    %89 = vector.load %arg16[%c64_68, %c0_69] : memref<144x512xf32, #tpu.memory_space<vmem>>, vector<8x512xf32>
    tpu.vector_store %arg16[%c64_68, %c0_69], %88 {strides = array<i32>} : memref<144x512xf32, #tpu.memory_space<vmem>>, vector<8x512xf32>,
    %c0_70 = arith.constant 0 : index
    %c0_71 = arith.constant 0 : index
    %90 = vector.load %arg5[%c0_70, %c0_71] : memref<8x72xf32, #tpu.memory_space<vmem>>, vector<8x72xf32>
    %c0_72 = arith.constant 0 : index
    %c0_73 = arith.constant 0 : index
    %91 = vector.load %arg16[%c0_72, %c0_73] : memref<144x512xf32, #tpu.memory_space<vmem>>, vector<72x512xf32>
    %cst_74 = arith.constant dense<0.000000e+00> : vector<8x512xf32>
    %92 = tpu.matmul %90, %91, %cst_74 {dimension_numbers = #tpu.dot_dimension_numbers<[1], [0], [0], [1], [0, 0, 1, 1], [], []>, precision = #tpu.contract_precision<fp32>} : vector<8x72xf32>, vector<72x512xf32>, vector<8x512xf32> -> vector<8x512xf32>
    %c0_75 = arith.constant 0 : index
    %c0_76 = arith.constant 0 : index
    %93 = vector.load %arg6[%c0_75, %c0_76] : memref<8x1xf32, #tpu.memory_space<vmem>>, vector<8x1xf32>
    %94 = vector.broadcast %93 : vector<8x1xf32> to vector<8x512xf32>
    %95 = arith.addf %92, %94 : vector<8x512xf32>
    %c34_i32 = arith.constant 34 : i32
    %96 = tpu.dynamic_rotate %95 by %c34_i32 dim 1 : vector<8x512xf32>, i32 -> vector<8x512xf32>
    %c9 = arith.constant 9 : index
    %c0_77 = arith.constant 0 : index
    %97 = vector.load %arg2[%c9, %c0_77] : memref<27x512xf32, #tpu.memory_space<vmem>>, vector<1x512xf32>
    %98 = vector.broadcast %97 : vector<1x512xf32> to vector<8x512xf32>
    %99 = arith.mulf %96, %98 : vector<8x512xf32>
    %c0_78 = arith.constant 0 : index
    %c0_79 = arith.constant 0 : index
    %100 = vector.load %arg16[%c0_78, %c0_79] : memref<144x512xf32, #tpu.memory_space<vmem>>, vector<8x512xf32>
    tpu.vector_store %arg16[%c0_78, %c0_79], %99 {strides = array<i32>} : memref<144x512xf32, #tpu.memory_space<vmem>>, vector<8x512xf32>,
    %c32_i32 = arith.constant 32 : i32
    %101 = tpu.dynamic_rotate %95 by %c32_i32 dim 1 : vector<8x512xf32>, i32 -> vector<8x512xf32>
    %c10 = arith.constant 10 : index
    %c0_80 = arith.constant 0 : index
    %102 = vector.load %arg2[%c10, %c0_80] : memref<27x512xf32, #tpu.memory_space<vmem>>, vector<1x512xf32>
    %103 = vector.broadcast %102 : vector<1x512xf32> to vector<8x512xf32>
    %104 = arith.mulf %101, %103 : vector<8x512xf32>
    %c8_81 = arith.constant 8 : index
    %c0_82 = arith.constant 0 : index
    %105 = vector.load %arg16[%c8_81, %c0_82] : memref<144x512xf32, #tpu.memory_space<vmem>>, vector<8x512xf32>
    tpu.vector_store %arg16[%c8_81, %c0_82], %104 {strides = array<i32>} : memref<144x512xf32, #tpu.memory_space<vmem>>, vector<8x512xf32>,
    %c30_i32 = arith.constant 30 : i32
    %106 = tpu.dynamic_rotate %95 by %c30_i32 dim 1 : vector<8x512xf32>, i32 -> vector<8x512xf32>
    %c11 = arith.constant 11 : index
    %c0_83 = arith.constant 0 : index
    %107 = vector.load %arg2[%c11, %c0_83] : memref<27x512xf32, #tpu.memory_space<vmem>>, vector<1x512xf32>
    %108 = vector.broadcast %107 : vector<1x512xf32> to vector<8x512xf32>
    %109 = arith.mulf %106, %108 : vector<8x512xf32>
    %c16_84 = arith.constant 16 : index
    %c0_85 = arith.constant 0 : index
    %110 = vector.load %arg16[%c16_84, %c0_85] : memref<144x512xf32, #tpu.memory_space<vmem>>, vector<8x512xf32>
    tpu.vector_store %arg16[%c16_84, %c0_85], %109 {strides = array<i32>} : memref<144x512xf32, #tpu.memory_space<vmem>>, vector<8x512xf32>,
    %c2_i32 = arith.constant 2 : i32
    %111 = tpu.dynamic_rotate %95 by %c2_i32 dim 1 : vector<8x512xf32>, i32 -> vector<8x512xf32>
    %c12 = arith.constant 12 : index
    %c0_86 = arith.constant 0 : index
    %112 = vector.load %arg2[%c12, %c0_86] : memref<27x512xf32, #tpu.memory_space<vmem>>, vector<1x512xf32>
    %113 = vector.broadcast %112 : vector<1x512xf32> to vector<8x512xf32>
    %114 = arith.mulf %111, %113 : vector<8x512xf32>
    %c24_87 = arith.constant 24 : index
    %c0_88 = arith.constant 0 : index
    %115 = vector.load %arg16[%c24_87, %c0_88] : memref<144x512xf32, #tpu.memory_space<vmem>>, vector<8x512xf32>
    tpu.vector_store %arg16[%c24_87, %c0_88], %114 {strides = array<i32>} : memref<144x512xf32, #tpu.memory_space<vmem>>, vector<8x512xf32>,
    %c32_89 = arith.constant 32 : index
    %c0_90 = arith.constant 0 : index
    %116 = vector.load %arg16[%c32_89, %c0_90] : memref<144x512xf32, #tpu.memory_space<vmem>>, vector<8x512xf32>
    tpu.vector_store %arg16[%c32_89, %c0_90], %95 {strides = array<i32>} : memref<144x512xf32, #tpu.memory_space<vmem>>, vector<8x512xf32>,
    %c510_i32 = arith.constant 510 : i32
    %117 = tpu.dynamic_rotate %95 by %c510_i32 dim 1 : vector<8x512xf32>, i32 -> vector<8x512xf32>
    %c14 = arith.constant 14 : index
    %c0_91 = arith.constant 0 : index
    %118 = vector.load %arg2[%c14, %c0_91] : memref<27x512xf32, #tpu.memory_space<vmem>>, vector<1x512xf32>
    %119 = vector.broadcast %118 : vector<1x512xf32> to vector<8x512xf32>
    %120 = arith.mulf %117, %119 : vector<8x512xf32>
    %c40_92 = arith.constant 40 : index
    %c0_93 = arith.constant 0 : index
    %121 = vector.load %arg16[%c40_92, %c0_93] : memref<144x512xf32, #tpu.memory_space<vmem>>, vector<8x512xf32>
    tpu.vector_store %arg16[%c40_92, %c0_93], %120 {strides = array<i32>} : memref<144x512xf32, #tpu.memory_space<vmem>>, vector<8x512xf32>,
    %c482_i32 = arith.constant 482 : i32
    %122 = tpu.dynamic_rotate %95 by %c482_i32 dim 1 : vector<8x512xf32>, i32 -> vector<8x512xf32>
    %c15 = arith.constant 15 : index
    %c0_94 = arith.constant 0 : index
    %123 = vector.load %arg2[%c15, %c0_94] : memref<27x512xf32, #tpu.memory_space<vmem>>, vector<1x512xf32>
    %124 = vector.broadcast %123 : vector<1x512xf32> to vector<8x512xf32>
    %125 = arith.mulf %122, %124 : vector<8x512xf32>
    %c48_95 = arith.constant 48 : index
    %c0_96 = arith.constant 0 : index
    %126 = vector.load %arg16[%c48_95, %c0_96] : memref<144x512xf32, #tpu.memory_space<vmem>>, vector<8x512xf32>
    tpu.vector_store %arg16[%c48_95, %c0_96], %125 {strides = array<i32>} : memref<144x512xf32, #tpu.memory_space<vmem>>, vector<8x512xf32>,
    %c480_i32 = arith.constant 480 : i32
    %127 = tpu.dynamic_rotate %95 by %c480_i32 dim 1 : vector<8x512xf32>, i32 -> vector<8x512xf32>
    %c16_97 = arith.constant 16 : index
    %c0_98 = arith.constant 0 : index
    %128 = vector.load %arg2[%c16_97, %c0_98] : memref<27x512xf32, #tpu.memory_space<vmem>>, vector<1x512xf32>
    %129 = vector.broadcast %128 : vector<1x512xf32> to vector<8x512xf32>
    %130 = arith.mulf %127, %129 : vector<8x512xf32>
    %c56_99 = arith.constant 56 : index
    %c0_100 = arith.constant 0 : index
    %131 = vector.load %arg16[%c56_99, %c0_100] : memref<144x512xf32, #tpu.memory_space<vmem>>, vector<8x512xf32>
    tpu.vector_store %arg16[%c56_99, %c0_100], %130 {strides = array<i32>} : memref<144x512xf32, #tpu.memory_space<vmem>>, vector<8x512xf32>,
    %c478_i32 = arith.constant 478 : i32
    %132 = tpu.dynamic_rotate %95 by %c478_i32 dim 1 : vector<8x512xf32>, i32 -> vector<8x512xf32>
    %c17 = arith.constant 17 : index
    %c0_101 = arith.constant 0 : index
    %133 = vector.load %arg2[%c17, %c0_101] : memref<27x512xf32, #tpu.memory_space<vmem>>, vector<1x512xf32>
    %134 = vector.broadcast %133 : vector<1x512xf32> to vector<8x512xf32>
    %135 = arith.mulf %132, %134 : vector<8x512xf32>
    %c64_102 = arith.constant 64 : index
    %c0_103 = arith.constant 0 : index
    %136 = vector.load %arg16[%c64_102, %c0_103] : memref<144x512xf32, #tpu.memory_space<vmem>>, vector<8x512xf32>
    tpu.vector_store %arg16[%c64_102, %c0_103], %135 {strides = array<i32>} : memref<144x512xf32, #tpu.memory_space<vmem>>, vector<8x512xf32>,
    %c0_104 = arith.constant 0 : index
    %c0_105 = arith.constant 0 : index
    %137 = vector.load %arg7[%c0_104, %c0_105] : memref<16x72xf32, #tpu.memory_space<vmem>>, vector<16x72xf32>
    %c0_106 = arith.constant 0 : index
    %c0_107 = arith.constant 0 : index
    %138 = vector.load %arg16[%c0_106, %c0_107] : memref<144x512xf32, #tpu.memory_space<vmem>>, vector<72x512xf32>
    %cst_108 = arith.constant dense<0.000000e+00> : vector<16x512xf32>
    %139 = tpu.matmul %137, %138, %cst_108 {dimension_numbers = #tpu.dot_dimension_numbers<[1], [0], [0], [1], [0, 0, 1, 1], [], []>, precision = #tpu.contract_precision<fp32>} : vector<16x72xf32>, vector<72x512xf32>, vector<16x512xf32> -> vector<16x512xf32>
    %c0_109 = arith.constant 0 : index
    %c0_110 = arith.constant 0 : index
    %140 = vector.load %arg8[%c0_109, %c0_110] : memref<16x1xf32, #tpu.memory_space<vmem>>, vector<16x1xf32>
    %141 = vector.broadcast %140 : vector<16x1xf32> to vector<16x512xf32>
    %142 = arith.addf %139, %141 : vector<16x512xf32>
    %c34_i32_111 = arith.constant 34 : i32
    %143 = tpu.dynamic_rotate %142 by %c34_i32_111 dim 1 : vector<16x512xf32>, i32 -> vector<16x512xf32>
    %c9_112 = arith.constant 9 : index
    %c0_113 = arith.constant 0 : index
    %144 = vector.load %arg2[%c9_112, %c0_113] : memref<27x512xf32, #tpu.memory_space<vmem>>, vector<1x512xf32>
    %145 = vector.broadcast %144 : vector<1x512xf32> to vector<16x512xf32>
    %146 = arith.mulf %143, %145 : vector<16x512xf32>
    %c0_114 = arith.constant 0 : index
    %c0_115 = arith.constant 0 : index
    %147 = vector.load %arg16[%c0_114, %c0_115] : memref<144x512xf32, #tpu.memory_space<vmem>>, vector<16x512xf32>
    tpu.vector_store %arg16[%c0_114, %c0_115], %146 {strides = array<i32>} : memref<144x512xf32, #tpu.memory_space<vmem>>, vector<16x512xf32>,
    %c32_i32_116 = arith.constant 32 : i32
    %148 = tpu.dynamic_rotate %142 by %c32_i32_116 dim 1 : vector<16x512xf32>, i32 -> vector<16x512xf32>
    %c10_117 = arith.constant 10 : index
    %c0_118 = arith.constant 0 : index
    %149 = vector.load %arg2[%c10_117, %c0_118] : memref<27x512xf32, #tpu.memory_space<vmem>>, vector<1x512xf32>
    %150 = vector.broadcast %149 : vector<1x512xf32> to vector<16x512xf32>
    %151 = arith.mulf %148, %150 : vector<16x512xf32>
    %c16_119 = arith.constant 16 : index
    %c0_120 = arith.constant 0 : index
    %152 = vector.load %arg16[%c16_119, %c0_120] : memref<144x512xf32, #tpu.memory_space<vmem>>, vector<16x512xf32>
    tpu.vector_store %arg16[%c16_119, %c0_120], %151 {strides = array<i32>} : memref<144x512xf32, #tpu.memory_space<vmem>>, vector<16x512xf32>,
    %c30_i32_121 = arith.constant 30 : i32
    %153 = tpu.dynamic_rotate %142 by %c30_i32_121 dim 1 : vector<16x512xf32>, i32 -> vector<16x512xf32>
    %c11_122 = arith.constant 11 : index
    %c0_123 = arith.constant 0 : index
    %154 = vector.load %arg2[%c11_122, %c0_123] : memref<27x512xf32, #tpu.memory_space<vmem>>, vector<1x512xf32>
    %155 = vector.broadcast %154 : vector<1x512xf32> to vector<16x512xf32>
    %156 = arith.mulf %153, %155 : vector<16x512xf32>
    %c32_124 = arith.constant 32 : index
    %c0_125 = arith.constant 0 : index
    %157 = vector.load %arg16[%c32_124, %c0_125] : memref<144x512xf32, #tpu.memory_space<vmem>>, vector<16x512xf32>
    tpu.vector_store %arg16[%c32_124, %c0_125], %156 {strides = array<i32>} : memref<144x512xf32, #tpu.memory_space<vmem>>, vector<16x512xf32>,
    %c2_i32_126 = arith.constant 2 : i32
    %158 = tpu.dynamic_rotate %142 by %c2_i32_126 dim 1 : vector<16x512xf32>, i32 -> vector<16x512xf32>
    %c12_127 = arith.constant 12 : index
    %c0_128 = arith.constant 0 : index
    %159 = vector.load %arg2[%c12_127, %c0_128] : memref<27x512xf32, #tpu.memory_space<vmem>>, vector<1x512xf32>
    %160 = vector.broadcast %159 : vector<1x512xf32> to vector<16x512xf32>
    %161 = arith.mulf %158, %160 : vector<16x512xf32>
    %c48_129 = arith.constant 48 : index
    %c0_130 = arith.constant 0 : index
    %162 = vector.load %arg16[%c48_129, %c0_130] : memref<144x512xf32, #tpu.memory_space<vmem>>, vector<16x512xf32>
    tpu.vector_store %arg16[%c48_129, %c0_130], %161 {strides = array<i32>} : memref<144x512xf32, #tpu.memory_space<vmem>>, vector<16x512xf32>,
    %c64_131 = arith.constant 64 : index
    %c0_132 = arith.constant 0 : index
    %163 = vector.load %arg16[%c64_131, %c0_132] : memref<144x512xf32, #tpu.memory_space<vmem>>, vector<16x512xf32>
    tpu.vector_store %arg16[%c64_131, %c0_132], %142 {strides = array<i32>} : memref<144x512xf32, #tpu.memory_space<vmem>>, vector<16x512xf32>,
    %c510_i32_133 = arith.constant 510 : i32
    %164 = tpu.dynamic_rotate %142 by %c510_i32_133 dim 1 : vector<16x512xf32>, i32 -> vector<16x512xf32>
    %c14_134 = arith.constant 14 : index
    %c0_135 = arith.constant 0 : index
    %165 = vector.load %arg2[%c14_134, %c0_135] : memref<27x512xf32, #tpu.memory_space<vmem>>, vector<1x512xf32>
    %166 = vector.broadcast %165 : vector<1x512xf32> to vector<16x512xf32>
    %167 = arith.mulf %164, %166 : vector<16x512xf32>
    %c80 = arith.constant 80 : index
    %c0_136 = arith.constant 0 : index
    %168 = vector.load %arg16[%c80, %c0_136] : memref<144x512xf32, #tpu.memory_space<vmem>>, vector<16x512xf32>
    tpu.vector_store %arg16[%c80, %c0_136], %167 {strides = array<i32>} : memref<144x512xf32, #tpu.memory_space<vmem>>, vector<16x512xf32>,
    %c482_i32_137 = arith.constant 482 : i32
    %169 = tpu.dynamic_rotate %142 by %c482_i32_137 dim 1 : vector<16x512xf32>, i32 -> vector<16x512xf32>
    %c15_138 = arith.constant 15 : index
    %c0_139 = arith.constant 0 : index
    %170 = vector.load %arg2[%c15_138, %c0_139] : memref<27x512xf32, #tpu.memory_space<vmem>>, vector<1x512xf32>
    %171 = vector.broadcast %170 : vector<1x512xf32> to vector<16x512xf32>
    %172 = arith.mulf %169, %171 : vector<16x512xf32>
    %c96 = arith.constant 96 : index
    %c0_140 = arith.constant 0 : index
    %173 = vector.load %arg16[%c96, %c0_140] : memref<144x512xf32, #tpu.memory_space<vmem>>, vector<16x512xf32>
    tpu.vector_store %arg16[%c96, %c0_140], %172 {strides = array<i32>} : memref<144x512xf32, #tpu.memory_space<vmem>>, vector<16x512xf32>,
    %c480_i32_141 = arith.constant 480 : i32
    %174 = tpu.dynamic_rotate %142 by %c480_i32_141 dim 1 : vector<16x512xf32>, i32 -> vector<16x512xf32>
    %c16_142 = arith.constant 16 : index
    %c0_143 = arith.constant 0 : index
    %175 = vector.load %arg2[%c16_142, %c0_143] : memref<27x512xf32, #tpu.memory_space<vmem>>, vector<1x512xf32>
    %176 = vector.broadcast %175 : vector<1x512xf32> to vector<16x512xf32>
    %177 = arith.mulf %174, %176 : vector<16x512xf32>
    %c112 = arith.constant 112 : index
    %c0_144 = arith.constant 0 : index
    %178 = vector.load %arg16[%c112, %c0_144] : memref<144x512xf32, #tpu.memory_space<vmem>>, vector<16x512xf32>
    tpu.vector_store %arg16[%c112, %c0_144], %177 {strides = array<i32>} : memref<144x512xf32, #tpu.memory_space<vmem>>, vector<16x512xf32>,
    %c478_i32_145 = arith.constant 478 : i32
    %179 = tpu.dynamic_rotate %142 by %c478_i32_145 dim 1 : vector<16x512xf32>, i32 -> vector<16x512xf32>
    %c17_146 = arith.constant 17 : index
    %c0_147 = arith.constant 0 : index
    %180 = vector.load %arg2[%c17_146, %c0_147] : memref<27x512xf32, #tpu.memory_space<vmem>>, vector<1x512xf32>
    %181 = vector.broadcast %180 : vector<1x512xf32> to vector<16x512xf32>
    %182 = arith.mulf %179, %181 : vector<16x512xf32>
    %c128 = arith.constant 128 : index
    %c0_148 = arith.constant 0 : index
    %183 = vector.load %arg16[%c128, %c0_148] : memref<144x512xf32, #tpu.memory_space<vmem>>, vector<16x512xf32>
    tpu.vector_store %arg16[%c128, %c0_148], %182 {strides = array<i32>} : memref<144x512xf32, #tpu.memory_space<vmem>>, vector<16x512xf32>,
    %c0_149 = arith.constant 0 : index
    %c0_150 = arith.constant 0 : index
    %184 = vector.load %arg9[%c0_149, %c0_150] : memref<16x144xf32, #tpu.memory_space<vmem>>, vector<16x144xf32>
    %c0_151 = arith.constant 0 : index
    %c0_152 = arith.constant 0 : index
    %185 = vector.load %arg16[%c0_151, %c0_152] : memref<144x512xf32, #tpu.memory_space<vmem>>, vector<144x512xf32>
    %cst_153 = arith.constant dense<0.000000e+00> : vector<16x512xf32>
    %186 = tpu.matmul %184, %185, %cst_153 {dimension_numbers = #tpu.dot_dimension_numbers<[1], [0], [0], [1], [0, 0, 1, 1], [], []>, precision = #tpu.contract_precision<fp32>} : vector<16x144xf32>, vector<144x512xf32>, vector<16x512xf32> -> vector<16x512xf32>
    %c0_154 = arith.constant 0 : index
    %c0_155 = arith.constant 0 : index
    %187 = vector.load %arg10[%c0_154, %c0_155] : memref<16x1xf32, #tpu.memory_space<vmem>>, vector<16x1xf32>
    %188 = vector.broadcast %187 : vector<16x1xf32> to vector<16x512xf32>
    %189 = arith.addf %186, %188 : vector<16x512xf32>
    %c51_i32 = arith.constant 51 : i32
    %190 = tpu.dynamic_rotate %189 by %c51_i32 dim 1 : vector<16x512xf32>, i32 -> vector<16x512xf32>
    %c18 = arith.constant 18 : index
    %c0_156 = arith.constant 0 : index
    %191 = vector.load %arg2[%c18, %c0_156] : memref<27x512xf32, #tpu.memory_space<vmem>>, vector<1x512xf32>
    %192 = vector.broadcast %191 : vector<1x512xf32> to vector<16x512xf32>
    %193 = arith.mulf %190, %192 : vector<16x512xf32>
    %c0_157 = arith.constant 0 : index
    %c0_158 = arith.constant 0 : index
    %194 = vector.load %arg16[%c0_157, %c0_158] : memref<144x512xf32, #tpu.memory_space<vmem>>, vector<16x512xf32>
    tpu.vector_store %arg16[%c0_157, %c0_158], %193 {strides = array<i32>} : memref<144x512xf32, #tpu.memory_space<vmem>>, vector<16x512xf32>,
    %c48_i32 = arith.constant 48 : i32
    %195 = tpu.dynamic_rotate %189 by %c48_i32 dim 1 : vector<16x512xf32>, i32 -> vector<16x512xf32>
    %c19 = arith.constant 19 : index
    %c0_159 = arith.constant 0 : index
    %196 = vector.load %arg2[%c19, %c0_159] : memref<27x512xf32, #tpu.memory_space<vmem>>, vector<1x512xf32>
    %197 = vector.broadcast %196 : vector<1x512xf32> to vector<16x512xf32>
    %198 = arith.mulf %195, %197 : vector<16x512xf32>
    %c16_160 = arith.constant 16 : index
    %c0_161 = arith.constant 0 : index
    %199 = vector.load %arg16[%c16_160, %c0_161] : memref<144x512xf32, #tpu.memory_space<vmem>>, vector<16x512xf32>
    tpu.vector_store %arg16[%c16_160, %c0_161], %198 {strides = array<i32>} : memref<144x512xf32, #tpu.memory_space<vmem>>, vector<16x512xf32>,
    %c45_i32 = arith.constant 45 : i32
    %200 = tpu.dynamic_rotate %189 by %c45_i32 dim 1 : vector<16x512xf32>, i32 -> vector<16x512xf32>
    %c20 = arith.constant 20 : index
    %c0_162 = arith.constant 0 : index
    %201 = vector.load %arg2[%c20, %c0_162] : memref<27x512xf32, #tpu.memory_space<vmem>>, vector<1x512xf32>
    %202 = vector.broadcast %201 : vector<1x512xf32> to vector<16x512xf32>
    %203 = arith.mulf %200, %202 : vector<16x512xf32>
    %c32_163 = arith.constant 32 : index
    %c0_164 = arith.constant 0 : index
    %204 = vector.load %arg16[%c32_163, %c0_164] : memref<144x512xf32, #tpu.memory_space<vmem>>, vector<16x512xf32>
    tpu.vector_store %arg16[%c32_163, %c0_164], %203 {strides = array<i32>} : memref<144x512xf32, #tpu.memory_space<vmem>>, vector<16x512xf32>,
    %c3_i32 = arith.constant 3 : i32
    %205 = tpu.dynamic_rotate %189 by %c3_i32 dim 1 : vector<16x512xf32>, i32 -> vector<16x512xf32>
    %c21 = arith.constant 21 : index
    %c0_165 = arith.constant 0 : index
    %206 = vector.load %arg2[%c21, %c0_165] : memref<27x512xf32, #tpu.memory_space<vmem>>, vector<1x512xf32>
    %207 = vector.broadcast %206 : vector<1x512xf32> to vector<16x512xf32>
    %208 = arith.mulf %205, %207 : vector<16x512xf32>
    %c48_166 = arith.constant 48 : index
    %c0_167 = arith.constant 0 : index
    %209 = vector.load %arg16[%c48_166, %c0_167] : memref<144x512xf32, #tpu.memory_space<vmem>>, vector<16x512xf32>
    tpu.vector_store %arg16[%c48_166, %c0_167], %208 {strides = array<i32>} : memref<144x512xf32, #tpu.memory_space<vmem>>, vector<16x512xf32>,
    %c64_168 = arith.constant 64 : index
    %c0_169 = arith.constant 0 : index
    %210 = vector.load %arg16[%c64_168, %c0_169] : memref<144x512xf32, #tpu.memory_space<vmem>>, vector<16x512xf32>
    tpu.vector_store %arg16[%c64_168, %c0_169], %189 {strides = array<i32>} : memref<144x512xf32, #tpu.memory_space<vmem>>, vector<16x512xf32>,
    %c509_i32 = arith.constant 509 : i32
    %211 = tpu.dynamic_rotate %189 by %c509_i32 dim 1 : vector<16x512xf32>, i32 -> vector<16x512xf32>
    %c23 = arith.constant 23 : index
    %c0_170 = arith.constant 0 : index
    %212 = vector.load %arg2[%c23, %c0_170] : memref<27x512xf32, #tpu.memory_space<vmem>>, vector<1x512xf32>
    %213 = vector.broadcast %212 : vector<1x512xf32> to vector<16x512xf32>
    %214 = arith.mulf %211, %213 : vector<16x512xf32>
    %c80_171 = arith.constant 80 : index
    %c0_172 = arith.constant 0 : index
    %215 = vector.load %arg16[%c80_171, %c0_172] : memref<144x512xf32, #tpu.memory_space<vmem>>, vector<16x512xf32>
    tpu.vector_store %arg16[%c80_171, %c0_172], %214 {strides = array<i32>} : memref<144x512xf32, #tpu.memory_space<vmem>>, vector<16x512xf32>,
    %c467_i32 = arith.constant 467 : i32
    %216 = tpu.dynamic_rotate %189 by %c467_i32 dim 1 : vector<16x512xf32>, i32 -> vector<16x512xf32>
    %c24_173 = arith.constant 24 : index
    %c0_174 = arith.constant 0 : index
    %217 = vector.load %arg2[%c24_173, %c0_174] : memref<27x512xf32, #tpu.memory_space<vmem>>, vector<1x512xf32>
    %218 = vector.broadcast %217 : vector<1x512xf32> to vector<16x512xf32>
    %219 = arith.mulf %216, %218 : vector<16x512xf32>
    %c96_175 = arith.constant 96 : index
    %c0_176 = arith.constant 0 : index
    %220 = vector.load %arg16[%c96_175, %c0_176] : memref<144x512xf32, #tpu.memory_space<vmem>>, vector<16x512xf32>
    tpu.vector_store %arg16[%c96_175, %c0_176], %219 {strides = array<i32>} : memref<144x512xf32, #tpu.memory_space<vmem>>, vector<16x512xf32>,
    %c464_i32 = arith.constant 464 : i32
    %221 = tpu.dynamic_rotate %189 by %c464_i32 dim 1 : vector<16x512xf32>, i32 -> vector<16x512xf32>
    %c25 = arith.constant 25 : index
    %c0_177 = arith.constant 0 : index
    %222 = vector.load %arg2[%c25, %c0_177] : memref<27x512xf32, #tpu.memory_space<vmem>>, vector<1x512xf32>
    %223 = vector.broadcast %222 : vector<1x512xf32> to vector<16x512xf32>
    %224 = arith.mulf %221, %223 : vector<16x512xf32>
    %c112_178 = arith.constant 112 : index
    %c0_179 = arith.constant 0 : index
    %225 = vector.load %arg16[%c112_178, %c0_179] : memref<144x512xf32, #tpu.memory_space<vmem>>, vector<16x512xf32>
    tpu.vector_store %arg16[%c112_178, %c0_179], %224 {strides = array<i32>} : memref<144x512xf32, #tpu.memory_space<vmem>>, vector<16x512xf32>,
    %c461_i32 = arith.constant 461 : i32
    %226 = tpu.dynamic_rotate %189 by %c461_i32 dim 1 : vector<16x512xf32>, i32 -> vector<16x512xf32>
    %c26 = arith.constant 26 : index
    %c0_180 = arith.constant 0 : index
    %227 = vector.load %arg2[%c26, %c0_180] : memref<27x512xf32, #tpu.memory_space<vmem>>, vector<1x512xf32>
    %228 = vector.broadcast %227 : vector<1x512xf32> to vector<16x512xf32>
    %229 = arith.mulf %226, %228 : vector<16x512xf32>
    %c128_181 = arith.constant 128 : index
    %c0_182 = arith.constant 0 : index
    %230 = vector.load %arg16[%c128_181, %c0_182] : memref<144x512xf32, #tpu.memory_space<vmem>>, vector<16x512xf32>
    tpu.vector_store %arg16[%c128_181, %c0_182], %229 {strides = array<i32>} : memref<144x512xf32, #tpu.memory_space<vmem>>, vector<16x512xf32>,
    %c0_183 = arith.constant 0 : index
    %c0_184 = arith.constant 0 : index
    %231 = vector.load %arg11[%c0_183, %c0_184] : memref<32x144xf32, #tpu.memory_space<vmem>>, vector<32x144xf32>
    %c0_185 = arith.constant 0 : index
    %c0_186 = arith.constant 0 : index
    %232 = vector.load %arg16[%c0_185, %c0_186] : memref<144x512xf32, #tpu.memory_space<vmem>>, vector<144x512xf32>
    %cst_187 = arith.constant dense<0.000000e+00> : vector<32x512xf32>
    %233 = tpu.matmul %231, %232, %cst_187 {dimension_numbers = #tpu.dot_dimension_numbers<[1], [0], [0], [1], [0, 0, 1, 1], [], []>, precision = #tpu.contract_precision<fp32>} : vector<32x144xf32>, vector<144x512xf32>, vector<32x512xf32> -> vector<32x512xf32>
    %c0_188 = arith.constant 0 : index
    %c0_189 = arith.constant 0 : index
    %234 = vector.load %arg12[%c0_188, %c0_189] : memref<32x1xf32, #tpu.memory_space<vmem>>, vector<32x1xf32>
    %235 = vector.broadcast %234 : vector<32x1xf32> to vector<32x512xf32>
    %236 = arith.addf %233, %235 : vector<32x512xf32>
    %c0_190 = arith.constant 0 : index
    %c0_191 = arith.constant 0 : index
    %237 = vector.load %arg13[%c0_190, %c0_191] : memref<1x32xf32, #tpu.memory_space<vmem>>, vector<1x32xf32>
    %cst_192 = arith.constant dense<0.000000e+00> : vector<1x512xf32>
    %238 = tpu.matmul %237, %236, %cst_192 {dimension_numbers = #tpu.dot_dimension_numbers<[1], [0], [0], [1], [0, 0, 1, 1], [], []>, precision = #tpu.contract_precision<fp32>} : vector<1x32xf32>, vector<32x512xf32>, vector<1x512xf32> -> vector<1x512xf32>
    %c0_193 = arith.constant 0 : index
    %c0_194 = arith.constant 0 : index
    %239 = vector.load %arg14[%c0_193, %c0_194] : memref<1x1xf32, #tpu.memory_space<vmem>>, vector<1x1xf32>
    %240 = vector.broadcast %239 : vector<1x1xf32> to vector<1x512xf32>
    %241 = arith.addf %238, %240 : vector<1x512xf32>
    %242 = arith.negf %241 : vector<1x512xf32>
    %243 = math.exp %242 : vector<1x512xf32>
    %cst_195 = arith.constant 1.000000e+00 : f32
    %244 = vector.broadcast %cst_195 : f32 to vector<1x512xf32>
    %245 = arith.addf %244, %243 : vector<1x512xf32>
    %246 = arith.divf %244, %245 : vector<1x512xf32>
    %247 = vector.shape_cast %246 : vector<1x512xf32> to vector<1x1x512xf32>
    %c0_196 = arith.constant 0 : index
    %c0_197 = arith.constant 0 : index
    %c0_198 = arith.constant 0 : index
    %248 = vector.load %arg15[%c0_196, %c0_197, %c0_198] : memref<1x1x512xf32, #tpu.memory_space<vmem>>, vector<1x1x512xf32>
    tpu.vector_store %arg15[%c0_196, %c0_197, %c0_198], %247 {strides = array<i32>} : memref<1x1x512xf32, #tpu.memory_space<vmem>>, vector<1x1x512xf32>,
    return
  }
  func.func @transform_0(%arg0: i32) -> (i32, i32, i32) {
    %c0_i32 = arith.constant 0 : i32
    %c0_i32_0 = arith.constant 0 : i32
    %c0_i32_1 = arith.constant 0 : i32
    return %arg0, %c0_i32, %c0_i32_0 : i32, i32, i32
  }
  func.func @transform_1(%arg0: i32) -> (i32, i32) {
    %c0_i32 = arith.constant 0 : i32
    %c0_i32_0 = arith.constant 0 : i32
    %c0_i32_1 = arith.constant 0 : i32
    return %c0_i32, %c0_i32_0 : i32, i32
  }
  func.func @transform_2(%arg0: i32) -> (i32, i32) {
    %c0_i32 = arith.constant 0 : i32
    %c0_i32_0 = arith.constant 0 : i32
    %c0_i32_1 = arith.constant 0 : i32
    return %c0_i32, %c0_i32_0 : i32, i32
  }
  func.func @transform_3(%arg0: i32) -> (i32, i32) {
    %c0_i32 = arith.constant 0 : i32
    %c0_i32_0 = arith.constant 0 : i32
    %c0_i32_1 = arith.constant 0 : i32
    return %c0_i32, %c0_i32_0 : i32, i32
  }
  func.func @transform_4(%arg0: i32) -> (i32, i32) {
    %c0_i32 = arith.constant 0 : i32
    %c0_i32_0 = arith.constant 0 : i32
    %c0_i32_1 = arith.constant 0 : i32
    return %c0_i32, %c0_i32_0 : i32, i32
  }
  func.func @transform_5(%arg0: i32) -> (i32, i32) {
    %c0_i32 = arith.constant 0 : i32
    %c0_i32_0 = arith.constant 0 : i32
    %c0_i32_1 = arith.constant 0 : i32
    return %c0_i32, %c0_i32_0 : i32, i32
  }
  func.func @transform_6(%arg0: i32) -> (i32, i32) {
    %c0_i32 = arith.constant 0 : i32
    %c0_i32_0 = arith.constant 0 : i32
    %c0_i32_1 = arith.constant 0 : i32
    return %c0_i32, %c0_i32_0 : i32, i32
  }
  func.func @transform_7(%arg0: i32) -> (i32, i32) {
    %c0_i32 = arith.constant 0 : i32
    %c0_i32_0 = arith.constant 0 : i32
    %c0_i32_1 = arith.constant 0 : i32
    return %c0_i32, %c0_i32_0 : i32, i32
  }
  func.func @transform_8(%arg0: i32) -> (i32, i32) {
    %c0_i32 = arith.constant 0 : i32
    %c0_i32_0 = arith.constant 0 : i32
    %c0_i32_1 = arith.constant 0 : i32
    return %c0_i32, %c0_i32_0 : i32, i32
  }
  func.func @transform_9(%arg0: i32) -> (i32, i32) {
    %c0_i32 = arith.constant 0 : i32
    %c0_i32_0 = arith.constant 0 : i32
    %c0_i32_1 = arith.constant 0 : i32
    return %c0_i32, %c0_i32_0 : i32, i32
  }
  func.func @transform_10(%arg0: i32) -> (i32, i32) {
    %c0_i32 = arith.constant 0 : i32
    %c0_i32_0 = arith.constant 0 : i32
    %c0_i32_1 = arith.constant 0 : i32
    return %c0_i32, %c0_i32_0 : i32, i32
  }
  func.func @transform_11(%arg0: i32) -> (i32, i32) {
    %c0_i32 = arith.constant 0 : i32
    %c0_i32_0 = arith.constant 0 : i32
    %c0_i32_1 = arith.constant 0 : i32
    return %c0_i32, %c0_i32_0 : i32, i32
  }
  func.func @transform_12(%arg0: i32) -> (i32, i32) {
    %c0_i32 = arith.constant 0 : i32
    %c0_i32_0 = arith.constant 0 : i32
    %c0_i32_1 = arith.constant 0 : i32
    return %c0_i32, %c0_i32_0 : i32, i32
  }
  func.func @transform_13(%arg0: i32) -> (i32, i32) {
    %c0_i32 = arith.constant 0 : i32
    %c0_i32_0 = arith.constant 0 : i32
    %c0_i32_1 = arith.constant 0 : i32
    return %c0_i32, %c0_i32_0 : i32, i32
  }
  func.func @transform_14(%arg0: i32) -> (i32, i32, i32) {
    %c0_i32 = arith.constant 0 : i32
    %c0_i32_0 = arith.constant 0 : i32
    %c0_i32_1 = arith.constant 0 : i32
    return %arg0, %c0_i32, %c0_i32_0 : i32, i32, i32
  }
}

</mosaic_0001>

<llo_original>
// kernel: tpu_custom_call.1
$region0: #{tpu_custom_call.1}
  #allocation0 [shape = 'u32[]', space=smem, size = 0x4, offset = 0x4, fixed_abs, tag = 'smem constant byte address 0x4 - core index']
  #allocation1 [shape = 'u32[72,128]{1,0:T(1,128)}', space=vmem, size = 0x9000, scoped, tag = 'internal scratch']
  #allocation2 [shape = 'f32[144,512]{1,0:T(8,128)}', space=vmem, size = 0x48000, scoped, tag = 'scratch operand']
  #allocation3 [shape = 'f32[1,1]{1,0:T(1,128)S(1)}', space=vmem, size = 0x200, scoped, tag = 'scoped memory for tpu_custom_call.1']
  %s0 = inlined_call_operand.vmem [shape: f32[1,8,512], index: 0, kind: input, shape index: {}]
  %s1 = inlined_call_operand.hbm [shape: f32[27,512], index: 1, kind: input, shape index: {}]
  %s2 = inlined_call_operand.hbm [shape: f32[8,72], index: 2, kind: input, shape index: {}]
  %s3 = inlined_call_operand.vmem [shape: f32[8,1], index: 3, kind: input, shape index: {}]
  %s4 = inlined_call_operand.hbm [shape: f32[8,72], index: 4, kind: input, shape index: {}]
  %s5 = inlined_call_operand.vmem [shape: f32[8,1], index: 5, kind: input, shape index: {}]
  %s6 = inlined_call_operand.vmem [shape: f32[16,72], index: 6, kind: input, shape index: {}]
  %s7 = inlined_call_operand.vmem [shape: f32[16,1], index: 7, kind: input, shape index: {}]
  %s8 = inlined_call_operand.vmem [shape: f32[16,144], index: 8, kind: input, shape index: {}]
  %s9 = inlined_call_operand.vmem [shape: f32[16,1], index: 9, kind: input, shape index: {}]
  %s10 = inlined_call_operand.hbm [shape: f32[32,144], index: 10, kind: input, shape index: {}]
  %s11 = inlined_call_operand.vmem [shape: f32[32,1], index: 11, kind: input, shape index: {}]
  %s12 = inlined_call_operand.vmem [shape: f32[1,32], index: 12, kind: input, shape index: {}]
  %s13 = inlined_call_operand.<no memory space> [shape: f32[1,1], index: 13, kind: input, shape index: {}]
  %s14 = inlined_call_operand.hbm [shape: f32[1,1,512], index: 14, kind: output, shape index: {}]
  %s15 = sld [smem:[#allocation0]]
  $region82: #{tpu_custom_call.1} parent=0
    _
  %s17 = ssub.s32 1, %s15
  %s18 = scalar_select 0, %s17, %s15
  %v19 = vstv %s13
  %20 = vst [vmem:[#allocation3] sm:$0x1] %v19
  $region1: #{tpu_custom_call.1} parent=0
    #allocation4 [shape = 'u8[65536]{0}', space=vmem, size = 0x10000, scoped, tag = 'input window, operand 1, single buffered']
    #allocation5 [shape = 's32[1]{0}', space=sflag, size = 0x4, scoped, tag = 'scoped memory for tpu_custom_call.1']
    #allocation6 [shape = 's32[1]{0}', space=sflag, size = 0x4, scoped, tag = 'scoped memory for tpu_custom_call.1']
    #allocation7 [shape = 'u8[4096]{0}', space=vmem, size = 0x1000, scoped, tag = 'input window, operand 2, single buffered']
    #allocation8 [shape = 's32[1]{0}', space=sflag, size = 0x4, scoped, tag = 'scoped memory for tpu_custom_call.1']
    #allocation9 [shape = 'u8[4096]{0}', space=vmem, size = 0x1000, scoped, tag = 'input window, operand 4, single buffered']
    #allocation10 [shape = 'u8[32768]{0}', space=vmem, size = 0x8000, scoped, tag = 'input window, operand 10, single buffered']
    #allocation11 [shape = 's32[1]{0}', space=sflag, size = 0x4, scoped, tag = 'scoped memory for tpu_custom_call.1']
    #allocation12 [shape = 'u8[2048]{0}', space=vmem, size = 0x800, scoped, tag = 'output window, operand 0, single buffered']
    %21 = vsyncpa [#allocation5], 0
    %22 = vsyncpa [#allocation8], 0
    %23 = vsyncpa [#allocation11], 0
    %24 = vsyncpa [#allocation6], 0
    // Predicated region
    $region2: #{tpu_custom_call.1} parent=1 // pred_check
      _
    $region3: #{tpu_custom_call.1} parent=1 // pred_check_branch
      %26 = sbr.rel (0) target = $region5
    $region4: #{tpu_custom_call.1} parent=1 // pred_region
      _
    $region5: #{tpu_custom_call.1} parent=1 // pred_fallthru
      _
    // Predicated region
    $region6: #{tpu_custom_call.1} parent=1 // pred_check
      _
    $region7: #{tpu_custom_call.1} parent=1 // pred_check_branch
      %28 = sbr.rel (0) target = $region9
    $region8: #{tpu_custom_call.1} parent=1 // pred_region
      %30 = vsyncadd [#allocation5], 0
      %s31 = sshll.u32 %s1, 4
      %s32 = int_to_ptr.hbm [resolvable:$true] %s31
      %s33 = sshll.u32 [#allocation4], 4
      %s34 = int_to_ptr.vmem [resolvable:$true] %s33
      %39 = dma.hbm_to_vmem [thread:$0]  %s32, 2048, %s34, [#allocation5], 512, 512, 32
    $region9: #{tpu_custom_call.1} parent=1 // pred_fallthru
      _
    // Predicated region
    $region10: #{tpu_custom_call.1} parent=1 // pred_check
      _
    $region11: #{tpu_custom_call.1} parent=1 // pred_check_branch
      %41 = sbr.rel (0) target = $region13
    $region12: #{tpu_custom_call.1} parent=1 // pred_region
      %43 = vsyncadd [#allocation8], 0
      %s45 = sshll.u32 %s2, 4
      %s46 = int_to_ptr.hbm [resolvable:$true] %s45
      %s47 = sshll.u32 [#allocation7], 4
      %s48 = int_to_ptr.vmem [resolvable:$true] %s47
      %50 = dma.hbm_to_vmem [thread:$0]  %s46, 128, %s48, [#allocation8]
    $region13: #{tpu_custom_call.1} parent=1 // pred_fallthru
      _
    // Predicated region
    $region14: #{tpu_custom_call.1} parent=1 // pred_check
      _
    $region15: #{tpu_custom_call.1} parent=1 // pred_check_branch
      %52 = sbr.rel (0) target = $region17
    $region16: #{tpu_custom_call.1} parent=1 // pred_region
      _
    $region17: #{tpu_custom_call.1} parent=1 // pred_fallthru
      _
    // Predicated region
    $region18: #{tpu_custom_call.1} parent=1 // pred_check
      _
    $region19: #{tpu_custom_call.1} parent=1 // pred_check_branch
      %54 = sbr.rel (0) target = $region21
    $region20: #{tpu_custom_call.1} parent=1 // pred_region
      %56 = vsyncadd [#allocation8], 0
      %s58 = sshll.u32 %s4, 4
      %s59 = int_to_ptr.hbm [resolvable:$true] %s58
      %s60 = sshll.u32 [#allocation9], 4
      %s61 = int_to_ptr.vmem [resolvable:$true] %s60
      %63 = dma.hbm_to_vmem [thread:$0]  %s59, 128, %s61, [#allocation8]
    $region21: #{tpu_custom_call.1} parent=1 // pred_fallthru
      _
    // Predicated region
    $region22: #{tpu_custom_call.1} parent=1 // pred_check
      _
    $region23: #{tpu_custom_call.1} parent=1 // pred_check_branch
      %65 = sbr.rel (0) target = $region25
    $region24: #{tpu_custom_call.1} parent=1 // pred_region
      _
    $region25: #{tpu_custom_call.1} parent=1 // pred_fallthru
      _
    // Predicated region
    $region26: #{tpu_custom_call.1} parent=1 // pred_check
      _
    $region27: #{tpu_custom_call.1} parent=1 // pred_check_branch
      %67 = sbr.rel (0) target = $region29
    $region28: #{tpu_custom_call.1} parent=1 // pred_region
      _
    $region29: #{tpu_custom_call.1} parent=1 // pred_fallthru
      _
    // Predicated region
    $region30: #{tpu_custom_call.1} parent=1 // pred_check
      _
    $region31: #{tpu_custom_call.1} parent=1 // pred_check_branch
      %69 = sbr.rel (0) target = $region33
    $region32: #{tpu_custom_call.1} parent=1 // pred_region
      _
    $region33: #{tpu_custom_call.1} parent=1 // pred_fallthru
      _
    // Predicated region
    $region34: #{tpu_custom_call.1} parent=1 // pred_check
      _
    $region35: #{tpu_custom_call.1} parent=1 // pred_check_branch
      %71 = sbr.rel (0) target = $region37
    $region36: #{tpu_custom_call.1} parent=1 // pred_region
      _
    $region37: #{tpu_custom_call.1} parent=1 // pred_fallthru
      _
    // Predicated region
    $region38: #{tpu_custom_call.1} parent=1 // pred_check
      _
    $region39: #{tpu_custom_call.1} parent=1 // pred_check_branch
      %73 = sbr.rel (0) target = $region41
    $region40: #{tpu_custom_call.1} parent=1 // pred_region
      _
    $region41: #{tpu_custom_call.1} parent=1 // pred_fallthru
      _
    // Predicated region
    $region42: #{tpu_custom_call.1} parent=1 // pred_check
      _
    $region43: #{tpu_custom_call.1} parent=1 // pred_check_branch
      %75 = sbr.rel (0) target = $region45
    $region44: #{tpu_custom_call.1} parent=1 // pred_region
      %77 = vsyncadd [#allocation11], 0
      %s78 = sshll.u32 %s10, 4
      %s79 = int_to_ptr.hbm [resolvable:$true] %s78
      %s80 = sshll.u32 [#allocation10], 4
      %s81 = int_to_ptr.vmem [resolvable:$true] %s80
      %86 = dma.hbm_to_vmem [thread:$0]  %s79, 1024, %s81, [#allocation11], 256, 256, 16
    $region45: #{tpu_custom_call.1} parent=1 // pred_fallthru
      _
    // Predicated region
    $region46: #{tpu_custom_call.1} parent=1 // pred_check
      _
    $region47: #{tpu_custom_call.1} parent=1 // pred_check_branch
      %88 = sbr.rel (0) target = $region49
    $region48: #{tpu_custom_call.1} parent=1 // pred_region
      _
    $region49: #{tpu_custom_call.1} parent=1 // pred_fallthru
      _
    // Predicated region
    $region50: #{tpu_custom_call.1} parent=1 // pred_check
      _
    $region51: #{tpu_custom_call.1} parent=1 // pred_check_branch
      %90 = sbr.rel (0) target = $region53
    $region52: #{tpu_custom_call.1} parent=1 // pred_region
      _
    $region53: #{tpu_custom_call.1} parent=1 // pred_fallthru
      _
    // Predicated region
    $region54: #{tpu_custom_call.1} parent=1 // pred_check
      _
    $region55: #{tpu_custom_call.1} parent=1 // pred_check_branch
      %92 = sbr.rel (0) target = $region57
    $region56: #{tpu_custom_call.1} parent=1 // pred_region
      _
    $region57: #{tpu_custom_call.1} parent=1 // pred_fallthru
      _
    // Predicated region
    $region58: #{tpu_custom_call.1} parent=1 // pred_check
      _
    $region59: #{tpu_custom_call.1} parent=1 // pred_check_branch
      %94 = sbr.rel (0) target = $region61
    $region60: #{tpu_custom_call.1} parent=1 // pred_region
      %96 = dma.done [#allocation5], 2048
    $region61: #{tpu_custom_call.1} parent=1 // pred_fallthru
      _
    // Predicated region
    $region62: #{tpu_custom_call.1} parent=1 // pred_check
      _
    $region63: #{tpu_custom_call.1} parent=1 // pred_check_branch
      %98 = sbr.rel (0) target = $region65
    $region64: #{tpu_custom_call.1} parent=1 // pred_region
      %100 = dma.done [#allocation8], 128
    $region65: #{tpu_custom_call.1} parent=1 // pred_fallthru
      _
    // Predicated region
    $region66: #{tpu_custom_call.1} parent=1 // pred_check
      _
    $region67: #{tpu_custom_call.1} parent=1 // pred_check_branch
      %102 = sbr.rel (0) target = $region69
    $region68: #{tpu_custom_call.1} parent=1 // pred_region
      %104 = dma.done [#allocation8], 128
    $region69: #{tpu_custom_call.1} parent=1 // pred_fallthru
      _
    // Predicated region
    $region70: #{tpu_custom_call.1} parent=1 // pred_check
      _
    $region71: #{tpu_custom_call.1} parent=1 // pred_check_branch
      %106 = sbr.rel (0) target = $region73
    $region72: #{tpu_custom_call.1} parent=1 // pred_region
      %108 = dma.done [#allocation11], 1024
    $region73: #{tpu_custom_call.1} parent=1 // pred_fallthru
      _
    %v109 = vld [vmem:[%s0] sm:$0xff]
    %v110 = vld [vmem:[%s0 + $0x8] sm:$0xff]
    %v111 = vld [vmem:[%s0 + $0x10] sm:$0xff]
    %v112 = vld [vmem:[%s0 + $0x18] sm:$0xff]
    %113 = vrot.lane.b32.xlu0 %v109, 17
    %v114 = vpop.permute.xlu0 %113
    %115 = vrot.lane.b32.xlu0 %v110, 17
    %v116 = vpop.permute.xlu0 %115
    %117 = vrot.lane.b32.xlu0 %v111, 17
    %v118 = vpop.permute.xlu0 %117
    %119 = vrot.lane.b32.xlu0 %v112, 17
    %v120 = vpop.permute.xlu0 %119
    %v121 = vlaneseq
    %v122 = vand.u32 %v121, 127
    %vm123 = vcmp.lt.s32.totalorder %v122, 17
    %v124 = vsel %vm123, %v118, %v120
    %v125 = vsel %vm123, %v116, %v118
    %v126 = vsel %vm123, %v114, %v116
    %v127 = vsel %vm123, %v120, %v114
    %v128 = vld [vmem:[#allocation4] ss:$8 sm:$0xf]
    %v130 = vperm.slane %v128, 0
    %v131 = vperm.slane %v128, 1
    %v132 = vperm.slane %v128, 2
    %v133 = vperm.slane %v128, 3
    %v138 = vmul.f32 %v127, %v130
    %v139 = vmul.f32 %v126, %v131
    %v140 = vmul.f32 %v125, %v132
    %v141 = vmul.f32 %v124, %v133
    %142 = vst [vmem:[#allocation2] sm:$0xff] %v138
    %143 = vst [vmem:[#allocation2 + $0x8] sm:$0xff] %v139
    %144 = vst [vmem:[#allocation2 + $0x10] sm:$0xff] %v140
    %145 = vst [vmem:[#allocation2 + $0x18] sm:$0xff] %v141
    %146 = vrot.lane.b32.xlu0 %v109, 16
    %v147 = vpop.permute.xlu0 %146
    %148 = vrot.lane.b32.xlu0 %v110, 16
    %v149 = vpop.permute.xlu0 %148
    %150 = vrot.lane.b32.xlu0 %v111, 16
    %v151 = vpop.permute.xlu0 %150
    %152 = vrot.lane.b32.xlu0 %v112, 16
    %v153 = vpop.permute.xlu0 %152
    %vm154 = vcmp.lt.s32.totalorder %v122, 16
    %v155 = vsel %vm154, %v151, %v153
    %v156 = vsel %vm154, %v149, %v151
    %v157 = vsel %vm154, %v147, %v149
    %v158 = vsel %vm154, %v153, %v147
    %s159 = scalar_lea.vmem [#allocation4], 1
    %v160 = vld [vmem:[%s159] ss:$8 sm:$0xf]
    %v162 = vperm.slane %v160, 0
    %v163 = vperm.slane %v160, 1
    %v164 = vperm.slane %v160, 2
    %v165 = vperm.slane %v160, 3
    %v170 = vmul.f32 %v158, %v162
    %v171 = vmul.f32 %v157, %v163
    %v172 = vmul.f32 %v156, %v164
    %v173 = vmul.f32 %v155, %v165
    %174 = vst [vmem:[#allocation2 + $0x20] sm:$0xff] %v170
    %175 = vst [vmem:[#allocation2 + $0x28] sm:$0xff] %v171
    %176 = vst [vmem:[#allocation2 + $0x30] sm:$0xff] %v172
    %177 = vst [vmem:[#allocation2 + $0x38] sm:$0xff] %v173
    %178 = vrot.lane.b32.xlu0 %v109, 15
    %v179 = vpop.permute.xlu0 %178
    %180 = vrot.lane.b32.xlu0 %v110, 15
    %v181 = vpop.permute.xlu0 %180
    %182 = vrot.lane.b32.xlu0 %v111, 15
    %v183 = vpop.permute.xlu0 %182
    %184 = vrot.lane.b32.xlu0 %v112, 15
    %v185 = vpop.permute.xlu0 %184
    %vm186 = vcmp.lt.s32.totalorder %v122, 15
    %v187 = vsel %vm186, %v183, %v185
    %v188 = vsel %vm186, %v181, %v183
    %v189 = vsel %vm186, %v179, %v181
    %v190 = vsel %vm186, %v185, %v179
    %s191 = scalar_lea.vmem [#allocation4], 2
    %v192 = vld [vmem:[%s191] ss:$8 sm:$0xf]
    %v194 = vperm.slane %v192, 0
    %v195 = vperm.slane %v192, 1
    %v196 = vperm.slane %v192, 2
    %v197 = vperm.slane %v192, 3
    %v202 = vmul.f32 %v190, %v194
    %v203 = vmul.f32 %v189, %v195
    %v204 = vmul.f32 %v188, %v196
    %v205 = vmul.f32 %v187, %v197
    %206 = vst [vmem:[#allocation2 + $0x40] sm:$0xff] %v202
    %207 = vst [vmem:[#allocation2 + $0x48] sm:$0xff] %v203
    %208 = vst [vmem:[#allocation2 + $0x50] sm:$0xff] %v204
    %209 = vst [vmem:[#allocation2 + $0x58] sm:$0xff] %v205
    %210 = vrot.lane.b32.xlu0 %v109, 1
    %v211 = vpop.permute.xlu0 %210
    %212 = vrot.lane.b32.xlu0 %v110, 1
    %v213 = vpop.permute.xlu0 %212
    %214 = vrot.lane.b32.xlu0 %v111, 1
    %v215 = vpop.permute.xlu0 %214
    %216 = vrot.lane.b32.xlu0 %v112, 1
    %v217 = vpop.permute.xlu0 %216
    %vm218 = vcmp.lt.s32.totalorder %v122, 1
    %v219 = vsel %vm218, %v215, %v217
    %v220 = vsel %vm218, %v213, %v215
    %v221 = vsel %vm218, %v211, %v213
    %v222 = vsel %vm218, %v217, %v211
    %s223 = scalar_lea.vmem [#allocation4], 3
    %v224 = vld [vmem:[%s223] ss:$8 sm:$0xf]
    %v226 = vperm.slane %v224, 0
    %v227 = vperm.slane %v224, 1
    %v228 = vperm.slane %v224, 2
    %v229 = vperm.slane %v224, 3
    %v234 = vmul.f32 %v222, %v226
    %v235 = vmul.f32 %v221, %v227
    %v236 = vmul.f32 %v220, %v228
    %v237 = vmul.f32 %v219, %v229
    %238 = vst [vmem:[#allocation2 + $0x60] sm:$0xff] %v234
    %239 = vst [vmem:[#allocation2 + $0x68] sm:$0xff] %v235
    %240 = vst [vmem:[#allocation2 + $0x70] sm:$0xff] %v236
    %241 = vst [vmem:[#allocation2 + $0x78] sm:$0xff] %v237
    %242 = vst [vmem:[#allocation2 + $0x80] sm:$0xff] %v109
    %243 = vst [vmem:[#allocation2 + $0x88] sm:$0xff] %v110
    %244 = vst [vmem:[#allocation2 + $0x90] sm:$0xff] %v111
    %245 = vst [vmem:[#allocation2 + $0x98] sm:$0xff] %v112
    %246 = vrot.lane.b32.xlu0 %v109, 127
    %v247 = vpop.permute.xlu0 %246
    %248 = vrot.lane.b32.xlu0 %v110, 127
    %v249 = vpop.permute.xlu0 %248
    %250 = vrot.lane.b32.xlu0 %v111, 127
    %v251 = vpop.permute.xlu0 %250
    %252 = vrot.lane.b32.xlu0 %v112, 127
    %v253 = vpop.permute.xlu0 %252
    %vm254 = vcmp.lt.s32.totalorder %v122, 127
    %v255 = vsel %vm254, %v251, %v253
    %v256 = vsel %vm254, %v249, %v251
    %v257 = vsel %vm254, %v247, %v249
    %v258 = vsel %vm254, %v253, %v247
    %s259 = scalar_lea.vmem [#allocation4], 5
    %v260 = vld [vmem:[%s259] ss:$8 sm:$0xf]
    %v262 = vperm.slane %v260, 0
    %v263 = vperm.slane %v260, 1
    %v264 = vperm.slane %v260, 2
    %v265 = vperm.slane %v260, 3
    %v270 = vmul.f32 %v257, %v262
    %v271 = vmul.f32 %v256, %v263
    %v272 = vmul.f32 %v255, %v264
    %v273 = vmul.f32 %v258, %v265
    %274 = vst [vmem:[#allocation2 + $0xa0] sm:$0xff] %v270
    %275 = vst [vmem:[#allocation2 + $0xa8] sm:$0xff] %v271
    %276 = vst [vmem:[#allocation2 + $0xb0] sm:$0xff] %v272
    %277 = vst [vmem:[#allocation2 + $0xb8] sm:$0xff] %v273
    %278 = vrot.lane.b32.xlu0 %v109, 113
    %v279 = vpop.permute.xlu0 %278
    %280 = vrot.lane.b32.xlu0 %v110, 113
    %v281 = vpop.permute.xlu0 %280
    %282 = vrot.lane.b32.xlu0 %v111, 113
    %v283 = vpop.permute.xlu0 %282
    %284 = vrot.lane.b32.xlu0 %v112, 113
    %v285 = vpop.permute.xlu0 %284
    %vm286 = vcmp.lt.s32.totalorder %v122, 113
    %v287 = vsel %vm286, %v283, %v285
    %v288 = vsel %vm286, %v281, %v283
    %v289 = vsel %vm286, %v279, %v281
    %v290 = vsel %vm286, %v285, %v279
    %s291 = scalar_lea.vmem [#allocation4], 6
    %v292 = vld [vmem:[%s291] ss:$8 sm:$0xf]
    %v294 = vperm.slane %v292, 0
    %v295 = vperm.slane %v292, 1
    %v296 = vperm.slane %v292, 2
    %v297 = vperm.slane %v292, 3
    %v302 = vmul.f32 %v289, %v294
    %v303 = vmul.f32 %v288, %v295
    %v304 = vmul.f32 %v287, %v296
    %v305 = vmul.f32 %v290, %v297
    %306 = vst [vmem:[#allocation2 + $0xc0] sm:$0xff] %v302
    %307 = vst [vmem:[#allocation2 + $0xc8] sm:$0xff] %v303
    %308 = vst [vmem:[#allocation2 + $0xd0] sm:$0xff] %v304
    %309 = vst [vmem:[#allocation2 + $0xd8] sm:$0xff] %v305
    %310 = vrot.lane.b32.xlu0 %v109, 112
    %v311 = vpop.permute.xlu0 %310
    %312 = vrot.lane.b32.xlu0 %v110, 112
    %v313 = vpop.permute.xlu0 %312
    %314 = vrot.lane.b32.xlu0 %v111, 112
    %v315 = vpop.permute.xlu0 %314
    %316 = vrot.lane.b32.xlu0 %v112, 112
    %v317 = vpop.permute.xlu0 %316
    %vm318 = vcmp.lt.s32.totalorder %v122, 112
    %v319 = vsel %vm318, %v315, %v317
    %v320 = vsel %vm318, %v313, %v315
    %v321 = vsel %vm318, %v311, %v313
    %v322 = vsel %vm318, %v317, %v311
    %s323 = scalar_lea.vmem [#allocation4], 7
    %v324 = vld [vmem:[%s323] ss:$8 sm:$0xf]
    %v326 = vperm.slane %v324, 0
    %v327 = vperm.slane %v324, 1
    %v328 = vperm.slane %v324, 2
    %v329 = vperm.slane %v324, 3
    %v334 = vmul.f32 %v321, %v326
    %v335 = vmul.f32 %v320, %v327
    %v336 = vmul.f32 %v319, %v328
    %v337 = vmul.f32 %v322, %v329
    %338 = vst [vmem:[#allocation2 + $0xe0] sm:$0xff] %v334
    %339 = vst [vmem:[#allocation2 + $0xe8] sm:$0xff] %v335
    %340 = vst [vmem:[#allocation2 + $0xf0] sm:$0xff] %v336
    %341 = vst [vmem:[#allocation2 + $0xf8] sm:$0xff] %v337
    %342 = vrot.lane.b32.xlu0 %v109, 111
    %v343 = vpop.permute.xlu0 %342
    %344 = vrot.lane.b32.xlu0 %v110, 111
    %v345 = vpop.permute.xlu0 %344
    %346 = vrot.lane.b32.xlu0 %v111, 111
    %v347 = vpop.permute.xlu0 %346
    %348 = vrot.lane.b32.xlu0 %v112, 111
    %v349 = vpop.permute.xlu0 %348
    %vm350 = vcmp.lt.s32.totalorder %v122, 111
    %v351 = vsel %vm350, %v347, %v349
    %v352 = vsel %vm350, %v345, %v347
    %v353 = vsel %vm350, %v343, %v345
    %v354 = vsel %vm350, %v349, %v343
    %s355 = scalar_lea.vmem [#allocation4], 32
    %v356 = vld [vmem:[%s355] ss:$8 sm:$0xf]
    %v358 = vperm.slane %v356, 0
    %v359 = vperm.slane %v356, 1
    %v360 = vperm.slane %v356, 2
    %v361 = vperm.slane %v356, 3
    %v366 = vmul.f32 %v353, %v358
    %v367 = vmul.f32 %v352, %v359
    %v368 = vmul.f32 %v351, %v360
    %v369 = vmul.f32 %v354, %v361
    %370 = vst [vmem:[#allocation2 + $0x100] sm:$0xff] %v366
    %371 = vst [vmem:[#allocation2 + $0x108] sm:$0xff] %v367
    %372 = vst [vmem:[#allocation2 + $0x110] sm:$0xff] %v368
    %373 = vst [vmem:[#allocation2 + $0x118] sm:$0xff] %v369
    %v374 = vld [vmem:[#allocation7] sm:$0xff]
    %v375 = vld [vmem:[#allocation2] sm:$0xff]
    %v376 = vld [vmem:[#allocation2 + $0x8] sm:$0xff]
    %v377 = vld [vmem:[#allocation2 + $0x10] sm:$0xff]
    %v378 = vld [vmem:[#allocation2 + $0x18] sm:$0xff]
    %v379 = vld [vmem:[#allocation2 + $0x20] sm:$0xff]
    %v380 = vld [vmem:[#allocation2 + $0x28] sm:$0xff]
    %v381 = vld [vmem:[#allocation2 + $0x30] sm:$0xff]
    %v382 = vld [vmem:[#allocation2 + $0x38] sm:$0xff]
    %v383 = vld [vmem:[#allocation2 + $0x40] sm:$0xff]
    %v384 = vld [vmem:[#allocation2 + $0x48] sm:$0xff]
    %v385 = vld [vmem:[#allocation2 + $0x50] sm:$0xff]
    %v386 = vld [vmem:[#allocation2 + $0x58] sm:$0xff]
    %v387 = vld [vmem:[#allocation2 + $0x60] sm:$0xff]
    %v388 = vld [vmem:[#allocation2 + $0x68] sm:$0xff]
    %v389 = vld [vmem:[#allocation2 + $0x70] sm:$0xff]
    %v390 = vld [vmem:[#allocation2 + $0x78] sm:$0xff]
    %v391 = vld [vmem:[#allocation2 + $0x80] sm:$0xff]
    %v392 = vld [vmem:[#allocation2 + $0x88] sm:$0xff]
    %v393 = vld [vmem:[#allocation2 + $0x90] sm:$0xff]
    %v394 = vld [vmem:[#allocation2 + $0x98] sm:$0xff]
    %v395 = vld [vmem:[#allocation2 + $0xa0] sm:$0xff]
    %v396 = vld [vmem:[#allocation2 + $0xa8] sm:$0xff]
    %v397 = vld [vmem:[#allocation2 + $0xb0] sm:$0xff]
    %v398 = vld [vmem:[#allocation2 + $0xb8] sm:$0xff]
    %v399 = vld [vmem:[#allocation2 + $0xc0] sm:$0xff]
    %v400 = vld [vmem:[#allocation2 + $0xc8] sm:$0xff]
    %v401 = vld [vmem:[#allocation2 + $0xd0] sm:$0xff]
    %v402 = vld [vmem:[#allocation2 + $0xd8] sm:$0xff]
    %v403 = vld [vmem:[#allocation2 + $0xe0] sm:$0xff]
    %v404 = vld [vmem:[#allocation2 + $0xe8] sm:$0xff]
    %v405 = vld [vmem:[#allocation2 + $0xf0] sm:$0xff]
    %v406 = vld [vmem:[#allocation2 + $0xf8] sm:$0xff]
    %v407 = vld [vmem:[#allocation2 + $0x100] sm:$0xff]
    %v408 = vld [vmem:[#allocation2 + $0x108] sm:$0xff]
    %v409 = vld [vmem:[#allocation2 + $0x110] sm:$0xff]
    %v410 = vld [vmem:[#allocation2 + $0x118] sm:$0xff]
    %v411 = vld [vmem:[%s3] sm:$0xff]
    %413 = vset.pattern.permute.xlu0 0
    %414 = vperm.xlu0 %413, %v411
    %v415 = vpop.permute.xlu0 %414
    %vm417 = vcmask 588800
    %v419 = vsel %vm417, %v374, 0
    %421 = vmatpush.msra.mxu0 0.0
    %422 = vmatpush.msra.mxu0 0.0
    %423 = vmatpush.msra.mxu0 0.0
    %424 = vmatpush.msra.mxu0 0.0
    %425 = vmatpush.msra.mxu0 0.0
    %426 = vmatpush.msra.mxu0 0.0
    %427 = vmatpush.msra.mxu0 0.0
    %v428 = vand.u32 %v407, 4294901760
    %429 = vmatpush.msra.mxu0 %v428
    %v430 = vand.u32 %v403, 4294901760
    %431 = vmatpush.msra.mxu0 %v430
    %v432 = vand.u32 %v399, 4294901760
    %433 = vmatpush.msra.mxu0 %v432
    %v434 = vand.u32 %v395, 4294901760
    %435 = vmatpush.msra.mxu0 %v434
    %v436 = vand.u32 %v391, 4294901760
    %437 = vmatpush.msra.mxu0 %v436
    %v438 = vand.u32 %v387, 4294901760
    %439 = vmatpush.msra.mxu0 %v438
    %v440 = vand.u32 %v383, 4294901760
    %441 = vmatpush.msra.mxu0 %v440
    %v442 = vand.u32 %v379, 4294901760
    %443 = vmatpush.msra.mxu0 %v442
    %v444 = vand.u32 %v375, 4294901760
    %445 = vmatpush.msra.mxu0 %v444
    %v446 = vand.u32 %v419, 4294901760
    %v447 = vsub.f32 %v419, %v446
    %v448 = vand.u32 %v447, 4294901760
    %v449 = vsub.f32 %v447, %v448
    %v450 = vand.u32 %v449, 4294901760
    %451 = vmatmul.f32.gmra.mxu0 %v450
    %v452 = vpop.f32.mrf.mxu0
    %v453 = vadd.f32 %v415, %v452
    %454 = vdwg.mxu0
    %455 = vmatpush.msra.mxu0 0.0
    %456 = vmatpush.msra.mxu0 0.0
    %457 = vmatpush.msra.mxu0 0.0
    %458 = vmatpush.msra.mxu0 0.0
    %459 = vmatpush.msra.mxu0 0.0
    %460 = vmatpush.msra.mxu0 0.0
    %461 = vmatpush.msra.mxu0 0.0
    %v462 = vand.u32 %v407, 4294901760
    %v463 = vsub.f32 %v407, %v462
    %v464 = vand.u32 %v463, 4294901760
    %v465 = vsub.f32 %v463, %v464
    %v466 = vand.u32 %v465, 4294901760
    %467 = vmatpush.msra.mxu0 %v466
    %v468 = vand.u32 %v403, 4294901760
    %v469 = vsub.f32 %v403, %v468
    %v470 = vand.u32 %v469, 4294901760
    %v471 = vsub.f32 %v469, %v470
    %v472 = vand.u32 %v471, 4294901760
    %473 = vmatpush.msra.mxu0 %v472
    %v474 = vand.u32 %v399, 4294901760
    %v475 = vsub.f32 %v399, %v474
    %v476 = vand.u32 %v475, 4294901760
    %v477 = vsub.f32 %v475, %v476
    %v478 = vand.u32 %v477, 4294901760
    %479 = vmatpush.msra.mxu0 %v478
    %v480 = vand.u32 %v395, 4294901760
    %v481 = vsub.f32 %v395, %v480
    %v482 = vand.u32 %v481, 4294901760
    %v483 = vsub.f32 %v481, %v482
    %v484 = vand.u32 %v483, 4294901760
    %485 = vmatpush.msra.mxu0 %v484
    %v486 = vand.u32 %v391, 4294901760
    %v487 = vsub.f32 %v391, %v486
    %v488 = vand.u32 %v487, 4294901760
    %v489 = vsub.f32 %v487, %v488
    %v490 = vand.u32 %v489, 4294901760
    %491 = vmatpush.msra.mxu0 %v490
    %v492 = vand.u32 %v387, 4294901760
    %v493 = vsub.f32 %v387, %v492
    %v494 = vand.u32 %v493, 4294901760
    %v495 = vsub.f32 %v493, %v494
    %v496 = vand.u32 %v495, 4294901760
    %497 = vmatpush.msra.mxu0 %v496
    %v498 = vand.u32 %v383, 4294901760
    %v499 = vsub.f32 %v383, %v498
    %v500 = vand.u32 %v499, 4294901760
    %v501 = vsub.f32 %v499, %v500
    %v502 = vand.u32 %v501, 4294901760
    %503 = vmatpush.msra.mxu0 %v502
    %v504 = vand.u32 %v379, 4294901760
    %v505 = vsub.f32 %v379, %v504
    %v506 = vand.u32 %v505, 4294901760
    %v507 = vsub.f32 %v505, %v506
    %v508 = vand.u32 %v507, 4294901760
    %509 = vmatpush.msra.mxu0 %v508
    %v510 = vand.u32 %v375, 4294901760
    %v511 = vsub.f32 %v375, %v510
    %v512 = vand.u32 %v511, 4294901760
    %v513 = vsub.f32 %v511, %v512
    %v514 = vand.u32 %v513, 4294901760
    %515 = vmatpush.msra.mxu0 %v514
    %v516 = vand.u32 %v419, 4294901760
    %517 = vmatmul.f32.gmra.mxu0 %v516
    %v518 = vpop.f32.mrf.mxu0
    %v519 = vadd.f32 %v453, %v518
    %520 = vdwg.mxu0
    %521 = vmatpush.msra.mxu0 0.0
    %522 = vmatpush.msra.mxu0 0.0
    %523 = vmatpush.msra.mxu0 0.0
    %524 = vmatpush.msra.mxu0 0.0
    %525 = vmatpush.msra.mxu0 0.0
    %526 = vmatpush.msra.mxu0 0.0
    %527 = vmatpush.msra.mxu0 0.0
    %v528 = vand.u32 %v407, 4294901760
    %v529 = vsub.f32 %v407, %v528
    %530 = vmatpush.msra.mxu0 %v529
    %v531 = vand.u32 %v403, 4294901760
    %v532 = vsub.f32 %v403, %v531
    %533 = vmatpush.msra.mxu0 %v532
    %v534 = vand.u32 %v399, 4294901760
    %v535 = vsub.f32 %v399, %v534
    %536 = vmatpush.msra.mxu0 %v535
    %v537 = vand.u32 %v395, 4294901760
    %v538 = vsub.f32 %v395, %v537
    %539 = vmatpush.msra.mxu0 %v538
    %v540 = vand.u32 %v391, 4294901760
    %v541 = vsub.f32 %v391, %v540
    %542 = vmatpush.msra.mxu0 %v541
    %v543 = vand.u32 %v387, 4294901760
    %v544 = vsub.f32 %v387, %v543
    %545 = vmatpush.msra.mxu0 %v544
    %v546 = vand.u32 %v383, 4294901760
    %v547 = vsub.f32 %v383, %v546
    %548 = vmatpush.msra.mxu0 %v547
    %v549 = vand.u32 %v379, 4294901760
    %v550 = vsub.f32 %v379, %v549
    %551 = vmatpush.msra.mxu0 %v550
    %v552 = vand.u32 %v375, 4294901760
    %v553 = vsub.f32 %v375, %v552
    %554 = vmatpush.msra.mxu0 %v553
    %v555 = vand.u32 %v419, 4294901760
    %v556 = vsub.f32 %v419, %v555
    %557 = vmatmul.f32.gmra.mxu0 %v556
    %v558 = vpop.f32.mrf.mxu0
    %v559 = vadd.f32 %v519, %v558
    %560 = vdwg.mxu0
    %561 = vmatpush.msra.mxu0 0.0
    %562 = vmatpush.msra.mxu0 0.0
    %563 = vmatpush.msra.mxu0 0.0
    %564 = vmatpush.msra.mxu0 0.0
    %565 = vmatpush.msra.mxu0 0.0
    %566 = vmatpush.msra.mxu0 0.0
    %567 = vmatpush.msra.mxu0 0.0
    %v568 = vand.u32 %v407, 4294901760
    %569 = vmatpush.msra.mxu0 %v568
    %v570 = vand.u32 %v403, 4294901760
    %571 = vmatpush.msra.mxu0 %v570
    %v572 = vand.u32 %v399, 4294901760
    %573 = vmatpush.msra.mxu0 %v572
    %v574 = vand.u32 %v395, 4294901760
    %575 = vmatpush.msra.mxu0 %v574
    %v576 = vand.u32 %v391, 4294901760
    %577 = vmatpush.msra.mxu0 %v576
    %v578 = vand.u32 %v387, 4294901760
    %579 = vmatpush.msra.mxu0 %v578
    %v580 = vand.u32 %v383, 4294901760
    %581 = vmatpush.msra.mxu0 %v580
    %v582 = vand.u32 %v379, 4294901760
    %583 = vmatpush.msra.mxu0 %v582
    %v584 = vand.u32 %v375, 4294901760
    %585 = vmatpush.msra.mxu0 %v584
    %v586 = vand.u32 %v419, 4294901760
    %v587 = vsub.f32 %v419, %v586
    %v588 = vand.u32 %v587, 4294901760
    %589 = vmatmul.f32.gmra.mxu0 %v588
    %v590 = vpop.f32.mrf.mxu0
    %v591 = vadd.f32 %v559, %v590
    %592 = vdwg.mxu0
    %593 = vmatpush.msra.mxu0 0.0
    %594 = vmatpush.msra.mxu0 0.0
    %595 = vmatpush.msra.mxu0 0.0
    %596 = vmatpush.msra.mxu0 0.0
    %597 = vmatpush.msra.mxu0 0.0
    %598 = vmatpush.msra.mxu0 0.0
    %599 = vmatpush.msra.mxu0 0.0
    %v600 = vand.u32 %v407, 4294901760
    %v601 = vsub.f32 %v407, %v600
    %v602 = vand.u32 %v601, 4294901760
    %603 = vmatpush.msra.mxu0 %v602
    %v604 = vand.u32 %v403, 4294901760
    %v605 = vsub.f32 %v403, %v604
    %v606 = vand.u32 %v605, 4294901760
    %607 = vmatpush.msra.mxu0 %v606
    %v608 = vand.u32 %v399, 4294901760
    %v609 = vsub.f32 %v399, %v608
    %v610 = vand.u32 %v609, 4294901760
    %611 = vmatpush.msra.mxu0 %v610
    %v612 = vand.u32 %v395, 4294901760
    %v613 = vsub.f32 %v395, %v612
    %v614 = vand.u32 %v613, 4294901760
    %615 = vmatpush.msra.mxu0 %v614
    %v616 = vand.u32 %v391, 4294901760
    %v617 = vsub.f32 %v391, %v616
    %v618 = vand.u32 %v617, 4294901760
    %619 = vmatpush.msra.mxu0 %v618
    %v620 = vand.u32 %v387, 4294901760
    %v621 = vsub.f32 %v387, %v620
    %v622 = vand.u32 %v621, 4294901760
    %623 = vmatpush.msra.mxu0 %v622
    %v624 = vand.u32 %v383, 4294901760
    %v625 = vsub.f32 %v383, %v624
    %v626 = vand.u32 %v625, 4294901760
    %627 = vmatpush.msra.mxu0 %v626
    %v628 = vand.u32 %v379, 4294901760
    %v629 = vsub.f32 %v379, %v628
    %v630 = vand.u32 %v629, 4294901760
    %631 = vmatpush.msra.mxu0 %v630
    %v632 = vand.u32 %v375, 4294901760
    %v633 = vsub.f32 %v375, %v632
    %v634 = vand.u32 %v633, 4294901760
    %635 = vmatpush.msra.mxu0 %v634
    %v636 = vand.u32 %v419, 4294901760
    %637 = vmatmul.f32.gmra.mxu0 %v636
    %v638 = vpop.f32.mrf.mxu0
    %v639 = vadd.f32 %v591, %v638
    %640 = vdwg.mxu0
    %641 = vmatpush.msra.mxu0 0.0
    %642 = vmatpush.msra.mxu0 0.0
    %643 = vmatpush.msra.mxu0 0.0
    %644 = vmatpush.msra.mxu0 0.0
    %645 = vmatpush.msra.mxu0 0.0
    %646 = vmatpush.msra.mxu0 0.0
    %647 = vmatpush.msra.mxu0 0.0
    %v648 = vand.u32 %v407, 4294901760
    %649 = vmatpush.msra.mxu0 %v648
    %v650 = vand.u32 %v403, 4294901760
    %651 = vmatpush.msra.mxu0 %v650
    %v652 = vand.u32 %v399, 4294901760
    %653 = vmatpush.msra.mxu0 %v652
    %v654 = vand.u32 %v395, 4294901760
    %655 = vmatpush.msra.mxu0 %v654
    %v656 = vand.u32 %v391, 4294901760
    %657 = vmatpush.msra.mxu0 %v656
    %v658 = vand.u32 %v387, 4294901760
    %659 = vmatpush.msra.mxu0 %v658
    %v660 = vand.u32 %v383, 4294901760
    %661 = vmatpush.msra.mxu0 %v660
    %v662 = vand.u32 %v379, 4294901760
    %663 = vmatpush.msra.mxu0 %v662
    %v664 = vand.u32 %v375, 4294901760
    %665 = vmatpush.msra.mxu0 %v664
    %v666 = vand.u32 %v419, 4294901760
    %667 = vmatmul.f32.gmra.mxu0 %v666
    %v668 = vpop.f32.mrf.mxu0
    %v669 = vadd.f32 %v639, %v668
    %670 = vdwg.mxu0
    %671 = vmatpush.msra.mxu0 0.0
    %672 = vmatpush.msra.mxu0 0.0
    %673 = vmatpush.msra.mxu0 0.0
    %674 = vmatpush.msra.mxu0 0.0
    %675 = vmatpush.msra.mxu0 0.0
    %676 = vmatpush.msra.mxu0 0.0
    %677 = vmatpush.msra.mxu0 0.0
    %v678 = vand.u32 %v408, 4294901760
    %679 = vmatpush.msra.mxu0 %v678
    %v680 = vand.u32 %v404, 4294901760
    %681 = vmatpush.msra.mxu0 %v680
    %v682 = vand.u32 %v400, 4294901760
    %683 = vmatpush.msra.mxu0 %v682
    %v684 = vand.u32 %v396, 4294901760
    %685 = vmatpush.msra.mxu0 %v684
    %v686 = vand.u32 %v392, 4294901760
    %687 = vmatpush.msra.mxu0 %v686
    %v688 = vand.u32 %v388, 4294901760
    %689 = vmatpush.msra.mxu0 %v688
    %v690 = vand.u32 %v384, 4294901760
    %691 = vmatpush.msra.mxu0 %v690
    %v692 = vand.u32 %v380, 4294901760
    %693 = vmatpush.msra.mxu0 %v692
    %v694 = vand.u32 %v376, 4294901760
    %695 = vmatpush.msra.mxu0 %v694
    %v696 = vand.u32 %v419, 4294901760
    %v697 = vsub.f32 %v419, %v696
    %v698 = vand.u32 %v697, 4294901760
    %v699 = vsub.f32 %v697, %v698
    %v700 = vand.u32 %v699, 4294901760
    %701 = vmatmul.f32.gmra.mxu0 %v700
    %v702 = vpop.f32.mrf.mxu0
    %v703 = vadd.f32 %v415, %v702
    %704 = vdwg.mxu0
    %705 = vmatpush.msra.mxu0 0.0
    %706 = vmatpush.msra.mxu0 0.0
    %707 = vmatpush.msra.mxu0 0.0
    %708 = vmatpush.msra.mxu0 0.0
    %709 = vmatpush.msra.mxu0 0.0
    %710 = vmatpush.msra.mxu0 0.0
    %711 = vmatpush.msra.mxu0 0.0
    %v712 = vand.u32 %v408, 4294901760
    %v713 = vsub.f32 %v408, %v712
    %v714 = vand.u32 %v713, 4294901760
    %v715 = vsub.f32 %v713, %v714
    %v716 = vand.u32 %v715, 4294901760
    %717 = vmatpush.msra.mxu0 %v716
    %v718 = vand.u32 %v404, 4294901760
    %v719 = vsub.f32 %v404, %v718
    %v720 = vand.u32 %v719, 4294901760
    %v721 = vsub.f32 %v719, %v720
    %v722 = vand.u32 %v721, 4294901760
    %723 = vmatpush.msra.mxu0 %v722
    %v724 = vand.u32 %v400, 4294901760
    %v725 = vsub.f32 %v400, %v724
    %v726 = vand.u32 %v725, 4294901760
    %v727 = vsub.f32 %v725, %v726
    %v728 = vand.u32 %v727, 4294901760
    %729 = vmatpush.msra.mxu0 %v728
    %v730 = vand.u32 %v396, 4294901760
    %v731 = vsub.f32 %v396, %v730
    %v732 = vand.u32 %v731, 4294901760
    %v733 = vsub.f32 %v731, %v732
    %v734 = vand.u32 %v733, 4294901760
    %735 = vmatpush.msra.mxu0 %v734
    %v736 = vand.u32 %v392, 4294901760
    %v737 = vsub.f32 %v392, %v736
    %v738 = vand.u32 %v737, 4294901760
    %v739 = vsub.f32 %v737, %v738
    %v740 = vand.u32 %v739, 4294901760
    %741 = vmatpush.msra.mxu0 %v740
    %v742 = vand.u32 %v388, 4294901760
    %v743 = vsub.f32 %v388, %v742
    %v744 = vand.u32 %v743, 4294901760
    %v745 = vsub.f32 %v743, %v744
    %v746 = vand.u32 %v745, 4294901760
    %747 = vmatpush.msra.mxu0 %v746
    %v748 = vand.u32 %v384, 4294901760
    %v749 = vsub.f32 %v384, %v748
    %v750 = vand.u32 %v749, 4294901760
    %v751 = vsub.f32 %v749, %v750
    %v752 = vand.u32 %v751, 4294901760
    %753 = vmatpush.msra.mxu0 %v752
    %v754 = vand.u32 %v380, 4294901760
    %v755 = vsub.f32 %v380, %v754
    %v756 = vand.u32 %v755, 4294901760
    %v757 = vsub.f32 %v755, %v756
    %v758 = vand.u32 %v757, 4294901760
    %759 = vmatpush.msra.mxu0 %v758
    %v760 = vand.u32 %v376, 4294901760
    %v761 = vsub.f32 %v376, %v760
    %v762 = vand.u32 %v761, 4294901760
    %v763 = vsub.f32 %v761, %v762
    %v764 = vand.u32 %v763, 4294901760
    %765 = vmatpush.msra.mxu0 %v764
    %v766 = vand.u32 %v419, 4294901760
    %767 = vmatmul.f32.gmra.mxu0 %v766
    %v768 = vpop.f32.mrf.mxu0
    %v769 = vadd.f32 %v703, %v768
    %770 = vdwg.mxu0
    %771 = vmatpush.msra.mxu0 0.0
    %772 = vmatpush.msra.mxu0 0.0
    %773 = vmatpush.msra.mxu0 0.0
    %774 = vmatpush.msra.mxu0 0.0
    %775 = vmatpush.msra.mxu0 0.0
    %776 = vmatpush.msra.mxu0 0.0
    %777 = vmatpush.msra.mxu0 0.0
    %v778 = vand.u32 %v408, 4294901760
    %v779 = vsub.f32 %v408, %v778
    %780 = vmatpush.msra.mxu0 %v779
    %v781 = vand.u32 %v404, 4294901760
    %v782 = vsub.f32 %v404, %v781
    %783 = vmatpush.msra.mxu0 %v782
    %v784 = vand.u32 %v400, 4294901760
    %v785 = vsub.f32 %v400, %v784
    %786 = vmatpush.msra.mxu0 %v785
    %v787 = vand.u32 %v396, 4294901760
    %v788 = vsub.f32 %v396, %v787
    %789 = vmatpush.msra.mxu0 %v788
    %v790 = vand.u32 %v392, 4294901760
    %v791 = vsub.f32 %v392, %v790
    %792 = vmatpush.msra.mxu0 %v791
    %v793 = vand.u32 %v388, 4294901760
    %v794 = vsub.f32 %v388, %v793
    %795 = vmatpush.msra.mxu0 %v794
    %v796 = vand.u32 %v384, 4294901760
    %v797 = vsub.f32 %v384, %v796
    %798 = vmatpush.msra.mxu0 %v797
    %v799 = vand.u32 %v380, 4294901760
    %v800 = vsub.f32 %v380, %v799
    %801 = vmatpush.msra.mxu0 %v800
    %v802 = vand.u32 %v376, 4294901760
    %v803 = vsub.f32 %v376, %v802
    %804 = vmatpush.msra.mxu0 %v803
    %v805 = vand.u32 %v419, 4294901760
    %v806 = vsub.f32 %v419, %v805
    %807 = vmatmul.f32.gmra.mxu0 %v806
    %v808 = vpop.f32.mrf.mxu0
    %v809 = vadd.f32 %v769, %v808
    %810 = vdwg.mxu0
    %811 = vmatpush.msra.mxu0 0.0
    %812 = vmatpush.msra.mxu0 0.0
    %813 = vmatpush.msra.mxu0 0.0
    %814 = vmatpush.msra.mxu0 0.0
    %815 = vmatpush.msra.mxu0 0.0
    %816 = vmatpush.msra.mxu0 0.0
    %817 = vmatpush.msra.mxu0 0.0
    %v818 = vand.u32 %v408, 4294901760
    %819 = vmatpush.msra.mxu0 %v818
    %v820 = vand.u32 %v404, 4294901760
    %821 = vmatpush.msra.mxu0 %v820
    %v822 = vand.u32 %v400, 4294901760
    %823 = vmatpush.msra.mxu0 %v822
    %v824 = vand.u32 %v396, 4294901760
    %825 = vmatpush.msra.mxu0 %v824
    %v826 = vand.u32 %v392, 4294901760
    %827 = vmatpush.msra.mxu0 %v826
    %v828 = vand.u32 %v388, 4294901760
    %829 = vmatpush.msra.mxu0 %v828
    %v830 = vand.u32 %v384, 4294901760
    %831 = vmatpush.msra.mxu0 %v830
    %v832 = vand.u32 %v380, 4294901760
    %833 = vmatpush.msra.mxu0 %v832
    %v834 = vand.u32 %v376, 4294901760
    %835 = vmatpush.msra.mxu0 %v834
    %v836 = vand.u32 %v419, 4294901760
    %v837 = vsub.f32 %v419, %v836
    %v838 = vand.u32 %v837, 4294901760
    %839 = vmatmul.f32.gmra.mxu0 %v838
    %v840 = vpop.f32.mrf.mxu0
    %v841 = vadd.f32 %v809, %v840
    %842 = vdwg.mxu0
    %843 = vmatpush.msra.mxu0 0.0
    %844 = vmatpush.msra.mxu0 0.0
    %845 = vmatpush.msra.mxu0 0.0
    %846 = vmatpush.msra.mxu0 0.0
    %847 = vmatpush.msra.mxu0 0.0
    %848 = vmatpush.msra.mxu0 0.0
    %849 = vmatpush.msra.mxu0 0.0
    %v850 = vand.u32 %v408, 4294901760
    %v851 = vsub.f32 %v408, %v850
    %v852 = vand.u32 %v851, 4294901760
    %853 = vmatpush.msra.mxu0 %v852
    %v854 = vand.u32 %v404, 4294901760
    %v855 = vsub.f32 %v404, %v854
    %v856 = vand.u32 %v855, 4294901760
    %857 = vmatpush.msra.mxu0 %v856
    %v858 = vand.u32 %v400, 4294901760
    %v859 = vsub.f32 %v400, %v858
    %v860 = vand.u32 %v859, 4294901760
    %861 = vmatpush.msra.mxu0 %v860
    %v862 = vand.u32 %v396, 4294901760
    %v863 = vsub.f32 %v396, %v862
    %v864 = vand.u32 %v863, 4294901760
    %865 = vmatpush.msra.mxu0 %v864
    %v866 = vand.u32 %v392, 4294901760
    %v867 = vsub.f32 %v392, %v866
    %v868 = vand.u32 %v867, 4294901760
    %869 = vmatpush.msra.mxu0 %v868
    %v870 = vand.u32 %v388, 4294901760
    %v871 = vsub.f32 %v388, %v870
    %v872 = vand.u32 %v871, 4294901760
    %873 = vmatpush.msra.mxu0 %v872
    %v874 = vand.u32 %v384, 4294901760
    %v875 = vsub.f32 %v384, %v874
    %v876 = vand.u32 %v875, 4294901760
    %877 = vmatpush.msra.mxu0 %v876
    %v878 = vand.u32 %v380, 4294901760
    %v879 = vsub.f32 %v380, %v878
    %v880 = vand.u32 %v879, 4294901760
    %881 = vmatpush.msra.mxu0 %v880
    %v882 = vand.u32 %v376, 4294901760
    %v883 = vsub.f32 %v376, %v882
    %v884 = vand.u32 %v883, 4294901760
    %885 = vmatpush.msra.mxu0 %v884
    %v886 = vand.u32 %v419, 4294901760
    %887 = vmatmul.f32.gmra.mxu0 %v886
    %v888 = vpop.f32.mrf.mxu0
    %v889 = vadd.f32 %v841, %v888
    %890 = vdwg.mxu0
    %891 = vmatpush.msra.mxu0 0.0
    %892 = vmatpush.msra.mxu0 0.0
    %893 = vmatpush.msra.mxu0 0.0
    %894 = vmatpush.msra.mxu0 0.0
    %895 = vmatpush.msra.mxu0 0.0
    %896 = vmatpush.msra.mxu0 0.0
    %897 = vmatpush.msra.mxu0 0.0
    %v898 = vand.u32 %v408, 4294901760
    %899 = vmatpush.msra.mxu0 %v898
    %v900 = vand.u32 %v404, 4294901760
    %901 = vmatpush.msra.mxu0 %v900
    %v902 = vand.u32 %v400, 4294901760
    %903 = vmatpush.msra.mxu0 %v902
    %v904 = vand.u32 %v396, 4294901760
    %905 = vmatpush.msra.mxu0 %v904
    %v906 = vand.u32 %v392, 4294901760
    %907 = vmatpush.msra.mxu0 %v906
    %v908 = vand.u32 %v388, 4294901760
    %909 = vmatpush.msra.mxu0 %v908
    %v910 = vand.u32 %v384, 4294901760
    %911 = vmatpush.msra.mxu0 %v910
    %v912 = vand.u32 %v380, 4294901760
    %913 = vmatpush.msra.mxu0 %v912
    %v914 = vand.u32 %v376, 4294901760
    %915 = vmatpush.msra.mxu0 %v914
    %v916 = vand.u32 %v419, 4294901760
    %917 = vmatmul.f32.gmra.mxu0 %v916
    %v918 = vpop.f32.mrf.mxu0
    %v919 = vadd.f32 %v889, %v918
    %920 = vdwg.mxu0
    %921 = vmatpush.msra.mxu0 0.0
    %922 = vmatpush.msra.mxu0 0.0
    %923 = vmatpush.msra.mxu0 0.0
    %924 = vmatpush.msra.mxu0 0.0
    %925 = vmatpush.msra.mxu0 0.0
    %926 = vmatpush.msra.mxu0 0.0
    %927 = vmatpush.msra.mxu0 0.0
    %v928 = vand.u32 %v409, 4294901760
    %929 = vmatpush.msra.mxu0 %v928
    %v930 = vand.u32 %v405, 4294901760
    %931 = vmatpush.msra.mxu0 %v930
    %v932 = vand.u32 %v401, 4294901760
    %933 = vmatpush.msra.mxu0 %v932
    %v934 = vand.u32 %v397, 4294901760
    %935 = vmatpush.msra.mxu0 %v934
    %v936 = vand.u32 %v393, 4294901760
    %937 = vmatpush.msra.mxu0 %v936
    %v938 = vand.u32 %v389, 4294901760
    %939 = vmatpush.msra.mxu0 %v938
    %v940 = vand.u32 %v385, 4294901760
    %941 = vmatpush.msra.mxu0 %v940
    %v942 = vand.u32 %v381, 4294901760
    %943 = vmatpush.msra.mxu0 %v942
    %v944 = vand.u32 %v377, 4294901760
    %945 = vmatpush.msra.mxu0 %v944
    %v946 = vand.u32 %v419, 4294901760
    %v947 = vsub.f32 %v419, %v946
    %v948 = vand.u32 %v947, 4294901760
    %v949 = vsub.f32 %v947, %v948
    %v950 = vand.u32 %v949, 4294901760
    %951 = vmatmul.f32.gmra.mxu0 %v950
    %v952 = vpop.f32.mrf.mxu0
    %v953 = vadd.f32 %v415, %v952
    %954 = vdwg.mxu0
    %955 = vmatpush.msra.mxu0 0.0
    %956 = vmatpush.msra.mxu0 0.0
    %957 = vmatpush.msra.mxu0 0.0
    %958 = vmatpush.msra.mxu0 0.0
    %959 = vmatpush.msra.mxu0 0.0
    %960 = vmatpush.msra.mxu0 0.0
    %961 = vmatpush.msra.mxu0 0.0
    %v962 = vand.u32 %v409, 4294901760
    %v963 = vsub.f32 %v409, %v962
    %v964 = vand.u32 %v963, 4294901760
    %v965 = vsub.f32 %v963, %v964
    %v966 = vand.u32 %v965, 4294901760
    %967 = vmatpush.msra.mxu0 %v966
    %v968 = vand.u32 %v405, 4294901760
    %v969 = vsub.f32 %v405, %v968
    %v970 = vand.u32 %v969, 4294901760
    %v971 = vsub.f32 %v969, %v970
    %v972 = vand.u32 %v971, 4294901760
    %973 = vmatpush.msra.mxu0 %v972
    %v974 = vand.u32 %v401, 4294901760
    %v975 = vsub.f32 %v401, %v974
    %v976 = vand.u32 %v975, 4294901760
    %v977 = vsub.f32 %v975, %v976
    %v978 = vand.u32 %v977, 4294901760
    %979 = vmatpush.msra.mxu0 %v978
    %v980 = vand.u32 %v397, 4294901760
    %v981 = vsub.f32 %v397, %v980
    %v982 = vand.u32 %v981, 4294901760
    %v983 = vsub.f32 %v981, %v982
    %v984 = vand.u32 %v983, 4294901760
    %985 = vmatpush.msra.mxu0 %v984
    %v986 = vand.u32 %v393, 4294901760
    %v987 = vsub.f32 %v393, %v986
    %v988 = vand.u32 %v987, 4294901760
    %v989 = vsub.f32 %v987, %v988
    %v990 = vand.u32 %v989, 4294901760
    %991 = vmatpush.msra.mxu0 %v990
    %v992 = vand.u32 %v389, 4294901760
    %v993 = vsub.f32 %v389, %v992
    %v994 = vand.u32 %v993, 4294901760
    %v995 = vsub.f32 %v993, %v994
    %v996 = vand.u32 %v995, 4294901760
    %997 = vmatpush.msra.mxu0 %v996
    %v998 = vand.u32 %v385, 4294901760
    %v999 = vsub.f32 %v385, %v998
    %v1000 = vand.u32 %v999, 4294901760
    %v1001 = vsub.f32 %v999, %v1000
    %v1002 = vand.u32 %v1001, 4294901760
    %1003 = vmatpush.msra.mxu0 %v1002
    %v1004 = vand.u32 %v381, 4294901760
    %v1005 = vsub.f32 %v381, %v1004
    %v1006 = vand.u32 %v1005, 4294901760
    %v1007 = vsub.f32 %v1005, %v1006
    %v1008 = vand.u32 %v1007, 4294901760
    %1009 = vmatpush.msra.mxu0 %v1008
    %v1010 = vand.u32 %v377, 4294901760
    %v1011 = vsub.f32 %v377, %v1010
    %v1012 = vand.u32 %v1011, 4294901760
    %v1013 = vsub.f32 %v1011, %v1012
    %v1014 = vand.u32 %v1013, 4294901760
    %1015 = vmatpush.msra.mxu0 %v1014
    %v1016 = vand.u32 %v419, 4294901760
    %1017 = vmatmul.f32.gmra.mxu0 %v1016
    %v1018 = vpop.f32.mrf.mxu0
    %v1019 = vadd.f32 %v953, %v1018
    %1020 = vdwg.mxu0
    %1021 = vmatpush.msra.mxu0 0.0
    %1022 = vmatpush.msra.mxu0 0.0
    %1023 = vmatpush.msra.mxu0 0.0
    %1024 = vmatpush.msra.mxu0 0.0
    %1025 = vmatpush.msra.mxu0 0.0
    %1026 = vmatpush.msra.mxu0 0.0
    %1027 = vmatpush.msra.mxu0 0.0
    %v1028 = vand.u32 %v409, 4294901760
    %v1029 = vsub.f32 %v409, %v1028
    %1030 = vmatpush.msra.mxu0 %v1029
    %v1031 = vand.u32 %v405, 4294901760
    %v1032 = vsub.f32 %v405, %v1031
    %1033 = vmatpush.msra.mxu0 %v1032
    %v1034 = vand.u32 %v401, 4294901760
    %v1035 = vsub.f32 %v401, %v1034
    %1036 = vmatpush.msra.mxu0 %v1035
    %v1037 = vand.u32 %v397, 4294901760
    %v1038 = vsub.f32 %v397, %v1037
    %1039 = vmatpush.msra.mxu0 %v1038
    %v1040 = vand.u32 %v393, 4294901760
    %v1041 = vsub.f32 %v393, %v1040
    %1042 = vmatpush.msra.mxu0 %v1041
    %v1043 = vand.u32 %v389, 4294901760
    %v1044 = vsub.f32 %v389, %v1043
    %1045 = vmatpush.msra.mxu0 %v1044
    %v1046 = vand.u32 %v385, 4294901760
    %v1047 = vsub.f32 %v385, %v1046
    %1048 = vmatpush.msra.mxu0 %v1047
    %v1049 = vand.u32 %v381, 4294901760
    %v1050 = vsub.f32 %v381, %v1049
    %1051 = vmatpush.msra.mxu0 %v1050
    %v1052 = vand.u32 %v377, 4294901760
    %v1053 = vsub.f32 %v377, %v1052
    %1054 = vmatpush.msra.mxu0 %v1053
    %v1055 = vand.u32 %v419, 4294901760
    %v1056 = vsub.f32 %v419, %v1055
    %1057 = vmatmul.f32.gmra.mxu0 %v1056
    %v1058 = vpop.f32.mrf.mxu0
    %v1059 = vadd.f32 %v1019, %v1058
    %1060 = vdwg.mxu0
    %1061 = vmatpush.msra.mxu0 0.0
    %1062 = vmatpush.msra.mxu0 0.0
    %1063 = vmatpush.msra.mxu0 0.0
    %1064 = vmatpush.msra.mxu0 0.0
    %1065 = vmatpush.msra.mxu0 0.0
    %1066 = vmatpush.msra.mxu0 0.0
    %1067 = vmatpush.msra.mxu0 0.0
    %v1068 = vand.u32 %v409, 4294901760
    %1069 = vmatpush.msra.mxu0 %v1068
    %v1070 = vand.u32 %v405, 4294901760
    %1071 = vmatpush.msra.mxu0 %v1070
    %v1072 = vand.u32 %v401, 4294901760
    %1073 = vmatpush.msra.mxu0 %v1072
    %v1074 = vand.u32 %v397, 4294901760
    %1075 = vmatpush.msra.mxu0 %v1074
    %v1076 = vand.u32 %v393, 4294901760
    %1077 = vmatpush.msra.mxu0 %v1076
    %v1078 = vand.u32 %v389, 4294901760
    %1079 = vmatpush.msra.mxu0 %v1078
    %v1080 = vand.u32 %v385, 4294901760
    %1081 = vmatpush.msra.mxu0 %v1080
    %v1082 = vand.u32 %v381, 4294901760
    %1083 = vmatpush.msra.mxu0 %v1082
    %v1084 = vand.u32 %v377, 4294901760
    %1085 = vmatpush.msra.mxu0 %v1084
    %v1086 = vand.u32 %v419, 4294901760
    %v1087 = vsub.f32 %v419, %v1086
    %v1088 = vand.u32 %v1087, 4294901760
    %1089 = vmatmul.f32.gmra.mxu0 %v1088
    %v1090 = vpop.f32.mrf.mxu0
    %v1091 = vadd.f32 %v1059, %v1090
    %1092 = vdwg.mxu0
    %1093 = vmatpush.msra.mxu0 0.0
    %1094 = vmatpush.msra.mxu0 0.0
    %1095 = vmatpush.msra.mxu0 0.0
    %1096 = vmatpush.msra.mxu0 0.0
    %1097 = vmatpush.msra.mxu0 0.0
    %1098 = vmatpush.msra.mxu0 0.0
    %1099 = vmatpush.msra.mxu0 0.0
    %v1100 = vand.u32 %v409, 4294901760
    %v1101 = vsub.f32 %v409, %v1100
    %v1102 = vand.u32 %v1101, 4294901760
    %1103 = vmatpush.msra.mxu0 %v1102
    %v1104 = vand.u32 %v405, 4294901760
    %v1105 = vsub.f32 %v405, %v1104
    %v1106 = vand.u32 %v1105, 4294901760
    %1107 = vmatpush.msra.mxu0 %v1106
    %v1108 = vand.u32 %v401, 4294901760
    %v1109 = vsub.f32 %v401, %v1108
    %v1110 = vand.u32 %v1109, 4294901760
    %1111 = vmatpush.msra.mxu0 %v1110
    %v1112 = vand.u32 %v397, 4294901760
    %v1113 = vsub.f32 %v397, %v1112
    %v1114 = vand.u32 %v1113, 4294901760
    %1115 = vmatpush.msra.mxu0 %v1114
    %v1116 = vand.u32 %v393, 4294901760
    %v1117 = vsub.f32 %v393, %v1116
    %v1118 = vand.u32 %v1117, 4294901760
    %1119 = vmatpush.msra.mxu0 %v1118
    %v1120 = vand.u32 %v389, 4294901760
    %v1121 = vsub.f32 %v389, %v1120
    %v1122 = vand.u32 %v1121, 4294901760
    %1123 = vmatpush.msra.mxu0 %v1122
    %v1124 = vand.u32 %v385, 4294901760
    %v1125 = vsub.f32 %v385, %v1124
    %v1126 = vand.u32 %v1125, 4294901760
    %1127 = vmatpush.msra.mxu0 %v1126
    %v1128 = vand.u32 %v381, 4294901760
    %v1129 = vsub.f32 %v381, %v1128
    %v1130 = vand.u32 %v1129, 4294901760
    %1131 = vmatpush.msra.mxu0 %v1130
    %v1132 = vand.u32 %v377, 4294901760
    %v1133 = vsub.f32 %v377, %v1132
    %v1134 = vand.u32 %v1133, 4294901760
    %1135 = vmatpush.msra.mxu0 %v1134
    %v1136 = vand.u32 %v419, 4294901760
    %1137 = vmatmul.f32.gmra.mxu0 %v1136
    %v1138 = vpop.f32.mrf.mxu0
    %v1139 = vadd.f32 %v1091, %v1138
    %1140 = vdwg.mxu0
    %1141 = vmatpush.msra.mxu0 0.0
    %1142 = vmatpush.msra.mxu0 0.0
    %1143 = vmatpush.msra.mxu0 0.0
    %1144 = vmatpush.msra.mxu0 0.0
    %1145 = vmatpush.msra.mxu0 0.0
    %1146 = vmatpush.msra.mxu0 0.0
    %1147 = vmatpush.msra.mxu0 0.0
    %v1148 = vand.u32 %v409, 4294901760
    %1149 = vmatpush.msra.mxu0 %v1148
    %v1150 = vand.u32 %v405, 4294901760
    %1151 = vmatpush.msra.mxu0 %v1150
    %v1152 = vand.u32 %v401, 4294901760
    %1153 = vmatpush.msra.mxu0 %v1152
    %v1154 = vand.u32 %v397, 4294901760
    %1155 = vmatpush.msra.mxu0 %v1154
    %v1156 = vand.u32 %v393, 4294901760
    %1157 = vmatpush.msra.mxu0 %v1156
    %v1158 = vand.u32 %v389, 4294901760
    %1159 = vmatpush.msra.mxu0 %v1158
    %v1160 = vand.u32 %v385, 4294901760
    %1161 = vmatpush.msra.mxu0 %v1160
    %v1162 = vand.u32 %v381, 4294901760
    %1163 = vmatpush.msra.mxu0 %v1162
    %v1164 = vand.u32 %v377, 4294901760
    %1165 = vmatpush.msra.mxu0 %v1164
    %v1166 = vand.u32 %v419, 4294901760
    %1167 = vmatmul.f32.gmra.mxu0 %v1166
    %v1168 = vpop.f32.mrf.mxu0
    %v1169 = vadd.f32 %v1139, %v1168
    %1170 = vdwg.mxu0
    %1171 = vmatpush.msra.mxu0 0.0
    %1172 = vmatpush.msra.mxu0 0.0
    %1173 = vmatpush.msra.mxu0 0.0
    %1174 = vmatpush.msra.mxu0 0.0
    %1175 = vmatpush.msra.mxu0 0.0
    %1176 = vmatpush.msra.mxu0 0.0
    %1177 = vmatpush.msra.mxu0 0.0
    %v1178 = vand.u32 %v410, 4294901760
    %1179 = vmatpush.msra.mxu0 %v1178
    %v1180 = vand.u32 %v406, 4294901760
    %1181 = vmatpush.msra.mxu0 %v1180
    %v1182 = vand.u32 %v402, 4294901760
    %1183 = vmatpush.msra.mxu0 %v1182
    %v1184 = vand.u32 %v398, 4294901760
    %1185 = vmatpush.msra.mxu0 %v1184
    %v1186 = vand.u32 %v394, 4294901760
    %1187 = vmatpush.msra.mxu0 %v1186
    %v1188 = vand.u32 %v390, 4294901760
    %1189 = vmatpush.msra.mxu0 %v1188
    %v1190 = vand.u32 %v386, 4294901760
    %1191 = vmatpush.msra.mxu0 %v1190
    %v1192 = vand.u32 %v382, 4294901760
    %1193 = vmatpush.msra.mxu0 %v1192
    %v1194 = vand.u32 %v378, 4294901760
    %1195 = vmatpush.msra.mxu0 %v1194
    %v1196 = vand.u32 %v419, 4294901760
    %v1197 = vsub.f32 %v419, %v1196
    %v1198 = vand.u32 %v1197, 4294901760
    %v1199 = vsub.f32 %v1197, %v1198
    %v1200 = vand.u32 %v1199, 4294901760
    %1201 = vmatmul.f32.gmra.mxu0 %v1200
    %v1202 = vpop.f32.mrf.mxu0
    %v1203 = vadd.f32 %v415, %v1202
    %1204 = vdwg.mxu0
    %1205 = vmatpush.msra.mxu0 0.0
    %1206 = vmatpush.msra.mxu0 0.0
    %1207 = vmatpush.msra.mxu0 0.0
    %1208 = vmatpush.msra.mxu0 0.0
    %1209 = vmatpush.msra.mxu0 0.0
    %1210 = vmatpush.msra.mxu0 0.0
    %1211 = vmatpush.msra.mxu0 0.0
    %v1212 = vand.u32 %v410, 4294901760
    %v1213 = vsub.f32 %v410, %v1212
    %v1214 = vand.u32 %v1213, 4294901760
    %v1215 = vsub.f32 %v1213, %v1214
    %v1216 = vand.u32 %v1215, 4294901760
    %1217 = vmatpush.msra.mxu0 %v1216
    %v1218 = vand.u32 %v406, 4294901760
    %v1219 = vsub.f32 %v406, %v1218
    %v1220 = vand.u32 %v1219, 4294901760
    %v1221 = vsub.f32 %v1219, %v1220
    %v1222 = vand.u32 %v1221, 4294901760
    %1223 = vmatpush.msra.mxu0 %v1222
    %v1224 = vand.u32 %v402, 4294901760
    %v1225 = vsub.f32 %v402, %v1224
    %v1226 = vand.u32 %v1225, 4294901760
    %v1227 = vsub.f32 %v1225, %v1226
    %v1228 = vand.u32 %v1227, 4294901760
    %1229 = vmatpush.msra.mxu0 %v1228
    %v1230 = vand.u32 %v398, 4294901760
    %v1231 = vsub.f32 %v398, %v1230
    %v1232 = vand.u32 %v1231, 4294901760
    %v1233 = vsub.f32 %v1231, %v1232
    %v1234 = vand.u32 %v1233, 4294901760
    %1235 = vmatpush.msra.mxu0 %v1234
    %v1236 = vand.u32 %v394, 4294901760
    %v1237 = vsub.f32 %v394, %v1236
    %v1238 = vand.u32 %v1237, 4294901760
    %v1239 = vsub.f32 %v1237, %v1238
    %v1240 = vand.u32 %v1239, 4294901760
    %1241 = vmatpush.msra.mxu0 %v1240
    %v1242 = vand.u32 %v390, 4294901760
    %v1243 = vsub.f32 %v390, %v1242
    %v1244 = vand.u32 %v1243, 4294901760
    %v1245 = vsub.f32 %v1243, %v1244
    %v1246 = vand.u32 %v1245, 4294901760
    %1247 = vmatpush.msra.mxu0 %v1246
    %v1248 = vand.u32 %v386, 4294901760
    %v1249 = vsub.f32 %v386, %v1248
    %v1250 = vand.u32 %v1249, 4294901760
    %v1251 = vsub.f32 %v1249, %v1250
    %v1252 = vand.u32 %v1251, 4294901760
    %1253 = vmatpush.msra.mxu0 %v1252
    %v1254 = vand.u32 %v382, 4294901760
    %v1255 = vsub.f32 %v382, %v1254
    %v1256 = vand.u32 %v1255, 4294901760
    %v1257 = vsub.f32 %v1255, %v1256
    %v1258 = vand.u32 %v1257, 4294901760
    %1259 = vmatpush.msra.mxu0 %v1258
    %v1260 = vand.u32 %v378, 4294901760
    %v1261 = vsub.f32 %v378, %v1260
    %v1262 = vand.u32 %v1261, 4294901760
    %v1263 = vsub.f32 %v1261, %v1262
    %v1264 = vand.u32 %v1263, 4294901760
    %1265 = vmatpush.msra.mxu0 %v1264
    %v1266 = vand.u32 %v419, 4294901760
    %1267 = vmatmul.f32.gmra.mxu0 %v1266
    %v1268 = vpop.f32.mrf.mxu0
    %v1269 = vadd.f32 %v1203, %v1268
    %1270 = vdwg.mxu0
    %1271 = vmatpush.msra.mxu0 0.0
    %1272 = vmatpush.msra.mxu0 0.0
    %1273 = vmatpush.msra.mxu0 0.0
    %1274 = vmatpush.msra.mxu0 0.0
    %1275 = vmatpush.msra.mxu0 0.0
    %1276 = vmatpush.msra.mxu0 0.0
    %1277 = vmatpush.msra.mxu0 0.0
    %v1278 = vand.u32 %v410, 4294901760
    %v1279 = vsub.f32 %v410, %v1278
    %1280 = vmatpush.msra.mxu0 %v1279
    %v1281 = vand.u32 %v406, 4294901760
    %v1282 = vsub.f32 %v406, %v1281
    %1283 = vmatpush.msra.mxu0 %v1282
    %v1284 = vand.u32 %v402, 4294901760
    %v1285 = vsub.f32 %v402, %v1284
    %1286 = vmatpush.msra.mxu0 %v1285
    %v1287 = vand.u32 %v398, 4294901760
    %v1288 = vsub.f32 %v398, %v1287
    %1289 = vmatpush.msra.mxu0 %v1288
    %v1290 = vand.u32 %v394, 4294901760
    %v1291 = vsub.f32 %v394, %v1290
    %1292 = vmatpush.msra.mxu0 %v1291
    %v1293 = vand.u32 %v390, 4294901760
    %v1294 = vsub.f32 %v390, %v1293
    %1295 = vmatpush.msra.mxu0 %v1294
    %v1296 = vand.u32 %v386, 4294901760
    %v1297 = vsub.f32 %v386, %v1296
    %1298 = vmatpush.msra.mxu0 %v1297
    %v1299 = vand.u32 %v382, 4294901760
    %v1300 = vsub.f32 %v382, %v1299
    %1301 = vmatpush.msra.mxu0 %v1300
    %v1302 = vand.u32 %v378, 4294901760
    %v1303 = vsub.f32 %v378, %v1302
    %1304 = vmatpush.msra.mxu0 %v1303
    %v1305 = vand.u32 %v419, 4294901760
    %v1306 = vsub.f32 %v419, %v1305
    %1307 = vmatmul.f32.gmra.mxu0 %v1306
    %v1308 = vpop.f32.mrf.mxu0
    %v1309 = vadd.f32 %v1269, %v1308
    %1310 = vdwg.mxu0
    %1311 = vmatpush.msra.mxu0 0.0
    %1312 = vmatpush.msra.mxu0 0.0
    %1313 = vmatpush.msra.mxu0 0.0
    %1314 = vmatpush.msra.mxu0 0.0
    %1315 = vmatpush.msra.mxu0 0.0
    %1316 = vmatpush.msra.mxu0 0.0
    %1317 = vmatpush.msra.mxu0 0.0
    %v1318 = vand.u32 %v410, 4294901760
    %1319 = vmatpush.msra.mxu0 %v1318
    %v1320 = vand.u32 %v406, 4294901760
    %1321 = vmatpush.msra.mxu0 %v1320
    %v1322 = vand.u32 %v402, 4294901760
    %1323 = vmatpush.msra.mxu0 %v1322
    %v1324 = vand.u32 %v398, 4294901760
    %1325 = vmatpush.msra.mxu0 %v1324
    %v1326 = vand.u32 %v394, 4294901760
    %1327 = vmatpush.msra.mxu0 %v1326
    %v1328 = vand.u32 %v390, 4294901760
    %1329 = vmatpush.msra.mxu0 %v1328
    %v1330 = vand.u32 %v386, 4294901760
    %1331 = vmatpush.msra.mxu0 %v1330
    %v1332 = vand.u32 %v382, 4294901760
    %1333 = vmatpush.msra.mxu0 %v1332
    %v1334 = vand.u32 %v378, 4294901760
    %1335 = vmatpush.msra.mxu0 %v1334
    %v1336 = vand.u32 %v419, 4294901760
    %v1337 = vsub.f32 %v419, %v1336
    %v1338 = vand.u32 %v1337, 4294901760
    %1339 = vmatmul.f32.gmra.mxu0 %v1338
    %v1340 = vpop.f32.mrf.mxu0
    %v1341 = vadd.f32 %v1309, %v1340
    %1342 = vdwg.mxu0
    %1343 = vmatpush.msra.mxu0 0.0
    %1344 = vmatpush.msra.mxu0 0.0
    %1345 = vmatpush.msra.mxu0 0.0
    %1346 = vmatpush.msra.mxu0 0.0
    %1347 = vmatpush.msra.mxu0 0.0
    %1348 = vmatpush.msra.mxu0 0.0
    %1349 = vmatpush.msra.mxu0 0.0
    %v1350 = vand.u32 %v410, 4294901760
    %v1351 = vsub.f32 %v410, %v1350
    %v1352 = vand.u32 %v1351, 4294901760
    %1353 = vmatpush.msra.mxu0 %v1352
    %v1354 = vand.u32 %v406, 4294901760
    %v1355 = vsub.f32 %v406, %v1354
    %v1356 = vand.u32 %v1355, 4294901760
    %1357 = vmatpush.msra.mxu0 %v1356
    %v1358 = vand.u32 %v402, 4294901760
    %v1359 = vsub.f32 %v402, %v1358
    %v1360 = vand.u32 %v1359, 4294901760
    %1361 = vmatpush.msra.mxu0 %v1360
    %v1362 = vand.u32 %v398, 4294901760
    %v1363 = vsub.f32 %v398, %v1362
    %v1364 = vand.u32 %v1363, 4294901760
    %1365 = vmatpush.msra.mxu0 %v1364
    %v1366 = vand.u32 %v394, 4294901760
    %v1367 = vsub.f32 %v394, %v1366
    %v1368 = vand.u32 %v1367, 4294901760
    %1369 = vmatpush.msra.mxu0 %v1368
    %v1370 = vand.u32 %v390, 4294901760
    %v1371 = vsub.f32 %v390, %v1370
    %v1372 = vand.u32 %v1371, 4294901760
    %1373 = vmatpush.msra.mxu0 %v1372
    %v1374 = vand.u32 %v386, 4294901760
    %v1375 = vsub.f32 %v386, %v1374
    %v1376 = vand.u32 %v1375, 4294901760
    %1377 = vmatpush.msra.mxu0 %v1376
    %v1378 = vand.u32 %v382, 4294901760
    %v1379 = vsub.f32 %v382, %v1378
    %v1380 = vand.u32 %v1379, 4294901760
    %1381 = vmatpush.msra.mxu0 %v1380
    %v1382 = vand.u32 %v378, 4294901760
    %v1383 = vsub.f32 %v378, %v1382
    %v1384 = vand.u32 %v1383, 4294901760
    %1385 = vmatpush.msra.mxu0 %v1384
    %v1386 = vand.u32 %v419, 4294901760
    %1387 = vmatmul.f32.gmra.mxu0 %v1386
    %v1388 = vpop.f32.mrf.mxu0
    %v1389 = vadd.f32 %v1341, %v1388
    %1390 = vdwg.mxu0
    %1391 = vmatpush.msra.mxu0 0.0
    %1392 = vmatpush.msra.mxu0 0.0
    %1393 = vmatpush.msra.mxu0 0.0
    %1394 = vmatpush.msra.mxu0 0.0
    %1395 = vmatpush.msra.mxu0 0.0
    %1396 = vmatpush.msra.mxu0 0.0
    %1397 = vmatpush.msra.mxu0 0.0
    %v1398 = vand.u32 %v410, 4294901760
    %1399 = vmatpush.msra.mxu0 %v1398
    %v1400 = vand.u32 %v406, 4294901760
    %1401 = vmatpush.msra.mxu0 %v1400
    %v1402 = vand.u32 %v402, 4294901760
    %1403 = vmatpush.msra.mxu0 %v1402
    %v1404 = vand.u32 %v398, 4294901760
    %1405 = vmatpush.msra.mxu0 %v1404
    %v1406 = vand.u32 %v394, 4294901760
    %1407 = vmatpush.msra.mxu0 %v1406
    %v1408 = vand.u32 %v390, 4294901760
    %1409 = vmatpush.msra.mxu0 %v1408
    %v1410 = vand.u32 %v386, 4294901760
    %1411 = vmatpush.msra.mxu0 %v1410
    %v1412 = vand.u32 %v382, 4294901760
    %1413 = vmatpush.msra.mxu0 %v1412
    %v1414 = vand.u32 %v378, 4294901760
    %1415 = vmatpush.msra.mxu0 %v1414
    %v1416 = vand.u32 %v419, 4294901760
    %1417 = vmatmul.f32.gmra.mxu0 %v1416
    %v1418 = vpop.f32.mrf.mxu0
    %v1419 = vadd.f32 %v1389, %v1418
    %1420 = vdwg.mxu0
    %1421 = vrot.lane.b32.xlu0 %v669, 17
    %v1422 = vpop.permute.xlu0 %1421
    %1423 = vrot.lane.b32.xlu0 %v919, 17
    %v1424 = vpop.permute.xlu0 %1423
    %1425 = vrot.lane.b32.xlu0 %v1169, 17
    %v1426 = vpop.permute.xlu0 %1425
    %1427 = vrot.lane.b32.xlu0 %v1419, 17
    %v1428 = vpop.permute.xlu0 %1427
    %v1429 = vsel %vm123, %v1426, %v1428
    %v1430 = vsel %vm123, %v1424, %v1426
    %v1431 = vsel %vm123, %v1422, %v1424
    %v1432 = vsel %vm123, %v1428, %v1422
    %v1433 = vld [vmem:[#allocation4] ss:$8 sm:$0xf]
    %v1435 = vperm.slane %v1433, 0
    %v1436 = vperm.slane %v1433, 1
    %v1437 = vperm.slane %v1433, 2
    %v1438 = vperm.slane %v1433, 3
    %v1443 = vmul.f32 %v1432, %v1435
    %v1444 = vmul.f32 %v1431, %v1436
    %v1445 = vmul.f32 %v1430, %v1437
    %v1446 = vmul.f32 %v1429, %v1438
    %1447 = vst [vmem:[#allocation2] sm:$0xff] %v1443
    %1448 = vst [vmem:[#allocation2 + $0x8] sm:$0xff] %v1444
    %1449 = vst [vmem:[#allocation2 + $0x10] sm:$0xff] %v1445
    %1450 = vst [vmem:[#allocation2 + $0x18] sm:$0xff] %v1446
    %1451 = vrot.lane.b32.xlu0 %v669, 16
    %v1452 = vpop.permute.xlu0 %1451
    %1453 = vrot.lane.b32.xlu0 %v919, 16
    %v1454 = vpop.permute.xlu0 %1453
    %1455 = vrot.lane.b32.xlu0 %v1169, 16
    %v1456 = vpop.permute.xlu0 %1455
    %1457 = vrot.lane.b32.xlu0 %v1419, 16
    %v1458 = vpop.permute.xlu0 %1457
    %v1459 = vsel %vm154, %v1456, %v1458
    %v1460 = vsel %vm154, %v1454, %v1456
    %v1461 = vsel %vm154, %v1452, %v1454
    %v1462 = vsel %vm154, %v1458, %v1452
    %v1463 = vld [vmem:[%s159] ss:$8 sm:$0xf]
    %v1465 = vperm.slane %v1463, 0
    %v1466 = vperm.slane %v1463, 1
    %v1467 = vperm.slane %v1463, 2
    %v1468 = vperm.slane %v1463, 3
    %v1473 = vmul.f32 %v1462, %v1465
    %v1474 = vmul.f32 %v1461, %v1466
    %v1475 = vmul.f32 %v1460, %v1467
    %v1476 = vmul.f32 %v1459, %v1468
    %1477 = vst [vmem:[#allocation2 + $0x20] sm:$0xff] %v1473
    %1478 = vst [vmem:[#allocation2 + $0x28] sm:$0xff] %v1474
    %1479 = vst [vmem:[#allocation2 + $0x30] sm:$0xff] %v1475
    %1480 = vst [vmem:[#allocation2 + $0x38] sm:$0xff] %v1476
    %1481 = vrot.lane.b32.xlu0 %v669, 15
    %v1482 = vpop.permute.xlu0 %1481
    %1483 = vrot.lane.b32.xlu0 %v919, 15
    %v1484 = vpop.permute.xlu0 %1483
    %1485 = vrot.lane.b32.xlu0 %v1169, 15
    %v1486 = vpop.permute.xlu0 %1485
    %1487 = vrot.lane.b32.xlu0 %v1419, 15
    %v1488 = vpop.permute.xlu0 %1487
    %v1489 = vsel %vm186, %v1486, %v1488
    %v1490 = vsel %vm186, %v1484, %v1486
    %v1491 = vsel %vm186, %v1482, %v1484
    %v1492 = vsel %vm186, %v1488, %v1482
    %v1493 = vld [vmem:[%s191] ss:$8 sm:$0xf]
    %v1495 = vperm.slane %v1493, 0
    %v1496 = vperm.slane %v1493, 1
    %v1497 = vperm.slane %v1493, 2
    %v1498 = vperm.slane %v1493, 3
    %v1503 = vmul.f32 %v1492, %v1495
    %v1504 = vmul.f32 %v1491, %v1496
    %v1505 = vmul.f32 %v1490, %v1497
    %v1506 = vmul.f32 %v1489, %v1498
    %1507 = vst [vmem:[#allocation2 + $0x40] sm:$0xff] %v1503
    %1508 = vst [vmem:[#allocation2 + $0x48] sm:$0xff] %v1504
    %1509 = vst [vmem:[#allocation2 + $0x50] sm:$0xff] %v1505
    %1510 = vst [vmem:[#allocation2 + $0x58] sm:$0xff] %v1506
    %1511 = vrot.lane.b32.xlu0 %v669, 1
    %v1512 = vpop.permute.xlu0 %1511
    %1513 = vrot.lane.b32.xlu0 %v919, 1
    %v1514 = vpop.permute.xlu0 %1513
    %1515 = vrot.lane.b32.xlu0 %v1169, 1
    %v1516 = vpop.permute.xlu0 %1515
    %1517 = vrot.lane.b32.xlu0 %v1419, 1
    %v1518 = vpop.permute.xlu0 %1517
    %v1519 = vsel %vm218, %v1516, %v1518
    %v1520 = vsel %vm218, %v1514, %v1516
    %v1521 = vsel %vm218, %v1512, %v1514
    %v1522 = vsel %vm218, %v1518, %v1512
    %v1523 = vld [vmem:[%s223] ss:$8 sm:$0xf]
    %v1525 = vperm.slane %v1523, 0
    %v1526 = vperm.slane %v1523, 1
    %v1527 = vperm.slane %v1523, 2
    %v1528 = vperm.slane %v1523, 3
    %v1533 = vmul.f32 %v1522, %v1525
    %v1534 = vmul.f32 %v1521, %v1526
    %v1535 = vmul.f32 %v1520, %v1527
    %v1536 = vmul.f32 %v1519, %v1528
    %1537 = vst [vmem:[#allocation2 + $0x60] sm:$0xff] %v1533
    %1538 = vst [vmem:[#allocation2 + $0x68] sm:$0xff] %v1534
    %1539 = vst [vmem:[#allocation2 + $0x70] sm:$0xff] %v1535
    %1540 = vst [vmem:[#allocation2 + $0x78] sm:$0xff] %v1536
    %1541 = vst [vmem:[#allocation2 + $0x80] sm:$0xff] %v669
    %1542 = vst [vmem:[#allocation2 + $0x88] sm:$0xff] %v919
    %1543 = vst [vmem:[#allocation2 + $0x90] sm:$0xff] %v1169
    %1544 = vst [vmem:[#allocation2 + $0x98] sm:$0xff] %v1419
    %1545 = vrot.lane.b32.xlu0 %v669, 127
    %v1546 = vpop.permute.xlu0 %1545
    %1547 = vrot.lane.b32.xlu0 %v919, 127
    %v1548 = vpop.permute.xlu0 %1547
    %1549 = vrot.lane.b32.xlu0 %v1169, 127
    %v1550 = vpop.permute.xlu0 %1549
    %1551 = vrot.lane.b32.xlu0 %v1419, 127
    %v1552 = vpop.permute.xlu0 %1551
    %v1553 = vsel %vm254, %v1550, %v1552
    %v1554 = vsel %vm254, %v1548, %v1550
    %v1555 = vsel %vm254, %v1546, %v1548
    %v1556 = vsel %vm254, %v1552, %v1546
    %v1557 = vld [vmem:[%s259] ss:$8 sm:$0xf]
    %v1559 = vperm.slane %v1557, 0
    %v1560 = vperm.slane %v1557, 1
    %v1561 = vperm.slane %v1557, 2
    %v1562 = vperm.slane %v1557, 3
    %v1567 = vmul.f32 %v1555, %v1559
    %v1568 = vmul.f32 %v1554, %v1560
    %v1569 = vmul.f32 %v1553, %v1561
    %v1570 = vmul.f32 %v1556, %v1562
    %1571 = vst [vmem:[#allocation2 + $0xa0] sm:$0xff] %v1567
    %1572 = vst [vmem:[#allocation2 + $0xa8] sm:$0xff] %v1568
    %1573 = vst [vmem:[#allocation2 + $0xb0] sm:$0xff] %v1569
    %1574 = vst [vmem:[#allocation2 + $0xb8] sm:$0xff] %v1570
    %1575 = vrot.lane.b32.xlu0 %v669, 113
    %v1576 = vpop.permute.xlu0 %1575
    %1577 = vrot.lane.b32.xlu0 %v919, 113
    %v1578 = vpop.permute.xlu0 %1577
    %1579 = vrot.lane.b32.xlu0 %v1169, 113
    %v1580 = vpop.permute.xlu0 %1579
    %1581 = vrot.lane.b32.xlu0 %v1419, 113
    %v1582 = vpop.permute.xlu0 %1581
    %v1583 = vsel %vm286, %v1580, %v1582
    %v1584 = vsel %vm286, %v1578, %v1580
    %v1585 = vsel %vm286, %v1576, %v1578
    %v1586 = vsel %vm286, %v1582, %v1576
    %v1587 = vld [vmem:[%s291] ss:$8 sm:$0xf]
    %v1589 = vperm.slane %v1587, 0
    %v1590 = vperm.slane %v1587, 1
    %v1591 = vperm.slane %v1587, 2
    %v1592 = vperm.slane %v1587, 3
    %v1597 = vmul.f32 %v1585, %v1589
    %v1598 = vmul.f32 %v1584, %v1590
    %v1599 = vmul.f32 %v1583, %v1591
    %v1600 = vmul.f32 %v1586, %v1592
    %1601 = vst [vmem:[#allocation2 + $0xc0] sm:$0xff] %v1597
    %1602 = vst [vmem:[#allocation2 + $0xc8] sm:$0xff] %v1598
    %1603 = vst [vmem:[#allocation2 + $0xd0] sm:$0xff] %v1599
    %1604 = vst [vmem:[#allocation2 + $0xd8] sm:$0xff] %v1600
    %1605 = vrot.lane.b32.xlu0 %v669, 112
    %v1606 = vpop.permute.xlu0 %1605
    %1607 = vrot.lane.b32.xlu0 %v919, 112
    %v1608 = vpop.permute.xlu0 %1607
    %1609 = vrot.lane.b32.xlu0 %v1169, 112
    %v1610 = vpop.permute.xlu0 %1609
    %1611 = vrot.lane.b32.xlu0 %v1419, 112
    %v1612 = vpop.permute.xlu0 %1611
    %v1613 = vsel %vm318, %v1610, %v1612
    %v1614 = vsel %vm318, %v1608, %v1610
    %v1615 = vsel %vm318, %v1606, %v1608
    %v1616 = vsel %vm318, %v1612, %v1606
    %v1617 = vld [vmem:[%s323] ss:$8 sm:$0xf]
    %v1619 = vperm.slane %v1617, 0
    %v1620 = vperm.slane %v1617, 1
    %v1621 = vperm.slane %v1617, 2
    %v1622 = vperm.slane %v1617, 3
    %v1627 = vmul.f32 %v1615, %v1619
    %v1628 = vmul.f32 %v1614, %v1620
    %v1629 = vmul.f32 %v1613, %v1621
    %v1630 = vmul.f32 %v1616, %v1622
    %1631 = vst [vmem:[#allocation2 + $0xe0] sm:$0xff] %v1627
    %1632 = vst [vmem:[#allocation2 + $0xe8] sm:$0xff] %v1628
    %1633 = vst [vmem:[#allocation2 + $0xf0] sm:$0xff] %v1629
    %1634 = vst [vmem:[#allocation2 + $0xf8] sm:$0xff] %v1630
    %1635 = vrot.lane.b32.xlu0 %v669, 111
    %v1636 = vpop.permute.xlu0 %1635
    %1637 = vrot.lane.b32.xlu0 %v919, 111
    %v1638 = vpop.permute.xlu0 %1637
    %1639 = vrot.lane.b32.xlu0 %v1169, 111
    %v1640 = vpop.permute.xlu0 %1639
    %1641 = vrot.lane.b32.xlu0 %v1419, 111
    %v1642 = vpop.permute.xlu0 %1641
    %v1643 = vsel %vm350, %v1640, %v1642
    %v1644 = vsel %vm350, %v1638, %v1640
    %v1645 = vsel %vm350, %v1636, %v1638
    %v1646 = vsel %vm350, %v1642, %v1636
    %v1647 = vld [vmem:[%s355] ss:$8 sm:$0xf]
    %v1649 = vperm.slane %v1647, 0
    %v1650 = vperm.slane %v1647, 1
    %v1651 = vperm.slane %v1647, 2
    %v1652 = vperm.slane %v1647, 3
    %v1657 = vmul.f32 %v1645, %v1649
    %v1658 = vmul.f32 %v1644, %v1650
    %v1659 = vmul.f32 %v1643, %v1651
    %v1660 = vmul.f32 %v1646, %v1652
    %1661 = vst [vmem:[#allocation2 + $0x100] sm:$0xff] %v1657
    %1662 = vst [vmem:[#allocation2 + $0x108] sm:$0xff] %v1658
    %1663 = vst [vmem:[#allocation2 + $0x110] sm:$0xff] %v1659
    %1664 = vst [vmem:[#allocation2 + $0x118] sm:$0xff] %v1660
    %v1665 = vld [vmem:[#allocation9] sm:$0xff]
    %v1666 = vld [vmem:[#allocation2] sm:$0xff]
    %v1667 = vld [vmem:[#allocation2 + $0x8] sm:$0xff]
    %v1668 = vld [vmem:[#allocation2 + $0x10] sm:$0xff]
    %v1669 = vld [vmem:[#allocation2 + $0x18] sm:$0xff]
    %v1670 = vld [vmem:[#allocation2 + $0x20] sm:$0xff]
    %v1671 = vld [vmem:[#allocation2 + $0x28] sm:$0xff]
    %v1672 = vld [vmem:[#allocation2 + $0x30] sm:$0xff]
    %v1673 = vld [vmem:[#allocation2 + $0x38] sm:$0xff]
    %v1674 = vld [vmem:[#allocation2 + $0x40] sm:$0xff]
    %v1675 = vld [vmem:[#allocation2 + $0x48] sm:$0xff]
    %v1676 = vld [vmem:[#allocation2 + $0x50] sm:$0xff]
    %v1677 = vld [vmem:[#allocation2 + $0x58] sm:$0xff]
    %v1678 = vld [vmem:[#allocation2 + $0x60] sm:$0xff]
    %v1679 = vld [vmem:[#allocation2 + $0x68] sm:$0xff]
    %v1680 = vld [vmem:[#allocation2 + $0x70] sm:$0xff]
    %v1681 = vld [vmem:[#allocation2 + $0x78] sm:$0xff]
    %v1682 = vld [vmem:[#allocation2 + $0x80] sm:$0xff]
    %v1683 = vld [vmem:[#allocation2 + $0x88] sm:$0xff]
    %v1684 = vld [vmem:[#allocation2 + $0x90] sm:$0xff]
    %v1685 = vld [vmem:[#allocation2 + $0x98] sm:$0xff]
    %v1686 = vld [vmem:[#allocation2 + $0xa0] sm:$0xff]
    %v1687 = vld [vmem:[#allocation2 + $0xa8] sm:$0xff]
    %v1688 = vld [vmem:[#allocation2 + $0xb0] sm:$0xff]
    %v1689 = vld [vmem:[#allocation2 + $0xb8] sm:$0xff]
    %v1690 = vld [vmem:[#allocation2 + $0xc0] sm:$0xff]
    %v1691 = vld [vmem:[#allocation2 + $0xc8] sm:$0xff]
    %v1692 = vld [vmem:[#allocation2 + $0xd0] sm:$0xff]
    %v1693 = vld [vmem:[#allocation2 + $0xd8] sm:$0xff]
    %v1694 = vld [vmem:[#allocation2 + $0xe0] sm:$0xff]
    %v1695 = vld [vmem:[#allocation2 + $0xe8] sm:$0xff]
    %v1696 = vld [vmem:[#allocation2 + $0xf0] sm:$0xff]
    %v1697 = vld [vmem:[#allocation2 + $0xf8] sm:$0xff]
    %v1698 = vld [vmem:[#allocation2 + $0x100] sm:$0xff]
    %v1699 = vld [vmem:[#allocation2 + $0x108] sm:$0xff]
    %v1700 = vld [vmem:[#allocation2 + $0x110] sm:$0xff]
    %v1701 = vld [vmem:[#allocation2 + $0x118] sm:$0xff]
    %v1702 = vld [vmem:[%s5] sm:$0xff]
    %1704 = vset.pattern.permute.xlu0 0
    %1705 = vperm.xlu0 %1704, %v1702
    %v1706 = vpop.permute.xlu0 %1705
    %v1709 = vsel %vm417, %v1665, 0
    %1711 = vmatpush.msra.mxu0 0.0
    %1712 = vmatpush.msra.mxu0 0.0
    %1713 = vmatpush.msra.mxu0 0.0
    %1714 = vmatpush.msra.mxu0 0.0
    %1715 = vmatpush.msra.mxu0 0.0
    %1716 = vmatpush.msra.mxu0 0.0
    %1717 = vmatpush.msra.mxu0 0.0
    %v1718 = vand.u32 %v1698, 4294901760
    %1719 = vmatpush.msra.mxu0 %v1718
    %v1720 = vand.u32 %v1694, 4294901760
    %1721 = vmatpush.msra.mxu0 %v1720
    %v1722 = vand.u32 %v1690, 4294901760
    %1723 = vmatpush.msra.mxu0 %v1722
    %v1724 = vand.u32 %v1686, 4294901760
    %1725 = vmatpush.msra.mxu0 %v1724
    %v1726 = vand.u32 %v1682, 4294901760
    %1727 = vmatpush.msra.mxu0 %v1726
    %v1728 = vand.u32 %v1678, 4294901760
    %1729 = vmatpush.msra.mxu0 %v1728
    %v1730 = vand.u32 %v1674, 4294901760
    %1731 = vmatpush.msra.mxu0 %v1730
    %v1732 = vand.u32 %v1670, 4294901760
    %1733 = vmatpush.msra.mxu0 %v1732
    %v1734 = vand.u32 %v1666, 4294901760
    %1735 = vmatpush.msra.mxu0 %v1734
    %v1736 = vand.u32 %v1709, 4294901760
    %v1737 = vsub.f32 %v1709, %v1736
    %v1738 = vand.u32 %v1737, 4294901760
    %v1739 = vsub.f32 %v1737, %v1738
    %v1740 = vand.u32 %v1739, 4294901760
    %1741 = vmatmul.f32.gmra.mxu0 %v1740
    %v1742 = vpop.f32.mrf.mxu0
    %v1743 = vadd.f32 %v1706, %v1742
    %1744 = vdwg.mxu0
    %1745 = vmatpush.msra.mxu0 0.0
    %1746 = vmatpush.msra.mxu0 0.0
    %1747 = vmatpush.msra.mxu0 0.0
    %1748 = vmatpush.msra.mxu0 0.0
    %1749 = vmatpush.msra.mxu0 0.0
    %1750 = vmatpush.msra.mxu0 0.0
    %1751 = vmatpush.msra.mxu0 0.0
    %v1752 = vand.u32 %v1698, 4294901760
    %v1753 = vsub.f32 %v1698, %v1752
    %v1754 = vand.u32 %v1753, 4294901760
    %v1755 = vsub.f32 %v1753, %v1754
    %v1756 = vand.u32 %v1755, 4294901760
    %1757 = vmatpush.msra.mxu0 %v1756
    %v1758 = vand.u32 %v1694, 4294901760
    %v1759 = vsub.f32 %v1694, %v1758
    %v1760 = vand.u32 %v1759, 4294901760
    %v1761 = vsub.f32 %v1759, %v1760
    %v1762 = vand.u32 %v1761, 4294901760
    %1763 = vmatpush.msra.mxu0 %v1762
    %v1764 = vand.u32 %v1690, 4294901760
    %v1765 = vsub.f32 %v1690, %v1764
    %v1766 = vand.u32 %v1765, 4294901760
    %v1767 = vsub.f32 %v1765, %v1766
    %v1768 = vand.u32 %v1767, 4294901760
    %1769 = vmatpush.msra.mxu0 %v1768
    %v1770 = vand.u32 %v1686, 4294901760
    %v1771 = vsub.f32 %v1686, %v1770
    %v1772 = vand.u32 %v1771, 4294901760
    %v1773 = vsub.f32 %v1771, %v1772
    %v1774 = vand.u32 %v1773, 4294901760
    %1775 = vmatpush.msra.mxu0 %v1774
    %v1776 = vand.u32 %v1682, 4294901760
    %v1777 = vsub.f32 %v1682, %v1776
    %v1778 = vand.u32 %v1777, 4294901760
    %v1779 = vsub.f32 %v1777, %v1778
    %v1780 = vand.u32 %v1779, 4294901760
    %1781 = vmatpush.msra.mxu0 %v1780
    %v1782 = vand.u32 %v1678, 4294901760
    %v1783 = vsub.f32 %v1678, %v1782
    %v1784 = vand.u32 %v1783, 4294901760
    %v1785 = vsub.f32 %v1783, %v1784
    %v1786 = vand.u32 %v1785, 4294901760
    %1787 = vmatpush.msra.mxu0 %v1786
    %v1788 = vand.u32 %v1674, 4294901760
    %v1789 = vsub.f32 %v1674, %v1788
    %v1790 = vand.u32 %v1789, 4294901760
    %v1791 = vsub.f32 %v1789, %v1790
    %v1792 = vand.u32 %v1791, 4294901760
    %1793 = vmatpush.msra.mxu0 %v1792
    %v1794 = vand.u32 %v1670, 4294901760
    %v1795 = vsub.f32 %v1670, %v1794
    %v1796 = vand.u32 %v1795, 4294901760
    %v1797 = vsub.f32 %v1795, %v1796
    %v1798 = vand.u32 %v1797, 4294901760
    %1799 = vmatpush.msra.mxu0 %v1798
    %v1800 = vand.u32 %v1666, 4294901760
    %v1801 = vsub.f32 %v1666, %v1800
    %v1802 = vand.u32 %v1801, 4294901760
    %v1803 = vsub.f32 %v1801, %v1802
    %v1804 = vand.u32 %v1803, 4294901760
    %1805 = vmatpush.msra.mxu0 %v1804
    %v1806 = vand.u32 %v1709, 4294901760
    %1807 = vmatmul.f32.gmra.mxu0 %v1806
    %v1808 = vpop.f32.mrf.mxu0
    %v1809 = vadd.f32 %v1743, %v1808
    %1810 = vdwg.mxu0
    %1811 = vmatpush.msra.mxu0 0.0
    %1812 = vmatpush.msra.mxu0 0.0
    %1813 = vmatpush.msra.mxu0 0.0
    %1814 = vmatpush.msra.mxu0 0.0
    %1815 = vmatpush.msra.mxu0 0.0
    %1816 = vmatpush.msra.mxu0 0.0
    %1817 = vmatpush.msra.mxu0 0.0
    %v1818 = vand.u32 %v1698, 4294901760
    %v1819 = vsub.f32 %v1698, %v1818
    %1820 = vmatpush.msra.mxu0 %v1819
    %v1821 = vand.u32 %v1694, 4294901760
    %v1822 = vsub.f32 %v1694, %v1821
    %1823 = vmatpush.msra.mxu0 %v1822
    %v1824 = vand.u32 %v1690, 4294901760
    %v1825 = vsub.f32 %v1690, %v1824
    %1826 = vmatpush.msra.mxu0 %v1825
    %v1827 = vand.u32 %v1686, 4294901760
    %v1828 = vsub.f32 %v1686, %v1827
    %1829 = vmatpush.msra.mxu0 %v1828
    %v1830 = vand.u32 %v1682, 4294901760
    %v1831 = vsub.f32 %v1682, %v1830
    %1832 = vmatpush.msra.mxu0 %v1831
    %v1833 = vand.u32 %v1678, 4294901760
    %v1834 = vsub.f32 %v1678, %v1833
    %1835 = vmatpush.msra.mxu0 %v1834
    %v1836 = vand.u32 %v1674, 4294901760
    %v1837 = vsub.f32 %v1674, %v1836
    %1838 = vmatpush.msra.mxu0 %v1837
    %v1839 = vand.u32 %v1670, 4294901760
    %v1840 = vsub.f32 %v1670, %v1839
    %1841 = vmatpush.msra.mxu0 %v1840
    %v1842 = vand.u32 %v1666, 4294901760
    %v1843 = vsub.f32 %v1666, %v1842
    %1844 = vmatpush.msra.mxu0 %v1843
    %v1845 = vand.u32 %v1709, 4294901760
    %v1846 = vsub.f32 %v1709, %v1845
    %1847 = vmatmul.f32.gmra.mxu0 %v1846
    %v1848 = vpop.f32.mrf.mxu0
    %v1849 = vadd.f32 %v1809, %v1848
    %1850 = vdwg.mxu0
    %1851 = vmatpush.msra.mxu0 0.0
    %1852 = vmatpush.msra.mxu0 0.0
    %1853 = vmatpush.msra.mxu0 0.0
    %1854 = vmatpush.msra.mxu0 0.0
    %1855 = vmatpush.msra.mxu0 0.0
    %1856 = vmatpush.msra.mxu0 0.0
    %1857 = vmatpush.msra.mxu0 0.0
    %v1858 = vand.u32 %v1698, 4294901760
    %1859 = vmatpush.msra.mxu0 %v1858
    %v1860 = vand.u32 %v1694, 4294901760
    %1861 = vmatpush.msra.mxu0 %v1860
    %v1862 = vand.u32 %v1690, 4294901760
    %1863 = vmatpush.msra.mxu0 %v1862
    %v1864 = vand.u32 %v1686, 4294901760
    %1865 = vmatpush.msra.mxu0 %v1864
    %v1866 = vand.u32 %v1682, 4294901760
    %1867 = vmatpush.msra.mxu0 %v1866
    %v1868 = vand.u32 %v1678, 4294901760
    %1869 = vmatpush.msra.mxu0 %v1868
    %v1870 = vand.u32 %v1674, 4294901760
    %1871 = vmatpush.msra.mxu0 %v1870
    %v1872 = vand.u32 %v1670, 4294901760
    %1873 = vmatpush.msra.mxu0 %v1872
    %v1874 = vand.u32 %v1666, 4294901760
    %1875 = vmatpush.msra.mxu0 %v1874
    %v1876 = vand.u32 %v1709, 4294901760
    %v1877 = vsub.f32 %v1709, %v1876
    %v1878 = vand.u32 %v1877, 4294901760
    %1879 = vmatmul.f32.gmra.mxu0 %v1878
    %v1880 = vpop.f32.mrf.mxu0
    %v1881 = vadd.f32 %v1849, %v1880
    %1882 = vdwg.mxu0
    %1883 = vmatpush.msra.mxu0 0.0
    %1884 = vmatpush.msra.mxu0 0.0
    %1885 = vmatpush.msra.mxu0 0.0
    %1886 = vmatpush.msra.mxu0 0.0
    %1887 = vmatpush.msra.mxu0 0.0
    %1888 = vmatpush.msra.mxu0 0.0
    %1889 = vmatpush.msra.mxu0 0.0
    %v1890 = vand.u32 %v1698, 4294901760
    %v1891 = vsub.f32 %v1698, %v1890
    %v1892 = vand.u32 %v1891, 4294901760
    %1893 = vmatpush.msra.mxu0 %v1892
    %v1894 = vand.u32 %v1694, 4294901760
    %v1895 = vsub.f32 %v1694, %v1894
    %v1896 = vand.u32 %v1895, 4294901760
    %1897 = vmatpush.msra.mxu0 %v1896
    %v1898 = vand.u32 %v1690, 4294901760
    %v1899 = vsub.f32 %v1690, %v1898
    %v1900 = vand.u32 %v1899, 4294901760
    %1901 = vmatpush.msra.mxu0 %v1900
    %v1902 = vand.u32 %v1686, 4294901760
    %v1903 = vsub.f32 %v1686, %v1902
    %v1904 = vand.u32 %v1903, 4294901760
    %1905 = vmatpush.msra.mxu0 %v1904
    %v1906 = vand.u32 %v1682, 4294901760
    %v1907 = vsub.f32 %v1682, %v1906
    %v1908 = vand.u32 %v1907, 4294901760
    %1909 = vmatpush.msra.mxu0 %v1908
    %v1910 = vand.u32 %v1678, 4294901760
    %v1911 = vsub.f32 %v1678, %v1910
    %v1912 = vand.u32 %v1911, 4294901760
    %1913 = vmatpush.msra.mxu0 %v1912
    %v1914 = vand.u32 %v1674, 4294901760
    %v1915 = vsub.f32 %v1674, %v1914
    %v1916 = vand.u32 %v1915, 4294901760
    %1917 = vmatpush.msra.mxu0 %v1916
    %v1918 = vand.u32 %v1670, 4294901760
    %v1919 = vsub.f32 %v1670, %v1918
    %v1920 = vand.u32 %v1919, 4294901760
    %1921 = vmatpush.msra.mxu0 %v1920
    %v1922 = vand.u32 %v1666, 4294901760
    %v1923 = vsub.f32 %v1666, %v1922
    %v1924 = vand.u32 %v1923, 4294901760
    %1925 = vmatpush.msra.mxu0 %v1924
    %v1926 = vand.u32 %v1709, 4294901760
    %1927 = vmatmul.f32.gmra.mxu0 %v1926
    %v1928 = vpop.f32.mrf.mxu0
    %v1929 = vadd.f32 %v1881, %v1928
    %1930 = vdwg.mxu0
    %1931 = vmatpush.msra.mxu0 0.0
    %1932 = vmatpush.msra.mxu0 0.0
    %1933 = vmatpush.msra.mxu0 0.0
    %1934 = vmatpush.msra.mxu0 0.0
    %1935 = vmatpush.msra.mxu0 0.0
    %1936 = vmatpush.msra.mxu0 0.0
    %1937 = vmatpush.msra.mxu0 0.0
    %v1938 = vand.u32 %v1698, 4294901760
    %1939 = vmatpush.msra.mxu0 %v1938
    %v1940 = vand.u32 %v1694, 4294901760
    %1941 = vmatpush.msra.mxu0 %v1940
    %v1942 = vand.u32 %v1690, 4294901760
    %1943 = vmatpush.msra.mxu0 %v1942
    %v1944 = vand.u32 %v1686, 4294901760
    %1945 = vmatpush.msra.mxu0 %v1944
    %v1946 = vand.u32 %v1682, 4294901760
    %1947 = vmatpush.msra.mxu0 %v1946
    %v1948 = vand.u32 %v1678, 4294901760
    %1949 = vmatpush.msra.mxu0 %v1948
    %v1950 = vand.u32 %v1674, 4294901760
    %1951 = vmatpush.msra.mxu0 %v1950
    %v1952 = vand.u32 %v1670, 4294901760
    %1953 = vmatpush.msra.mxu0 %v1952
    %v1954 = vand.u32 %v1666, 4294901760
    %1955 = vmatpush.msra.mxu0 %v1954
    %v1956 = vand.u32 %v1709, 4294901760
    %1957 = vmatmul.f32.gmra.mxu0 %v1956
    %v1958 = vpop.f32.mrf.mxu0
    %v1959 = vadd.f32 %v1929, %v1958
    %1960 = vdwg.mxu0
    %1961 = vmatpush.msra.mxu0 0.0
    %1962 = vmatpush.msra.mxu0 0.0
    %1963 = vmatpush.msra.mxu0 0.0
    %1964 = vmatpush.msra.mxu0 0.0
    %1965 = vmatpush.msra.mxu0 0.0
    %1966 = vmatpush.msra.mxu0 0.0
    %1967 = vmatpush.msra.mxu0 0.0
    %v1968 = vand.u32 %v1699, 4294901760
    %1969 = vmatpush.msra.mxu0 %v1968
    %v1970 = vand.u32 %v1695, 4294901760
    %1971 = vmatpush.msra.mxu0 %v1970
    %v1972 = vand.u32 %v1691, 4294901760
    %1973 = vmatpush.msra.mxu0 %v1972
    %v1974 = vand.u32 %v1687, 4294901760
    %1975 = vmatpush.msra.mxu0 %v1974
    %v1976 = vand.u32 %v1683, 4294901760
    %1977 = vmatpush.msra.mxu0 %v1976
    %v1978 = vand.u32 %v1679, 4294901760
    %1979 = vmatpush.msra.mxu0 %v1978
    %v1980 = vand.u32 %v1675, 4294901760
    %1981 = vmatpush.msra.mxu0 %v1980
    %v1982 = vand.u32 %v1671, 4294901760
    %1983 = vmatpush.msra.mxu0 %v1982
    %v1984 = vand.u32 %v1667, 4294901760
    %1985 = vmatpush.msra.mxu0 %v1984
    %v1986 = vand.u32 %v1709, 4294901760
    %v1987 = vsub.f32 %v1709, %v1986
    %v1988 = vand.u32 %v1987, 4294901760
    %v1989 = vsub.f32 %v1987, %v1988
    %v1990 = vand.u32 %v1989, 4294901760
    %1991 = vmatmul.f32.gmra.mxu0 %v1990
    %v1992 = vpop.f32.mrf.mxu0
    %v1993 = vadd.f32 %v1706, %v1992
    %1994 = vdwg.mxu0
    %1995 = vmatpush.msra.mxu0 0.0
    %1996 = vmatpush.msra.mxu0 0.0
    %1997 = vmatpush.msra.mxu0 0.0
    %1998 = vmatpush.msra.mxu0 0.0
    %1999 = vmatpush.msra.mxu0 0.0
    %2000 = vmatpush.msra.mxu0 0.0
    %2001 = vmatpush.msra.mxu0 0.0
    %v2002 = vand.u32 %v1699, 4294901760
    %v2003 = vsub.f32 %v1699, %v2002
    %v2004 = vand.u32 %v2003, 4294901760
    %v2005 = vsub.f32 %v2003, %v2004
    %v2006 = vand.u32 %v2005, 4294901760
    %2007 = vmatpush.msra.mxu0 %v2006
    %v2008 = vand.u32 %v1695, 4294901760
    %v2009 = vsub.f32 %v1695, %v2008
    %v2010 = vand.u32 %v2009, 4294901760
    %v2011 = vsub.f32 %v2009, %v2010
    %v2012 = vand.u32 %v2011, 4294901760
    %2013 = vmatpush.msra.mxu0 %v2012
    %v2014 = vand.u32 %v1691, 4294901760
    %v2015 = vsub.f32 %v1691, %v2014
    %v2016 = vand.u32 %v2015, 4294901760
    %v2017 = vsub.f32 %v2015, %v2016
    %v2018 = vand.u32 %v2017, 4294901760
    %2019 = vmatpush.msra.mxu0 %v2018
    %v2020 = vand.u32 %v1687, 4294901760
    %v2021 = vsub.f32 %v1687, %v2020
    %v2022 = vand.u32 %v2021, 4294901760
    %v2023 = vsub.f32 %v2021, %v2022
    %v2024 = vand.u32 %v2023, 4294901760
    %2025 = vmatpush.msra.mxu0 %v2024
    %v2026 = vand.u32 %v1683, 4294901760
    %v2027 = vsub.f32 %v1683, %v2026
    %v2028 = vand.u32 %v2027, 4294901760
    %v2029 = vsub.f32 %v2027, %v2028
    %v2030 = vand.u32 %v2029, 4294901760
    %2031 = vmatpush.msra.mxu0 %v2030
    %v2032 = vand.u32 %v1679, 4294901760
    %v2033 = vsub.f32 %v1679, %v2032
    %v2034 = vand.u32 %v2033, 4294901760
    %v2035 = vsub.f32 %v2033, %v2034
    %v2036 = vand.u32 %v2035, 4294901760
    %2037 = vmatpush.msra.mxu0 %v2036
    %v2038 = vand.u32 %v1675, 4294901760
    %v2039 = vsub.f32 %v1675, %v2038
    %v2040 = vand.u32 %v2039, 4294901760
    %v2041 = vsub.f32 %v2039, %v2040
    %v2042 = vand.u32 %v2041, 4294901760
    %2043 = vmatpush.msra.mxu0 %v2042
    %v2044 = vand.u32 %v1671, 4294901760
    %v2045 = vsub.f32 %v1671, %v2044
    %v2046 = vand.u32 %v2045, 4294901760
    %v2047 = vsub.f32 %v2045, %v2046
    %v2048 = vand.u32 %v2047, 4294901760
    %2049 = vmatpush.msra.mxu0 %v2048
    %v2050 = vand.u32 %v1667, 4294901760
    %v2051 = vsub.f32 %v1667, %v2050
    %v2052 = vand.u32 %v2051, 4294901760
    %v2053 = vsub.f32 %v2051, %v2052
    %v2054 = vand.u32 %v2053, 4294901760
    %2055 = vmatpush.msra.mxu0 %v2054
    %v2056 = vand.u32 %v1709, 4294901760
    %2057 = vmatmul.f32.gmra.mxu0 %v2056
    %v2058 = vpop.f32.mrf.mxu0
    %v2059 = vadd.f32 %v1993, %v2058
    %2060 = vdwg.mxu0
    %2061 = vmatpush.msra.mxu0 0.0
    %2062 = vmatpush.msra.mxu0 0.0
    %2063 = vmatpush.msra.mxu0 0.0
    %2064 = vmatpush.msra.mxu0 0.0
    %2065 = vmatpush.msra.mxu0 0.0
    %2066 = vmatpush.msra.mxu0 0.0
    %2067 = vmatpush.msra.mxu0 0.0
    %v2068 = vand.u32 %v1699, 4294901760
    %v2069 = vsub.f32 %v1699, %v2068
    %2070 = vmatpush.msra.mxu0 %v2069
    %v2071 = vand.u32 %v1695, 4294901760
    %v2072 = vsub.f32 %v1695, %v2071
    %2073 = vmatpush.msra.mxu0 %v2072
    %v2074 = vand.u32 %v1691, 4294901760
    %v2075 = vsub.f32 %v1691, %v2074
    %2076 = vmatpush.msra.mxu0 %v2075
    %v2077 = vand.u32 %v1687, 4294901760
    %v2078 = vsub.f32 %v1687, %v2077
    %2079 = vmatpush.msra.mxu0 %v2078
    %v2080 = vand.u32 %v1683, 4294901760
    %v2081 = vsub.f32 %v1683, %v2080
    %2082 = vmatpush.msra.mxu0 %v2081
    %v2083 = vand.u32 %v1679, 4294901760
    %v2084 = vsub.f32 %v1679, %v2083
    %2085 = vmatpush.msra.mxu0 %v2084
    %v2086 = vand.u32 %v1675, 4294901760
    %v2087 = vsub.f32 %v1675, %v2086
    %2088 = vmatpush.msra.mxu0 %v2087
    %v2089 = vand.u32 %v1671, 4294901760
    %v2090 = vsub.f32 %v1671, %v2089
    %2091 = vmatpush.msra.mxu0 %v2090
    %v2092 = vand.u32 %v1667, 4294901760
    %v2093 = vsub.f32 %v1667, %v2092
    %2094 = vmatpush.msra.mxu0 %v2093
    %v2095 = vand.u32 %v1709, 4294901760
    %v2096 = vsub.f32 %v1709, %v2095
    %2097 = vmatmul.f32.gmra.mxu0 %v2096
    %v2098 = vpop.f32.mrf.mxu0
    %v2099 = vadd.f32 %v2059, %v2098
    %2100 = vdwg.mxu0
    %2101 = vmatpush.msra.mxu0 0.0
    %2102 = vmatpush.msra.mxu0 0.0
    %2103 = vmatpush.msra.mxu0 0.0
    %2104 = vmatpush.msra.mxu0 0.0
    %2105 = vmatpush.msra.mxu0 0.0
    %2106 = vmatpush.msra.mxu0 0.0
    %2107 = vmatpush.msra.mxu0 0.0
    %v2108 = vand.u32 %v1699, 4294901760
    %2109 = vmatpush.msra.mxu0 %v2108
    %v2110 = vand.u32 %v1695, 4294901760
    %2111 = vmatpush.msra.mxu0 %v2110
    %v2112 = vand.u32 %v1691, 4294901760
    %2113 = vmatpush.msra.mxu0 %v2112
    %v2114 = vand.u32 %v1687, 4294901760
    %2115 = vmatpush.msra.mxu0 %v2114
    %v2116 = vand.u32 %v1683, 4294901760
    %2117 = vmatpush.msra.mxu0 %v2116
    %v2118 = vand.u32 %v1679, 4294901760
    %2119 = vmatpush.msra.mxu0 %v2118
    %v2120 = vand.u32 %v1675, 4294901760
    %2121 = vmatpush.msra.mxu0 %v2120
    %v2122 = vand.u32 %v1671, 4294901760
    %2123 = vmatpush.msra.mxu0 %v2122
    %v2124 = vand.u32 %v1667, 4294901760
    %2125 = vmatpush.msra.mxu0 %v2124
    %v2126 = vand.u32 %v1709, 4294901760
    %v2127 = vsub.f32 %v1709, %v2126
    %v2128 = vand.u32 %v2127, 4294901760
    %2129 = vmatmul.f32.gmra.mxu0 %v2128
    %v2130 = vpop.f32.mrf.mxu0
    %v2131 = vadd.f32 %v2099, %v2130
    %2132 = vdwg.mxu0
    %2133 = vmatpush.msra.mxu0 0.0
    %2134 = vmatpush.msra.mxu0 0.0
    %2135 = vmatpush.msra.mxu0 0.0
    %2136 = vmatpush.msra.mxu0 0.0
    %2137 = vmatpush.msra.mxu0 0.0
    %2138 = vmatpush.msra.mxu0 0.0
    %2139 = vmatpush.msra.mxu0 0.0
    %v2140 = vand.u32 %v1699, 4294901760
    %v2141 = vsub.f32 %v1699, %v2140
    %v2142 = vand.u32 %v2141, 4294901760
    %2143 = vmatpush.msra.mxu0 %v2142
    %v2144 = vand.u32 %v1695, 4294901760
    %v2145 = vsub.f32 %v1695, %v2144
    %v2146 = vand.u32 %v2145, 4294901760
    %2147 = vmatpush.msra.mxu0 %v2146
    %v2148 = vand.u32 %v1691, 4294901760
    %v2149 = vsub.f32 %v1691, %v2148
    %v2150 = vand.u32 %v2149, 4294901760
    %2151 = vmatpush.msra.mxu0 %v2150
    %v2152 = vand.u32 %v1687, 4294901760
    %v2153 = vsub.f32 %v1687, %v2152
    %v2154 = vand.u32 %v2153, 4294901760
    %2155 = vmatpush.msra.mxu0 %v2154
    %v2156 = vand.u32 %v1683, 4294901760
    %v2157 = vsub.f32 %v1683, %v2156
    %v2158 = vand.u32 %v2157, 4294901760
    %2159 = vmatpush.msra.mxu0 %v2158
    %v2160 = vand.u32 %v1679, 4294901760
    %v2161 = vsub.f32 %v1679, %v2160
    %v2162 = vand.u32 %v2161, 4294901760
    %2163 = vmatpush.msra.mxu0 %v2162
    %v2164 = vand.u32 %v1675, 4294901760
    %v2165 = vsub.f32 %v1675, %v2164
    %v2166 = vand.u32 %v2165, 4294901760
    %2167 = vmatpush.msra.mxu0 %v2166
    %v2168 = vand.u32 %v1671, 4294901760
    %v2169 = vsub.f32 %v1671, %v2168
    %v2170 = vand.u32 %v2169, 4294901760
    %2171 = vmatpush.msra.mxu0 %v2170
    %v2172 = vand.u32 %v1667, 4294901760
    %v2173 = vsub.f32 %v1667, %v2172
    %v2174 = vand.u32 %v2173, 4294901760
    %2175 = vmatpush.msra.mxu0 %v2174
    %v2176 = vand.u32 %v1709, 4294901760
    %2177 = vmatmul.f32.gmra.mxu0 %v2176
    %v2178 = vpop.f32.mrf.mxu0
    %v2179 = vadd.f32 %v2131, %v2178
    %2180 = vdwg.mxu0
    %2181 = vmatpush.msra.mxu0 0.0
    %2182 = vmatpush.msra.mxu0 0.0
    %2183 = vmatpush.msra.mxu0 0.0
    %2184 = vmatpush.msra.mxu0 0.0
    %2185 = vmatpush.msra.mxu0 0.0
    %2186 = vmatpush.msra.mxu0 0.0
    %2187 = vmatpush.msra.mxu0 0.0
    %v2188 = vand.u32 %v1699, 4294901760
    %2189 = vmatpush.msra.mxu0 %v2188
    %v2190 = vand.u32 %v1695, 4294901760
    %2191 = vmatpush.msra.mxu0 %v2190
    %v2192 = vand.u32 %v1691, 4294901760
    %2193 = vmatpush.msra.mxu0 %v2192
    %v2194 = vand.u32 %v1687, 4294901760
    %2195 = vmatpush.msra.mxu0 %v2194
    %v2196 = vand.u32 %v1683, 4294901760
    %2197 = vmatpush.msra.mxu0 %v2196
    %v2198 = vand.u32 %v1679, 4294901760
    %2199 = vmatpush.msra.mxu0 %v2198
    %v2200 = vand.u32 %v1675, 4294901760
    %2201 = vmatpush.msra.mxu0 %v2200
    %v2202 = vand.u32 %v1671, 4294901760
    %2203 = vmatpush.msra.mxu0 %v2202
    %v2204 = vand.u32 %v1667, 4294901760
    %2205 = vmatpush.msra.mxu0 %v2204
    %v2206 = vand.u32 %v1709, 4294901760
    %2207 = vmatmul.f32.gmra.mxu0 %v2206
    %v2208 = vpop.f32.mrf.mxu0
    %v2209 = vadd.f32 %v2179, %v2208
    %2210 = vdwg.mxu0
    %2211 = vmatpush.msra.mxu0 0.0
    %2212 = vmatpush.msra.mxu0 0.0
    %2213 = vmatpush.msra.mxu0 0.0
    %2214 = vmatpush.msra.mxu0 0.0
    %2215 = vmatpush.msra.mxu0 0.0
    %2216 = vmatpush.msra.mxu0 0.0
    %2217 = vmatpush.msra.mxu0 0.0
    %v2218 = vand.u32 %v1700, 4294901760
    %2219 = vmatpush.msra.mxu0 %v2218
    %v2220 = vand.u32 %v1696, 4294901760
    %2221 = vmatpush.msra.mxu0 %v2220
    %v2222 = vand.u32 %v1692, 4294901760
    %2223 = vmatpush.msra.mxu0 %v2222
    %v2224 = vand.u32 %v1688, 4294901760
    %2225 = vmatpush.msra.mxu0 %v2224
    %v2226 = vand.u32 %v1684, 4294901760
    %2227 = vmatpush.msra.mxu0 %v2226
    %v2228 = vand.u32 %v1680, 4294901760
    %2229 = vmatpush.msra.mxu0 %v2228
    %v2230 = vand.u32 %v1676, 4294901760
    %2231 = vmatpush.msra.mxu0 %v2230
    %v2232 = vand.u32 %v1672, 4294901760
    %2233 = vmatpush.msra.mxu0 %v2232
    %v2234 = vand.u32 %v1668, 4294901760
    %2235 = vmatpush.msra.mxu0 %v2234
    %v2236 = vand.u32 %v1709, 4294901760
    %v2237 = vsub.f32 %v1709, %v2236
    %v2238 = vand.u32 %v2237, 4294901760
    %v2239 = vsub.f32 %v2237, %v2238
    %v2240 = vand.u32 %v2239, 4294901760
    %2241 = vmatmul.f32.gmra.mxu0 %v2240
    %v2242 = vpop.f32.mrf.mxu0
    %v2243 = vadd.f32 %v1706, %v2242
    %2244 = vdwg.mxu0
    %2245 = vmatpush.msra.mxu0 0.0
    %2246 = vmatpush.msra.mxu0 0.0
    %2247 = vmatpush.msra.mxu0 0.0
    %2248 = vmatpush.msra.mxu0 0.0
    %2249 = vmatpush.msra.mxu0 0.0
    %2250 = vmatpush.msra.mxu0 0.0
    %2251 = vmatpush.msra.mxu0 0.0
    %v2252 = vand.u32 %v1700, 4294901760
    %v2253 = vsub.f32 %v1700, %v2252
    %v2254 = vand.u32 %v2253, 4294901760
    %v2255 = vsub.f32 %v2253, %v2254
    %v2256 = vand.u32 %v2255, 4294901760
    %2257 = vmatpush.msra.mxu0 %v2256
    %v2258 = vand.u32 %v1696, 4294901760
    %v2259 = vsub.f32 %v1696, %v2258
    %v2260 = vand.u32 %v2259, 4294901760
    %v2261 = vsub.f32 %v2259, %v2260
    %v2262 = vand.u32 %v2261, 4294901760
    %2263 = vmatpush.msra.mxu0 %v2262
    %v2264 = vand.u32 %v1692, 4294901760
    %v2265 = vsub.f32 %v1692, %v2264
    %v2266 = vand.u32 %v2265, 4294901760
    %v2267 = vsub.f32 %v2265, %v2266
    %v2268 = vand.u32 %v2267, 4294901760
    %2269 = vmatpush.msra.mxu0 %v2268
    %v2270 = vand.u32 %v1688, 4294901760
    %v2271 = vsub.f32 %v1688, %v2270
    %v2272 = vand.u32 %v2271, 4294901760
    %v2273 = vsub.f32 %v2271, %v2272
    %v2274 = vand.u32 %v2273, 4294901760
    %2275 = vmatpush.msra.mxu0 %v2274
    %v2276 = vand.u32 %v1684, 4294901760
    %v2277 = vsub.f32 %v1684, %v2276
    %v2278 = vand.u32 %v2277, 4294901760
    %v2279 = vsub.f32 %v2277, %v2278
    %v2280 = vand.u32 %v2279, 4294901760
    %2281 = vmatpush.msra.mxu0 %v2280
    %v2282 = vand.u32 %v1680, 4294901760
    %v2283 = vsub.f32 %v1680, %v2282
    %v2284 = vand.u32 %v2283, 4294901760
    %v2285 = vsub.f32 %v2283, %v2284
    %v2286 = vand.u32 %v2285, 4294901760
    %2287 = vmatpush.msra.mxu0 %v2286
    %v2288 = vand.u32 %v1676, 4294901760
    %v2289 = vsub.f32 %v1676, %v2288
    %v2290 = vand.u32 %v2289, 4294901760
    %v2291 = vsub.f32 %v2289, %v2290
    %v2292 = vand.u32 %v2291, 4294901760
    %2293 = vmatpush.msra.mxu0 %v2292
    %v2294 = vand.u32 %v1672, 4294901760
    %v2295 = vsub.f32 %v1672, %v2294
    %v2296 = vand.u32 %v2295, 4294901760
    %v2297 = vsub.f32 %v2295, %v2296
    %v2298 = vand.u32 %v2297, 4294901760
    %2299 = vmatpush.msra.mxu0 %v2298
    %v2300 = vand.u32 %v1668, 4294901760
    %v2301 = vsub.f32 %v1668, %v2300
    %v2302 = vand.u32 %v2301, 4294901760
    %v2303 = vsub.f32 %v2301, %v2302
    %v2304 = vand.u32 %v2303, 4294901760
    %2305 = vmatpush.msra.mxu0 %v2304
    %v2306 = vand.u32 %v1709, 4294901760
    %2307 = vmatmul.f32.gmra.mxu0 %v2306
    %v2308 = vpop.f32.mrf.mxu0
    %v2309 = vadd.f32 %v2243, %v2308
    %2310 = vdwg.mxu0
    %2311 = vmatpush.msra.mxu0 0.0
    %2312 = vmatpush.msra.mxu0 0.0
    %2313 = vmatpush.msra.mxu0 0.0
    %2314 = vmatpush.msra.mxu0 0.0
    %2315 = vmatpush.msra.mxu0 0.0
    %2316 = vmatpush.msra.mxu0 0.0
    %2317 = vmatpush.msra.mxu0 0.0
    %v2318 = vand.u32 %v1700, 4294901760
    %v2319 = vsub.f32 %v1700, %v2318
    %2320 = vmatpush.msra.mxu0 %v2319
    %v2321 = vand.u32 %v1696, 4294901760
    %v2322 = vsub.f32 %v1696, %v2321
    %2323 = vmatpush.msra.mxu0 %v2322
    %v2324 = vand.u32 %v1692, 4294901760
    %v2325 = vsub.f32 %v1692, %v2324
    %2326 = vmatpush.msra.mxu0 %v2325
    %v2327 = vand.u32 %v1688, 4294901760
    %v2328 = vsub.f32 %v1688, %v2327
    %2329 = vmatpush.msra.mxu0 %v2328
    %v2330 = vand.u32 %v1684, 4294901760
    %v2331 = vsub.f32 %v1684, %v2330
    %2332 = vmatpush.msra.mxu0 %v2331
    %v2333 = vand.u32 %v1680, 4294901760
    %v2334 = vsub.f32 %v1680, %v2333
    %2335 = vmatpush.msra.mxu0 %v2334
    %v2336 = vand.u32 %v1676, 4294901760
    %v2337 = vsub.f32 %v1676, %v2336
    %2338 = vmatpush.msra.mxu0 %v2337
    %v2339 = vand.u32 %v1672, 4294901760
    %v2340 = vsub.f32 %v1672, %v2339
    %2341 = vmatpush.msra.mxu0 %v2340
    %v2342 = vand.u32 %v1668, 4294901760
    %v2343 = vsub.f32 %v1668, %v2342
    %2344 = vmatpush.msra.mxu0 %v2343
    %v2345 = vand.u32 %v1709, 4294901760
    %v2346 = vsub.f32 %v1709, %v2345
    %2347 = vmatmul.f32.gmra.mxu0 %v2346
    %v2348 = vpop.f32.mrf.mxu0
    %v2349 = vadd.f32 %v2309, %v2348
    %2350 = vdwg.mxu0
    %2351 = vmatpush.msra.mxu0 0.0
    %2352 = vmatpush.msra.mxu0 0.0
    %2353 = vmatpush.msra.mxu0 0.0
    %2354 = vmatpush.msra.mxu0 0.0
    %2355 = vmatpush.msra.mxu0 0.0
    %2356 = vmatpush.msra.mxu0 0.0
    %2357 = vmatpush.msra.mxu0 0.0
    %v2358 = vand.u32 %v1700, 4294901760
    %2359 = vmatpush.msra.mxu0 %v2358
    %v2360 = vand.u32 %v1696, 4294901760
    %2361 = vmatpush.msra.mxu0 %v2360
    %v2362 = vand.u32 %v1692, 4294901760
    %2363 = vmatpush.msra.mxu0 %v2362
    %v2364 = vand.u32 %v1688, 4294901760
    %2365 = vmatpush.msra.mxu0 %v2364
    %v2366 = vand.u32 %v1684, 4294901760
    %2367 = vmatpush.msra.mxu0 %v2366
    %v2368 = vand.u32 %v1680, 4294901760
    %2369 = vmatpush.msra.mxu0 %v2368
    %v2370 = vand.u32 %v1676, 4294901760
    %2371 = vmatpush.msra.mxu0 %v2370
    %v2372 = vand.u32 %v1672, 4294901760
    %2373 = vmatpush.msra.mxu0 %v2372
    %v2374 = vand.u32 %v1668, 4294901760
    %2375 = vmatpush.msra.mxu0 %v2374
    %v2376 = vand.u32 %v1709, 4294901760
    %v2377 = vsub.f32 %v1709, %v2376
    %v2378 = vand.u32 %v2377, 4294901760
    %2379 = vmatmul.f32.gmra.mxu0 %v2378
    %v2380 = vpop.f32.mrf.mxu0
    %v2381 = vadd.f32 %v2349, %v2380
    %2382 = vdwg.mxu0
    %2383 = vmatpush.msra.mxu0 0.0
    %2384 = vmatpush.msra.mxu0 0.0
    %2385 = vmatpush.msra.mxu0 0.0
    %2386 = vmatpush.msra.mxu0 0.0
    %2387 = vmatpush.msra.mxu0 0.0
    %2388 = vmatpush.msra.mxu0 0.0
    %2389 = vmatpush.msra.mxu0 0.0
    %v2390 = vand.u32 %v1700, 4294901760
    %v2391 = vsub.f32 %v1700, %v2390
    %v2392 = vand.u32 %v2391, 4294901760
    %2393 = vmatpush.msra.mxu0 %v2392
    %v2394 = vand.u32 %v1696, 4294901760
    %v2395 = vsub.f32 %v1696, %v2394
    %v2396 = vand.u32 %v2395, 4294901760
    %2397 = vmatpush.msra.mxu0 %v2396
    %v2398 = vand.u32 %v1692, 4294901760
    %v2399 = vsub.f32 %v1692, %v2398
    %v2400 = vand.u32 %v2399, 4294901760
    %2401 = vmatpush.msra.mxu0 %v2400
    %v2402 = vand.u32 %v1688, 4294901760
    %v2403 = vsub.f32 %v1688, %v2402
    %v2404 = vand.u32 %v2403, 4294901760
    %2405 = vmatpush.msra.mxu0 %v2404
    %v2406 = vand.u32 %v1684, 4294901760
    %v2407 = vsub.f32 %v1684, %v2406
    %v2408 = vand.u32 %v2407, 4294901760
    %2409 = vmatpush.msra.mxu0 %v2408
    %v2410 = vand.u32 %v1680, 4294901760
    %v2411 = vsub.f32 %v1680, %v2410
    %v2412 = vand.u32 %v2411, 4294901760
    %2413 = vmatpush.msra.mxu0 %v2412
    %v2414 = vand.u32 %v1676, 4294901760
    %v2415 = vsub.f32 %v1676, %v2414
    %v2416 = vand.u32 %v2415, 4294901760
    %2417 = vmatpush.msra.mxu0 %v2416
    %v2418 = vand.u32 %v1672, 4294901760
    %v2419 = vsub.f32 %v1672, %v2418
    %v2420 = vand.u32 %v2419, 4294901760
    %2421 = vmatpush.msra.mxu0 %v2420
    %v2422 = vand.u32 %v1668, 4294901760
    %v2423 = vsub.f32 %v1668, %v2422
    %v2424 = vand.u32 %v2423, 4294901760
    %2425 = vmatpush.msra.mxu0 %v2424
    %v2426 = vand.u32 %v1709, 4294901760
    %2427 = vmatmul.f32.gmra.mxu0 %v2426
    %v2428 = vpop.f32.mrf.mxu0
    %v2429 = vadd.f32 %v2381, %v2428
    %2430 = vdwg.mxu0
    %2431 = vmatpush.msra.mxu0 0.0
    %2432 = vmatpush.msra.mxu0 0.0
    %2433 = vmatpush.msra.mxu0 0.0
    %2434 = vmatpush.msra.mxu0 0.0
    %2435 = vmatpush.msra.mxu0 0.0
    %2436 = vmatpush.msra.mxu0 0.0
    %2437 = vmatpush.msra.mxu0 0.0
    %v2438 = vand.u32 %v1700, 4294901760
    %2439 = vmatpush.msra.mxu0 %v2438
    %v2440 = vand.u32 %v1696, 4294901760
    %2441 = vmatpush.msra.mxu0 %v2440
    %v2442 = vand.u32 %v1692, 4294901760
    %2443 = vmatpush.msra.mxu0 %v2442
    %v2444 = vand.u32 %v1688, 4294901760
    %2445 = vmatpush.msra.mxu0 %v2444
    %v2446 = vand.u32 %v1684, 4294901760
    %2447 = vmatpush.msra.mxu0 %v2446
    %v2448 = vand.u32 %v1680, 4294901760
    %2449 = vmatpush.msra.mxu0 %v2448
    %v2450 = vand.u32 %v1676, 4294901760
    %2451 = vmatpush.msra.mxu0 %v2450
    %v2452 = vand.u32 %v1672, 4294901760
    %2453 = vmatpush.msra.mxu0 %v2452
    %v2454 = vand.u32 %v1668, 4294901760
    %2455 = vmatpush.msra.mxu0 %v2454
    %v2456 = vand.u32 %v1709, 4294901760
    %2457 = vmatmul.f32.gmra.mxu0 %v2456
    %v2458 = vpop.f32.mrf.mxu0
    %v2459 = vadd.f32 %v2429, %v2458
    %2460 = vdwg.mxu0
    %2461 = vmatpush.msra.mxu0 0.0
    %2462 = vmatpush.msra.mxu0 0.0
    %2463 = vmatpush.msra.mxu0 0.0
    %2464 = vmatpush.msra.mxu0 0.0
    %2465 = vmatpush.msra.mxu0 0.0
    %2466 = vmatpush.msra.mxu0 0.0
    %2467 = vmatpush.msra.mxu0 0.0
    %v2468 = vand.u32 %v1701, 4294901760
    %2469 = vmatpush.msra.mxu0 %v2468
    %v2470 = vand.u32 %v1697, 4294901760
    %2471 = vmatpush.msra.mxu0 %v2470
    %v2472 = vand.u32 %v1693, 4294901760
    %2473 = vmatpush.msra.mxu0 %v2472
    %v2474 = vand.u32 %v1689, 4294901760
    %2475 = vmatpush.msra.mxu0 %v2474
    %v2476 = vand.u32 %v1685, 4294901760
    %2477 = vmatpush.msra.mxu0 %v2476
    %v2478 = vand.u32 %v1681, 4294901760
    %2479 = vmatpush.msra.mxu0 %v2478
    %v2480 = vand.u32 %v1677, 4294901760
    %2481 = vmatpush.msra.mxu0 %v2480
    %v2482 = vand.u32 %v1673, 4294901760
    %2483 = vmatpush.msra.mxu0 %v2482
    %v2484 = vand.u32 %v1669, 4294901760
    %2485 = vmatpush.msra.mxu0 %v2484
    %v2486 = vand.u32 %v1709, 4294901760
    %v2487 = vsub.f32 %v1709, %v2486
    %v2488 = vand.u32 %v2487, 4294901760
    %v2489 = vsub.f32 %v2487, %v2488
    %v2490 = vand.u32 %v2489, 4294901760
    %2491 = vmatmul.f32.gmra.mxu0 %v2490
    %v2492 = vpop.f32.mrf.mxu0
    %v2493 = vadd.f32 %v1706, %v2492
    %2494 = vdwg.mxu0
    %2495 = vmatpush.msra.mxu0 0.0
    %2496 = vmatpush.msra.mxu0 0.0
    %2497 = vmatpush.msra.mxu0 0.0
    %2498 = vmatpush.msra.mxu0 0.0
    %2499 = vmatpush.msra.mxu0 0.0
    %2500 = vmatpush.msra.mxu0 0.0
    %2501 = vmatpush.msra.mxu0 0.0
    %v2502 = vand.u32 %v1701, 4294901760
    %v2503 = vsub.f32 %v1701, %v2502
    %v2504 = vand.u32 %v2503, 4294901760
    %v2505 = vsub.f32 %v2503, %v2504
    %v2506 = vand.u32 %v2505, 4294901760
    %2507 = vmatpush.msra.mxu0 %v2506
    %v2508 = vand.u32 %v1697, 4294901760
    %v2509 = vsub.f32 %v1697, %v2508
    %v2510 = vand.u32 %v2509, 4294901760
    %v2511 = vsub.f32 %v2509, %v2510
    %v2512 = vand.u32 %v2511, 4294901760
    %2513 = vmatpush.msra.mxu0 %v2512
    %v2514 = vand.u32 %v1693, 4294901760
    %v2515 = vsub.f32 %v1693, %v2514
    %v2516 = vand.u32 %v2515, 4294901760
    %v2517 = vsub.f32 %v2515, %v2516
    %v2518 = vand.u32 %v2517, 4294901760
    %2519 = vmatpush.msra.mxu0 %v2518
    %v2520 = vand.u32 %v1689, 4294901760
    %v2521 = vsub.f32 %v1689, %v2520
    %v2522 = vand.u32 %v2521, 4294901760
    %v2523 = vsub.f32 %v2521, %v2522
    %v2524 = vand.u32 %v2523, 4294901760
    %2525 = vmatpush.msra.mxu0 %v2524
    %v2526 = vand.u32 %v1685, 4294901760
    %v2527 = vsub.f32 %v1685, %v2526
    %v2528 = vand.u32 %v2527, 4294901760
    %v2529 = vsub.f32 %v2527, %v2528
    %v2530 = vand.u32 %v2529, 4294901760
    %2531 = vmatpush.msra.mxu0 %v2530
    %v2532 = vand.u32 %v1681, 4294901760
    %v2533 = vsub.f32 %v1681, %v2532
    %v2534 = vand.u32 %v2533, 4294901760
    %v2535 = vsub.f32 %v2533, %v2534
    %v2536 = vand.u32 %v2535, 4294901760
    %2537 = vmatpush.msra.mxu0 %v2536
    %v2538 = vand.u32 %v1677, 4294901760
    %v2539 = vsub.f32 %v1677, %v2538
    %v2540 = vand.u32 %v2539, 4294901760
    %v2541 = vsub.f32 %v2539, %v2540
    %v2542 = vand.u32 %v2541, 4294901760
    %2543 = vmatpush.msra.mxu0 %v2542
    %v2544 = vand.u32 %v1673, 4294901760
    %v2545 = vsub.f32 %v1673, %v2544
    %v2546 = vand.u32 %v2545, 4294901760
    %v2547 = vsub.f32 %v2545, %v2546
    %v2548 = vand.u32 %v2547, 4294901760
    %2549 = vmatpush.msra.mxu0 %v2548
    %v2550 = vand.u32 %v1669, 4294901760
    %v2551 = vsub.f32 %v1669, %v2550
    %v2552 = vand.u32 %v2551, 4294901760
    %v2553 = vsub.f32 %v2551, %v2552
    %v2554 = vand.u32 %v2553, 4294901760
    %2555 = vmatpush.msra.mxu0 %v2554
    %v2556 = vand.u32 %v1709, 4294901760
    %2557 = vmatmul.f32.gmra.mxu0 %v2556
    %v2558 = vpop.f32.mrf.mxu0
    %v2559 = vadd.f32 %v2493, %v2558
    %2560 = vdwg.mxu0
    %2561 = vmatpush.msra.mxu0 0.0
    %2562 = vmatpush.msra.mxu0 0.0
    %2563 = vmatpush.msra.mxu0 0.0
    %2564 = vmatpush.msra.mxu0 0.0
    %2565 = vmatpush.msra.mxu0 0.0
    %2566 = vmatpush.msra.mxu0 0.0
    %2567 = vmatpush.msra.mxu0 0.0
    %v2568 = vand.u32 %v1701, 4294901760
    %v2569 = vsub.f32 %v1701, %v2568
    %2570 = vmatpush.msra.mxu0 %v2569
    %v2571 = vand.u32 %v1697, 4294901760
    %v2572 = vsub.f32 %v1697, %v2571
    %2573 = vmatpush.msra.mxu0 %v2572
    %v2574 = vand.u32 %v1693, 4294901760
    %v2575 = vsub.f32 %v1693, %v2574
    %2576 = vmatpush.msra.mxu0 %v2575
    %v2577 = vand.u32 %v1689, 4294901760
    %v2578 = vsub.f32 %v1689, %v2577
    %2579 = vmatpush.msra.mxu0 %v2578
    %v2580 = vand.u32 %v1685, 4294901760
    %v2581 = vsub.f32 %v1685, %v2580
    %2582 = vmatpush.msra.mxu0 %v2581
    %v2583 = vand.u32 %v1681, 4294901760
    %v2584 = vsub.f32 %v1681, %v2583
    %2585 = vmatpush.msra.mxu0 %v2584
    %v2586 = vand.u32 %v1677, 4294901760
    %v2587 = vsub.f32 %v1677, %v2586
    %2588 = vmatpush.msra.mxu0 %v2587
    %v2589 = vand.u32 %v1673, 4294901760
    %v2590 = vsub.f32 %v1673, %v2589
    %2591 = vmatpush.msra.mxu0 %v2590
    %v2592 = vand.u32 %v1669, 4294901760
    %v2593 = vsub.f32 %v1669, %v2592
    %2594 = vmatpush.msra.mxu0 %v2593
    %v2595 = vand.u32 %v1709, 4294901760
    %v2596 = vsub.f32 %v1709, %v2595
    %2597 = vmatmul.f32.gmra.mxu0 %v2596
    %v2598 = vpop.f32.mrf.mxu0
    %v2599 = vadd.f32 %v2559, %v2598
    %2600 = vdwg.mxu0
    %2601 = vmatpush.msra.mxu0 0.0
    %2602 = vmatpush.msra.mxu0 0.0
    %2603 = vmatpush.msra.mxu0 0.0
    %2604 = vmatpush.msra.mxu0 0.0
    %2605 = vmatpush.msra.mxu0 0.0
    %2606 = vmatpush.msra.mxu0 0.0
    %2607 = vmatpush.msra.mxu0 0.0
    %v2608 = vand.u32 %v1701, 4294901760
    %2609 = vmatpush.msra.mxu0 %v2608
    %v2610 = vand.u32 %v1697, 4294901760
    %2611 = vmatpush.msra.mxu0 %v2610
    %v2612 = vand.u32 %v1693, 4294901760
    %2613 = vmatpush.msra.mxu0 %v2612
    %v2614 = vand.u32 %v1689, 4294901760
    %2615 = vmatpush.msra.mxu0 %v2614
    %v2616 = vand.u32 %v1685, 4294901760
    %2617 = vmatpush.msra.mxu0 %v2616
    %v2618 = vand.u32 %v1681, 4294901760
    %2619 = vmatpush.msra.mxu0 %v2618
    %v2620 = vand.u32 %v1677, 4294901760
    %2621 = vmatpush.msra.mxu0 %v2620
    %v2622 = vand.u32 %v1673, 4294901760
    %2623 = vmatpush.msra.mxu0 %v2622
    %v2624 = vand.u32 %v1669, 4294901760
    %2625 = vmatpush.msra.mxu0 %v2624
    %v2626 = vand.u32 %v1709, 4294901760
    %v2627 = vsub.f32 %v1709, %v2626
    %v2628 = vand.u32 %v2627, 4294901760
    %2629 = vmatmul.f32.gmra.mxu0 %v2628
    %v2630 = vpop.f32.mrf.mxu0
    %v2631 = vadd.f32 %v2599, %v2630
    %2632 = vdwg.mxu0
    %2633 = vmatpush.msra.mxu0 0.0
    %2634 = vmatpush.msra.mxu0 0.0
    %2635 = vmatpush.msra.mxu0 0.0
    %2636 = vmatpush.msra.mxu0 0.0
    %2637 = vmatpush.msra.mxu0 0.0
    %2638 = vmatpush.msra.mxu0 0.0
    %2639 = vmatpush.msra.mxu0 0.0
    %v2640 = vand.u32 %v1701, 4294901760
    %v2641 = vsub.f32 %v1701, %v2640
    %v2642 = vand.u32 %v2641, 4294901760
    %2643 = vmatpush.msra.mxu0 %v2642
    %v2644 = vand.u32 %v1697, 4294901760
    %v2645 = vsub.f32 %v1697, %v2644
    %v2646 = vand.u32 %v2645, 4294901760
    %2647 = vmatpush.msra.mxu0 %v2646
    %v2648 = vand.u32 %v1693, 4294901760
    %v2649 = vsub.f32 %v1693, %v2648
    %v2650 = vand.u32 %v2649, 4294901760
    %2651 = vmatpush.msra.mxu0 %v2650
    %v2652 = vand.u32 %v1689, 4294901760
    %v2653 = vsub.f32 %v1689, %v2652
    %v2654 = vand.u32 %v2653, 4294901760
    %2655 = vmatpush.msra.mxu0 %v2654
    %v2656 = vand.u32 %v1685, 4294901760
    %v2657 = vsub.f32 %v1685, %v2656
    %v2658 = vand.u32 %v2657, 4294901760
    %2659 = vmatpush.msra.mxu0 %v2658
    %v2660 = vand.u32 %v1681, 4294901760
    %v2661 = vsub.f32 %v1681, %v2660
    %v2662 = vand.u32 %v2661, 4294901760
    %2663 = vmatpush.msra.mxu0 %v2662
    %v2664 = vand.u32 %v1677, 4294901760
    %v2665 = vsub.f32 %v1677, %v2664
    %v2666 = vand.u32 %v2665, 4294901760
    %2667 = vmatpush.msra.mxu0 %v2666
    %v2668 = vand.u32 %v1673, 4294901760
    %v2669 = vsub.f32 %v1673, %v2668
    %v2670 = vand.u32 %v2669, 4294901760
    %2671 = vmatpush.msra.mxu0 %v2670
    %v2672 = vand.u32 %v1669, 4294901760
    %v2673 = vsub.f32 %v1669, %v2672
    %v2674 = vand.u32 %v2673, 4294901760
    %2675 = vmatpush.msra.mxu0 %v2674
    %v2676 = vand.u32 %v1709, 4294901760
    %2677 = vmatmul.f32.gmra.mxu0 %v2676
    %v2678 = vpop.f32.mrf.mxu0
    %v2679 = vadd.f32 %v2631, %v2678
    %2680 = vdwg.mxu0
    %2681 = vmatpush.msra.mxu0 0.0
    %2682 = vmatpush.msra.mxu0 0.0
    %2683 = vmatpush.msra.mxu0 0.0
    %2684 = vmatpush.msra.mxu0 0.0
    %2685 = vmatpush.msra.mxu0 0.0
    %2686 = vmatpush.msra.mxu0 0.0
    %2687 = vmatpush.msra.mxu0 0.0
    %v2688 = vand.u32 %v1701, 4294901760
    %2689 = vmatpush.msra.mxu0 %v2688
    %v2690 = vand.u32 %v1697, 4294901760
    %2691 = vmatpush.msra.mxu0 %v2690
    %v2692 = vand.u32 %v1693, 4294901760
    %2693 = vmatpush.msra.mxu0 %v2692
    %v2694 = vand.u32 %v1689, 4294901760
    %2695 = vmatpush.msra.mxu0 %v2694
    %v2696 = vand.u32 %v1685, 4294901760
    %2697 = vmatpush.msra.mxu0 %v2696
    %v2698 = vand.u32 %v1681, 4294901760
    %2699 = vmatpush.msra.mxu0 %v2698
    %v2700 = vand.u32 %v1677, 4294901760
    %2701 = vmatpush.msra.mxu0 %v2700
    %v2702 = vand.u32 %v1673, 4294901760
    %2703 = vmatpush.msra.mxu0 %v2702
    %v2704 = vand.u32 %v1669, 4294901760
    %2705 = vmatpush.msra.mxu0 %v2704
    %v2706 = vand.u32 %v1709, 4294901760
    %2707 = vmatmul.f32.gmra.mxu0 %v2706
    %v2708 = vpop.f32.mrf.mxu0
    %v2709 = vadd.f32 %v2679, %v2708
    %2710 = vdwg.mxu0
    %2711 = vrot.lane.b32.xlu0 %v1959, 34
    %v2712 = vpop.permute.xlu0 %2711
    %2713 = vrot.lane.b32.xlu0 %v2209, 34
    %v2714 = vpop.permute.xlu0 %2713
    %2715 = vrot.lane.b32.xlu0 %v2459, 34
    %v2716 = vpop.permute.xlu0 %2715
    %2717 = vrot.lane.b32.xlu0 %v2709, 34
    %v2718 = vpop.permute.xlu0 %2717
    %vm2719 = vcmp.lt.s32.totalorder %v122, 34
    %v2720 = vsel %vm2719, %v2716, %v2718
    %v2721 = vsel %vm2719, %v2714, %v2716
    %v2722 = vsel %vm2719, %v2712, %v2714
    %v2723 = vsel %vm2719, %v2718, %v2712
    %s2724 = scalar_lea.vmem [#allocation4], 33
    %v2725 = vld [vmem:[%s2724] ss:$8 sm:$0xf]
    %v2727 = vperm.slane %v2725, 0
    %v2728 = vperm.slane %v2725, 1
    %v2729 = vperm.slane %v2725, 2
    %v2730 = vperm.slane %v2725, 3
    %v2735 = vmul.f32 %v2723, %v2727
    %v2736 = vmul.f32 %v2722, %v2728
    %v2737 = vmul.f32 %v2721, %v2729
    %v2738 = vmul.f32 %v2720, %v2730
    %2739 = vst [vmem:[#allocation2] sm:$0xff] %v2735
    %2740 = vst [vmem:[#allocation2 + $0x8] sm:$0xff] %v2736
    %2741 = vst [vmem:[#allocation2 + $0x10] sm:$0xff] %v2737
    %2742 = vst [vmem:[#allocation2 + $0x18] sm:$0xff] %v2738
    %2743 = vrot.lane.b32.xlu0 %v1959, 32
    %v2744 = vpop.permute.xlu0 %2743
    %2745 = vrot.lane.b32.xlu0 %v2209, 32
    %v2746 = vpop.permute.xlu0 %2745
    %2747 = vrot.lane.b32.xlu0 %v2459, 32
    %v2748 = vpop.permute.xlu0 %2747
    %2749 = vrot.lane.b32.xlu0 %v2709, 32
    %v2750 = vpop.permute.xlu0 %2749
    %vm2751 = vcmp.lt.s32.totalorder %v122, 32
    %v2752 = vsel %vm2751, %v2748, %v2750
    %v2753 = vsel %vm2751, %v2746, %v2748
    %v2754 = vsel %vm2751, %v2744, %v2746
    %v2755 = vsel %vm2751, %v2750, %v2744
    %s2756 = scalar_lea.vmem [#allocation4], 34
    %v2757 = vld [vmem:[%s2756] ss:$8 sm:$0xf]
    %v2759 = vperm.slane %v2757, 0
    %v2760 = vperm.slane %v2757, 1
    %v2761 = vperm.slane %v2757, 2
    %v2762 = vperm.slane %v2757, 3
    %v2767 = vmul.f32 %v2755, %v2759
    %v2768 = vmul.f32 %v2754, %v2760
    %v2769 = vmul.f32 %v2753, %v2761
    %v2770 = vmul.f32 %v2752, %v2762
    %2771 = vst [vmem:[#allocation2 + $0x20] sm:$0xff] %v2767
    %2772 = vst [vmem:[#allocation2 + $0x28] sm:$0xff] %v2768
    %2773 = vst [vmem:[#allocation2 + $0x30] sm:$0xff] %v2769
    %2774 = vst [vmem:[#allocation2 + $0x38] sm:$0xff] %v2770
    %2775 = vrot.lane.b32.xlu0 %v1959, 30
    %v2776 = vpop.permute.xlu0 %2775
    %2777 = vrot.lane.b32.xlu0 %v2209, 30
    %v2778 = vpop.permute.xlu0 %2777
    %2779 = vrot.lane.b32.xlu0 %v2459, 30
    %v2780 = vpop.permute.xlu0 %2779
    %2781 = vrot.lane.b32.xlu0 %v2709, 30
    %v2782 = vpop.permute.xlu0 %2781
    %vm2783 = vcmp.lt.s32.totalorder %v122, 30
    %v2784 = vsel %vm2783, %v2780, %v2782
    %v2785 = vsel %vm2783, %v2778, %v2780
    %v2786 = vsel %vm2783, %v2776, %v2778
    %v2787 = vsel %vm2783, %v2782, %v2776
    %s2788 = scalar_lea.vmem [#allocation4], 35
    %v2789 = vld [vmem:[%s2788] ss:$8 sm:$0xf]
    %v2791 = vperm.slane %v2789, 0
    %v2792 = vperm.slane %v2789, 1
    %v2793 = vperm.slane %v2789, 2
    %v2794 = vperm.slane %v2789, 3
    %v2799 = vmul.f32 %v2787, %v2791
    %v2800 = vmul.f32 %v2786, %v2792
    %v2801 = vmul.f32 %v2785, %v2793
    %v2802 = vmul.f32 %v2784, %v2794
    %2803 = vst [vmem:[#allocation2 + $0x40] sm:$0xff] %v2799
    %2804 = vst [vmem:[#allocation2 + $0x48] sm:$0xff] %v2800
    %2805 = vst [vmem:[#allocation2 + $0x50] sm:$0xff] %v2801
    %2806 = vst [vmem:[#allocation2 + $0x58] sm:$0xff] %v2802
    %2807 = vrot.lane.b32.xlu0 %v1959, 2
    %v2808 = vpop.permute.xlu0 %2807
    %2809 = vrot.lane.b32.xlu0 %v2209, 2
    %v2810 = vpop.permute.xlu0 %2809
    %2811 = vrot.lane.b32.xlu0 %v2459, 2
    %v2812 = vpop.permute.xlu0 %2811
    %2813 = vrot.lane.b32.xlu0 %v2709, 2
    %v2814 = vpop.permute.xlu0 %2813
    %vm2815 = vcmp.lt.s32.totalorder %v122, 2
    %v2816 = vsel %vm2815, %v2812, %v2814
    %v2817 = vsel %vm2815, %v2810, %v2812
    %v2818 = vsel %vm2815, %v2808, %v2810
    %v2819 = vsel %vm2815, %v2814, %v2808
    %s2820 = scalar_lea.vmem [#allocation4], 36
    %v2821 = vld [vmem:[%s2820] ss:$8 sm:$0xf]
    %v2823 = vperm.slane %v2821, 0
    %v2824 = vperm.slane %v2821, 1
    %v2825 = vperm.slane %v2821, 2
    %v2826 = vperm.slane %v2821, 3
    %v2831 = vmul.f32 %v2819, %v2823
    %v2832 = vmul.f32 %v2818, %v2824
    %v2833 = vmul.f32 %v2817, %v2825
    %v2834 = vmul.f32 %v2816, %v2826
    %2835 = vst [vmem:[#allocation2 + $0x60] sm:$0xff] %v2831
    %2836 = vst [vmem:[#allocation2 + $0x68] sm:$0xff] %v2832
    %2837 = vst [vmem:[#allocation2 + $0x70] sm:$0xff] %v2833
    %2838 = vst [vmem:[#allocation2 + $0x78] sm:$0xff] %v2834
    %2839 = vst [vmem:[#allocation2 + $0x80] sm:$0xff] %v1959
    %2840 = vst [vmem:[#allocation2 + $0x88] sm:$0xff] %v2209
    %2841 = vst [vmem:[#allocation2 + $0x90] sm:$0xff] %v2459
    %2842 = vst [vmem:[#allocation2 + $0x98] sm:$0xff] %v2709
    %2843 = vrot.lane.b32.xlu0 %v1959, 126
    %v2844 = vpop.permute.xlu0 %2843
    %2845 = vrot.lane.b32.xlu0 %v2209, 126
    %v2846 = vpop.permute.xlu0 %2845
    %2847 = vrot.lane.b32.xlu0 %v2459, 126
    %v2848 = vpop.permute.xlu0 %2847
    %2849 = vrot.lane.b32.xlu0 %v2709, 126
    %v2850 = vpop.permute.xlu0 %2849
    %vm2851 = vcmp.lt.s32.totalorder %v122, 126
    %v2852 = vsel %vm2851, %v2848, %v2850
    %v2853 = vsel %vm2851, %v2846, %v2848
    %v2854 = vsel %vm2851, %v2844, %v2846
    %v2855 = vsel %vm2851, %v2850, %v2844
    %s2856 = scalar_lea.vmem [#allocation4], 38
    %v2857 = vld [vmem:[%s2856] ss:$8 sm:$0xf]
    %v2859 = vperm.slane %v2857, 0
    %v2860 = vperm.slane %v2857, 1
    %v2861 = vperm.slane %v2857, 2
    %v2862 = vperm.slane %v2857, 3
    %v2867 = vmul.f32 %v2854, %v2859
    %v2868 = vmul.f32 %v2853, %v2860
    %v2869 = vmul.f32 %v2852, %v2861
    %v2870 = vmul.f32 %v2855, %v2862
    %2871 = vst [vmem:[#allocation2 + $0xa0] sm:$0xff] %v2867
    %2872 = vst [vmem:[#allocation2 + $0xa8] sm:$0xff] %v2868
    %2873 = vst [vmem:[#allocation2 + $0xb0] sm:$0xff] %v2869
    %2874 = vst [vmem:[#allocation2 + $0xb8] sm:$0xff] %v2870
    %2875 = vrot.lane.b32.xlu0 %v1959, 98
    %v2876 = vpop.permute.xlu0 %2875
    %2877 = vrot.lane.b32.xlu0 %v2209, 98
    %v2878 = vpop.permute.xlu0 %2877
    %2879 = vrot.lane.b32.xlu0 %v2459, 98
    %v2880 = vpop.permute.xlu0 %2879
    %2881 = vrot.lane.b32.xlu0 %v2709, 98
    %v2882 = vpop.permute.xlu0 %2881
    %vm2883 = vcmp.lt.s32.totalorder %v122, 98
    %v2884 = vsel %vm2883, %v2880, %v2882
    %v2885 = vsel %vm2883, %v2878, %v2880
    %v2886 = vsel %vm2883, %v2876, %v2878
    %v2887 = vsel %vm2883, %v2882, %v2876
    %s2888 = scalar_lea.vmem [#allocation4], 39
    %v2889 = vld [vmem:[%s2888] ss:$8 sm:$0xf]
    %v2891 = vperm.slane %v2889, 0
    %v2892 = vperm.slane %v2889, 1
    %v2893 = vperm.slane %v2889, 2
    %v2894 = vperm.slane %v2889, 3
    %v2899 = vmul.f32 %v2886, %v2891
    %v2900 = vmul.f32 %v2885, %v2892
    %v2901 = vmul.f32 %v2884, %v2893
    %v2902 = vmul.f32 %v2887, %v2894
    %2903 = vst [vmem:[#allocation2 + $0xc0] sm:$0xff] %v2899
    %2904 = vst [vmem:[#allocation2 + $0xc8] sm:$0xff] %v2900
    %2905 = vst [vmem:[#allocation2 + $0xd0] sm:$0xff] %v2901
    %2906 = vst [vmem:[#allocation2 + $0xd8] sm:$0xff] %v2902
    %2907 = vrot.lane.b32.xlu0 %v1959, 96
    %v2908 = vpop.permute.xlu0 %2907
    %2909 = vrot.lane.b32.xlu0 %v2209, 96
    %v2910 = vpop.permute.xlu0 %2909
    %2911 = vrot.lane.b32.xlu0 %v2459, 96
    %v2912 = vpop.permute.xlu0 %2911
    %2913 = vrot.lane.b32.xlu0 %v2709, 96
    %v2914 = vpop.permute.xlu0 %2913
    %vm2915 = vcmp.lt.s32.totalorder %v122, 96
    %v2916 = vsel %vm2915, %v2912, %v2914
    %v2917 = vsel %vm2915, %v2910, %v2912
    %v2918 = vsel %vm2915, %v2908, %v2910
    %v2919 = vsel %vm2915, %v2914, %v2908
    %s2920 = scalar_lea.vmem [#allocation4], 64
    %v2921 = vld [vmem:[%s2920] ss:$8 sm:$0xf]
    %v2923 = vperm.slane %v2921, 0
    %v2924 = vperm.slane %v2921, 1
    %v2925 = vperm.slane %v2921, 2
    %v2926 = vperm.slane %v2921, 3
    %v2931 = vmul.f32 %v2918, %v2923
    %v2932 = vmul.f32 %v2917, %v2924
    %v2933 = vmul.f32 %v2916, %v2925
    %v2934 = vmul.f32 %v2919, %v2926
    %2935 = vst [vmem:[#allocation2 + $0xe0] sm:$0xff] %v2931
    %2936 = vst [vmem:[#allocation2 + $0xe8] sm:$0xff] %v2932
    %2937 = vst [vmem:[#allocation2 + $0xf0] sm:$0xff] %v2933
    %2938 = vst [vmem:[#allocation2 + $0xf8] sm:$0xff] %v2934
    %2939 = vrot.lane.b32.xlu0 %v1959, 94
    %v2940 = vpop.permute.xlu0 %2939
    %2941 = vrot.lane.b32.xlu0 %v2209, 94
    %v2942 = vpop.permute.xlu0 %2941
    %2943 = vrot.lane.b32.xlu0 %v2459, 94
    %v2944 = vpop.permute.xlu0 %2943
    %2945 = vrot.lane.b32.xlu0 %v2709, 94
    %v2946 = vpop.permute.xlu0 %2945
    %vm2947 = vcmp.lt.s32.totalorder %v122, 94
    %v2948 = vsel %vm2947, %v2944, %v2946
    %v2949 = vsel %vm2947, %v2942, %v2944
    %v2950 = vsel %vm2947, %v2940, %v2942
    %v2951 = vsel %vm2947, %v2946, %v2940
    %s2952 = scalar_lea.vmem [#allocation4], 65
    %v2953 = vld [vmem:[%s2952] ss:$8 sm:$0xf]
    %v2955 = vperm.slane %v2953, 0
    %v2956 = vperm.slane %v2953, 1
    %v2957 = vperm.slane %v2953, 2
    %v2958 = vperm.slane %v2953, 3
    %v2963 = vmul.f32 %v2950, %v2955
    %v2964 = vmul.f32 %v2949, %v2956
    %v2965 = vmul.f32 %v2948, %v2957
    %v2966 = vmul.f32 %v2951, %v2958
    %2967 = vst [vmem:[#allocation2 + $0x100] sm:$0xff] %v2963
    %2968 = vst [vmem:[#allocation2 + $0x108] sm:$0xff] %v2964
    %2969 = vst [vmem:[#allocation2 + $0x110] sm:$0xff] %v2965
    %2970 = vst [vmem:[#allocation2 + $0x118] sm:$0xff] %v2966
    %v2971 = vld [vmem:[%s6] sm:$0xff]
    %v2972 = vld [vmem:[%s6 + $0x8] sm:$0xff]
    %v2973 = vld [vmem:[#allocation2] sm:$0xff]
    %v2974 = vld [vmem:[#allocation2 + $0x8] sm:$0xff]
    %v2975 = vld [vmem:[#allocation2 + $0x10] sm:$0xff]
    %v2976 = vld [vmem:[#allocation2 + $0x18] sm:$0xff]
    %v2977 = vld [vmem:[#allocation2 + $0x20] sm:$0xff]
    %v2978 = vld [vmem:[#allocation2 + $0x28] sm:$0xff]
    %v2979 = vld [vmem:[#allocation2 + $0x30] sm:$0xff]
    %v2980 = vld [vmem:[#allocation2 + $0x38] sm:$0xff]
    %v2981 = vld [vmem:[#allocation2 + $0x40] sm:$0xff]
    %v2982 = vld [vmem:[#allocation2 + $0x48] sm:$0xff]
    %v2983 = vld [vmem:[#allocation2 + $0x50] sm:$0xff]
    %v2984 = vld [vmem:[#allocation2 + $0x58] sm:$0xff]
    %v2985 = vld [vmem:[#allocation2 + $0x60] sm:$0xff]
    %v2986 = vld [vmem:[#allocation2 + $0x68] sm:$0xff]
    %v2987 = vld [vmem:[#allocation2 + $0x70] sm:$0xff]
    %v2988 = vld [vmem:[#allocation2 + $0x78] sm:$0xff]
    %v2989 = vld [vmem:[#allocation2 + $0x80] sm:$0xff]
    %v2990 = vld [vmem:[#allocation2 + $0x88] sm:$0xff]
    %v2991 = vld [vmem:[#allocation2 + $0x90] sm:$0xff]
    %v2992 = vld [vmem:[#allocation2 + $0x98] sm:$0xff]
    %v2993 = vld [vmem:[#allocation2 + $0xa0] sm:$0xff]
    %v2994 = vld [vmem:[#allocation2 + $0xa8] sm:$0xff]
    %v2995 = vld [vmem:[#allocation2 + $0xb0] sm:$0xff]
    %v2996 = vld [vmem:[#allocation2 + $0xb8] sm:$0xff]
    %v2997 = vld [vmem:[#allocation2 + $0xc0] sm:$0xff]
    %v2998 = vld [vmem:[#allocation2 + $0xc8] sm:$0xff]
    %v2999 = vld [vmem:[#allocation2 + $0xd0] sm:$0xff]
    %v3000 = vld [vmem:[#allocation2 + $0xd8] sm:$0xff]
    %v3001 = vld [vmem:[#allocation2 + $0xe0] sm:$0xff]
    %v3002 = vld [vmem:[#allocation2 + $0xe8] sm:$0xff]
    %v3003 = vld [vmem:[#allocation2 + $0xf0] sm:$0xff]
    %v3004 = vld [vmem:[#allocation2 + $0xf8] sm:$0xff]
    %v3005 = vld [vmem:[#allocation2 + $0x100] sm:$0xff]
    %v3006 = vld [vmem:[#allocation2 + $0x108] sm:$0xff]
    %v3007 = vld [vmem:[#allocation2 + $0x110] sm:$0xff]
    %v3008 = vld [vmem:[#allocation2 + $0x118] sm:$0xff]
    %v3009 = vld [vmem:[%s7] sm:$0xff]
    %v3010 = vld [vmem:[%s7 + $0x8] sm:$0xff]
    %3012 = vset.pattern.permute.xlu0 0
    %3013 = vperm.xlu0 %3012, %v3009
    %v3014 = vpop.permute.xlu0 %3013
    %3017 = vset.pattern.permute.xlu0 0
    %3018 = vperm.xlu0 %3017, %v3010
    %v3019 = vpop.permute.xlu0 %3018
    %v3022 = vsel %vm417, %v2971, 0
    %v3025 = vsel %vm417, %v2972, 0
    %3027 = vmatpush.msra.mxu0 0.0
    %3028 = vmatpush.msra.mxu0 0.0
    %3029 = vmatpush.msra.mxu0 0.0
    %3030 = vmatpush.msra.mxu0 0.0
    %3031 = vmatpush.msra.mxu0 0.0
    %3032 = vmatpush.msra.mxu0 0.0
    %3033 = vmatpush.msra.mxu0 0.0
    %v3034 = vand.u32 %v3005, 4294901760
    %3035 = vmatpush.msra.mxu0 %v3034
    %v3036 = vand.u32 %v3001, 4294901760
    %3037 = vmatpush.msra.mxu0 %v3036
    %v3038 = vand.u32 %v2997, 4294901760
    %3039 = vmatpush.msra.mxu0 %v3038
    %v3040 = vand.u32 %v2993, 4294901760
    %3041 = vmatpush.msra.mxu0 %v3040
    %v3042 = vand.u32 %v2989, 4294901760
    %3043 = vmatpush.msra.mxu0 %v3042
    %v3044 = vand.u32 %v2985, 4294901760
    %3045 = vmatpush.msra.mxu0 %v3044
    %v3046 = vand.u32 %v2981, 4294901760
    %3047 = vmatpush.msra.mxu0 %v3046
    %v3048 = vand.u32 %v2977, 4294901760
    %3049 = vmatpush.msra.mxu0 %v3048
    %v3050 = vand.u32 %v2973, 4294901760
    %3051 = vmatpush.msra.mxu0 %v3050
    %v3052 = vand.u32 %v3022, 4294901760
    %v3053 = vsub.f32 %v3022, %v3052
    %v3054 = vand.u32 %v3053, 4294901760
    %v3055 = vsub.f32 %v3053, %v3054
    %v3056 = vand.u32 %v3055, 4294901760
    %3057 = vmatmul.f32.gmra.mxu0 %v3056
    %v3058 = vpop.f32.mrf.mxu0
    %v3059 = vadd.f32 %v3014, %v3058
    %v3060 = vand.u32 %v3025, 4294901760
    %v3061 = vsub.f32 %v3025, %v3060
    %v3062 = vand.u32 %v3061, 4294901760
    %v3063 = vsub.f32 %v3061, %v3062
    %v3064 = vand.u32 %v3063, 4294901760
    %3065 = vmatmul.f32.gmra.mxu0 %v3064
    %v3066 = vpop.f32.mrf.mxu0
    %v3067 = vadd.f32 %v3019, %v3066
    %3068 = vdwg.mxu0
    %3069 = vmatpush.msra.mxu0 0.0
    %3070 = vmatpush.msra.mxu0 0.0
    %3071 = vmatpush.msra.mxu0 0.0
    %3072 = vmatpush.msra.mxu0 0.0
    %3073 = vmatpush.msra.mxu0 0.0
    %3074 = vmatpush.msra.mxu0 0.0
    %3075 = vmatpush.msra.mxu0 0.0
    %v3076 = vand.u32 %v3005, 4294901760
    %v3077 = vsub.f32 %v3005, %v3076
    %v3078 = vand.u32 %v3077, 4294901760
    %v3079 = vsub.f32 %v3077, %v3078
    %v3080 = vand.u32 %v3079, 4294901760
    %3081 = vmatpush.msra.mxu0 %v3080
    %v3082 = vand.u32 %v3001, 4294901760
    %v3083 = vsub.f32 %v3001, %v3082
    %v3084 = vand.u32 %v3083, 4294901760
    %v3085 = vsub.f32 %v3083, %v3084
    %v3086 = vand.u32 %v3085, 4294901760
    %3087 = vmatpush.msra.mxu0 %v3086
    %v3088 = vand.u32 %v2997, 4294901760
    %v3089 = vsub.f32 %v2997, %v3088
    %v3090 = vand.u32 %v3089, 4294901760
    %v3091 = vsub.f32 %v3089, %v3090
    %v3092 = vand.u32 %v3091, 4294901760
    %3093 = vmatpush.msra.mxu0 %v3092
    %v3094 = vand.u32 %v2993, 4294901760
    %v3095 = vsub.f32 %v2993, %v3094
    %v3096 = vand.u32 %v3095, 4294901760
    %v3097 = vsub.f32 %v3095, %v3096
    %v3098 = vand.u32 %v3097, 4294901760
    %3099 = vmatpush.msra.mxu0 %v3098
    %v3100 = vand.u32 %v2989, 4294901760
    %v3101 = vsub.f32 %v2989, %v3100
    %v3102 = vand.u32 %v3101, 4294901760
    %v3103 = vsub.f32 %v3101, %v3102
    %v3104 = vand.u32 %v3103, 4294901760
    %3105 = vmatpush.msra.mxu0 %v3104
    %v3106 = vand.u32 %v2985, 4294901760
    %v3107 = vsub.f32 %v2985, %v3106
    %v3108 = vand.u32 %v3107, 4294901760
    %v3109 = vsub.f32 %v3107, %v3108
    %v3110 = vand.u32 %v3109, 4294901760
    %3111 = vmatpush.msra.mxu0 %v3110
    %v3112 = vand.u32 %v2981, 4294901760
    %v3113 = vsub.f32 %v2981, %v3112
    %v3114 = vand.u32 %v3113, 4294901760
    %v3115 = vsub.f32 %v3113, %v3114
    %v3116 = vand.u32 %v3115, 4294901760
    %3117 = vmatpush.msra.mxu0 %v3116
    %v3118 = vand.u32 %v2977, 4294901760
    %v3119 = vsub.f32 %v2977, %v3118
    %v3120 = vand.u32 %v3119, 4294901760
    %v3121 = vsub.f32 %v3119, %v3120
    %v3122 = vand.u32 %v3121, 4294901760
    %3123 = vmatpush.msra.mxu0 %v3122
    %v3124 = vand.u32 %v2973, 4294901760
    %v3125 = vsub.f32 %v2973, %v3124
    %v3126 = vand.u32 %v3125, 4294901760
    %v3127 = vsub.f32 %v3125, %v3126
    %v3128 = vand.u32 %v3127, 4294901760
    %3129 = vmatpush.msra.mxu0 %v3128
    %v3130 = vand.u32 %v3022, 4294901760
    %3131 = vmatmul.f32.gmra.mxu0 %v3130
    %v3132 = vpop.f32.mrf.mxu0
    %v3133 = vadd.f32 %v3059, %v3132
    %v3134 = vand.u32 %v3025, 4294901760
    %3135 = vmatmul.f32.gmra.mxu0 %v3134
    %v3136 = vpop.f32.mrf.mxu0
    %v3137 = vadd.f32 %v3067, %v3136
    %3138 = vdwg.mxu0
    %3139 = vmatpush.msra.mxu0 0.0
    %3140 = vmatpush.msra.mxu0 0.0
    %3141 = vmatpush.msra.mxu0 0.0
    %3142 = vmatpush.msra.mxu0 0.0
    %3143 = vmatpush.msra.mxu0 0.0
    %3144 = vmatpush.msra.mxu0 0.0
    %3145 = vmatpush.msra.mxu0 0.0
    %v3146 = vand.u32 %v3005, 4294901760
    %v3147 = vsub.f32 %v3005, %v3146
    %3148 = vmatpush.msra.mxu0 %v3147
    %v3149 = vand.u32 %v3001, 4294901760
    %v3150 = vsub.f32 %v3001, %v3149
    %3151 = vmatpush.msra.mxu0 %v3150
    %v3152 = vand.u32 %v2997, 4294901760
    %v3153 = vsub.f32 %v2997, %v3152
    %3154 = vmatpush.msra.mxu0 %v3153
    %v3155 = vand.u32 %v2993, 4294901760
    %v3156 = vsub.f32 %v2993, %v3155
    %3157 = vmatpush.msra.mxu0 %v3156
    %v3158 = vand.u32 %v2989, 4294901760
    %v3159 = vsub.f32 %v2989, %v3158
    %3160 = vmatpush.msra.mxu0 %v3159
    %v3161 = vand.u32 %v2985, 4294901760
    %v3162 = vsub.f32 %v2985, %v3161
    %3163 = vmatpush.msra.mxu0 %v3162
    %v3164 = vand.u32 %v2981, 4294901760
    %v3165 = vsub.f32 %v2981, %v3164
    %3166 = vmatpush.msra.mxu0 %v3165
    %v3167 = vand.u32 %v2977, 4294901760
    %v3168 = vsub.f32 %v2977, %v3167
    %3169 = vmatpush.msra.mxu0 %v3168
    %v3170 = vand.u32 %v2973, 4294901760
    %v3171 = vsub.f32 %v2973, %v3170
    %3172 = vmatpush.msra.mxu0 %v3171
    %v3173 = vand.u32 %v3022, 4294901760
    %v3174 = vsub.f32 %v3022, %v3173
    %3175 = vmatmul.f32.gmra.mxu0 %v3174
    %v3176 = vpop.f32.mrf.mxu0
    %v3177 = vadd.f32 %v3133, %v3176
    %v3178 = vand.u32 %v3025, 4294901760
    %v3179 = vsub.f32 %v3025, %v3178
    %3180 = vmatmul.f32.gmra.mxu0 %v3179
    %v3181 = vpop.f32.mrf.mxu0
    %v3182 = vadd.f32 %v3137, %v3181
    %3183 = vdwg.mxu0
    %3184 = vmatpush.msra.mxu0 0.0
    %3185 = vmatpush.msra.mxu0 0.0
    %3186 = vmatpush.msra.mxu0 0.0
    %3187 = vmatpush.msra.mxu0 0.0
    %3188 = vmatpush.msra.mxu0 0.0
    %3189 = vmatpush.msra.mxu0 0.0
    %3190 = vmatpush.msra.mxu0 0.0
    %v3191 = vand.u32 %v3005, 4294901760
    %3192 = vmatpush.msra.mxu0 %v3191
    %v3193 = vand.u32 %v3001, 4294901760
    %3194 = vmatpush.msra.mxu0 %v3193
    %v3195 = vand.u32 %v2997, 4294901760
    %3196 = vmatpush.msra.mxu0 %v3195
    %v3197 = vand.u32 %v2993, 4294901760
    %3198 = vmatpush.msra.mxu0 %v3197
    %v3199 = vand.u32 %v2989, 4294901760
    %3200 = vmatpush.msra.mxu0 %v3199
    %v3201 = vand.u32 %v2985, 4294901760
    %3202 = vmatpush.msra.mxu0 %v3201
    %v3203 = vand.u32 %v2981, 4294901760
    %3204 = vmatpush.msra.mxu0 %v3203
    %v3205 = vand.u32 %v2977, 4294901760
    %3206 = vmatpush.msra.mxu0 %v3205
    %v3207 = vand.u32 %v2973, 4294901760
    %3208 = vmatpush.msra.mxu0 %v3207
    %v3209 = vand.u32 %v3022, 4294901760
    %v3210 = vsub.f32 %v3022, %v3209
    %v3211 = vand.u32 %v3210, 4294901760
    %3212 = vmatmul.f32.gmra.mxu0 %v3211
    %v3213 = vpop.f32.mrf.mxu0
    %v3214 = vadd.f32 %v3177, %v3213
    %v3215 = vand.u32 %v3025, 4294901760
    %v3216 = vsub.f32 %v3025, %v3215
    %v3217 = vand.u32 %v3216, 4294901760
    %3218 = vmatmul.f32.gmra.mxu0 %v3217
    %v3219 = vpop.f32.mrf.mxu0
    %v3220 = vadd.f32 %v3182, %v3219
    %3221 = vdwg.mxu0
    %3222 = vmatpush.msra.mxu0 0.0
    %3223 = vmatpush.msra.mxu0 0.0
    %3224 = vmatpush.msra.mxu0 0.0
    %3225 = vmatpush.msra.mxu0 0.0
    %3226 = vmatpush.msra.mxu0 0.0
    %3227 = vmatpush.msra.mxu0 0.0
    %3228 = vmatpush.msra.mxu0 0.0
    %v3229 = vand.u32 %v3005, 4294901760
    %v3230 = vsub.f32 %v3005, %v3229
    %v3231 = vand.u32 %v3230, 4294901760
    %3232 = vmatpush.msra.mxu0 %v3231
    %v3233 = vand.u32 %v3001, 4294901760
    %v3234 = vsub.f32 %v3001, %v3233
    %v3235 = vand.u32 %v3234, 4294901760
    %3236 = vmatpush.msra.mxu0 %v3235
    %v3237 = vand.u32 %v2997, 4294901760
    %v3238 = vsub.f32 %v2997, %v3237
    %v3239 = vand.u32 %v3238, 4294901760
    %3240 = vmatpush.msra.mxu0 %v3239
    %v3241 = vand.u32 %v2993, 4294901760
    %v3242 = vsub.f32 %v2993, %v3241
    %v3243 = vand.u32 %v3242, 4294901760
    %3244 = vmatpush.msra.mxu0 %v3243
    %v3245 = vand.u32 %v2989, 4294901760
    %v3246 = vsub.f32 %v2989, %v3245
    %v3247 = vand.u32 %v3246, 4294901760
    %3248 = vmatpush.msra.mxu0 %v3247
    %v3249 = vand.u32 %v2985, 4294901760
    %v3250 = vsub.f32 %v2985, %v3249
    %v3251 = vand.u32 %v3250, 4294901760
    %3252 = vmatpush.msra.mxu0 %v3251
    %v3253 = vand.u32 %v2981, 4294901760
    %v3254 = vsub.f32 %v2981, %v3253
    %v3255 = vand.u32 %v3254, 4294901760
    %3256 = vmatpush.msra.mxu0 %v3255
    %v3257 = vand.u32 %v2977, 4294901760
    %v3258 = vsub.f32 %v2977, %v3257
    %v3259 = vand.u32 %v3258, 4294901760
    %3260 = vmatpush.msra.mxu0 %v3259
    %v3261 = vand.u32 %v2973, 4294901760
    %v3262 = vsub.f32 %v2973, %v3261
    %v3263 = vand.u32 %v3262, 4294901760
    %3264 = vmatpush.msra.mxu0 %v3263
    %v3265 = vand.u32 %v3022, 4294901760
    %3266 = vmatmul.f32.gmra.mxu0 %v3265
    %v3267 = vpop.f32.mrf.mxu0
    %v3268 = vadd.f32 %v3214, %v3267
    %v3269 = vand.u32 %v3025, 4294901760
    %3270 = vmatmul.f32.gmra.mxu0 %v3269
    %v3271 = vpop.f32.mrf.mxu0
    %v3272 = vadd.f32 %v3220, %v3271
    %3273 = vdwg.mxu0
    %3274 = vmatpush.msra.mxu0 0.0
    %3275 = vmatpush.msra.mxu0 0.0
    %3276 = vmatpush.msra.mxu0 0.0
    %3277 = vmatpush.msra.mxu0 0.0
    %3278 = vmatpush.msra.mxu0 0.0
    %3279 = vmatpush.msra.mxu0 0.0
    %3280 = vmatpush.msra.mxu0 0.0
    %v3281 = vand.u32 %v3005, 4294901760
    %3282 = vmatpush.msra.mxu0 %v3281
    %v3283 = vand.u32 %v3001, 4294901760
    %3284 = vmatpush.msra.mxu0 %v3283
    %v3285 = vand.u32 %v2997, 4294901760
    %3286 = vmatpush.msra.mxu0 %v3285
    %v3287 = vand.u32 %v2993, 4294901760
    %3288 = vmatpush.msra.mxu0 %v3287
    %v3289 = vand.u32 %v2989, 4294901760
    %3290 = vmatpush.msra.mxu0 %v3289
    %v3291 = vand.u32 %v2985, 4294901760
    %3292 = vmatpush.msra.mxu0 %v3291
    %v3293 = vand.u32 %v2981, 4294901760
    %3294 = vmatpush.msra.mxu0 %v3293
    %v3295 = vand.u32 %v2977, 4294901760
    %3296 = vmatpush.msra.mxu0 %v3295
    %v3297 = vand.u32 %v2973, 4294901760
    %3298 = vmatpush.msra.mxu0 %v3297
    %v3299 = vand.u32 %v3022, 4294901760
    %3300 = vmatmul.f32.gmra.mxu0 %v3299
    %v3301 = vpop.f32.mrf.mxu0
    %v3302 = vadd.f32 %v3268, %v3301
    %v3303 = vand.u32 %v3025, 4294901760
    %3304 = vmatmul.f32.gmra.mxu0 %v3303
    %v3305 = vpop.f32.mrf.mxu0
    %v3306 = vadd.f32 %v3272, %v3305
    %3307 = vdwg.mxu0
    %3308 = vmatpush.msra.mxu0 0.0
    %3309 = vmatpush.msra.mxu0 0.0
    %3310 = vmatpush.msra.mxu0 0.0
    %3311 = vmatpush.msra.mxu0 0.0
    %3312 = vmatpush.msra.mxu0 0.0
    %3313 = vmatpush.msra.mxu0 0.0
    %3314 = vmatpush.msra.mxu0 0.0
    %v3315 = vand.u32 %v3006, 4294901760
    %3316 = vmatpush.msra.mxu0 %v3315
    %v3317 = vand.u32 %v3002, 4294901760
    %3318 = vmatpush.msra.mxu0 %v3317
    %v3319 = vand.u32 %v2998, 4294901760
    %3320 = vmatpush.msra.mxu0 %v3319
    %v3321 = vand.u32 %v2994, 4294901760
    %3322 = vmatpush.msra.mxu0 %v3321
    %v3323 = vand.u32 %v2990, 4294901760
    %3324 = vmatpush.msra.mxu0 %v3323
    %v3325 = vand.u32 %v2986, 4294901760
    %3326 = vmatpush.msra.mxu0 %v3325
    %v3327 = vand.u32 %v2982, 4294901760
    %3328 = vmatpush.msra.mxu0 %v3327
    %v3329 = vand.u32 %v2978, 4294901760
    %3330 = vmatpush.msra.mxu0 %v3329
    %v3331 = vand.u32 %v2974, 4294901760
    %3332 = vmatpush.msra.mxu0 %v3331
    %v3333 = vand.u32 %v3022, 4294901760
    %v3334 = vsub.f32 %v3022, %v3333
    %v3335 = vand.u32 %v3334, 4294901760
    %v3336 = vsub.f32 %v3334, %v3335
    %v3337 = vand.u32 %v3336, 4294901760
    %3338 = vmatmul.f32.gmra.mxu0 %v3337
    %v3339 = vpop.f32.mrf.mxu0
    %v3340 = vadd.f32 %v3014, %v3339
    %v3341 = vand.u32 %v3025, 4294901760
    %v3342 = vsub.f32 %v3025, %v3341
    %v3343 = vand.u32 %v3342, 4294901760
    %v3344 = vsub.f32 %v3342, %v3343
    %v3345 = vand.u32 %v3344, 4294901760
    %3346 = vmatmul.f32.gmra.mxu0 %v3345
    %v3347 = vpop.f32.mrf.mxu0
    %v3348 = vadd.f32 %v3019, %v3347
    %3349 = vdwg.mxu0
    %3350 = vmatpush.msra.mxu0 0.0
    %3351 = vmatpush.msra.mxu0 0.0
    %3352 = vmatpush.msra.mxu0 0.0
    %3353 = vmatpush.msra.mxu0 0.0
    %3354 = vmatpush.msra.mxu0 0.0
    %3355 = vmatpush.msra.mxu0 0.0
    %3356 = vmatpush.msra.mxu0 0.0
    %v3357 = vand.u32 %v3006, 4294901760
    %v3358 = vsub.f32 %v3006, %v3357
    %v3359 = vand.u32 %v3358, 4294901760
    %v3360 = vsub.f32 %v3358, %v3359
    %v3361 = vand.u32 %v3360, 4294901760
    %3362 = vmatpush.msra.mxu0 %v3361
    %v3363 = vand.u32 %v3002, 4294901760
    %v3364 = vsub.f32 %v3002, %v3363
    %v3365 = vand.u32 %v3364, 4294901760
    %v3366 = vsub.f32 %v3364, %v3365
    %v3367 = vand.u32 %v3366, 4294901760
    %3368 = vmatpush.msra.mxu0 %v3367
    %v3369 = vand.u32 %v2998, 4294901760
    %v3370 = vsub.f32 %v2998, %v3369
    %v3371 = vand.u32 %v3370, 4294901760
    %v3372 = vsub.f32 %v3370, %v3371
    %v3373 = vand.u32 %v3372, 4294901760
    %3374 = vmatpush.msra.mxu0 %v3373
    %v3375 = vand.u32 %v2994, 4294901760
    %v3376 = vsub.f32 %v2994, %v3375
    %v3377 = vand.u32 %v3376, 4294901760
    %v3378 = vsub.f32 %v3376, %v3377
    %v3379 = vand.u32 %v3378, 4294901760
    %3380 = vmatpush.msra.mxu0 %v3379
    %v3381 = vand.u32 %v2990, 4294901760
    %v3382 = vsub.f32 %v2990, %v3381
    %v3383 = vand.u32 %v3382, 4294901760
    %v3384 = vsub.f32 %v3382, %v3383
    %v3385 = vand.u32 %v3384, 4294901760
    %3386 = vmatpush.msra.mxu0 %v3385
    %v3387 = vand.u32 %v2986, 4294901760
    %v3388 = vsub.f32 %v2986, %v3387
    %v3389 = vand.u32 %v3388, 4294901760
    %v3390 = vsub.f32 %v3388, %v3389
    %v3391 = vand.u32 %v3390, 4294901760
    %3392 = vmatpush.msra.mxu0 %v3391
    %v3393 = vand.u32 %v2982, 4294901760
    %v3394 = vsub.f32 %v2982, %v3393
    %v3395 = vand.u32 %v3394, 4294901760
    %v3396 = vsub.f32 %v3394, %v3395
    %v3397 = vand.u32 %v3396, 4294901760
    %3398 = vmatpush.msra.mxu0 %v3397
    %v3399 = vand.u32 %v2978, 4294901760
    %v3400 = vsub.f32 %v2978, %v3399
    %v3401 = vand.u32 %v3400, 4294901760
    %v3402 = vsub.f32 %v3400, %v3401
    %v3403 = vand.u32 %v3402, 4294901760
    %3404 = vmatpush.msra.mxu0 %v3403
    %v3405 = vand.u32 %v2974, 4294901760
    %v3406 = vsub.f32 %v2974, %v3405
    %v3407 = vand.u32 %v3406, 4294901760
    %v3408 = vsub.f32 %v3406, %v3407
    %v3409 = vand.u32 %v3408, 4294901760
    %3410 = vmatpush.msra.mxu0 %v3409
    %v3411 = vand.u32 %v3022, 4294901760
    %3412 = vmatmul.f32.gmra.mxu0 %v3411
    %v3413 = vpop.f32.mrf.mxu0
    %v3414 = vadd.f32 %v3340, %v3413
    %v3415 = vand.u32 %v3025, 4294901760
    %3416 = vmatmul.f32.gmra.mxu0 %v3415
    %v3417 = vpop.f32.mrf.mxu0
    %v3418 = vadd.f32 %v3348, %v3417
    %3419 = vdwg.mxu0
    %3420 = vmatpush.msra.mxu0 0.0
    %3421 = vmatpush.msra.mxu0 0.0
    %3422 = vmatpush.msra.mxu0 0.0
    %3423 = vmatpush.msra.mxu0 0.0
    %3424 = vmatpush.msra.mxu0 0.0
    %3425 = vmatpush.msra.mxu0 0.0
    %3426 = vmatpush.msra.mxu0 0.0
    %v3427 = vand.u32 %v3006, 4294901760
    %v3428 = vsub.f32 %v3006, %v3427
    %3429 = vmatpush.msra.mxu0 %v3428
    %v3430 = vand.u32 %v3002, 4294901760
    %v3431 = vsub.f32 %v3002, %v3430
    %3432 = vmatpush.msra.mxu0 %v3431
    %v3433 = vand.u32 %v2998, 4294901760
    %v3434 = vsub.f32 %v2998, %v3433
    %3435 = vmatpush.msra.mxu0 %v3434
    %v3436 = vand.u32 %v2994, 4294901760
    %v3437 = vsub.f32 %v2994, %v3436
    %3438 = vmatpush.msra.mxu0 %v3437
    %v3439 = vand.u32 %v2990, 4294901760
    %v3440 = vsub.f32 %v2990, %v3439
    %3441 = vmatpush.msra.mxu0 %v3440
    %v3442 = vand.u32 %v2986, 4294901760
    %v3443 = vsub.f32 %v2986, %v3442
    %3444 = vmatpush.msra.mxu0 %v3443
    %v3445 = vand.u32 %v2982, 4294901760
    %v3446 = vsub.f32 %v2982, %v3445
    %3447 = vmatpush.msra.mxu0 %v3446
    %v3448 = vand.u32 %v2978, 4294901760
    %v3449 = vsub.f32 %v2978, %v3448
    %3450 = vmatpush.msra.mxu0 %v3449
    %v3451 = vand.u32 %v2974, 4294901760
    %v3452 = vsub.f32 %v2974, %v3451
    %3453 = vmatpush.msra.mxu0 %v3452
    %v3454 = vand.u32 %v3022, 4294901760
    %v3455 = vsub.f32 %v3022, %v3454
    %3456 = vmatmul.f32.gmra.mxu0 %v3455
    %v3457 = vpop.f32.mrf.mxu0
    %v3458 = vadd.f32 %v3414, %v3457
    %v3459 = vand.u32 %v3025, 4294901760
    %v3460 = vsub.f32 %v3025, %v3459
    %3461 = vmatmul.f32.gmra.mxu0 %v3460
    %v3462 = vpop.f32.mrf.mxu0
    %v3463 = vadd.f32 %v3418, %v3462
    %3464 = vdwg.mxu0
    %3465 = vmatpush.msra.mxu0 0.0
    %3466 = vmatpush.msra.mxu0 0.0
    %3467 = vmatpush.msra.mxu0 0.0
    %3468 = vmatpush.msra.mxu0 0.0
    %3469 = vmatpush.msra.mxu0 0.0
    %3470 = vmatpush.msra.mxu0 0.0
    %3471 = vmatpush.msra.mxu0 0.0
    %v3472 = vand.u32 %v3006, 4294901760
    %3473 = vmatpush.msra.mxu0 %v3472
    %v3474 = vand.u32 %v3002, 4294901760
    %3475 = vmatpush.msra.mxu0 %v3474
    %v3476 = vand.u32 %v2998, 4294901760
    %3477 = vmatpush.msra.mxu0 %v3476
    %v3478 = vand.u32 %v2994, 4294901760
    %3479 = vmatpush.msra.mxu0 %v3478
    %v3480 = vand.u32 %v2990, 4294901760
    %3481 = vmatpush.msra.mxu0 %v3480
    %v3482 = vand.u32 %v2986, 4294901760
    %3483 = vmatpush.msra.mxu0 %v3482
    %v3484 = vand.u32 %v2982, 4294901760
    %3485 = vmatpush.msra.mxu0 %v3484
    %v3486 = vand.u32 %v2978, 4294901760
    %3487 = vmatpush.msra.mxu0 %v3486
    %v3488 = vand.u32 %v2974, 4294901760
    %3489 = vmatpush.msra.mxu0 %v3488
    %v3490 = vand.u32 %v3022, 4294901760
    %v3491 = vsub.f32 %v3022, %v3490
    %v3492 = vand.u32 %v3491, 4294901760
    %3493 = vmatmul.f32.gmra.mxu0 %v3492
    %v3494 = vpop.f32.mrf.mxu0
    %v3495 = vadd.f32 %v3458, %v3494
    %v3496 = vand.u32 %v3025, 4294901760
    %v3497 = vsub.f32 %v3025, %v3496
    %v3498 = vand.u32 %v3497, 4294901760
    %3499 = vmatmul.f32.gmra.mxu0 %v3498
    %v3500 = vpop.f32.mrf.mxu0
    %v3501 = vadd.f32 %v3463, %v3500
    %3502 = vdwg.mxu0
    %3503 = vmatpush.msra.mxu0 0.0
    %3504 = vmatpush.msra.mxu0 0.0
    %3505 = vmatpush.msra.mxu0 0.0
    %3506 = vmatpush.msra.mxu0 0.0
    %3507 = vmatpush.msra.mxu0 0.0
    %3508 = vmatpush.msra.mxu0 0.0
    %3509 = vmatpush.msra.mxu0 0.0
    %v3510 = vand.u32 %v3006, 4294901760
    %v3511 = vsub.f32 %v3006, %v3510
    %v3512 = vand.u32 %v3511, 4294901760
    %3513 = vmatpush.msra.mxu0 %v3512
    %v3514 = vand.u32 %v3002, 4294901760
    %v3515 = vsub.f32 %v3002, %v3514
    %v3516 = vand.u32 %v3515, 4294901760
    %3517 = vmatpush.msra.mxu0 %v3516
    %v3518 = vand.u32 %v2998, 4294901760
    %v3519 = vsub.f32 %v2998, %v3518
    %v3520 = vand.u32 %v3519, 4294901760
    %3521 = vmatpush.msra.mxu0 %v3520
    %v3522 = vand.u32 %v2994, 4294901760
    %v3523 = vsub.f32 %v2994, %v3522
    %v3524 = vand.u32 %v3523, 4294901760
    %3525 = vmatpush.msra.mxu0 %v3524
    %v3526 = vand.u32 %v2990, 4294901760
    %v3527 = vsub.f32 %v2990, %v3526
    %v3528 = vand.u32 %v3527, 4294901760
    %3529 = vmatpush.msra.mxu0 %v3528
    %v3530 = vand.u32 %v2986, 4294901760
    %v3531 = vsub.f32 %v2986, %v3530
    %v3532 = vand.u32 %v3531, 4294901760
    %3533 = vmatpush.msra.mxu0 %v3532
    %v3534 = vand.u32 %v2982, 4294901760
    %v3535 = vsub.f32 %v2982, %v3534
    %v3536 = vand.u32 %v3535, 4294901760
    %3537 = vmatpush.msra.mxu0 %v3536
    %v3538 = vand.u32 %v2978, 4294901760
    %v3539 = vsub.f32 %v2978, %v3538
    %v3540 = vand.u32 %v3539, 4294901760
    %3541 = vmatpush.msra.mxu0 %v3540
    %v3542 = vand.u32 %v2974, 4294901760
    %v3543 = vsub.f32 %v2974, %v3542
    %v3544 = vand.u32 %v3543, 4294901760
    %3545 = vmatpush.msra.mxu0 %v3544
    %v3546 = vand.u32 %v3022, 4294901760
    %3547 = vmatmul.f32.gmra.mxu0 %v3546
    %v3548 = vpop.f32.mrf.mxu0
    %v3549 = vadd.f32 %v3495, %v3548
    %v3550 = vand.u32 %v3025, 4294901760
    %3551 = vmatmul.f32.gmra.mxu0 %v3550
    %v3552 = vpop.f32.mrf.mxu0
    %v3553 = vadd.f32 %v3501, %v3552
    %3554 = vdwg.mxu0
    %3555 = vmatpush.msra.mxu0 0.0
    %3556 = vmatpush.msra.mxu0 0.0
    %3557 = vmatpush.msra.mxu0 0.0
    %3558 = vmatpush.msra.mxu0 0.0
    %3559 = vmatpush.msra.mxu0 0.0
    %3560 = vmatpush.msra.mxu0 0.0
    %3561 = vmatpush.msra.mxu0 0.0
    %v3562 = vand.u32 %v3006, 4294901760
    %3563 = vmatpush.msra.mxu0 %v3562
    %v3564 = vand.u32 %v3002, 4294901760
    %3565 = vmatpush.msra.mxu0 %v3564
    %v3566 = vand.u32 %v2998, 4294901760
    %3567 = vmatpush.msra.mxu0 %v3566
    %v3568 = vand.u32 %v2994, 4294901760
    %3569 = vmatpush.msra.mxu0 %v3568
    %v3570 = vand.u32 %v2990, 4294901760
    %3571 = vmatpush.msra.mxu0 %v3570
    %v3572 = vand.u32 %v2986, 4294901760
    %3573 = vmatpush.msra.mxu0 %v3572
    %v3574 = vand.u32 %v2982, 4294901760
    %3575 = vmatpush.msra.mxu0 %v3574
    %v3576 = vand.u32 %v2978, 4294901760
    %3577 = vmatpush.msra.mxu0 %v3576
    %v3578 = vand.u32 %v2974, 4294901760
    %3579 = vmatpush.msra.mxu0 %v3578
    %v3580 = vand.u32 %v3022, 4294901760
    %3581 = vmatmul.f32.gmra.mxu0 %v3580
    %v3582 = vpop.f32.mrf.mxu0
    %v3583 = vadd.f32 %v3549, %v3582
    %v3584 = vand.u32 %v3025, 4294901760
    %3585 = vmatmul.f32.gmra.mxu0 %v3584
    %v3586 = vpop.f32.mrf.mxu0
    %v3587 = vadd.f32 %v3553, %v3586
    %3588 = vdwg.mxu0
    %3589 = vmatpush.msra.mxu0 0.0
    %3590 = vmatpush.msra.mxu0 0.0
    %3591 = vmatpush.msra.mxu0 0.0
    %3592 = vmatpush.msra.mxu0 0.0
    %3593 = vmatpush.msra.mxu0 0.0
    %3594 = vmatpush.msra.mxu0 0.0
    %3595 = vmatpush.msra.mxu0 0.0
    %v3596 = vand.u32 %v3007, 4294901760
    %3597 = vmatpush.msra.mxu0 %v3596
    %v3598 = vand.u32 %v3003, 4294901760
    %3599 = vmatpush.msra.mxu0 %v3598
    %v3600 = vand.u32 %v2999, 4294901760
    %3601 = vmatpush.msra.mxu0 %v3600
    %v3602 = vand.u32 %v2995, 4294901760
    %3603 = vmatpush.msra.mxu0 %v3602
    %v3604 = vand.u32 %v2991, 4294901760
    %3605 = vmatpush.msra.mxu0 %v3604
    %v3606 = vand.u32 %v2987, 4294901760
    %3607 = vmatpush.msra.mxu0 %v3606
    %v3608 = vand.u32 %v2983, 4294901760
    %3609 = vmatpush.msra.mxu0 %v3608
    %v3610 = vand.u32 %v2979, 4294901760
    %3611 = vmatpush.msra.mxu0 %v3610
    %v3612 = vand.u32 %v2975, 4294901760
    %3613 = vmatpush.msra.mxu0 %v3612
    %v3614 = vand.u32 %v3022, 4294901760
    %v3615 = vsub.f32 %v3022, %v3614
    %v3616 = vand.u32 %v3615, 4294901760
    %v3617 = vsub.f32 %v3615, %v3616
    %v3618 = vand.u32 %v3617, 4294901760
    %3619 = vmatmul.f32.gmra.mxu0 %v3618
    %v3620 = vpop.f32.mrf.mxu0
    %v3621 = vadd.f32 %v3014, %v3620
    %v3622 = vand.u32 %v3025, 4294901760
    %v3623 = vsub.f32 %v3025, %v3622
    %v3624 = vand.u32 %v3623, 4294901760
    %v3625 = vsub.f32 %v3623, %v3624
    %v3626 = vand.u32 %v3625, 4294901760
    %3627 = vmatmul.f32.gmra.mxu0 %v3626
    %v3628 = vpop.f32.mrf.mxu0
    %v3629 = vadd.f32 %v3019, %v3628
    %3630 = vdwg.mxu0
    %3631 = vmatpush.msra.mxu0 0.0
    %3632 = vmatpush.msra.mxu0 0.0
    %3633 = vmatpush.msra.mxu0 0.0
    %3634 = vmatpush.msra.mxu0 0.0
    %3635 = vmatpush.msra.mxu0 0.0
    %3636 = vmatpush.msra.mxu0 0.0
    %3637 = vmatpush.msra.mxu0 0.0
    %v3638 = vand.u32 %v3007, 4294901760
    %v3639 = vsub.f32 %v3007, %v3638
    %v3640 = vand.u32 %v3639, 4294901760
    %v3641 = vsub.f32 %v3639, %v3640
    %v3642 = vand.u32 %v3641, 4294901760
    %3643 = vmatpush.msra.mxu0 %v3642
    %v3644 = vand.u32 %v3003, 4294901760
    %v3645 = vsub.f32 %v3003, %v3644
    %v3646 = vand.u32 %v3645, 4294901760
    %v3647 = vsub.f32 %v3645, %v3646
    %v3648 = vand.u32 %v3647, 4294901760
    %3649 = vmatpush.msra.mxu0 %v3648
    %v3650 = vand.u32 %v2999, 4294901760
    %v3651 = vsub.f32 %v2999, %v3650
    %v3652 = vand.u32 %v3651, 4294901760
    %v3653 = vsub.f32 %v3651, %v3652
    %v3654 = vand.u32 %v3653, 4294901760
    %3655 = vmatpush.msra.mxu0 %v3654
    %v3656 = vand.u32 %v2995, 4294901760
    %v3657 = vsub.f32 %v2995, %v3656
    %v3658 = vand.u32 %v3657, 4294901760
    %v3659 = vsub.f32 %v3657, %v3658
    %v3660 = vand.u32 %v3659, 4294901760
    %3661 = vmatpush.msra.mxu0 %v3660
    %v3662 = vand.u32 %v2991, 4294901760
    %v3663 = vsub.f32 %v2991, %v3662
    %v3664 = vand.u32 %v3663, 4294901760
    %v3665 = vsub.f32 %v3663, %v3664
    %v3666 = vand.u32 %v3665, 4294901760
    %3667 = vmatpush.msra.mxu0 %v3666
    %v3668 = vand.u32 %v2987, 4294901760
    %v3669 = vsub.f32 %v2987, %v3668
    %v3670 = vand.u32 %v3669, 4294901760
    %v3671 = vsub.f32 %v3669, %v3670
    %v3672 = vand.u32 %v3671, 4294901760
    %3673 = vmatpush.msra.mxu0 %v3672
    %v3674 = vand.u32 %v2983, 4294901760
    %v3675 = vsub.f32 %v2983, %v3674
    %v3676 = vand.u32 %v3675, 4294901760
    %v3677 = vsub.f32 %v3675, %v3676
    %v3678 = vand.u32 %v3677, 4294901760
    %3679 = vmatpush.msra.mxu0 %v3678
    %v3680 = vand.u32 %v2979, 4294901760
    %v3681 = vsub.f32 %v2979, %v3680
    %v3682 = vand.u32 %v3681, 4294901760
    %v3683 = vsub.f32 %v3681, %v3682
    %v3684 = vand.u32 %v3683, 4294901760
    %3685 = vmatpush.msra.mxu0 %v3684
    %v3686 = vand.u32 %v2975, 4294901760
    %v3687 = vsub.f32 %v2975, %v3686
    %v3688 = vand.u32 %v3687, 4294901760
    %v3689 = vsub.f32 %v3687, %v3688
    %v3690 = vand.u32 %v3689, 4294901760
    %3691 = vmatpush.msra.mxu0 %v3690
    %v3692 = vand.u32 %v3022, 4294901760
    %3693 = vmatmul.f32.gmra.mxu0 %v3692
    %v3694 = vpop.f32.mrf.mxu0
    %v3695 = vadd.f32 %v3621, %v3694
    %v3696 = vand.u32 %v3025, 4294901760
    %3697 = vmatmul.f32.gmra.mxu0 %v3696
    %v3698 = vpop.f32.mrf.mxu0
    %v3699 = vadd.f32 %v3629, %v3698
    %3700 = vdwg.mxu0
    %3701 = vmatpush.msra.mxu0 0.0
    %3702 = vmatpush.msra.mxu0 0.0
    %3703 = vmatpush.msra.mxu0 0.0
    %3704 = vmatpush.msra.mxu0 0.0
    %3705 = vmatpush.msra.mxu0 0.0
    %3706 = vmatpush.msra.mxu0 0.0
    %3707 = vmatpush.msra.mxu0 0.0
    %v3708 = vand.u32 %v3007, 4294901760
    %v3709 = vsub.f32 %v3007, %v3708
    %3710 = vmatpush.msra.mxu0 %v3709
    %v3711 = vand.u32 %v3003, 4294901760
    %v3712 = vsub.f32 %v3003, %v3711
    %3713 = vmatpush.msra.mxu0 %v3712
    %v3714 = vand.u32 %v2999, 4294901760
    %v3715 = vsub.f32 %v2999, %v3714
    %3716 = vmatpush.msra.mxu0 %v3715
    %v3717 = vand.u32 %v2995, 4294901760
    %v3718 = vsub.f32 %v2995, %v3717
    %3719 = vmatpush.msra.mxu0 %v3718
    %v3720 = vand.u32 %v2991, 4294901760
    %v3721 = vsub.f32 %v2991, %v3720
    %3722 = vmatpush.msra.mxu0 %v3721
    %v3723 = vand.u32 %v2987, 4294901760
    %v3724 = vsub.f32 %v2987, %v3723
    %3725 = vmatpush.msra.mxu0 %v3724
    %v3726 = vand.u32 %v2983, 4294901760
    %v3727 = vsub.f32 %v2983, %v3726
    %3728 = vmatpush.msra.mxu0 %v3727
    %v3729 = vand.u32 %v2979, 4294901760
    %v3730 = vsub.f32 %v2979, %v3729
    %3731 = vmatpush.msra.mxu0 %v3730
    %v3732 = vand.u32 %v2975, 4294901760
    %v3733 = vsub.f32 %v2975, %v3732
    %3734 = vmatpush.msra.mxu0 %v3733
    %v3735 = vand.u32 %v3022, 4294901760
    %v3736 = vsub.f32 %v3022, %v3735
    %3737 = vmatmul.f32.gmra.mxu0 %v3736
    %v3738 = vpop.f32.mrf.mxu0
    %v3739 = vadd.f32 %v3695, %v3738
    %v3740 = vand.u32 %v3025, 4294901760
    %v3741 = vsub.f32 %v3025, %v3740
    %3742 = vmatmul.f32.gmra.mxu0 %v3741
    %v3743 = vpop.f32.mrf.mxu0
    %v3744 = vadd.f32 %v3699, %v3743
    %3745 = vdwg.mxu0
    %3746 = vmatpush.msra.mxu0 0.0
    %3747 = vmatpush.msra.mxu0 0.0
    %3748 = vmatpush.msra.mxu0 0.0
    %3749 = vmatpush.msra.mxu0 0.0
    %3750 = vmatpush.msra.mxu0 0.0
    %3751 = vmatpush.msra.mxu0 0.0
    %3752 = vmatpush.msra.mxu0 0.0
    %v3753 = vand.u32 %v3007, 4294901760
    %3754 = vmatpush.msra.mxu0 %v3753
    %v3755 = vand.u32 %v3003, 4294901760
    %3756 = vmatpush.msra.mxu0 %v3755
    %v3757 = vand.u32 %v2999, 4294901760
    %3758 = vmatpush.msra.mxu0 %v3757
    %v3759 = vand.u32 %v2995, 4294901760
    %3760 = vmatpush.msra.mxu0 %v3759
    %v3761 = vand.u32 %v2991, 4294901760
    %3762 = vmatpush.msra.mxu0 %v3761
    %v3763 = vand.u32 %v2987, 4294901760
    %3764 = vmatpush.msra.mxu0 %v3763
    %v3765 = vand.u32 %v2983, 4294901760
    %3766 = vmatpush.msra.mxu0 %v3765
    %v3767 = vand.u32 %v2979, 4294901760
    %3768 = vmatpush.msra.mxu0 %v3767
    %v3769 = vand.u32 %v2975, 4294901760
    %3770 = vmatpush.msra.mxu0 %v3769
    %v3771 = vand.u32 %v3022, 4294901760
    %v3772 = vsub.f32 %v3022, %v3771
    %v3773 = vand.u32 %v3772, 4294901760
    %3774 = vmatmul.f32.gmra.mxu0 %v3773
    %v3775 = vpop.f32.mrf.mxu0
    %v3776 = vadd.f32 %v3739, %v3775
    %v3777 = vand.u32 %v3025, 4294901760
    %v3778 = vsub.f32 %v3025, %v3777
    %v3779 = vand.u32 %v3778, 4294901760
    %3780 = vmatmul.f32.gmra.mxu0 %v3779
    %v3781 = vpop.f32.mrf.mxu0
    %v3782 = vadd.f32 %v3744, %v3781
    %3783 = vdwg.mxu0
    %3784 = vmatpush.msra.mxu0 0.0
    %3785 = vmatpush.msra.mxu0 0.0
    %3786 = vmatpush.msra.mxu0 0.0
    %3787 = vmatpush.msra.mxu0 0.0
    %3788 = vmatpush.msra.mxu0 0.0
    %3789 = vmatpush.msra.mxu0 0.0
    %3790 = vmatpush.msra.mxu0 0.0
    %v3791 = vand.u32 %v3007, 4294901760
    %v3792 = vsub.f32 %v3007, %v3791
    %v3793 = vand.u32 %v3792, 4294901760
    %3794 = vmatpush.msra.mxu0 %v3793
    %v3795 = vand.u32 %v3003, 4294901760
    %v3796 = vsub.f32 %v3003, %v3795
    %v3797 = vand.u32 %v3796, 4294901760
    %3798 = vmatpush.msra.mxu0 %v3797
    %v3799 = vand.u32 %v2999, 4294901760
    %v3800 = vsub.f32 %v2999, %v3799
    %v3801 = vand.u32 %v3800, 4294901760
    %3802 = vmatpush.msra.mxu0 %v3801
    %v3803 = vand.u32 %v2995, 4294901760
    %v3804 = vsub.f32 %v2995, %v3803
    %v3805 = vand.u32 %v3804, 4294901760
    %3806 = vmatpush.msra.mxu0 %v3805
    %v3807 = vand.u32 %v2991, 4294901760
    %v3808 = vsub.f32 %v2991, %v3807
    %v3809 = vand.u32 %v3808, 4294901760
    %3810 = vmatpush.msra.mxu0 %v3809
    %v3811 = vand.u32 %v2987, 4294901760
    %v3812 = vsub.f32 %v2987, %v3811
    %v3813 = vand.u32 %v3812, 4294901760
    %3814 = vmatpush.msra.mxu0 %v3813
    %v3815 = vand.u32 %v2983, 4294901760
    %v3816 = vsub.f32 %v2983, %v3815
    %v3817 = vand.u32 %v3816, 4294901760
    %3818 = vmatpush.msra.mxu0 %v3817
    %v3819 = vand.u32 %v2979, 4294901760
    %v3820 = vsub.f32 %v2979, %v3819
    %v3821 = vand.u32 %v3820, 4294901760
    %3822 = vmatpush.msra.mxu0 %v3821
    %v3823 = vand.u32 %v2975, 4294901760
    %v3824 = vsub.f32 %v2975, %v3823
    %v3825 = vand.u32 %v3824, 4294901760
    %3826 = vmatpush.msra.mxu0 %v3825
    %v3827 = vand.u32 %v3022, 4294901760
    %3828 = vmatmul.f32.gmra.mxu0 %v3827
    %v3829 = vpop.f32.mrf.mxu0
    %v3830 = vadd.f32 %v3776, %v3829
    %v3831 = vand.u32 %v3025, 4294901760
    %3832 = vmatmul.f32.gmra.mxu0 %v3831
    %v3833 = vpop.f32.mrf.mxu0
    %v3834 = vadd.f32 %v3782, %v3833
    %3835 = vdwg.mxu0
    %3836 = vmatpush.msra.mxu0 0.0
    %3837 = vmatpush.msra.mxu0 0.0
    %3838 = vmatpush.msra.mxu0 0.0
    %3839 = vmatpush.msra.mxu0 0.0
    %3840 = vmatpush.msra.mxu0 0.0
    %3841 = vmatpush.msra.mxu0 0.0
    %3842 = vmatpush.msra.mxu0 0.0
    %v3843 = vand.u32 %v3007, 4294901760
    %3844 = vmatpush.msra.mxu0 %v3843
    %v3845 = vand.u32 %v3003, 4294901760
    %3846 = vmatpush.msra.mxu0 %v3845
    %v3847 = vand.u32 %v2999, 4294901760
    %3848 = vmatpush.msra.mxu0 %v3847
    %v3849 = vand.u32 %v2995, 4294901760
    %3850 = vmatpush.msra.mxu0 %v3849
    %v3851 = vand.u32 %v2991, 4294901760
    %3852 = vmatpush.msra.mxu0 %v3851
    %v3853 = vand.u32 %v2987, 4294901760
    %3854 = vmatpush.msra.mxu0 %v3853
    %v3855 = vand.u32 %v2983, 4294901760
    %3856 = vmatpush.msra.mxu0 %v3855
    %v3857 = vand.u32 %v2979, 4294901760
    %3858 = vmatpush.msra.mxu0 %v3857
    %v3859 = vand.u32 %v2975, 4294901760
    %3860 = vmatpush.msra.mxu0 %v3859
    %v3861 = vand.u32 %v3022, 4294901760
    %3862 = vmatmul.f32.gmra.mxu0 %v3861
    %v3863 = vpop.f32.mrf.mxu0
    %v3864 = vadd.f32 %v3830, %v3863
    %v3865 = vand.u32 %v3025, 4294901760
    %3866 = vmatmul.f32.gmra.mxu0 %v3865
    %v3867 = vpop.f32.mrf.mxu0
    %v3868 = vadd.f32 %v3834, %v3867
    %3869 = vdwg.mxu0
    %3870 = vmatpush.msra.mxu0 0.0
    %3871 = vmatpush.msra.mxu0 0.0
    %3872 = vmatpush.msra.mxu0 0.0
    %3873 = vmatpush.msra.mxu0 0.0
    %3874 = vmatpush.msra.mxu0 0.0
    %3875 = vmatpush.msra.mxu0 0.0
    %3876 = vmatpush.msra.mxu0 0.0
    %v3877 = vand.u32 %v3008, 4294901760
    %3878 = vmatpush.msra.mxu0 %v3877
    %v3879 = vand.u32 %v3004, 4294901760
    %3880 = vmatpush.msra.mxu0 %v3879
    %v3881 = vand.u32 %v3000, 4294901760
    %3882 = vmatpush.msra.mxu0 %v3881
    %v3883 = vand.u32 %v2996, 4294901760
    %3884 = vmatpush.msra.mxu0 %v3883
    %v3885 = vand.u32 %v2992, 4294901760
    %3886 = vmatpush.msra.mxu0 %v3885
    %v3887 = vand.u32 %v2988, 4294901760
    %3888 = vmatpush.msra.mxu0 %v3887
    %v3889 = vand.u32 %v2984, 4294901760
    %3890 = vmatpush.msra.mxu0 %v3889
    %v3891 = vand.u32 %v2980, 4294901760
    %3892 = vmatpush.msra.mxu0 %v3891
    %v3893 = vand.u32 %v2976, 4294901760
    %3894 = vmatpush.msra.mxu0 %v3893
    %v3895 = vand.u32 %v3022, 4294901760
    %v3896 = vsub.f32 %v3022, %v3895
    %v3897 = vand.u32 %v3896, 4294901760
    %v3898 = vsub.f32 %v3896, %v3897
    %v3899 = vand.u32 %v3898, 4294901760
    %3900 = vmatmul.f32.gmra.mxu0 %v3899
    %v3901 = vpop.f32.mrf.mxu0
    %v3902 = vadd.f32 %v3014, %v3901
    %v3903 = vand.u32 %v3025, 4294901760
    %v3904 = vsub.f32 %v3025, %v3903
    %v3905 = vand.u32 %v3904, 4294901760
    %v3906 = vsub.f32 %v3904, %v3905
    %v3907 = vand.u32 %v3906, 4294901760
    %3908 = vmatmul.f32.gmra.mxu0 %v3907
    %v3909 = vpop.f32.mrf.mxu0
    %v3910 = vadd.f32 %v3019, %v3909
    %3911 = vdwg.mxu0
    %3912 = vmatpush.msra.mxu0 0.0
    %3913 = vmatpush.msra.mxu0 0.0
    %3914 = vmatpush.msra.mxu0 0.0
    %3915 = vmatpush.msra.mxu0 0.0
    %3916 = vmatpush.msra.mxu0 0.0
    %3917 = vmatpush.msra.mxu0 0.0
    %3918 = vmatpush.msra.mxu0 0.0
    %v3919 = vand.u32 %v3008, 4294901760
    %v3920 = vsub.f32 %v3008, %v3919
    %v3921 = vand.u32 %v3920, 4294901760
    %v3922 = vsub.f32 %v3920, %v3921
    %v3923 = vand.u32 %v3922, 4294901760
    %3924 = vmatpush.msra.mxu0 %v3923
    %v3925 = vand.u32 %v3004, 4294901760
    %v3926 = vsub.f32 %v3004, %v3925
    %v3927 = vand.u32 %v3926, 4294901760
    %v3928 = vsub.f32 %v3926, %v3927
    %v3929 = vand.u32 %v3928, 4294901760
    %3930 = vmatpush.msra.mxu0 %v3929
    %v3931 = vand.u32 %v3000, 4294901760
    %v3932 = vsub.f32 %v3000, %v3931
    %v3933 = vand.u32 %v3932, 4294901760
    %v3934 = vsub.f32 %v3932, %v3933
    %v3935 = vand.u32 %v3934, 4294901760
    %3936 = vmatpush.msra.mxu0 %v3935
    %v3937 = vand.u32 %v2996, 4294901760
    %v3938 = vsub.f32 %v2996, %v3937
    %v3939 = vand.u32 %v3938, 4294901760
    %v3940 = vsub.f32 %v3938, %v3939
    %v3941 = vand.u32 %v3940, 4294901760
    %3942 = vmatpush.msra.mxu0 %v3941
    %v3943 = vand.u32 %v2992, 4294901760
    %v3944 = vsub.f32 %v2992, %v3943
    %v3945 = vand.u32 %v3944, 4294901760
    %v3946 = vsub.f32 %v3944, %v3945
    %v3947 = vand.u32 %v3946, 4294901760
    %3948 = vmatpush.msra.mxu0 %v3947
    %v3949 = vand.u32 %v2988, 4294901760
    %v3950 = vsub.f32 %v2988, %v3949
    %v3951 = vand.u32 %v3950, 4294901760
    %v3952 = vsub.f32 %v3950, %v3951
    %v3953 = vand.u32 %v3952, 4294901760
    %3954 = vmatpush.msra.mxu0 %v3953
    %v3955 = vand.u32 %v2984, 4294901760
    %v3956 = vsub.f32 %v2984, %v3955
    %v3957 = vand.u32 %v3956, 4294901760
    %v3958 = vsub.f32 %v3956, %v3957
    %v3959 = vand.u32 %v3958, 4294901760
    %3960 = vmatpush.msra.mxu0 %v3959
    %v3961 = vand.u32 %v2980, 4294901760
    %v3962 = vsub.f32 %v2980, %v3961
    %v3963 = vand.u32 %v3962, 4294901760
    %v3964 = vsub.f32 %v3962, %v3963
    %v3965 = vand.u32 %v3964, 4294901760
    %3966 = vmatpush.msra.mxu0 %v3965
    %v3967 = vand.u32 %v2976, 4294901760
    %v3968 = vsub.f32 %v2976, %v3967
    %v3969 = vand.u32 %v3968, 4294901760
    %v3970 = vsub.f32 %v3968, %v3969
    %v3971 = vand.u32 %v3970, 4294901760
    %3972 = vmatpush.msra.mxu0 %v3971
    %v3973 = vand.u32 %v3022, 4294901760
    %3974 = vmatmul.f32.gmra.mxu0 %v3973
    %v3975 = vpop.f32.mrf.mxu0
    %v3976 = vadd.f32 %v3902, %v3975
    %v3977 = vand.u32 %v3025, 4294901760
    %3978 = vmatmul.f32.gmra.mxu0 %v3977
    %v3979 = vpop.f32.mrf.mxu0
    %v3980 = vadd.f32 %v3910, %v3979
    %3981 = vdwg.mxu0
    %3982 = vmatpush.msra.mxu0 0.0
    %3983 = vmatpush.msra.mxu0 0.0
    %3984 = vmatpush.msra.mxu0 0.0
    %3985 = vmatpush.msra.mxu0 0.0
    %3986 = vmatpush.msra.mxu0 0.0
    %3987 = vmatpush.msra.mxu0 0.0
    %3988 = vmatpush.msra.mxu0 0.0
    %v3989 = vand.u32 %v3008, 4294901760
    %v3990 = vsub.f32 %v3008, %v3989
    %3991 = vmatpush.msra.mxu0 %v3990
    %v3992 = vand.u32 %v3004, 4294901760
    %v3993 = vsub.f32 %v3004, %v3992
    %3994 = vmatpush.msra.mxu0 %v3993
    %v3995 = vand.u32 %v3000, 4294901760
    %v3996 = vsub.f32 %v3000, %v3995
    %3997 = vmatpush.msra.mxu0 %v3996
    %v3998 = vand.u32 %v2996, 4294901760
    %v3999 = vsub.f32 %v2996, %v3998
    %4000 = vmatpush.msra.mxu0 %v3999
    %v4001 = vand.u32 %v2992, 4294901760
    %v4002 = vsub.f32 %v2992, %v4001
    %4003 = vmatpush.msra.mxu0 %v4002
    %v4004 = vand.u32 %v2988, 4294901760
    %v4005 = vsub.f32 %v2988, %v4004
    %4006 = vmatpush.msra.mxu0 %v4005
    %v4007 = vand.u32 %v2984, 4294901760
    %v4008 = vsub.f32 %v2984, %v4007
    %4009 = vmatpush.msra.mxu0 %v4008
    %v4010 = vand.u32 %v2980, 4294901760
    %v4011 = vsub.f32 %v2980, %v4010
    %4012 = vmatpush.msra.mxu0 %v4011
    %v4013 = vand.u32 %v2976, 4294901760
    %v4014 = vsub.f32 %v2976, %v4013
    %4015 = vmatpush.msra.mxu0 %v4014
    %v4016 = vand.u32 %v3022, 4294901760
    %v4017 = vsub.f32 %v3022, %v4016
    %4018 = vmatmul.f32.gmra.mxu0 %v4017
    %v4019 = vpop.f32.mrf.mxu0
    %v4020 = vadd.f32 %v3976, %v4019
    %v4021 = vand.u32 %v3025, 4294901760
    %v4022 = vsub.f32 %v3025, %v4021
    %4023 = vmatmul.f32.gmra.mxu0 %v4022
    %v4024 = vpop.f32.mrf.mxu0
    %v4025 = vadd.f32 %v3980, %v4024
    %4026 = vdwg.mxu0
    %4027 = vmatpush.msra.mxu0 0.0
    %4028 = vmatpush.msra.mxu0 0.0
    %4029 = vmatpush.msra.mxu0 0.0
    %4030 = vmatpush.msra.mxu0 0.0
    %4031 = vmatpush.msra.mxu0 0.0
    %4032 = vmatpush.msra.mxu0 0.0
    %4033 = vmatpush.msra.mxu0 0.0
    %v4034 = vand.u32 %v3008, 4294901760
    %4035 = vmatpush.msra.mxu0 %v4034
    %v4036 = vand.u32 %v3004, 4294901760
    %4037 = vmatpush.msra.mxu0 %v4036
    %v4038 = vand.u32 %v3000, 4294901760
    %4039 = vmatpush.msra.mxu0 %v4038
    %v4040 = vand.u32 %v2996, 4294901760
    %4041 = vmatpush.msra.mxu0 %v4040
    %v4042 = vand.u32 %v2992, 4294901760
    %4043 = vmatpush.msra.mxu0 %v4042
    %v4044 = vand.u32 %v2988, 4294901760
    %4045 = vmatpush.msra.mxu0 %v4044
    %v4046 = vand.u32 %v2984, 4294901760
    %4047 = vmatpush.msra.mxu0 %v4046
    %v4048 = vand.u32 %v2980, 4294901760
    %4049 = vmatpush.msra.mxu0 %v4048
    %v4050 = vand.u32 %v2976, 4294901760
    %4051 = vmatpush.msra.mxu0 %v4050
    %v4052 = vand.u32 %v3022, 4294901760
    %v4053 = vsub.f32 %v3022, %v4052
    %v4054 = vand.u32 %v4053, 4294901760
    %4055 = vmatmul.f32.gmra.mxu0 %v4054
    %v4056 = vpop.f32.mrf.mxu0
    %v4057 = vadd.f32 %v4020, %v4056
    %v4058 = vand.u32 %v3025, 4294901760
    %v4059 = vsub.f32 %v3025, %v4058
    %v4060 = vand.u32 %v4059, 4294901760
    %4061 = vmatmul.f32.gmra.mxu0 %v4060
    %v4062 = vpop.f32.mrf.mxu0
    %v4063 = vadd.f32 %v4025, %v4062
    %4064 = vdwg.mxu0
    %4065 = vmatpush.msra.mxu0 0.0
    %4066 = vmatpush.msra.mxu0 0.0
    %4067 = vmatpush.msra.mxu0 0.0
    %4068 = vmatpush.msra.mxu0 0.0
    %4069 = vmatpush.msra.mxu0 0.0
    %4070 = vmatpush.msra.mxu0 0.0
    %4071 = vmatpush.msra.mxu0 0.0
    %v4072 = vand.u32 %v3008, 4294901760
    %v4073 = vsub.f32 %v3008, %v4072
    %v4074 = vand.u32 %v4073, 4294901760
    %4075 = vmatpush.msra.mxu0 %v4074
    %v4076 = vand.u32 %v3004, 4294901760
    %v4077 = vsub.f32 %v3004, %v4076
    %v4078 = vand.u32 %v4077, 4294901760
    %4079 = vmatpush.msra.mxu0 %v4078
    %v4080 = vand.u32 %v3000, 4294901760
    %v4081 = vsub.f32 %v3000, %v4080
    %v4082 = vand.u32 %v4081, 4294901760
    %4083 = vmatpush.msra.mxu0 %v4082
    %v4084 = vand.u32 %v2996, 4294901760
    %v4085 = vsub.f32 %v2996, %v4084
    %v4086 = vand.u32 %v4085, 4294901760
    %4087 = vmatpush.msra.mxu0 %v4086
    %v4088 = vand.u32 %v2992, 4294901760
    %v4089 = vsub.f32 %v2992, %v4088
    %v4090 = vand.u32 %v4089, 4294901760
    %4091 = vmatpush.msra.mxu0 %v4090
    %v4092 = vand.u32 %v2988, 4294901760
    %v4093 = vsub.f32 %v2988, %v4092
    %v4094 = vand.u32 %v4093, 4294901760
    %4095 = vmatpush.msra.mxu0 %v4094
    %v4096 = vand.u32 %v2984, 4294901760
    %v4097 = vsub.f32 %v2984, %v4096
    %v4098 = vand.u32 %v4097, 4294901760
    %4099 = vmatpush.msra.mxu0 %v4098
    %v4100 = vand.u32 %v2980, 4294901760
    %v4101 = vsub.f32 %v2980, %v4100
    %v4102 = vand.u32 %v4101, 4294901760
    %4103 = vmatpush.msra.mxu0 %v4102
    %v4104 = vand.u32 %v2976, 4294901760
    %v4105 = vsub.f32 %v2976, %v4104
    %v4106 = vand.u32 %v4105, 4294901760
    %4107 = vmatpush.msra.mxu0 %v4106
    %v4108 = vand.u32 %v3022, 4294901760
    %4109 = vmatmul.f32.gmra.mxu0 %v4108
    %v4110 = vpop.f32.mrf.mxu0
    %v4111 = vadd.f32 %v4057, %v4110
    %v4112 = vand.u32 %v3025, 4294901760
    %4113 = vmatmul.f32.gmra.mxu0 %v4112
    %v4114 = vpop.f32.mrf.mxu0
    %v4115 = vadd.f32 %v4063, %v4114
    %4116 = vdwg.mxu0
    %4117 = vmatpush.msra.mxu0 0.0
    %4118 = vmatpush.msra.mxu0 0.0
    %4119 = vmatpush.msra.mxu0 0.0
    %4120 = vmatpush.msra.mxu0 0.0
    %4121 = vmatpush.msra.mxu0 0.0
    %4122 = vmatpush.msra.mxu0 0.0
    %4123 = vmatpush.msra.mxu0 0.0
    %v4124 = vand.u32 %v3008, 4294901760
    %4125 = vmatpush.msra.mxu0 %v4124
    %v4126 = vand.u32 %v3004, 4294901760
    %4127 = vmatpush.msra.mxu0 %v4126
    %v4128 = vand.u32 %v3000, 4294901760
    %4129 = vmatpush.msra.mxu0 %v4128
    %v4130 = vand.u32 %v2996, 4294901760
    %4131 = vmatpush.msra.mxu0 %v4130
    %v4132 = vand.u32 %v2992, 4294901760
    %4133 = vmatpush.msra.mxu0 %v4132
    %v4134 = vand.u32 %v2988, 4294901760
    %4135 = vmatpush.msra.mxu0 %v4134
    %v4136 = vand.u32 %v2984, 4294901760
    %4137 = vmatpush.msra.mxu0 %v4136
    %v4138 = vand.u32 %v2980, 4294901760
    %4139 = vmatpush.msra.mxu0 %v4138
    %v4140 = vand.u32 %v2976, 4294901760
    %4141 = vmatpush.msra.mxu0 %v4140
    %v4142 = vand.u32 %v3022, 4294901760
    %4143 = vmatmul.f32.gmra.mxu0 %v4142
    %v4144 = vpop.f32.mrf.mxu0
    %v4145 = vadd.f32 %v4111, %v4144
    %v4146 = vand.u32 %v3025, 4294901760
    %4147 = vmatmul.f32.gmra.mxu0 %v4146
    %v4148 = vpop.f32.mrf.mxu0
    %v4149 = vadd.f32 %v4115, %v4148
    %4150 = vdwg.mxu0
    %4151 = vrot.lane.b32.xlu0 %v3302, 34
    %v4152 = vpop.permute.xlu0 %4151
    %4153 = vrot.lane.b32.xlu0 %v3306, 34
    %v4154 = vpop.permute.xlu0 %4153
    %4155 = vrot.lane.b32.xlu0 %v3583, 34
    %v4156 = vpop.permute.xlu0 %4155
    %4157 = vrot.lane.b32.xlu0 %v3587, 34
    %v4158 = vpop.permute.xlu0 %4157
    %4159 = vrot.lane.b32.xlu0 %v3864, 34
    %v4160 = vpop.permute.xlu0 %4159
    %4161 = vrot.lane.b32.xlu0 %v3868, 34
    %v4162 = vpop.permute.xlu0 %4161
    %4163 = vrot.lane.b32.xlu0 %v4145, 34
    %v4164 = vpop.permute.xlu0 %4163
    %4165 = vrot.lane.b32.xlu0 %v4149, 34
    %v4166 = vpop.permute.xlu0 %4165
    %v4167 = vsel %vm2719, %v4160, %v4164
    %v4168 = vsel %vm2719, %v4162, %v4166
    %v4169 = vsel %vm2719, %v4156, %v4160
    %v4170 = vsel %vm2719, %v4158, %v4162
    %v4171 = vsel %vm2719, %v4152, %v4156
    %v4172 = vsel %vm2719, %v4154, %v4158
    %v4173 = vsel %vm2719, %v4164, %v4152
    %v4174 = vsel %vm2719, %v4166, %v4154
    %v4175 = vld [vmem:[%s2724] ss:$8 sm:$0xf]
    %v4177 = vperm.slane %v4175, 0
    %v4178 = vperm.slane %v4175, 1
    %v4179 = vperm.slane %v4175, 2
    %v4180 = vperm.slane %v4175, 3
    %v4185 = vmul.f32 %v4173, %v4177
    %v4186 = vmul.f32 %v4171, %v4178
    %v4187 = vmul.f32 %v4169, %v4179
    %v4188 = vmul.f32 %v4167, %v4180
    %v4189 = vmul.f32 %v4174, %v4177
    %v4190 = vmul.f32 %v4172, %v4178
    %v4191 = vmul.f32 %v4170, %v4179
    %v4192 = vmul.f32 %v4168, %v4180
    %4193 = vst [vmem:[#allocation2] sm:$0xff] %v4185
    %4194 = vst [vmem:[#allocation2 + $0x8] sm:$0xff] %v4186
    %4195 = vst [vmem:[#allocation2 + $0x10] sm:$0xff] %v4187
    %4196 = vst [vmem:[#allocation2 + $0x18] sm:$0xff] %v4188
    %4197 = vst [vmem:[#allocation2 + $0x20] sm:$0xff] %v4189
    %4198 = vst [vmem:[#allocation2 + $0x28] sm:$0xff] %v4190
    %4199 = vst [vmem:[#allocation2 + $0x30] sm:$0xff] %v4191
    %4200 = vst [vmem:[#allocation2 + $0x38] sm:$0xff] %v4192
    %4201 = vrot.lane.b32.xlu0 %v3302, 32
    %v4202 = vpop.permute.xlu0 %4201
    %4203 = vrot.lane.b32.xlu0 %v3306, 32
    %v4204 = vpop.permute.xlu0 %4203
    %4205 = vrot.lane.b32.xlu0 %v3583, 32
    %v4206 = vpop.permute.xlu0 %4205
    %4207 = vrot.lane.b32.xlu0 %v3587, 32
    %v4208 = vpop.permute.xlu0 %4207
    %4209 = vrot.lane.b32.xlu0 %v3864, 32
    %v4210 = vpop.permute.xlu0 %4209
    %4211 = vrot.lane.b32.xlu0 %v3868, 32
    %v4212 = vpop.permute.xlu0 %4211
    %4213 = vrot.lane.b32.xlu0 %v4145, 32
    %v4214 = vpop.permute.xlu0 %4213
    %4215 = vrot.lane.b32.xlu0 %v4149, 32
    %v4216 = vpop.permute.xlu0 %4215
    %v4217 = vsel %vm2751, %v4210, %v4214
    %v4218 = vsel %vm2751, %v4212, %v4216
    %v4219 = vsel %vm2751, %v4206, %v4210
    %v4220 = vsel %vm2751, %v4208, %v4212
    %v4221 = vsel %vm2751, %v4202, %v4206
    %v4222 = vsel %vm2751, %v4204, %v4208
    %v4223 = vsel %vm2751, %v4214, %v4202
    %v4224 = vsel %vm2751, %v4216, %v4204
    %v4225 = vld [vmem:[%s2756] ss:$8 sm:$0xf]
    %v4227 = vperm.slane %v4225, 0
    %v4228 = vperm.slane %v4225, 1
    %v4229 = vperm.slane %v4225, 2
    %v4230 = vperm.slane %v4225, 3
    %v4235 = vmul.f32 %v4223, %v4227
    %v4236 = vmul.f32 %v4221, %v4228
    %v4237 = vmul.f32 %v4219, %v4229
    %v4238 = vmul.f32 %v4217, %v4230
    %v4239 = vmul.f32 %v4224, %v4227
    %v4240 = vmul.f32 %v4222, %v4228
    %v4241 = vmul.f32 %v4220, %v4229
    %v4242 = vmul.f32 %v4218, %v4230
    %4243 = vst [vmem:[#allocation2 + $0x40] sm:$0xff] %v4235
    %4244 = vst [vmem:[#allocation2 + $0x48] sm:$0xff] %v4236
    %4245 = vst [vmem:[#allocation2 + $0x50] sm:$0xff] %v4237
    %4246 = vst [vmem:[#allocation2 + $0x58] sm:$0xff] %v4238
    %4247 = vst [vmem:[#allocation2 + $0x60] sm:$0xff] %v4239
    %4248 = vst [vmem:[#allocation2 + $0x68] sm:$0xff] %v4240
    %4249 = vst [vmem:[#allocation2 + $0x70] sm:$0xff] %v4241
    %4250 = vst [vmem:[#allocation2 + $0x78] sm:$0xff] %v4242
    %4251 = vrot.lane.b32.xlu0 %v3302, 30
    %v4252 = vpop.permute.xlu0 %4251
    %4253 = vrot.lane.b32.xlu0 %v3306, 30
    %v4254 = vpop.permute.xlu0 %4253
    %4255 = vrot.lane.b32.xlu0 %v3583, 30
    %v4256 = vpop.permute.xlu0 %4255
    %4257 = vrot.lane.b32.xlu0 %v3587, 30
    %v4258 = vpop.permute.xlu0 %4257
    %4259 = vrot.lane.b32.xlu0 %v3864, 30
    %v4260 = vpop.permute.xlu0 %4259
    %4261 = vrot.lane.b32.xlu0 %v3868, 30
    %v4262 = vpop.permute.xlu0 %4261
    %4263 = vrot.lane.b32.xlu0 %v4145, 30
    %v4264 = vpop.permute.xlu0 %4263
    %4265 = vrot.lane.b32.xlu0 %v4149, 30
    %v4266 = vpop.permute.xlu0 %4265
    %v4267 = vsel %vm2783, %v4260, %v4264
    %v4268 = vsel %vm2783, %v4262, %v4266
    %v4269 = vsel %vm2783, %v4256, %v4260
    %v4270 = vsel %vm2783, %v4258, %v4262
    %v4271 = vsel %vm2783, %v4252, %v4256
    %v4272 = vsel %vm2783, %v4254, %v4258
    %v4273 = vsel %vm2783, %v4264, %v4252
    %v4274 = vsel %vm2783, %v4266, %v4254
    %v4275 = vld [vmem:[%s2788] ss:$8 sm:$0xf]
    %v4277 = vperm.slane %v4275, 0
    %v4278 = vperm.slane %v4275, 1
    %v4279 = vperm.slane %v4275, 2
    %v4280 = vperm.slane %v4275, 3
    %v4285 = vmul.f32 %v4273, %v4277
    %v4286 = vmul.f32 %v4271, %v4278
    %v4287 = vmul.f32 %v4269, %v4279
    %v4288 = vmul.f32 %v4267, %v4280
    %v4289 = vmul.f32 %v4274, %v4277
    %v4290 = vmul.f32 %v4272, %v4278
    %v4291 = vmul.f32 %v4270, %v4279
    %v4292 = vmul.f32 %v4268, %v4280
    %4293 = vst [vmem:[#allocation2 + $0x80] sm:$0xff] %v4285
    %4294 = vst [vmem:[#allocation2 + $0x88] sm:$0xff] %v4286
    %4295 = vst [vmem:[#allocation2 + $0x90] sm:$0xff] %v4287
    %4296 = vst [vmem:[#allocation2 + $0x98] sm:$0xff] %v4288
    %4297 = vst [vmem:[#allocation2 + $0xa0] sm:$0xff] %v4289
    %4298 = vst [vmem:[#allocation2 + $0xa8] sm:$0xff] %v4290
    %4299 = vst [vmem:[#allocation2 + $0xb0] sm:$0xff] %v4291
    %4300 = vst [vmem:[#allocation2 + $0xb8] sm:$0xff] %v4292
    %4301 = vrot.lane.b32.xlu0 %v3302, 2
    %v4302 = vpop.permute.xlu0 %4301
    %4303 = vrot.lane.b32.xlu0 %v3306, 2
    %v4304 = vpop.permute.xlu0 %4303
    %4305 = vrot.lane.b32.xlu0 %v3583, 2
    %v4306 = vpop.permute.xlu0 %4305
    %4307 = vrot.lane.b32.xlu0 %v3587, 2
    %v4308 = vpop.permute.xlu0 %4307
    %4309 = vrot.lane.b32.xlu0 %v3864, 2
    %v4310 = vpop.permute.xlu0 %4309
    %4311 = vrot.lane.b32.xlu0 %v3868, 2
    %v4312 = vpop.permute.xlu0 %4311
    %4313 = vrot.lane.b32.xlu0 %v4145, 2
    %v4314 = vpop.permute.xlu0 %4313
    %4315 = vrot.lane.b32.xlu0 %v4149, 2
    %v4316 = vpop.permute.xlu0 %4315
    %v4317 = vsel %vm2815, %v4310, %v4314
    %v4318 = vsel %vm2815, %v4312, %v4316
    %v4319 = vsel %vm2815, %v4306, %v4310
    %v4320 = vsel %vm2815, %v4308, %v4312
    %v4321 = vsel %vm2815, %v4302, %v4306
    %v4322 = vsel %vm2815, %v4304, %v4308
    %v4323 = vsel %vm2815, %v4314, %v4302
    %v4324 = vsel %vm2815, %v4316, %v4304
    %v4325 = vld [vmem:[%s2820] ss:$8 sm:$0xf]
    %v4327 = vperm.slane %v4325, 0
    %v4328 = vperm.slane %v4325, 1
    %v4329 = vperm.slane %v4325, 2
    %v4330 = vperm.slane %v4325, 3
    %v4335 = vmul.f32 %v4323, %v4327
    %v4336 = vmul.f32 %v4321, %v4328
    %v4337 = vmul.f32 %v4319, %v4329
    %v4338 = vmul.f32 %v4317, %v4330
    %v4339 = vmul.f32 %v4324, %v4327
    %v4340 = vmul.f32 %v4322, %v4328
    %v4341 = vmul.f32 %v4320, %v4329
    %v4342 = vmul.f32 %v4318, %v4330
    %4343 = vst [vmem:[#allocation2 + $0xc0] sm:$0xff] %v4335
    %4344 = vst [vmem:[#allocation2 + $0xc8] sm:$0xff] %v4336
    %4345 = vst [vmem:[#allocation2 + $0xd0] sm:$0xff] %v4337
    %4346 = vst [vmem:[#allocation2 + $0xd8] sm:$0xff] %v4338
    %4347 = vst [vmem:[#allocation2 + $0xe0] sm:$0xff] %v4339
    %4348 = vst [vmem:[#allocation2 + $0xe8] sm:$0xff] %v4340
    %4349 = vst [vmem:[#allocation2 + $0xf0] sm:$0xff] %v4341
    %4350 = vst [vmem:[#allocation2 + $0xf8] sm:$0xff] %v4342
    %4351 = vst [vmem:[#allocation2 + $0x100] sm:$0xff] %v3302
    %4352 = vst [vmem:[#allocation2 + $0x108] sm:$0xff] %v3583
    %4353 = vst [vmem:[#allocation2 + $0x110] sm:$0xff] %v3864
    %4354 = vst [vmem:[#allocation2 + $0x118] sm:$0xff] %v4145
    %4355 = vst [vmem:[#allocation2 + $0x120] sm:$0xff] %v3306
    %4356 = vst [vmem:[#allocation2 + $0x128] sm:$0xff] %v3587
    %4357 = vst [vmem:[#allocation2 + $0x130] sm:$0xff] %v3868
    %4358 = vst [vmem:[#allocation2 + $0x138] sm:$0xff] %v4149
    %4359 = vrot.lane.b32.xlu0 %v3302, 126
    %v4360 = vpop.permute.xlu0 %4359
    %4361 = vrot.lane.b32.xlu0 %v3306, 126
    %v4362 = vpop.permute.xlu0 %4361
    %4363 = vrot.lane.b32.xlu0 %v3583, 126
    %v4364 = vpop.permute.xlu0 %4363
    %4365 = vrot.lane.b32.xlu0 %v3587, 126
    %v4366 = vpop.permute.xlu0 %4365
    %4367 = vrot.lane.b32.xlu0 %v3864, 126
    %v4368 = vpop.permute.xlu0 %4367
    %4369 = vrot.lane.b32.xlu0 %v3868, 126
    %v4370 = vpop.permute.xlu0 %4369
    %4371 = vrot.lane.b32.xlu0 %v4145, 126
    %v4372 = vpop.permute.xlu0 %4371
    %4373 = vrot.lane.b32.xlu0 %v4149, 126
    %v4374 = vpop.permute.xlu0 %4373
    %v4375 = vsel %vm2851, %v4368, %v4372
    %v4376 = vsel %vm2851, %v4370, %v4374
    %v4377 = vsel %vm2851, %v4364, %v4368
    %v4378 = vsel %vm2851, %v4366, %v4370
    %v4379 = vsel %vm2851, %v4360, %v4364
    %v4380 = vsel %vm2851, %v4362, %v4366
    %v4381 = vsel %vm2851, %v4372, %v4360
    %v4382 = vsel %vm2851, %v4374, %v4362
    %v4383 = vld [vmem:[%s2856] ss:$8 sm:$0xf]
    %v4385 = vperm.slane %v4383, 0
    %v4386 = vperm.slane %v4383, 1
    %v4387 = vperm.slane %v4383, 2
    %v4388 = vperm.slane %v4383, 3
    %v4393 = vmul.f32 %v4379, %v4385
    %v4394 = vmul.f32 %v4377, %v4386
    %v4395 = vmul.f32 %v4375, %v4387
    %v4396 = vmul.f32 %v4381, %v4388
    %v4397 = vmul.f32 %v4380, %v4385
    %v4398 = vmul.f32 %v4378, %v4386
    %v4399 = vmul.f32 %v4376, %v4387
    %v4400 = vmul.f32 %v4382, %v4388
    %4401 = vst [vmem:[#allocation2 + $0x140] sm:$0xff] %v4393
    %4402 = vst [vmem:[#allocation2 + $0x148] sm:$0xff] %v4394
    %4403 = vst [vmem:[#allocation2 + $0x150] sm:$0xff] %v4395
    %4404 = vst [vmem:[#allocation2 + $0x158] sm:$0xff] %v4396
    %4405 = vst [vmem:[#allocation2 + $0x160] sm:$0xff] %v4397
    %4406 = vst [vmem:[#allocation2 + $0x168] sm:$0xff] %v4398
    %4407 = vst [vmem:[#allocation2 + $0x170] sm:$0xff] %v4399
    %4408 = vst [vmem:[#allocation2 + $0x178] sm:$0xff] %v4400
    %4409 = vrot.lane.b32.xlu0 %v3302, 98
    %v4410 = vpop.permute.xlu0 %4409
    %4411 = vrot.lane.b32.xlu0 %v3306, 98
    %v4412 = vpop.permute.xlu0 %4411
    %4413 = vrot.lane.b32.xlu0 %v3583, 98
    %v4414 = vpop.permute.xlu0 %4413
    %4415 = vrot.lane.b32.xlu0 %v3587, 98
    %v4416 = vpop.permute.xlu0 %4415
    %4417 = vrot.lane.b32.xlu0 %v3864, 98
    %v4418 = vpop.permute.xlu0 %4417
    %4419 = vrot.lane.b32.xlu0 %v3868, 98
    %v4420 = vpop.permute.xlu0 %4419
    %4421 = vrot.lane.b32.xlu0 %v4145, 98
    %v4422 = vpop.permute.xlu0 %4421
    %4423 = vrot.lane.b32.xlu0 %v4149, 98
    %v4424 = vpop.permute.xlu0 %4423
    %v4425 = vsel %vm2883, %v4418, %v4422
    %v4426 = vsel %vm2883, %v4420, %v4424
    %v4427 = vsel %vm2883, %v4414, %v4418
    %v4428 = vsel %vm2883, %v4416, %v4420
    %v4429 = vsel %vm2883, %v4410, %v4414
    %v4430 = vsel %vm2883, %v4412, %v4416
    %v4431 = vsel %vm2883, %v4422, %v4410
    %v4432 = vsel %vm2883, %v4424, %v4412
    %v4433 = vld [vmem:[%s2888] ss:$8 sm:$0xf]
    %v4435 = vperm.slane %v4433, 0
    %v4436 = vperm.slane %v4433, 1
    %v4437 = vperm.slane %v4433, 2
    %v4438 = vperm.slane %v4433, 3
    %v4443 = vmul.f32 %v4429, %v4435
    %v4444 = vmul.f32 %v4427, %v4436
    %v4445 = vmul.f32 %v4425, %v4437
    %v4446 = vmul.f32 %v4431, %v4438
    %v4447 = vmul.f32 %v4430, %v4435
    %v4448 = vmul.f32 %v4428, %v4436
    %v4449 = vmul.f32 %v4426, %v4437
    %v4450 = vmul.f32 %v4432, %v4438
    %4451 = vst [vmem:[#allocation2 + $0x180] sm:$0xff] %v4443
    %4452 = vst [vmem:[#allocation2 + $0x188] sm:$0xff] %v4444
    %4453 = vst [vmem:[#allocation2 + $0x190] sm:$0xff] %v4445
    %4454 = vst [vmem:[#allocation2 + $0x198] sm:$0xff] %v4446
    %4455 = vst [vmem:[#allocation2 + $0x1a0] sm:$0xff] %v4447
    %4456 = vst [vmem:[#allocation2 + $0x1a8] sm:$0xff] %v4448
    %4457 = vst [vmem:[#allocation2 + $0x1b0] sm:$0xff] %v4449
    %4458 = vst [vmem:[#allocation2 + $0x1b8] sm:$0xff] %v4450
    %4459 = vrot.lane.b32.xlu0 %v3302, 96
    %v4460 = vpop.permute.xlu0 %4459
    %4461 = vrot.lane.b32.xlu0 %v3306, 96
    %v4462 = vpop.permute.xlu0 %4461
    %4463 = vrot.lane.b32.xlu0 %v3583, 96
    %v4464 = vpop.permute.xlu0 %4463
    %4465 = vrot.lane.b32.xlu0 %v3587, 96
    %v4466 = vpop.permute.xlu0 %4465
    %4467 = vrot.lane.b32.xlu0 %v3864, 96
    %v4468 = vpop.permute.xlu0 %4467
    %4469 = vrot.lane.b32.xlu0 %v3868, 96
    %v4470 = vpop.permute.xlu0 %4469
    %4471 = vrot.lane.b32.xlu0 %v4145, 96
    %v4472 = vpop.permute.xlu0 %4471
    %4473 = vrot.lane.b32.xlu0 %v4149, 96
    %v4474 = vpop.permute.xlu0 %4473
    %v4475 = vsel %vm2915, %v4468, %v4472
    %v4476 = vsel %vm2915, %v4470, %v4474
    %v4477 = vsel %vm2915, %v4464, %v4468
    %v4478 = vsel %vm2915, %v4466, %v4470
    %v4479 = vsel %vm2915, %v4460, %v4464
    %v4480 = vsel %vm2915, %v4462, %v4466
    %v4481 = vsel %vm2915, %v4472, %v4460
    %v4482 = vsel %vm2915, %v4474, %v4462
    %v4483 = vld [vmem:[%s2920] ss:$8 sm:$0xf]
    %v4485 = vperm.slane %v4483, 0
    %v4486 = vperm.slane %v4483, 1
    %v4487 = vperm.slane %v4483, 2
    %v4488 = vperm.slane %v4483, 3
    %v4493 = vmul.f32 %v4479, %v4485
    %v4494 = vmul.f32 %v4477, %v4486
    %v4495 = vmul.f32 %v4475, %v4487
    %v4496 = vmul.f32 %v4481, %v4488
    %v4497 = vmul.f32 %v4480, %v4485
    %v4498 = vmul.f32 %v4478, %v4486
    %v4499 = vmul.f32 %v4476, %v4487
    %v4500 = vmul.f32 %v4482, %v4488
    %4501 = vst [vmem:[#allocation2 + $0x1c0] sm:$0xff] %v4493
    %4502 = vst [vmem:[#allocation2 + $0x1c8] sm:$0xff] %v4494
    %4503 = vst [vmem:[#allocation2 + $0x1d0] sm:$0xff] %v4495
    %4504 = vst [vmem:[#allocation2 + $0x1d8] sm:$0xff] %v4496
    %4505 = vst [vmem:[#allocation2 + $0x1e0] sm:$0xff] %v4497
    %4506 = vst [vmem:[#allocation2 + $0x1e8] sm:$0xff] %v4498
    %4507 = vst [vmem:[#allocation2 + $0x1f0] sm:$0xff] %v4499
    %4508 = vst [vmem:[#allocation2 + $0x1f8] sm:$0xff] %v4500
    %4509 = vrot.lane.b32.xlu0 %v3302, 94
    %v4510 = vpop.permute.xlu0 %4509
    %4511 = vrot.lane.b32.xlu0 %v3306, 94
    %v4512 = vpop.permute.xlu0 %4511
    %4513 = vrot.lane.b32.xlu0 %v3583, 94
    %v4514 = vpop.permute.xlu0 %4513
    %4515 = vrot.lane.b32.xlu0 %v3587, 94
    %v4516 = vpop.permute.xlu0 %4515
    %4517 = vrot.lane.b32.xlu0 %v3864, 94
    %v4518 = vpop.permute.xlu0 %4517
    %4519 = vrot.lane.b32.xlu0 %v3868, 94
    %v4520 = vpop.permute.xlu0 %4519
    %4521 = vrot.lane.b32.xlu0 %v4145, 94
    %v4522 = vpop.permute.xlu0 %4521
    %4523 = vrot.lane.b32.xlu0 %v4149, 94
    %v4524 = vpop.permute.xlu0 %4523
    %v4525 = vsel %vm2947, %v4518, %v4522
    %v4526 = vsel %vm2947, %v4520, %v4524
    %v4527 = vsel %vm2947, %v4514, %v4518
    %v4528 = vsel %vm2947, %v4516, %v4520
    %v4529 = vsel %vm2947, %v4510, %v4514
    %v4530 = vsel %vm2947, %v4512, %v4516
    %v4531 = vsel %vm2947, %v4522, %v4510
    %v4532 = vsel %vm2947, %v4524, %v4512
    %v4533 = vld [vmem:[%s2952] ss:$8 sm:$0xf]
    %v4535 = vperm.slane %v4533, 0
    %v4536 = vperm.slane %v4533, 1
    %v4537 = vperm.slane %v4533, 2
    %v4538 = vperm.slane %v4533, 3
    %v4543 = vmul.f32 %v4529, %v4535
    %v4544 = vmul.f32 %v4527, %v4536
    %v4545 = vmul.f32 %v4525, %v4537
    %v4546 = vmul.f32 %v4531, %v4538
    %v4547 = vmul.f32 %v4530, %v4535
    %v4548 = vmul.f32 %v4528, %v4536
    %v4549 = vmul.f32 %v4526, %v4537
    %v4550 = vmul.f32 %v4532, %v4538
    %4551 = vst [vmem:[#allocation2 + $0x200] sm:$0xff] %v4543
    %4552 = vst [vmem:[#allocation2 + $0x208] sm:$0xff] %v4544
    %4553 = vst [vmem:[#allocation2 + $0x210] sm:$0xff] %v4545
    %4554 = vst [vmem:[#allocation2 + $0x218] sm:$0xff] %v4546
    %4555 = vst [vmem:[#allocation2 + $0x220] sm:$0xff] %v4547
    %4556 = vst [vmem:[#allocation2 + $0x228] sm:$0xff] %v4548
    %4557 = vst [vmem:[#allocation2 + $0x230] sm:$0xff] %v4549
    %4558 = vst [vmem:[#allocation2 + $0x238] sm:$0xff] %v4550
    %v4559 = vld [vmem:[%s8] sm:$0xff]
    %v4560 = vld [vmem:[%s8 + $0x8] sm:$0xff]
    %v4561 = vld [vmem:[%s8 + $0x10] sm:$0xff]
    %v4562 = vld [vmem:[%s8 + $0x18] sm:$0xff]
    %v4563 = vld [vmem:[#allocation2] sm:$0xff]
    %v4564 = vld [vmem:[#allocation2 + $0x8] sm:$0xff]
    %v4565 = vld [vmem:[#allocation2 + $0x10] sm:$0xff]
    %v4566 = vld [vmem:[#allocation2 + $0x18] sm:$0xff]
    %v4567 = vld [vmem:[#allocation2 + $0x20] sm:$0xff]
    %v4568 = vld [vmem:[#allocation2 + $0x28] sm:$0xff]
    %v4569 = vld [vmem:[#allocation2 + $0x30] sm:$0xff]
    %v4570 = vld [vmem:[#allocation2 + $0x38] sm:$0xff]
    %v4571 = vld [vmem:[#allocation2 + $0x40] sm:$0xff]
    %v4572 = vld [vmem:[#allocation2 + $0x48] sm:$0xff]
    %v4573 = vld [vmem:[#allocation2 + $0x50] sm:$0xff]
    %v4574 = vld [vmem:[#allocation2 + $0x58] sm:$0xff]
    %v4575 = vld [vmem:[#allocation2 + $0x60] sm:$0xff]
    %v4576 = vld [vmem:[#allocation2 + $0x68] sm:$0xff]
    %v4577 = vld [vmem:[#allocation2 + $0x70] sm:$0xff]
    %v4578 = vld [vmem:[#allocation2 + $0x78] sm:$0xff]
    %v4579 = vld [vmem:[#allocation2 + $0x80] sm:$0xff]
    %v4580 = vld [vmem:[#allocation2 + $0x88] sm:$0xff]
    %v4581 = vld [vmem:[#allocation2 + $0x90] sm:$0xff]
    %v4582 = vld [vmem:[#allocation2 + $0x98] sm:$0xff]
    %v4583 = vld [vmem:[#allocation2 + $0xa0] sm:$0xff]
    %v4584 = vld [vmem:[#allocation2 + $0xa8] sm:$0xff]
    %v4585 = vld [vmem:[#allocation2 + $0xb0] sm:$0xff]
    %v4586 = vld [vmem:[#allocation2 + $0xb8] sm:$0xff]
    %v4587 = vld [vmem:[#allocation2 + $0xc0] sm:$0xff]
    %v4588 = vld [vmem:[#allocation2 + $0xc8] sm:$0xff]
    %v4589 = vld [vmem:[#allocation2 + $0xd0] sm:$0xff]
    %v4590 = vld [vmem:[#allocation2 + $0xd8] sm:$0xff]
    %v4591 = vld [vmem:[#allocation2 + $0xe0] sm:$0xff]
    %v4592 = vld [vmem:[#allocation2 + $0xe8] sm:$0xff]
    %v4593 = vld [vmem:[#allocation2 + $0xf0] sm:$0xff]
    %v4594 = vld [vmem:[#allocation2 + $0xf8] sm:$0xff]
    %v4595 = vld [vmem:[#allocation2 + $0x100] sm:$0xff]
    %v4596 = vld [vmem:[#allocation2 + $0x108] sm:$0xff]
    %v4597 = vld [vmem:[#allocation2 + $0x110] sm:$0xff]
    %v4598 = vld [vmem:[#allocation2 + $0x118] sm:$0xff]
    %v4599 = vld [vmem:[#allocation2 + $0x120] sm:$0xff]
    %v4600 = vld [vmem:[#allocation2 + $0x128] sm:$0xff]
    %v4601 = vld [vmem:[#allocation2 + $0x130] sm:$0xff]
    %v4602 = vld [vmem:[#allocation2 + $0x138] sm:$0xff]
    %v4603 = vld [vmem:[#allocation2 + $0x140] sm:$0xff]
    %v4604 = vld [vmem:[#allocation2 + $0x148] sm:$0xff]
    %v4605 = vld [vmem:[#allocation2 + $0x150] sm:$0xff]
    %v4606 = vld [vmem:[#allocation2 + $0x158] sm:$0xff]
    %v4607 = vld [vmem:[#allocation2 + $0x160] sm:$0xff]
    %v4608 = vld [vmem:[#allocation2 + $0x168] sm:$0xff]
    %v4609 = vld [vmem:[#allocation2 + $0x170] sm:$0xff]
    %v4610 = vld [vmem:[#allocation2 + $0x178] sm:$0xff]
    %v4611 = vld [vmem:[#allocation2 + $0x180] sm:$0xff]
    %v4612 = vld [vmem:[#allocation2 + $0x188] sm:$0xff]
    %v4613 = vld [vmem:[#allocation2 + $0x190] sm:$0xff]
    %v4614 = vld [vmem:[#allocation2 + $0x198] sm:$0xff]
    %v4615 = vld [vmem:[#allocation2 + $0x1a0] sm:$0xff]
    %v4616 = vld [vmem:[#allocation2 + $0x1a8] sm:$0xff]
    %v4617 = vld [vmem:[#allocation2 + $0x1b0] sm:$0xff]
    %v4618 = vld [vmem:[#allocation2 + $0x1b8] sm:$0xff]
    %v4619 = vld [vmem:[#allocation2 + $0x1c0] sm:$0xff]
    %v4620 = vld [vmem:[#allocation2 + $0x1c8] sm:$0xff]
    %v4621 = vld [vmem:[#allocation2 + $0x1d0] sm:$0xff]
    %v4622 = vld [vmem:[#allocation2 + $0x1d8] sm:$0xff]
    %v4623 = vld [vmem:[#allocation2 + $0x1e0] sm:$0xff]
    %v4624 = vld [vmem:[#allocation2 + $0x1e8] sm:$0xff]
    %v4625 = vld [vmem:[#allocation2 + $0x1f0] sm:$0xff]
    %v4626 = vld [vmem:[#allocation2 + $0x1f8] sm:$0xff]
    %v4627 = vld [vmem:[#allocation2 + $0x200] sm:$0xff]
    %v4628 = vld [vmem:[#allocation2 + $0x208] sm:$0xff]
    %v4629 = vld [vmem:[#allocation2 + $0x210] sm:$0xff]
    %v4630 = vld [vmem:[#allocation2 + $0x218] sm:$0xff]
    %v4631 = vld [vmem:[#allocation2 + $0x220] sm:$0xff]
    %v4632 = vld [vmem:[#allocation2 + $0x228] sm:$0xff]
    %v4633 = vld [vmem:[#allocation2 + $0x230] sm:$0xff]
    %v4634 = vld [vmem:[#allocation2 + $0x238] sm:$0xff]
    %v4635 = vld [vmem:[%s9] sm:$0xff]
    %v4636 = vld [vmem:[%s9 + $0x8] sm:$0xff]
    %4638 = vset.pattern.permute.xlu0 0
    %4639 = vperm.xlu0 %4638, %v4635
    %v4640 = vpop.permute.xlu0 %4639
    %4643 = vset.pattern.permute.xlu0 0
    %4644 = vperm.xlu0 %4643, %v4636
    %v4645 = vpop.permute.xlu0 %4644
    %vm4647 = vcmask 130048
    %v4649 = vsel %vm4647, %v4560, 0
    %v4652 = vsel %vm4647, %v4562, 0
    %v4654 = vand.u32 %v4623, 4294901760
    %4655 = vmatpush.msra.mxu0 %v4654
    %v4656 = vand.u32 %v4619, 4294901760
    %4657 = vmatpush.msra.mxu0 %v4656
    %v4658 = vand.u32 %v4615, 4294901760
    %4659 = vmatpush.msra.mxu0 %v4658
    %v4660 = vand.u32 %v4611, 4294901760
    %4661 = vmatpush.msra.mxu0 %v4660
    %v4662 = vand.u32 %v4607, 4294901760
    %4663 = vmatpush.msra.mxu0 %v4662
    %v4664 = vand.u32 %v4603, 4294901760
    %4665 = vmatpush.msra.mxu0 %v4664
    %v4666 = vand.u32 %v4599, 4294901760
    %4667 = vmatpush.msra.mxu0 %v4666
    %v4668 = vand.u32 %v4595, 4294901760
    %4669 = vmatpush.msra.mxu0 %v4668
    %v4670 = vand.u32 %v4591, 4294901760
    %4671 = vmatpush.msra.mxu0 %v4670
    %v4672 = vand.u32 %v4587, 4294901760
    %4673 = vmatpush.msra.mxu0 %v4672
    %v4674 = vand.u32 %v4583, 4294901760
    %4675 = vmatpush.msra.mxu0 %v4674
    %v4676 = vand.u32 %v4579, 4294901760
    %4677 = vmatpush.msra.mxu0 %v4676
    %v4678 = vand.u32 %v4575, 4294901760
    %4679 = vmatpush.msra.mxu0 %v4678
    %v4680 = vand.u32 %v4571, 4294901760
    %4681 = vmatpush.msra.mxu0 %v4680
    %v4682 = vand.u32 %v4567, 4294901760
    %4683 = vmatpush.msra.mxu0 %v4682
    %v4684 = vand.u32 %v4563, 4294901760
    %4685 = vmatpush.msra.mxu0 %v4684
    %v4686 = vand.u32 %v4559, 4294901760
    %v4687 = vsub.f32 %v4559, %v4686
    %v4688 = vand.u32 %v4687, 4294901760
    %v4689 = vsub.f32 %v4687, %v4688
    %v4690 = vand.u32 %v4689, 4294901760
    %4691 = vmatmul.f32.gmra.mxu0 %v4690
    %v4692 = vpop.f32.mrf.mxu0
    %v4693 = vadd.f32 %v4640, %v4692
    %v4694 = vand.u32 %v4561, 4294901760
    %v4695 = vsub.f32 %v4561, %v4694
    %v4696 = vand.u32 %v4695, 4294901760
    %v4697 = vsub.f32 %v4695, %v4696
    %v4698 = vand.u32 %v4697, 4294901760
    %4699 = vmatmul.f32.gmra.mxu0 %v4698
    %v4700 = vpop.f32.mrf.mxu0
    %v4701 = vadd.f32 %v4645, %v4700
    %4702 = vdwg.mxu0
    %v4703 = vand.u32 %v4623, 4294901760
    %v4704 = vsub.f32 %v4623, %v4703
    %v4705 = vand.u32 %v4704, 4294901760
    %v4706 = vsub.f32 %v4704, %v4705
    %v4707 = vand.u32 %v4706, 4294901760
    %4708 = vmatpush.msra.mxu0 %v4707
    %v4709 = vand.u32 %v4619, 4294901760
    %v4710 = vsub.f32 %v4619, %v4709
    %v4711 = vand.u32 %v4710, 4294901760
    %v4712 = vsub.f32 %v4710, %v4711
    %v4713 = vand.u32 %v4712, 4294901760
    %4714 = vmatpush.msra.mxu0 %v4713
    %v4715 = vand.u32 %v4615, 4294901760
    %v4716 = vsub.f32 %v4615, %v4715
    %v4717 = vand.u32 %v4716, 4294901760
    %v4718 = vsub.f32 %v4716, %v4717
    %v4719 = vand.u32 %v4718, 4294901760
    %4720 = vmatpush.msra.mxu0 %v4719
    %v4721 = vand.u32 %v4611, 4294901760
    %v4722 = vsub.f32 %v4611, %v4721
    %v4723 = vand.u32 %v4722, 4294901760
    %v4724 = vsub.f32 %v4722, %v4723
    %v4725 = vand.u32 %v4724, 4294901760
    %4726 = vmatpush.msra.mxu0 %v4725
    %v4727 = vand.u32 %v4607, 4294901760
    %v4728 = vsub.f32 %v4607, %v4727
    %v4729 = vand.u32 %v4728, 4294901760
    %v4730 = vsub.f32 %v4728, %v4729
    %v4731 = vand.u32 %v4730, 4294901760
    %4732 = vmatpush.msra.mxu0 %v4731
    %v4733 = vand.u32 %v4603, 4294901760
    %v4734 = vsub.f32 %v4603, %v4733
    %v4735 = vand.u32 %v4734, 4294901760
    %v4736 = vsub.f32 %v4734, %v4735
    %v4737 = vand.u32 %v4736, 4294901760
    %4738 = vmatpush.msra.mxu0 %v4737
    %v4739 = vand.u32 %v4599, 4294901760
    %v4740 = vsub.f32 %v4599, %v4739
    %v4741 = vand.u32 %v4740, 4294901760
    %v4742 = vsub.f32 %v4740, %v4741
    %v4743 = vand.u32 %v4742, 4294901760
    %4744 = vmatpush.msra.mxu0 %v4743
    %v4745 = vand.u32 %v4595, 4294901760
    %v4746 = vsub.f32 %v4595, %v4745
    %v4747 = vand.u32 %v4746, 4294901760
    %v4748 = vsub.f32 %v4746, %v4747
    %v4749 = vand.u32 %v4748, 4294901760
    %4750 = vmatpush.msra.mxu0 %v4749
    %v4751 = vand.u32 %v4591, 4294901760
    %v4752 = vsub.f32 %v4591, %v4751
    %v4753 = vand.u32 %v4752, 4294901760
    %v4754 = vsub.f32 %v4752, %v4753
    %v4755 = vand.u32 %v4754, 4294901760
    %4756 = vmatpush.msra.mxu0 %v4755
    %v4757 = vand.u32 %v4587, 4294901760
    %v4758 = vsub.f32 %v4587, %v4757
    %v4759 = vand.u32 %v4758, 4294901760
    %v4760 = vsub.f32 %v4758, %v4759
    %v4761 = vand.u32 %v4760, 4294901760
    %4762 = vmatpush.msra.mxu0 %v4761
    %v4763 = vand.u32 %v4583, 4294901760
    %v4764 = vsub.f32 %v4583, %v4763
    %v4765 = vand.u32 %v4764, 4294901760
    %v4766 = vsub.f32 %v4764, %v4765
    %v4767 = vand.u32 %v4766, 4294901760
    %4768 = vmatpush.msra.mxu0 %v4767
    %v4769 = vand.u32 %v4579, 4294901760
    %v4770 = vsub.f32 %v4579, %v4769
    %v4771 = vand.u32 %v4770, 4294901760
    %v4772 = vsub.f32 %v4770, %v4771
    %v4773 = vand.u32 %v4772, 4294901760
    %4774 = vmatpush.msra.mxu0 %v4773
    %v4775 = vand.u32 %v4575, 4294901760
    %v4776 = vsub.f32 %v4575, %v4775
    %v4777 = vand.u32 %v4776, 4294901760
    %v4778 = vsub.f32 %v4776, %v4777
    %v4779 = vand.u32 %v4778, 4294901760
    %4780 = vmatpush.msra.mxu0 %v4779
    %v4781 = vand.u32 %v4571, 4294901760
    %v4782 = vsub.f32 %v4571, %v4781
    %v4783 = vand.u32 %v4782, 4294901760
    %v4784 = vsub.f32 %v4782, %v4783
    %v4785 = vand.u32 %v4784, 4294901760
    %4786 = vmatpush.msra.mxu0 %v4785
    %v4787 = vand.u32 %v4567, 4294901760
    %v4788 = vsub.f32 %v4567, %v4787
    %v4789 = vand.u32 %v4788, 4294901760
    %v4790 = vsub.f32 %v4788, %v4789
    %v4791 = vand.u32 %v4790, 4294901760
    %4792 = vmatpush.msra.mxu0 %v4791
    %v4793 = vand.u32 %v4563, 4294901760
    %v4794 = vsub.f32 %v4563, %v4793
    %v4795 = vand.u32 %v4794, 4294901760
    %v4796 = vsub.f32 %v4794, %v4795
    %v4797 = vand.u32 %v4796, 4294901760
    %4798 = vmatpush.msra.mxu0 %v4797
    %v4799 = vand.u32 %v4559, 4294901760
    %4800 = vmatmul.f32.gmra.mxu0 %v4799
    %v4801 = vpop.f32.mrf.mxu0
    %v4802 = vadd.f32 %v4693, %v4801
    %v4803 = vand.u32 %v4561, 4294901760
    %4804 = vmatmul.f32.gmra.mxu0 %v4803
    %v4805 = vpop.f32.mrf.mxu0
    %v4806 = vadd.f32 %v4701, %v4805
    %4807 = vdwg.mxu0
    %v4808 = vand.u32 %v4623, 4294901760
    %v4809 = vsub.f32 %v4623, %v4808
    %4810 = vmatpush.msra.mxu0 %v4809
    %v4811 = vand.u32 %v4619, 4294901760
    %v4812 = vsub.f32 %v4619, %v4811
    %4813 = vmatpush.msra.mxu0 %v4812
    %v4814 = vand.u32 %v4615, 4294901760
    %v4815 = vsub.f32 %v4615, %v4814
    %4816 = vmatpush.msra.mxu0 %v4815
    %v4817 = vand.u32 %v4611, 4294901760
    %v4818 = vsub.f32 %v4611, %v4817
    %4819 = vmatpush.msra.mxu0 %v4818
    %v4820 = vand.u32 %v4607, 4294901760
    %v4821 = vsub.f32 %v4607, %v4820
    %4822 = vmatpush.msra.mxu0 %v4821
    %v4823 = vand.u32 %v4603, 4294901760
    %v4824 = vsub.f32 %v4603, %v4823
    %4825 = vmatpush.msra.mxu0 %v4824
    %v4826 = vand.u32 %v4599, 4294901760
    %v4827 = vsub.f32 %v4599, %v4826
    %4828 = vmatpush.msra.mxu0 %v4827
    %v4829 = vand.u32 %v4595, 4294901760
    %v4830 = vsub.f32 %v4595, %v4829
    %4831 = vmatpush.msra.mxu0 %v4830
    %v4832 = vand.u32 %v4591, 4294901760
    %v4833 = vsub.f32 %v4591, %v4832
    %4834 = vmatpush.msra.mxu0 %v4833
    %v4835 = vand.u32 %v4587, 4294901760
    %v4836 = vsub.f32 %v4587, %v4835
    %4837 = vmatpush.msra.mxu0 %v4836
    %v4838 = vand.u32 %v4583, 4294901760
    %v4839 = vsub.f32 %v4583, %v4838
    %4840 = vmatpush.msra.mxu0 %v4839
    %v4841 = vand.u32 %v4579, 4294901760
    %v4842 = vsub.f32 %v4579, %v4841
    %4843 = vmatpush.msra.mxu0 %v4842
    %v4844 = vand.u32 %v4575, 4294901760
    %v4845 = vsub.f32 %v4575, %v4844
    %4846 = vmatpush.msra.mxu0 %v4845
    %v4847 = vand.u32 %v4571, 4294901760
    %v4848 = vsub.f32 %v4571, %v4847
    %4849 = vmatpush.msra.mxu0 %v4848
    %v4850 = vand.u32 %v4567, 4294901760
    %v4851 = vsub.f32 %v4567, %v4850
    %4852 = vmatpush.msra.mxu0 %v4851
    %v4853 = vand.u32 %v4563, 4294901760
    %v4854 = vsub.f32 %v4563, %v4853
    %4855 = vmatpush.msra.mxu0 %v4854
    %v4856 = vand.u32 %v4559, 4294901760
    %v4857 = vsub.f32 %v4559, %v4856
    %4858 = vmatmul.f32.gmra.mxu0 %v4857
    %v4859 = vpop.f32.mrf.mxu0
    %v4860 = vadd.f32 %v4802, %v4859
    %v4861 = vand.u32 %v4561, 4294901760
    %v4862 = vsub.f32 %v4561, %v4861
    %4863 = vmatmul.f32.gmra.mxu0 %v4862
    %v4864 = vpop.f32.mrf.mxu0
    %v4865 = vadd.f32 %v4806, %v4864
    %4866 = vdwg.mxu0
    %v4867 = vand.u32 %v4623, 4294901760
    %4868 = vmatpush.msra.mxu0 %v4867
    %v4869 = vand.u32 %v4619, 4294901760
    %4870 = vmatpush.msra.mxu0 %v4869
    %v4871 = vand.u32 %v4615, 4294901760
    %4872 = vmatpush.msra.mxu0 %v4871
    %v4873 = vand.u32 %v4611, 4294901760
    %4874 = vmatpush.msra.mxu0 %v4873
    %v4875 = vand.u32 %v4607, 4294901760
    %4876 = vmatpush.msra.mxu0 %v4875
    %v4877 = vand.u32 %v4603, 4294901760
    %4878 = vmatpush.msra.mxu0 %v4877
    %v4879 = vand.u32 %v4599, 4294901760
    %4880 = vmatpush.msra.mxu0 %v4879
    %v4881 = vand.u32 %v4595, 4294901760
    %4882 = vmatpush.msra.mxu0 %v4881
    %v4883 = vand.u32 %v4591, 4294901760
    %4884 = vmatpush.msra.mxu0 %v4883
    %v4885 = vand.u32 %v4587, 4294901760
    %4886 = vmatpush.msra.mxu0 %v4885
    %v4887 = vand.u32 %v4583, 4294901760
    %4888 = vmatpush.msra.mxu0 %v4887
    %v4889 = vand.u32 %v4579, 4294901760
    %4890 = vmatpush.msra.mxu0 %v4889
    %v4891 = vand.u32 %v4575, 4294901760
    %4892 = vmatpush.msra.mxu0 %v4891
    %v4893 = vand.u32 %v4571, 4294901760
    %4894 = vmatpush.msra.mxu0 %v4893
    %v4895 = vand.u32 %v4567, 4294901760
    %4896 = vmatpush.msra.mxu0 %v4895
    %v4897 = vand.u32 %v4563, 4294901760
    %4898 = vmatpush.msra.mxu0 %v4897
    %v4899 = vand.u32 %v4559, 4294901760
    %v4900 = vsub.f32 %v4559, %v4899
    %v4901 = vand.u32 %v4900, 4294901760
    %4902 = vmatmul.f32.gmra.mxu0 %v4901
    %v4903 = vpop.f32.mrf.mxu0
    %v4904 = vadd.f32 %v4860, %v4903
    %v4905 = vand.u32 %v4561, 4294901760
    %v4906 = vsub.f32 %v4561, %v4905
    %v4907 = vand.u32 %v4906, 4294901760
    %4908 = vmatmul.f32.gmra.mxu0 %v4907
    %v4909 = vpop.f32.mrf.mxu0
    %v4910 = vadd.f32 %v4865, %v4909
    %4911 = vdwg.mxu0
    %v4912 = vand.u32 %v4623, 4294901760
    %v4913 = vsub.f32 %v4623, %v4912
    %v4914 = vand.u32 %v4913, 4294901760
    %4915 = vmatpush.msra.mxu0 %v4914
    %v4916 = vand.u32 %v4619, 4294901760
    %v4917 = vsub.f32 %v4619, %v4916
    %v4918 = vand.u32 %v4917, 4294901760
    %4919 = vmatpush.msra.mxu0 %v4918
    %v4920 = vand.u32 %v4615, 4294901760
    %v4921 = vsub.f32 %v4615, %v4920
    %v4922 = vand.u32 %v4921, 4294901760
    %4923 = vmatpush.msra.mxu0 %v4922
    %v4924 = vand.u32 %v4611, 4294901760
    %v4925 = vsub.f32 %v4611, %v4924
    %v4926 = vand.u32 %v4925, 4294901760
    %4927 = vmatpush.msra.mxu0 %v4926
    %v4928 = vand.u32 %v4607, 4294901760
    %v4929 = vsub.f32 %v4607, %v4928
    %v4930 = vand.u32 %v4929, 4294901760
    %4931 = vmatpush.msra.mxu0 %v4930
    %v4932 = vand.u32 %v4603, 4294901760
    %v4933 = vsub.f32 %v4603, %v4932
    %v4934 = vand.u32 %v4933, 4294901760
    %4935 = vmatpush.msra.mxu0 %v4934
    %v4936 = vand.u32 %v4599, 4294901760
    %v4937 = vsub.f32 %v4599, %v4936
    %v4938 = vand.u32 %v4937, 4294901760
    %4939 = vmatpush.msra.mxu0 %v4938
    %v4940 = vand.u32 %v4595, 4294901760
    %v4941 = vsub.f32 %v4595, %v4940
    %v4942 = vand.u32 %v4941, 4294901760
    %4943 = vmatpush.msra.mxu0 %v4942
    %v4944 = vand.u32 %v4591, 4294901760
    %v4945 = vsub.f32 %v4591, %v4944
    %v4946 = vand.u32 %v4945, 4294901760
    %4947 = vmatpush.msra.mxu0 %v4946
    %v4948 = vand.u32 %v4587, 4294901760
    %v4949 = vsub.f32 %v4587, %v4948
    %v4950 = vand.u32 %v4949, 4294901760
    %4951 = vmatpush.msra.mxu0 %v4950
    %v4952 = vand.u32 %v4583, 4294901760
    %v4953 = vsub.f32 %v4583, %v4952
    %v4954 = vand.u32 %v4953, 4294901760
    %4955 = vmatpush.msra.mxu0 %v4954
    %v4956 = vand.u32 %v4579, 4294901760
    %v4957 = vsub.f32 %v4579, %v4956
    %v4958 = vand.u32 %v4957, 4294901760
    %4959 = vmatpush.msra.mxu0 %v4958
    %v4960 = vand.u32 %v4575, 4294901760
    %v4961 = vsub.f32 %v4575, %v4960
    %v4962 = vand.u32 %v4961, 4294901760
    %4963 = vmatpush.msra.mxu0 %v4962
    %v4964 = vand.u32 %v4571, 4294901760
    %v4965 = vsub.f32 %v4571, %v4964
    %v4966 = vand.u32 %v4965, 4294901760
    %4967 = vmatpush.msra.mxu0 %v4966
    %v4968 = vand.u32 %v4567, 4294901760
    %v4969 = vsub.f32 %v4567, %v4968
    %v4970 = vand.u32 %v4969, 4294901760
    %4971 = vmatpush.msra.mxu0 %v4970
    %v4972 = vand.u32 %v4563, 4294901760
    %v4973 = vsub.f32 %v4563, %v4972
    %v4974 = vand.u32 %v4973, 4294901760
    %4975 = vmatpush.msra.mxu0 %v4974
    %v4976 = vand.u32 %v4559, 4294901760
    %4977 = vmatmul.f32.gmra.mxu0 %v4976
    %v4978 = vpop.f32.mrf.mxu0
    %v4979 = vadd.f32 %v4904, %v4978
    %v4980 = vand.u32 %v4561, 4294901760
    %4981 = vmatmul.f32.gmra.mxu0 %v4980
    %v4982 = vpop.f32.mrf.mxu0
    %v4983 = vadd.f32 %v4910, %v4982
    %4984 = vdwg.mxu0
    %v4985 = vand.u32 %v4623, 4294901760
    %4986 = vmatpush.msra.mxu0 %v4985
    %v4987 = vand.u32 %v4619, 4294901760
    %4988 = vmatpush.msra.mxu0 %v4987
    %v4989 = vand.u32 %v4615, 4294901760
    %4990 = vmatpush.msra.mxu0 %v4989
    %v4991 = vand.u32 %v4611, 4294901760
    %4992 = vmatpush.msra.mxu0 %v4991
    %v4993 = vand.u32 %v4607, 4294901760
    %4994 = vmatpush.msra.mxu0 %v4993
    %v4995 = vand.u32 %v4603, 4294901760
    %4996 = vmatpush.msra.mxu0 %v4995
    %v4997 = vand.u32 %v4599, 4294901760
    %4998 = vmatpush.msra.mxu0 %v4997
    %v4999 = vand.u32 %v4595, 4294901760
    %5000 = vmatpush.msra.mxu0 %v4999
    %v5001 = vand.u32 %v4591, 4294901760
    %5002 = vmatpush.msra.mxu0 %v5001
    %v5003 = vand.u32 %v4587, 4294901760
    %5004 = vmatpush.msra.mxu0 %v5003
    %v5005 = vand.u32 %v4583, 4294901760
    %5006 = vmatpush.msra.mxu0 %v5005
    %v5007 = vand.u32 %v4579, 4294901760
    %5008 = vmatpush.msra.mxu0 %v5007
    %v5009 = vand.u32 %v4575, 4294901760
    %5010 = vmatpush.msra.mxu0 %v5009
    %v5011 = vand.u32 %v4571, 4294901760
    %5012 = vmatpush.msra.mxu0 %v5011
    %v5013 = vand.u32 %v4567, 4294901760
    %5014 = vmatpush.msra.mxu0 %v5013
    %v5015 = vand.u32 %v4563, 4294901760
    %5016 = vmatpush.msra.mxu0 %v5015
    %v5017 = vand.u32 %v4559, 4294901760
    %5018 = vmatmul.f32.gmra.mxu0 %v5017
    %v5019 = vpop.f32.mrf.mxu0
    %v5020 = vadd.f32 %v4979, %v5019
    %v5021 = vand.u32 %v4561, 4294901760
    %5022 = vmatmul.f32.gmra.mxu0 %v5021
    %v5023 = vpop.f32.mrf.mxu0
    %v5024 = vadd.f32 %v4983, %v5023
    %5025 = vdwg.mxu0
    %5026 = vmatpush.msra.mxu0 0.0
    %5027 = vmatpush.msra.mxu0 0.0
    %5028 = vmatpush.msra.mxu0 0.0
    %5029 = vmatpush.msra.mxu0 0.0
    %5030 = vmatpush.msra.mxu0 0.0
    %5031 = vmatpush.msra.mxu0 0.0
    %5032 = vmatpush.msra.mxu0 0.0
    %5033 = vmatpush.msra.mxu0 0.0
    %5034 = vmatpush.msra.mxu0 0.0
    %5035 = vmatpush.msra.mxu0 0.0
    %5036 = vmatpush.msra.mxu0 0.0
    %5037 = vmatpush.msra.mxu0 0.0
    %5038 = vmatpush.msra.mxu0 0.0
    %5039 = vmatpush.msra.mxu0 0.0
    %v5040 = vand.u32 %v4631, 4294901760
    %5041 = vmatpush.msra.mxu0 %v5040
    %v5042 = vand.u32 %v4627, 4294901760
    %5043 = vmatpush.msra.mxu0 %v5042
    %v5044 = vand.u32 %v4649, 4294901760
    %v5045 = vsub.f32 %v4649, %v5044
    %v5046 = vand.u32 %v5045, 4294901760
    %v5047 = vsub.f32 %v5045, %v5046
    %v5048 = vand.u32 %v5047, 4294901760
    %5049 = vmatmul.f32.gmra.mxu0 %v5048
    %v5050 = vpop.f32.mrf.mxu0
    %v5051 = vadd.f32 %v5020, %v5050
    %v5052 = vand.u32 %v4652, 4294901760
    %v5053 = vsub.f32 %v4652, %v5052
    %v5054 = vand.u32 %v5053, 4294901760
    %v5055 = vsub.f32 %v5053, %v5054
    %v5056 = vand.u32 %v5055, 4294901760
    %5057 = vmatmul.f32.gmra.mxu0 %v5056
    %v5058 = vpop.f32.mrf.mxu0
    %v5059 = vadd.f32 %v5024, %v5058
    %5060 = vdwg.mxu0
    %5061 = vmatpush.msra.mxu0 0.0
    %5062 = vmatpush.msra.mxu0 0.0
    %5063 = vmatpush.msra.mxu0 0.0
    %5064 = vmatpush.msra.mxu0 0.0
    %5065 = vmatpush.msra.mxu0 0.0
    %5066 = vmatpush.msra.mxu0 0.0
    %5067 = vmatpush.msra.mxu0 0.0
    %5068 = vmatpush.msra.mxu0 0.0
    %5069 = vmatpush.msra.mxu0 0.0
    %5070 = vmatpush.msra.mxu0 0.0
    %5071 = vmatpush.msra.mxu0 0.0
    %5072 = vmatpush.msra.mxu0 0.0
    %5073 = vmatpush.msra.mxu0 0.0
    %5074 = vmatpush.msra.mxu0 0.0
    %v5075 = vand.u32 %v4631, 4294901760
    %v5076 = vsub.f32 %v4631, %v5075
    %v5077 = vand.u32 %v5076, 4294901760
    %v5078 = vsub.f32 %v5076, %v5077
    %v5079 = vand.u32 %v5078, 4294901760
    %5080 = vmatpush.msra.mxu0 %v5079
    %v5081 = vand.u32 %v4627, 4294901760
    %v5082 = vsub.f32 %v4627, %v5081
    %v5083 = vand.u32 %v5082, 4294901760
    %v5084 = vsub.f32 %v5082, %v5083
    %v5085 = vand.u32 %v5084, 4294901760
    %5086 = vmatpush.msra.mxu0 %v5085
    %v5087 = vand.u32 %v4649, 4294901760
    %5088 = vmatmul.f32.gmra.mxu0 %v5087
    %v5089 = vpop.f32.mrf.mxu0
    %v5090 = vadd.f32 %v5051, %v5089
    %v5091 = vand.u32 %v4652, 4294901760
    %5092 = vmatmul.f32.gmra.mxu0 %v5091
    %v5093 = vpop.f32.mrf.mxu0
    %v5094 = vadd.f32 %v5059, %v5093
    %5095 = vdwg.mxu0
    %5096 = vmatpush.msra.mxu0 0.0
    %5097 = vmatpush.msra.mxu0 0.0
    %5098 = vmatpush.msra.mxu0 0.0
    %5099 = vmatpush.msra.mxu0 0.0
    %5100 = vmatpush.msra.mxu0 0.0
    %5101 = vmatpush.msra.mxu0 0.0
    %5102 = vmatpush.msra.mxu0 0.0
    %5103 = vmatpush.msra.mxu0 0.0
    %5104 = vmatpush.msra.mxu0 0.0
    %5105 = vmatpush.msra.mxu0 0.0
    %5106 = vmatpush.msra.mxu0 0.0
    %5107 = vmatpush.msra.mxu0 0.0
    %5108 = vmatpush.msra.mxu0 0.0
    %5109 = vmatpush.msra.mxu0 0.0
    %v5110 = vand.u32 %v4631, 4294901760
    %v5111 = vsub.f32 %v4631, %v5110
    %5112 = vmatpush.msra.mxu0 %v5111
    %v5113 = vand.u32 %v4627, 4294901760
    %v5114 = vsub.f32 %v4627, %v5113
    %5115 = vmatpush.msra.mxu0 %v5114
    %v5116 = vand.u32 %v4649, 4294901760
    %v5117 = vsub.f32 %v4649, %v5116
    %5118 = vmatmul.f32.gmra.mxu0 %v5117
    %v5119 = vpop.f32.mrf.mxu0
    %v5120 = vadd.f32 %v5090, %v5119
    %v5121 = vand.u32 %v4652, 4294901760
    %v5122 = vsub.f32 %v4652, %v5121
    %5123 = vmatmul.f32.gmra.mxu0 %v5122
    %v5124 = vpop.f32.mrf.mxu0
    %v5125 = vadd.f32 %v5094, %v5124
    %5126 = vdwg.mxu0
    %5127 = vmatpush.msra.mxu0 0.0
    %5128 = vmatpush.msra.mxu0 0.0
    %5129 = vmatpush.msra.mxu0 0.0
    %5130 = vmatpush.msra.mxu0 0.0
    %5131 = vmatpush.msra.mxu0 0.0
    %5132 = vmatpush.msra.mxu0 0.0
    %5133 = vmatpush.msra.mxu0 0.0
    %5134 = vmatpush.msra.mxu0 0.0
    %5135 = vmatpush.msra.mxu0 0.0
    %5136 = vmatpush.msra.mxu0 0.0
    %5137 = vmatpush.msra.mxu0 0.0
    %5138 = vmatpush.msra.mxu0 0.0
    %5139 = vmatpush.msra.mxu0 0.0
    %5140 = vmatpush.msra.mxu0 0.0
    %v5141 = vand.u32 %v4631, 4294901760
    %5142 = vmatpush.msra.mxu0 %v5141
    %v5143 = vand.u32 %v4627, 4294901760
    %5144 = vmatpush.msra.mxu0 %v5143
    %v5145 = vand.u32 %v4649, 4294901760
    %v5146 = vsub.f32 %v4649, %v5145
    %v5147 = vand.u32 %v5146, 4294901760
    %5148 = vmatmul.f32.gmra.mxu0 %v5147
    %v5149 = vpop.f32.mrf.mxu0
    %v5150 = vadd.f32 %v5120, %v5149
    %v5151 = vand.u32 %v4652, 4294901760
    %v5152 = vsub.f32 %v4652, %v5151
    %v5153 = vand.u32 %v5152, 4294901760
    %5154 = vmatmul.f32.gmra.mxu0 %v5153
    %v5155 = vpop.f32.mrf.mxu0
    %v5156 = vadd.f32 %v5125, %v5155
    %5157 = vdwg.mxu0
    %5158 = vmatpush.msra.mxu0 0.0
    %5159 = vmatpush.msra.mxu0 0.0
    %5160 = vmatpush.msra.mxu0 0.0
    %5161 = vmatpush.msra.mxu0 0.0
    %5162 = vmatpush.msra.mxu0 0.0
    %5163 = vmatpush.msra.mxu0 0.0
    %5164 = vmatpush.msra.mxu0 0.0
    %5165 = vmatpush.msra.mxu0 0.0
    %5166 = vmatpush.msra.mxu0 0.0
    %5167 = vmatpush.msra.mxu0 0.0
    %5168 = vmatpush.msra.mxu0 0.0
    %5169 = vmatpush.msra.mxu0 0.0
    %5170 = vmatpush.msra.mxu0 0.0
    %5171 = vmatpush.msra.mxu0 0.0
    %v5172 = vand.u32 %v4631, 4294901760
    %v5173 = vsub.f32 %v4631, %v5172
    %v5174 = vand.u32 %v5173, 4294901760
    %5175 = vmatpush.msra.mxu0 %v5174
    %v5176 = vand.u32 %v4627, 4294901760
    %v5177 = vsub.f32 %v4627, %v5176
    %v5178 = vand.u32 %v5177, 4294901760
    %5179 = vmatpush.msra.mxu0 %v5178
    %v5180 = vand.u32 %v4649, 4294901760
    %5181 = vmatmul.f32.gmra.mxu0 %v5180
    %v5182 = vpop.f32.mrf.mxu0
    %v5183 = vadd.f32 %v5150, %v5182
    %v5184 = vand.u32 %v4652, 4294901760
    %5185 = vmatmul.f32.gmra.mxu0 %v5184
    %v5186 = vpop.f32.mrf.mxu0
    %v5187 = vadd.f32 %v5156, %v5186
    %5188 = vdwg.mxu0
    %5189 = vmatpush.msra.mxu0 0.0
    %5190 = vmatpush.msra.mxu0 0.0
    %5191 = vmatpush.msra.mxu0 0.0
    %5192 = vmatpush.msra.mxu0 0.0
    %5193 = vmatpush.msra.mxu0 0.0
    %5194 = vmatpush.msra.mxu0 0.0
    %5195 = vmatpush.msra.mxu0 0.0
    %5196 = vmatpush.msra.mxu0 0.0
    %5197 = vmatpush.msra.mxu0 0.0
    %5198 = vmatpush.msra.mxu0 0.0
    %5199 = vmatpush.msra.mxu0 0.0
    %5200 = vmatpush.msra.mxu0 0.0
    %5201 = vmatpush.msra.mxu0 0.0
    %5202 = vmatpush.msra.mxu0 0.0
    %v5203 = vand.u32 %v4631, 4294901760
    %5204 = vmatpush.msra.mxu0 %v5203
    %v5205 = vand.u32 %v4627, 4294901760
    %5206 = vmatpush.msra.mxu0 %v5205
    %v5207 = vand.u32 %v4649, 4294901760
    %5208 = vmatmul.f32.gmra.mxu0 %v5207
    %v5209 = vpop.f32.mrf.mxu0
    %v5210 = vadd.f32 %v5183, %v5209
    %v5211 = vand.u32 %v4652, 4294901760
    %5212 = vmatmul.f32.gmra.mxu0 %v5211
    %v5213 = vpop.f32.mrf.mxu0
    %v5214 = vadd.f32 %v5187, %v5213
    %5215 = vdwg.mxu0
    %v5216 = vand.u32 %v4624, 4294901760
    %5217 = vmatpush.msra.mxu0 %v5216
    %v5218 = vand.u32 %v4620, 4294901760
    %5219 = vmatpush.msra.mxu0 %v5218
    %v5220 = vand.u32 %v4616, 4294901760
    %5221 = vmatpush.msra.mxu0 %v5220
    %v5222 = vand.u32 %v4612, 4294901760
    %5223 = vmatpush.msra.mxu0 %v5222
    %v5224 = vand.u32 %v4608, 4294901760
    %5225 = vmatpush.msra.mxu0 %v5224
    %v5226 = vand.u32 %v4604, 4294901760
    %5227 = vmatpush.msra.mxu0 %v5226
    %v5228 = vand.u32 %v4600, 4294901760
    %5229 = vmatpush.msra.mxu0 %v5228
    %v5230 = vand.u32 %v4596, 4294901760
    %5231 = vmatpush.msra.mxu0 %v5230
    %v5232 = vand.u32 %v4592, 4294901760
    %5233 = vmatpush.msra.mxu0 %v5232
    %v5234 = vand.u32 %v4588, 4294901760
    %5235 = vmatpush.msra.mxu0 %v5234
    %v5236 = vand.u32 %v4584, 4294901760
    %5237 = vmatpush.msra.mxu0 %v5236
    %v5238 = vand.u32 %v4580, 4294901760
    %5239 = vmatpush.msra.mxu0 %v5238
    %v5240 = vand.u32 %v4576, 4294901760
    %5241 = vmatpush.msra.mxu0 %v5240
    %v5242 = vand.u32 %v4572, 4294901760
    %5243 = vmatpush.msra.mxu0 %v5242
    %v5244 = vand.u32 %v4568, 4294901760
    %5245 = vmatpush.msra.mxu0 %v5244
    %v5246 = vand.u32 %v4564, 4294901760
    %5247 = vmatpush.msra.mxu0 %v5246
    %v5248 = vand.u32 %v4559, 4294901760
    %v5249 = vsub.f32 %v4559, %v5248
    %v5250 = vand.u32 %v5249, 4294901760
    %v5251 = vsub.f32 %v5249, %v5250
    %v5252 = vand.u32 %v5251, 4294901760
    %5253 = vmatmul.f32.gmra.mxu0 %v5252
    %v5254 = vpop.f32.mrf.mxu0
    %v5255 = vadd.f32 %v4640, %v5254
    %v5256 = vand.u32 %v4561, 4294901760
    %v5257 = vsub.f32 %v4561, %v5256
    %v5258 = vand.u32 %v5257, 4294901760
    %v5259 = vsub.f32 %v5257, %v5258
    %v5260 = vand.u32 %v5259, 4294901760
    %5261 = vmatmul.f32.gmra.mxu0 %v5260
    %v5262 = vpop.f32.mrf.mxu0
    %v5263 = vadd.f32 %v4645, %v5262
    %5264 = vdwg.mxu0
    %v5265 = vand.u32 %v4624, 4294901760
    %v5266 = vsub.f32 %v4624, %v5265
    %v5267 = vand.u32 %v5266, 4294901760
    %v5268 = vsub.f32 %v5266, %v5267
    %v5269 = vand.u32 %v5268, 4294901760
    %5270 = vmatpush.msra.mxu0 %v5269
    %v5271 = vand.u32 %v4620, 4294901760
    %v5272 = vsub.f32 %v4620, %v5271
    %v5273 = vand.u32 %v5272, 4294901760
    %v5274 = vsub.f32 %v5272, %v5273
    %v5275 = vand.u32 %v5274, 4294901760
    %5276 = vmatpush.msra.mxu0 %v5275
    %v5277 = vand.u32 %v4616, 4294901760
    %v5278 = vsub.f32 %v4616, %v5277
    %v5279 = vand.u32 %v5278, 4294901760
    %v5280 = vsub.f32 %v5278, %v5279
    %v5281 = vand.u32 %v5280, 4294901760
    %5282 = vmatpush.msra.mxu0 %v5281
    %v5283 = vand.u32 %v4612, 4294901760
    %v5284 = vsub.f32 %v4612, %v5283
    %v5285 = vand.u32 %v5284, 4294901760
    %v5286 = vsub.f32 %v5284, %v5285
    %v5287 = vand.u32 %v5286, 4294901760
    %5288 = vmatpush.msra.mxu0 %v5287
    %v5289 = vand.u32 %v4608, 4294901760
    %v5290 = vsub.f32 %v4608, %v5289
    %v5291 = vand.u32 %v5290, 4294901760
    %v5292 = vsub.f32 %v5290, %v5291
    %v5293 = vand.u32 %v5292, 4294901760
    %5294 = vmatpush.msra.mxu0 %v5293
    %v5295 = vand.u32 %v4604, 4294901760
    %v5296 = vsub.f32 %v4604, %v5295
    %v5297 = vand.u32 %v5296, 4294901760
    %v5298 = vsub.f32 %v5296, %v5297
    %v5299 = vand.u32 %v5298, 4294901760
    %5300 = vmatpush.msra.mxu0 %v5299
    %v5301 = vand.u32 %v4600, 4294901760
    %v5302 = vsub.f32 %v4600, %v5301
    %v5303 = vand.u32 %v5302, 4294901760
    %v5304 = vsub.f32 %v5302, %v5303
    %v5305 = vand.u32 %v5304, 4294901760
    %5306 = vmatpush.msra.mxu0 %v5305
    %v5307 = vand.u32 %v4596, 4294901760
    %v5308 = vsub.f32 %v4596, %v5307
    %v5309 = vand.u32 %v5308, 4294901760
    %v5310 = vsub.f32 %v5308, %v5309
    %v5311 = vand.u32 %v5310, 4294901760
    %5312 = vmatpush.msra.mxu0 %v5311
    %v5313 = vand.u32 %v4592, 4294901760
    %v5314 = vsub.f32 %v4592, %v5313
    %v5315 = vand.u32 %v5314, 4294901760
    %v5316 = vsub.f32 %v5314, %v5315
    %v5317 = vand.u32 %v5316, 4294901760
    %5318 = vmatpush.msra.mxu0 %v5317
    %v5319 = vand.u32 %v4588, 4294901760
    %v5320 = vsub.f32 %v4588, %v5319
    %v5321 = vand.u32 %v5320, 4294901760
    %v5322 = vsub.f32 %v5320, %v5321
    %v5323 = vand.u32 %v5322, 4294901760
    %5324 = vmatpush.msra.mxu0 %v5323
    %v5325 = vand.u32 %v4584, 4294901760
    %v5326 = vsub.f32 %v4584, %v5325
    %v5327 = vand.u32 %v5326, 4294901760
    %v5328 = vsub.f32 %v5326, %v5327
    %v5329 = vand.u32 %v5328, 4294901760
    %5330 = vmatpush.msra.mxu0 %v5329
    %v5331 = vand.u32 %v4580, 4294901760
    %v5332 = vsub.f32 %v4580, %v5331
    %v5333 = vand.u32 %v5332, 4294901760
    %v5334 = vsub.f32 %v5332, %v5333
    %v5335 = vand.u32 %v5334, 4294901760
    %5336 = vmatpush.msra.mxu0 %v5335
    %v5337 = vand.u32 %v4576, 4294901760
    %v5338 = vsub.f32 %v4576, %v5337
    %v5339 = vand.u32 %v5338, 4294901760
    %v5340 = vsub.f32 %v5338, %v5339
    %v5341 = vand.u32 %v5340, 4294901760
    %5342 = vmatpush.msra.mxu0 %v5341
    %v5343 = vand.u32 %v4572, 4294901760
    %v5344 = vsub.f32 %v4572, %v5343
    %v5345 = vand.u32 %v5344, 4294901760
    %v5346 = vsub.f32 %v5344, %v5345
    %v5347 = vand.u32 %v5346, 4294901760
    %5348 = vmatpush.msra.mxu0 %v5347
    %v5349 = vand.u32 %v4568, 4294901760
    %v5350 = vsub.f32 %v4568, %v5349
    %v5351 = vand.u32 %v5350, 4294901760
    %v5352 = vsub.f32 %v5350, %v5351
    %v5353 = vand.u32 %v5352, 4294901760
    %5354 = vmatpush.msra.mxu0 %v5353
    %v5355 = vand.u32 %v4564, 4294901760
    %v5356 = vsub.f32 %v4564, %v5355
    %v5357 = vand.u32 %v5356, 4294901760
    %v5358 = vsub.f32 %v5356, %v5357
    %v5359 = vand.u32 %v5358, 4294901760
    %5360 = vmatpush.msra.mxu0 %v5359
    %v5361 = vand.u32 %v4559, 4294901760
    %5362 = vmatmul.f32.gmra.mxu0 %v5361
    %v5363 = vpop.f32.mrf.mxu0
    %v5364 = vadd.f32 %v5255, %v5363
    %v5365 = vand.u32 %v4561, 4294901760
    %5366 = vmatmul.f32.gmra.mxu0 %v5365
    %v5367 = vpop.f32.mrf.mxu0
    %v5368 = vadd.f32 %v5263, %v5367
    %5369 = vdwg.mxu0
    %v5370 = vand.u32 %v4624, 4294901760
    %v5371 = vsub.f32 %v4624, %v5370
    %5372 = vmatpush.msra.mxu0 %v5371
    %v5373 = vand.u32 %v4620, 4294901760
    %v5374 = vsub.f32 %v4620, %v5373
    %5375 = vmatpush.msra.mxu0 %v5374
    %v5376 = vand.u32 %v4616, 4294901760
    %v5377 = vsub.f32 %v4616, %v5376
    %5378 = vmatpush.msra.mxu0 %v5377
    %v5379 = vand.u32 %v4612, 4294901760
    %v5380 = vsub.f32 %v4612, %v5379
    %5381 = vmatpush.msra.mxu0 %v5380
    %v5382 = vand.u32 %v4608, 4294901760
    %v5383 = vsub.f32 %v4608, %v5382
    %5384 = vmatpush.msra.mxu0 %v5383
    %v5385 = vand.u32 %v4604, 4294901760
    %v5386 = vsub.f32 %v4604, %v5385
    %5387 = vmatpush.msra.mxu0 %v5386
    %v5388 = vand.u32 %v4600, 4294901760
    %v5389 = vsub.f32 %v4600, %v5388
    %5390 = vmatpush.msra.mxu0 %v5389
    %v5391 = vand.u32 %v4596, 4294901760
    %v5392 = vsub.f32 %v4596, %v5391
    %5393 = vmatpush.msra.mxu0 %v5392
    %v5394 = vand.u32 %v4592, 4294901760
    %v5395 = vsub.f32 %v4592, %v5394
    %5396 = vmatpush.msra.mxu0 %v5395
    %v5397 = vand.u32 %v4588, 4294901760
    %v5398 = vsub.f32 %v4588, %v5397
    %5399 = vmatpush.msra.mxu0 %v5398
    %v5400 = vand.u32 %v4584, 4294901760
    %v5401 = vsub.f32 %v4584, %v5400
    %5402 = vmatpush.msra.mxu0 %v5401
    %v5403 = vand.u32 %v4580, 4294901760
    %v5404 = vsub.f32 %v4580, %v5403
    %5405 = vmatpush.msra.mxu0 %v5404
    %v5406 = vand.u32 %v4576, 4294901760
    %v5407 = vsub.f32 %v4576, %v5406
    %5408 = vmatpush.msra.mxu0 %v5407
    %v5409 = vand.u32 %v4572, 4294901760
    %v5410 = vsub.f32 %v4572, %v5409
    %5411 = vmatpush.msra.mxu0 %v5410
    %v5412 = vand.u32 %v4568, 4294901760
    %v5413 = vsub.f32 %v4568, %v5412
    %5414 = vmatpush.msra.mxu0 %v5413
    %v5415 = vand.u32 %v4564, 4294901760
    %v5416 = vsub.f32 %v4564, %v5415
    %5417 = vmatpush.msra.mxu0 %v5416
    %v5418 = vand.u32 %v4559, 4294901760
    %v5419 = vsub.f32 %v4559, %v5418
    %5420 = vmatmul.f32.gmra.mxu0 %v5419
    %v5421 = vpop.f32.mrf.mxu0
    %v5422 = vadd.f32 %v5364, %v5421
    %v5423 = vand.u32 %v4561, 4294901760
    %v5424 = vsub.f32 %v4561, %v5423
    %5425 = vmatmul.f32.gmra.mxu0 %v5424
    %v5426 = vpop.f32.mrf.mxu0
    %v5427 = vadd.f32 %v5368, %v5426
    %5428 = vdwg.mxu0
    %v5429 = vand.u32 %v4624, 4294901760
    %5430 = vmatpush.msra.mxu0 %v5429
    %v5431 = vand.u32 %v4620, 4294901760
    %5432 = vmatpush.msra.mxu0 %v5431
    %v5433 = vand.u32 %v4616, 4294901760
    %5434 = vmatpush.msra.mxu0 %v5433
    %v5435 = vand.u32 %v4612, 4294901760
    %5436 = vmatpush.msra.mxu0 %v5435
    %v5437 = vand.u32 %v4608, 4294901760
    %5438 = vmatpush.msra.mxu0 %v5437
    %v5439 = vand.u32 %v4604, 4294901760
    %5440 = vmatpush.msra.mxu0 %v5439
    %v5441 = vand.u32 %v4600, 4294901760
    %5442 = vmatpush.msra.mxu0 %v5441
    %v5443 = vand.u32 %v4596, 4294901760
    %5444 = vmatpush.msra.mxu0 %v5443
    %v5445 = vand.u32 %v4592, 4294901760
    %5446 = vmatpush.msra.mxu0 %v5445
    %v5447 = vand.u32 %v4588, 4294901760
    %5448 = vmatpush.msra.mxu0 %v5447
    %v5449 = vand.u32 %v4584, 4294901760
    %5450 = vmatpush.msra.mxu0 %v5449
    %v5451 = vand.u32 %v4580, 4294901760
    %5452 = vmatpush.msra.mxu0 %v5451
    %v5453 = vand.u32 %v4576, 4294901760
    %5454 = vmatpush.msra.mxu0 %v5453
    %v5455 = vand.u32 %v4572, 4294901760
    %5456 = vmatpush.msra.mxu0 %v5455
    %v5457 = vand.u32 %v4568, 4294901760
    %5458 = vmatpush.msra.mxu0 %v5457
    %v5459 = vand.u32 %v4564, 4294901760
    %5460 = vmatpush.msra.mxu0 %v5459
    %v5461 = vand.u32 %v4559, 4294901760
    %v5462 = vsub.f32 %v4559, %v5461
    %v5463 = vand.u32 %v5462, 4294901760
    %5464 = vmatmul.f32.gmra.mxu0 %v5463
    %v5465 = vpop.f32.mrf.mxu0
    %v5466 = vadd.f32 %v5422, %v5465
    %v5467 = vand.u32 %v4561, 4294901760
    %v5468 = vsub.f32 %v4561, %v5467
    %v5469 = vand.u32 %v5468, 4294901760
    %5470 = vmatmul.f32.gmra.mxu0 %v5469
    %v5471 = vpop.f32.mrf.mxu0
    %v5472 = vadd.f32 %v5427, %v5471
    %5473 = vdwg.mxu0
    %v5474 = vand.u32 %v4624, 4294901760
    %v5475 = vsub.f32 %v4624, %v5474
    %v5476 = vand.u32 %v5475, 4294901760
    %5477 = vmatpush.msra.mxu0 %v5476
    %v5478 = vand.u32 %v4620, 4294901760
    %v5479 = vsub.f32 %v4620, %v5478
    %v5480 = vand.u32 %v5479, 4294901760
    %5481 = vmatpush.msra.mxu0 %v5480
    %v5482 = vand.u32 %v4616, 4294901760
    %v5483 = vsub.f32 %v4616, %v5482
    %v5484 = vand.u32 %v5483, 4294901760
    %5485 = vmatpush.msra.mxu0 %v5484
    %v5486 = vand.u32 %v4612, 4294901760
    %v5487 = vsub.f32 %v4612, %v5486
    %v5488 = vand.u32 %v5487, 4294901760
    %5489 = vmatpush.msra.mxu0 %v5488
    %v5490 = vand.u32 %v4608, 4294901760
    %v5491 = vsub.f32 %v4608, %v5490
    %v5492 = vand.u32 %v5491, 4294901760
    %5493 = vmatpush.msra.mxu0 %v5492
    %v5494 = vand.u32 %v4604, 4294901760
    %v5495 = vsub.f32 %v4604, %v5494
    %v5496 = vand.u32 %v5495, 4294901760
    %5497 = vmatpush.msra.mxu0 %v5496
    %v5498 = vand.u32 %v4600, 4294901760
    %v5499 = vsub.f32 %v4600, %v5498
    %v5500 = vand.u32 %v5499, 4294901760
    %5501 = vmatpush.msra.mxu0 %v5500
    %v5502 = vand.u32 %v4596, 4294901760
    %v5503 = vsub.f32 %v4596, %v5502
    %v5504 = vand.u32 %v5503, 4294901760
    %5505 = vmatpush.msra.mxu0 %v5504
    %v5506 = vand.u32 %v4592, 4294901760
    %v5507 = vsub.f32 %v4592, %v5506
    %v5508 = vand.u32 %v5507, 4294901760
    %5509 = vmatpush.msra.mxu0 %v5508
    %v5510 = vand.u32 %v4588, 4294901760
    %v5511 = vsub.f32 %v4588, %v5510
    %v5512 = vand.u32 %v5511, 4294901760
    %5513 = vmatpush.msra.mxu0 %v5512
    %v5514 = vand.u32 %v4584, 4294901760
    %v5515 = vsub.f32 %v4584, %v5514
    %v5516 = vand.u32 %v5515, 4294901760
    %5517 = vmatpush.msra.mxu0 %v5516
    %v5518 = vand.u32 %v4580, 4294901760
    %v5519 = vsub.f32 %v4580, %v5518
    %v5520 = vand.u32 %v5519, 4294901760
    %5521 = vmatpush.msra.mxu0 %v5520
    %v5522 = vand.u32 %v4576, 4294901760
    %v5523 = vsub.f32 %v4576, %v5522
    %v5524 = vand.u32 %v5523, 4294901760
    %5525 = vmatpush.msra.mxu0 %v5524
    %v5526 = vand.u32 %v4572, 4294901760
    %v5527 = vsub.f32 %v4572, %v5526
    %v5528 = vand.u32 %v5527, 4294901760
    %5529 = vmatpush.msra.mxu0 %v5528
    %v5530 = vand.u32 %v4568, 4294901760
    %v5531 = vsub.f32 %v4568, %v5530
    %v5532 = vand.u32 %v5531, 4294901760
    %5533 = vmatpush.msra.mxu0 %v5532
    %v5534 = vand.u32 %v4564, 4294901760
    %v5535 = vsub.f32 %v4564, %v5534
    %v5536 = vand.u32 %v5535, 4294901760
    %5537 = vmatpush.msra.mxu0 %v5536
    %v5538 = vand.u32 %v4559, 4294901760
    %5539 = vmatmul.f32.gmra.mxu0 %v5538
    %v5540 = vpop.f32.mrf.mxu0
    %v5541 = vadd.f32 %v5466, %v5540
    %v5542 = vand.u32 %v4561, 4294901760
    %5543 = vmatmul.f32.gmra.mxu0 %v5542
    %v5544 = vpop.f32.mrf.mxu0
    %v5545 = vadd.f32 %v5472, %v5544
    %5546 = vdwg.mxu0
    %v5547 = vand.u32 %v4624, 4294901760
    %5548 = vmatpush.msra.mxu0 %v5547
    %v5549 = vand.u32 %v4620, 4294901760
    %5550 = vmatpush.msra.mxu0 %v5549
    %v5551 = vand.u32 %v4616, 4294901760
    %5552 = vmatpush.msra.mxu0 %v5551
    %v5553 = vand.u32 %v4612, 4294901760
    %5554 = vmatpush.msra.mxu0 %v5553
    %v5555 = vand.u32 %v4608, 4294901760
    %5556 = vmatpush.msra.mxu0 %v5555
    %v5557 = vand.u32 %v4604, 4294901760
    %5558 = vmatpush.msra.mxu0 %v5557
    %v5559 = vand.u32 %v4600, 4294901760
    %5560 = vmatpush.msra.mxu0 %v5559
    %v5561 = vand.u32 %v4596, 4294901760
    %5562 = vmatpush.msra.mxu0 %v5561
    %v5563 = vand.u32 %v4592, 4294901760
    %5564 = vmatpush.msra.mxu0 %v5563
    %v5565 = vand.u32 %v4588, 4294901760
    %5566 = vmatpush.msra.mxu0 %v5565
    %v5567 = vand.u32 %v4584, 4294901760
    %5568 = vmatpush.msra.mxu0 %v5567
    %v5569 = vand.u32 %v4580, 4294901760
    %5570 = vmatpush.msra.mxu0 %v5569
    %v5571 = vand.u32 %v4576, 4294901760
    %5572 = vmatpush.msra.mxu0 %v5571
    %v5573 = vand.u32 %v4572, 4294901760
    %5574 = vmatpush.msra.mxu0 %v5573
    %v5575 = vand.u32 %v4568, 4294901760
    %5576 = vmatpush.msra.mxu0 %v5575
    %v5577 = vand.u32 %v4564, 4294901760
    %5578 = vmatpush.msra.mxu0 %v5577
    %v5579 = vand.u32 %v4559, 4294901760
    %5580 = vmatmul.f32.gmra.mxu0 %v5579
    %v5581 = vpop.f32.mrf.mxu0
    %v5582 = vadd.f32 %v5541, %v5581
    %v5583 = vand.u32 %v4561, 4294901760
    %5584 = vmatmul.f32.gmra.mxu0 %v5583
    %v5585 = vpop.f32.mrf.mxu0
    %v5586 = vadd.f32 %v5545, %v5585
    %5587 = vdwg.mxu0
    %5588 = vmatpush.msra.mxu0 0.0
    %5589 = vmatpush.msra.mxu0 0.0
    %5590 = vmatpush.msra.mxu0 0.0
    %5591 = vmatpush.msra.mxu0 0.0
    %5592 = vmatpush.msra.mxu0 0.0
    %5593 = vmatpush.msra.mxu0 0.0
    %5594 = vmatpush.msra.mxu0 0.0
    %5595 = vmatpush.msra.mxu0 0.0
    %5596 = vmatpush.msra.mxu0 0.0
    %5597 = vmatpush.msra.mxu0 0.0
    %5598 = vmatpush.msra.mxu0 0.0
    %5599 = vmatpush.msra.mxu0 0.0
    %5600 = vmatpush.msra.mxu0 0.0
    %5601 = vmatpush.msra.mxu0 0.0
    %v5602 = vand.u32 %v4632, 4294901760
    %5603 = vmatpush.msra.mxu0 %v5602
    %v5604 = vand.u32 %v4628, 4294901760
    %5605 = vmatpush.msra.mxu0 %v5604
    %v5606 = vand.u32 %v4649, 4294901760
    %v5607 = vsub.f32 %v4649, %v5606
    %v5608 = vand.u32 %v5607, 4294901760
    %v5609 = vsub.f32 %v5607, %v5608
    %v5610 = vand.u32 %v5609, 4294901760
    %5611 = vmatmul.f32.gmra.mxu0 %v5610
    %v5612 = vpop.f32.mrf.mxu0
    %v5613 = vadd.f32 %v5582, %v5612
    %v5614 = vand.u32 %v4652, 4294901760
    %v5615 = vsub.f32 %v4652, %v5614
    %v5616 = vand.u32 %v5615, 4294901760
    %v5617 = vsub.f32 %v5615, %v5616
    %v5618 = vand.u32 %v5617, 4294901760
    %5619 = vmatmul.f32.gmra.mxu0 %v5618
    %v5620 = vpop.f32.mrf.mxu0
    %v5621 = vadd.f32 %v5586, %v5620
    %5622 = vdwg.mxu0
    %5623 = vmatpush.msra.mxu0 0.0
    %5624 = vmatpush.msra.mxu0 0.0
    %5625 = vmatpush.msra.mxu0 0.0
    %5626 = vmatpush.msra.mxu0 0.0
    %5627 = vmatpush.msra.mxu0 0.0
    %5628 = vmatpush.msra.mxu0 0.0
    %5629 = vmatpush.msra.mxu0 0.0
    %5630 = vmatpush.msra.mxu0 0.0
    %5631 = vmatpush.msra.mxu0 0.0
    %5632 = vmatpush.msra.mxu0 0.0
    %5633 = vmatpush.msra.mxu0 0.0
    %5634 = vmatpush.msra.mxu0 0.0
    %5635 = vmatpush.msra.mxu0 0.0
    %5636 = vmatpush.msra.mxu0 0.0
    %v5637 = vand.u32 %v4632, 4294901760
    %v5638 = vsub.f32 %v4632, %v5637
    %v5639 = vand.u32 %v5638, 4294901760
    %v5640 = vsub.f32 %v5638, %v5639
    %v5641 = vand.u32 %v5640, 4294901760
    %5642 = vmatpush.msra.mxu0 %v5641
    %v5643 = vand.u32 %v4628, 4294901760
    %v5644 = vsub.f32 %v4628, %v5643
    %v5645 = vand.u32 %v5644, 4294901760
    %v5646 = vsub.f32 %v5644, %v5645
    %v5647 = vand.u32 %v5646, 4294901760
    %5648 = vmatpush.msra.mxu0 %v5647
    %v5649 = vand.u32 %v4649, 4294901760
    %5650 = vmatmul.f32.gmra.mxu0 %v5649
    %v5651 = vpop.f32.mrf.mxu0
    %v5652 = vadd.f32 %v5613, %v5651
    %v5653 = vand.u32 %v4652, 4294901760
    %5654 = vmatmul.f32.gmra.mxu0 %v5653
    %v5655 = vpop.f32.mrf.mxu0
    %v5656 = vadd.f32 %v5621, %v5655
    %5657 = vdwg.mxu0
    %5658 = vmatpush.msra.mxu0 0.0
    %5659 = vmatpush.msra.mxu0 0.0
    %5660 = vmatpush.msra.mxu0 0.0
    %5661 = vmatpush.msra.mxu0 0.0
    %5662 = vmatpush.msra.mxu0 0.0
    %5663 = vmatpush.msra.mxu0 0.0
    %5664 = vmatpush.msra.mxu0 0.0
    %5665 = vmatpush.msra.mxu0 0.0
    %5666 = vmatpush.msra.mxu0 0.0
    %5667 = vmatpush.msra.mxu0 0.0
    %5668 = vmatpush.msra.mxu0 0.0
    %5669 = vmatpush.msra.mxu0 0.0
    %5670 = vmatpush.msra.mxu0 0.0
    %5671 = vmatpush.msra.mxu0 0.0
    %v5672 = vand.u32 %v4632, 4294901760
    %v5673 = vsub.f32 %v4632, %v5672
    %5674 = vmatpush.msra.mxu0 %v5673
    %v5675 = vand.u32 %v4628, 4294901760
    %v5676 = vsub.f32 %v4628, %v5675
    %5677 = vmatpush.msra.mxu0 %v5676
    %v5678 = vand.u32 %v4649, 4294901760
    %v5679 = vsub.f32 %v4649, %v5678
    %5680 = vmatmul.f32.gmra.mxu0 %v5679
    %v5681 = vpop.f32.mrf.mxu0
    %v5682 = vadd.f32 %v5652, %v5681
    %v5683 = vand.u32 %v4652, 4294901760
    %v5684 = vsub.f32 %v4652, %v5683
    %5685 = vmatmul.f32.gmra.mxu0 %v5684
    %v5686 = vpop.f32.mrf.mxu0
    %v5687 = vadd.f32 %v5656, %v5686
    %5688 = vdwg.mxu0
    %5689 = vmatpush.msra.mxu0 0.0
    %5690 = vmatpush.msra.mxu0 0.0
    %5691 = vmatpush.msra.mxu0 0.0
    %5692 = vmatpush.msra.mxu0 0.0
    %5693 = vmatpush.msra.mxu0 0.0
    %5694 = vmatpush.msra.mxu0 0.0
    %5695 = vmatpush.msra.mxu0 0.0
    %5696 = vmatpush.msra.mxu0 0.0
    %5697 = vmatpush.msra.mxu0 0.0
    %5698 = vmatpush.msra.mxu0 0.0
    %5699 = vmatpush.msra.mxu0 0.0
    %5700 = vmatpush.msra.mxu0 0.0
    %5701 = vmatpush.msra.mxu0 0.0
    %5702 = vmatpush.msra.mxu0 0.0
    %v5703 = vand.u32 %v4632, 4294901760
    %5704 = vmatpush.msra.mxu0 %v5703
    %v5705 = vand.u32 %v4628, 4294901760
    %5706 = vmatpush.msra.mxu0 %v5705
    %v5707 = vand.u32 %v4649, 4294901760
    %v5708 = vsub.f32 %v4649, %v5707
    %v5709 = vand.u32 %v5708, 4294901760
    %5710 = vmatmul.f32.gmra.mxu0 %v5709
    %v5711 = vpop.f32.mrf.mxu0
    %v5712 = vadd.f32 %v5682, %v5711
    %v5713 = vand.u32 %v4652, 4294901760
    %v5714 = vsub.f32 %v4652, %v5713
    %v5715 = vand.u32 %v5714, 4294901760
    %5716 = vmatmul.f32.gmra.mxu0 %v5715
    %v5717 = vpop.f32.mrf.mxu0
    %v5718 = vadd.f32 %v5687, %v5717
    %5719 = vdwg.mxu0
    %5720 = vmatpush.msra.mxu0 0.0
    %5721 = vmatpush.msra.mxu0 0.0
    %5722 = vmatpush.msra.mxu0 0.0
    %5723 = vmatpush.msra.mxu0 0.0
    %5724 = vmatpush.msra.mxu0 0.0
    %5725 = vmatpush.msra.mxu0 0.0
    %5726 = vmatpush.msra.mxu0 0.0
    %5727 = vmatpush.msra.mxu0 0.0
    %5728 = vmatpush.msra.mxu0 0.0
    %5729 = vmatpush.msra.mxu0 0.0
    %5730 = vmatpush.msra.mxu0 0.0
    %5731 = vmatpush.msra.mxu0 0.0
    %5732 = vmatpush.msra.mxu0 0.0
    %5733 = vmatpush.msra.mxu0 0.0
    %v5734 = vand.u32 %v4632, 4294901760
    %v5735 = vsub.f32 %v4632, %v5734
    %v5736 = vand.u32 %v5735, 4294901760
    %5737 = vmatpush.msra.mxu0 %v5736
    %v5738 = vand.u32 %v4628, 4294901760
    %v5739 = vsub.f32 %v4628, %v5738
    %v5740 = vand.u32 %v5739, 4294901760
    %5741 = vmatpush.msra.mxu0 %v5740
    %v5742 = vand.u32 %v4649, 4294901760
    %5743 = vmatmul.f32.gmra.mxu0 %v5742
    %v5744 = vpop.f32.mrf.mxu0
    %v5745 = vadd.f32 %v5712, %v5744
    %v5746 = vand.u32 %v4652, 4294901760
    %5747 = vmatmul.f32.gmra.mxu0 %v5746
    %v5748 = vpop.f32.mrf.mxu0
    %v5749 = vadd.f32 %v5718, %v5748
    %5750 = vdwg.mxu0
    %5751 = vmatpush.msra.mxu0 0.0
    %5752 = vmatpush.msra.mxu0 0.0
    %5753 = vmatpush.msra.mxu0 0.0
    %5754 = vmatpush.msra.mxu0 0.0
    %5755 = vmatpush.msra.mxu0 0.0
    %5756 = vmatpush.msra.mxu0 0.0
    %5757 = vmatpush.msra.mxu0 0.0
    %5758 = vmatpush.msra.mxu0 0.0
    %5759 = vmatpush.msra.mxu0 0.0
    %5760 = vmatpush.msra.mxu0 0.0
    %5761 = vmatpush.msra.mxu0 0.0
    %5762 = vmatpush.msra.mxu0 0.0
    %5763 = vmatpush.msra.mxu0 0.0
    %5764 = vmatpush.msra.mxu0 0.0
    %v5765 = vand.u32 %v4632, 4294901760
    %5766 = vmatpush.msra.mxu0 %v5765
    %v5767 = vand.u32 %v4628, 4294901760
    %5768 = vmatpush.msra.mxu0 %v5767
    %v5769 = vand.u32 %v4649, 4294901760
    %5770 = vmatmul.f32.gmra.mxu0 %v5769
    %v5771 = vpop.f32.mrf.mxu0
    %v5772 = vadd.f32 %v5745, %v5771
    %v5773 = vand.u32 %v4652, 4294901760
    %5774 = vmatmul.f32.gmra.mxu0 %v5773
    %v5775 = vpop.f32.mrf.mxu0
    %v5776 = vadd.f32 %v5749, %v5775
    %5777 = vdwg.mxu0
    %v5778 = vand.u32 %v4625, 4294901760
    %5779 = vmatpush.msra.mxu0 %v5778
    %v5780 = vand.u32 %v4621, 4294901760
    %5781 = vmatpush.msra.mxu0 %v5780
    %v5782 = vand.u32 %v4617, 4294901760
    %5783 = vmatpush.msra.mxu0 %v5782
    %v5784 = vand.u32 %v4613, 4294901760
    %5785 = vmatpush.msra.mxu0 %v5784
    %v5786 = vand.u32 %v4609, 4294901760
    %5787 = vmatpush.msra.mxu0 %v5786
    %v5788 = vand.u32 %v4605, 4294901760
    %5789 = vmatpush.msra.mxu0 %v5788
    %v5790 = vand.u32 %v4601, 4294901760
    %5791 = vmatpush.msra.mxu0 %v5790
    %v5792 = vand.u32 %v4597, 4294901760
    %5793 = vmatpush.msra.mxu0 %v5792
    %v5794 = vand.u32 %v4593, 4294901760
    %5795 = vmatpush.msra.mxu0 %v5794
    %v5796 = vand.u32 %v4589, 4294901760
    %5797 = vmatpush.msra.mxu0 %v5796
    %v5798 = vand.u32 %v4585, 4294901760
    %5799 = vmatpush.msra.mxu0 %v5798
    %v5800 = vand.u32 %v4581, 4294901760
    %5801 = vmatpush.msra.mxu0 %v5800
    %v5802 = vand.u32 %v4577, 4294901760
    %5803 = vmatpush.msra.mxu0 %v5802
    %v5804 = vand.u32 %v4573, 4294901760
    %5805 = vmatpush.msra.mxu0 %v5804
    %v5806 = vand.u32 %v4569, 4294901760
    %5807 = vmatpush.msra.mxu0 %v5806
    %v5808 = vand.u32 %v4565, 4294901760
    %5809 = vmatpush.msra.mxu0 %v5808
    %v5810 = vand.u32 %v4559, 4294901760
    %v5811 = vsub.f32 %v4559, %v5810
    %v5812 = vand.u32 %v5811, 4294901760
    %v5813 = vsub.f32 %v5811, %v5812
    %v5814 = vand.u32 %v5813, 4294901760
    %5815 = vmatmul.f32.gmra.mxu0 %v5814
    %v5816 = vpop.f32.mrf.mxu0
    %v5817 = vadd.f32 %v4640, %v5816
    %v5818 = vand.u32 %v4561, 4294901760
    %v5819 = vsub.f32 %v4561, %v5818
    %v5820 = vand.u32 %v5819, 4294901760
    %v5821 = vsub.f32 %v5819, %v5820
    %v5822 = vand.u32 %v5821, 4294901760
    %5823 = vmatmul.f32.gmra.mxu0 %v5822
    %v5824 = vpop.f32.mrf.mxu0
    %v5825 = vadd.f32 %v4645, %v5824
    %5826 = vdwg.mxu0
    %v5827 = vand.u32 %v4625, 4294901760
    %v5828 = vsub.f32 %v4625, %v5827
    %v5829 = vand.u32 %v5828, 4294901760
    %v5830 = vsub.f32 %v5828, %v5829
    %v5831 = vand.u32 %v5830, 4294901760
    %5832 = vmatpush.msra.mxu0 %v5831
    %v5833 = vand.u32 %v4621, 4294901760
    %v5834 = vsub.f32 %v4621, %v5833
    %v5835 = vand.u32 %v5834, 4294901760
    %v5836 = vsub.f32 %v5834, %v5835
    %v5837 = vand.u32 %v5836, 4294901760
    %5838 = vmatpush.msra.mxu0 %v5837
    %v5839 = vand.u32 %v4617, 4294901760
    %v5840 = vsub.f32 %v4617, %v5839
    %v5841 = vand.u32 %v5840, 4294901760
    %v5842 = vsub.f32 %v5840, %v5841
    %v5843 = vand.u32 %v5842, 4294901760
    %5844 = vmatpush.msra.mxu0 %v5843
    %v5845 = vand.u32 %v4613, 4294901760
    %v5846 = vsub.f32 %v4613, %v5845
    %v5847 = vand.u32 %v5846, 4294901760
    %v5848 = vsub.f32 %v5846, %v5847
    %v5849 = vand.u32 %v5848, 4294901760
    %5850 = vmatpush.msra.mxu0 %v5849
    %v5851 = vand.u32 %v4609, 4294901760
    %v5852 = vsub.f32 %v4609, %v5851
    %v5853 = vand.u32 %v5852, 4294901760
    %v5854 = vsub.f32 %v5852, %v5853
    %v5855 = vand.u32 %v5854, 4294901760
    %5856 = vmatpush.msra.mxu0 %v5855
    %v5857 = vand.u32 %v4605, 4294901760
    %v5858 = vsub.f32 %v4605, %v5857
    %v5859 = vand.u32 %v5858, 4294901760
    %v5860 = vsub.f32 %v5858, %v5859
    %v5861 = vand.u32 %v5860, 4294901760
    %5862 = vmatpush.msra.mxu0 %v5861
    %v5863 = vand.u32 %v4601, 4294901760
    %v5864 = vsub.f32 %v4601, %v5863
    %v5865 = vand.u32 %v5864, 4294901760
    %v5866 = vsub.f32 %v5864, %v5865
    %v5867 = vand.u32 %v5866, 4294901760
    %5868 = vmatpush.msra.mxu0 %v5867
    %v5869 = vand.u32 %v4597, 4294901760
    %v5870 = vsub.f32 %v4597, %v5869
    %v5871 = vand.u32 %v5870, 4294901760
    %v5872 = vsub.f32 %v5870, %v5871
    %v5873 = vand.u32 %v5872, 4294901760
    %5874 = vmatpush.msra.mxu0 %v5873
    %v5875 = vand.u32 %v4593, 4294901760
    %v5876 = vsub.f32 %v4593, %v5875
    %v5877 = vand.u32 %v5876, 4294901760
    %v5878 = vsub.f32 %v5876, %v5877
    %v5879 = vand.u32 %v5878, 4294901760
    %5880 = vmatpush.msra.mxu0 %v5879
    %v5881 = vand.u32 %v4589, 4294901760
    %v5882 = vsub.f32 %v4589, %v5881
    %v5883 = vand.u32 %v5882, 4294901760
    %v5884 = vsub.f32 %v5882, %v5883
    %v5885 = vand.u32 %v5884, 4294901760
    %5886 = vmatpush.msra.mxu0 %v5885
    %v5887 = vand.u32 %v4585, 4294901760
    %v5888 = vsub.f32 %v4585, %v5887
    %v5889 = vand.u32 %v5888, 4294901760
    %v5890 = vsub.f32 %v5888, %v5889
    %v5891 = vand.u32 %v5890, 4294901760
    %5892 = vmatpush.msra.mxu0 %v5891
    %v5893 = vand.u32 %v4581, 4294901760
    %v5894 = vsub.f32 %v4581, %v5893
    %v5895 = vand.u32 %v5894, 4294901760
    %v5896 = vsub.f32 %v5894, %v5895
    %v5897 = vand.u32 %v5896, 4294901760
    %5898 = vmatpush.msra.mxu0 %v5897
    %v5899 = vand.u32 %v4577, 4294901760
    %v5900 = vsub.f32 %v4577, %v5899
    %v5901 = vand.u32 %v5900, 4294901760
    %v5902 = vsub.f32 %v5900, %v5901
    %v5903 = vand.u32 %v5902, 4294901760
    %5904 = vmatpush.msra.mxu0 %v5903
    %v5905 = vand.u32 %v4573, 4294901760
    %v5906 = vsub.f32 %v4573, %v5905
    %v5907 = vand.u32 %v5906, 4294901760
    %v5908 = vsub.f32 %v5906, %v5907
    %v5909 = vand.u32 %v5908, 4294901760
    %5910 = vmatpush.msra.mxu0 %v5909
    %v5911 = vand.u32 %v4569, 4294901760
    %v5912 = vsub.f32 %v4569, %v5911
    %v5913 = vand.u32 %v5912, 4294901760
    %v5914 = vsub.f32 %v5912, %v5913
    %v5915 = vand.u32 %v5914, 4294901760
    %5916 = vmatpush.msra.mxu0 %v5915
    %v5917 = vand.u32 %v4565, 4294901760
    %v5918 = vsub.f32 %v4565, %v5917
    %v5919 = vand.u32 %v5918, 4294901760
    %v5920 = vsub.f32 %v5918, %v5919
    %v5921 = vand.u32 %v5920, 4294901760
    %5922 = vmatpush.msra.mxu0 %v5921
    %v5923 = vand.u32 %v4559, 4294901760
    %5924 = vmatmul.f32.gmra.mxu0 %v5923
    %v5925 = vpop.f32.mrf.mxu0
    %v5926 = vadd.f32 %v5817, %v5925
    %v5927 = vand.u32 %v4561, 4294901760
    %5928 = vmatmul.f32.gmra.mxu0 %v5927
    %v5929 = vpop.f32.mrf.mxu0
    %v5930 = vadd.f32 %v5825, %v5929
    %5931 = vdwg.mxu0
    %v5932 = vand.u32 %v4625, 4294901760
    %v5933 = vsub.f32 %v4625, %v5932
    %5934 = vmatpush.msra.mxu0 %v5933
    %v5935 = vand.u32 %v4621, 4294901760
    %v5936 = vsub.f32 %v4621, %v5935
    %5937 = vmatpush.msra.mxu0 %v5936
    %v5938 = vand.u32 %v4617, 4294901760
    %v5939 = vsub.f32 %v4617, %v5938
    %5940 = vmatpush.msra.mxu0 %v5939
    %v5941 = vand.u32 %v4613, 4294901760
    %v5942 = vsub.f32 %v4613, %v5941
    %5943 = vmatpush.msra.mxu0 %v5942
    %v5944 = vand.u32 %v4609, 4294901760
    %v5945 = vsub.f32 %v4609, %v5944
    %5946 = vmatpush.msra.mxu0 %v5945
    %v5947 = vand.u32 %v4605, 4294901760
    %v5948 = vsub.f32 %v4605, %v5947
    %5949 = vmatpush.msra.mxu0 %v5948
    %v5950 = vand.u32 %v4601, 4294901760
    %v5951 = vsub.f32 %v4601, %v5950
    %5952 = vmatpush.msra.mxu0 %v5951
    %v5953 = vand.u32 %v4597, 4294901760
    %v5954 = vsub.f32 %v4597, %v5953
    %5955 = vmatpush.msra.mxu0 %v5954
    %v5956 = vand.u32 %v4593, 4294901760
    %v5957 = vsub.f32 %v4593, %v5956
    %5958 = vmatpush.msra.mxu0 %v5957
    %v5959 = vand.u32 %v4589, 4294901760
    %v5960 = vsub.f32 %v4589, %v5959
    %5961 = vmatpush.msra.mxu0 %v5960
    %v5962 = vand.u32 %v4585, 4294901760
    %v5963 = vsub.f32 %v4585, %v5962
    %5964 = vmatpush.msra.mxu0 %v5963
    %v5965 = vand.u32 %v4581, 4294901760
    %v5966 = vsub.f32 %v4581, %v5965
    %5967 = vmatpush.msra.mxu0 %v5966
    %v5968 = vand.u32 %v4577, 4294901760
    %v5969 = vsub.f32 %v4577, %v5968
    %5970 = vmatpush.msra.mxu0 %v5969
    %v5971 = vand.u32 %v4573, 4294901760
    %v5972 = vsub.f32 %v4573, %v5971
    %5973 = vmatpush.msra.mxu0 %v5972
    %v5974 = vand.u32 %v4569, 4294901760
    %v5975 = vsub.f32 %v4569, %v5974
    %5976 = vmatpush.msra.mxu0 %v5975
    %v5977 = vand.u32 %v4565, 4294901760
    %v5978 = vsub.f32 %v4565, %v5977
    %5979 = vmatpush.msra.mxu0 %v5978
    %v5980 = vand.u32 %v4559, 4294901760
    %v5981 = vsub.f32 %v4559, %v5980
    %5982 = vmatmul.f32.gmra.mxu0 %v5981
    %v5983 = vpop.f32.mrf.mxu0
    %v5984 = vadd.f32 %v5926, %v5983
    %v5985 = vand.u32 %v4561, 4294901760
    %v5986 = vsub.f32 %v4561, %v5985
    %5987 = vmatmul.f32.gmra.mxu0 %v5986
    %v5988 = vpop.f32.mrf.mxu0
    %v5989 = vadd.f32 %v5930, %v5988
    %5990 = vdwg.mxu0
    %v5991 = vand.u32 %v4625, 4294901760
    %5992 = vmatpush.msra.mxu0 %v5991
    %v5993 = vand.u32 %v4621, 4294901760
    %5994 = vmatpush.msra.mxu0 %v5993
    %v5995 = vand.u32 %v4617, 4294901760
    %5996 = vmatpush.msra.mxu0 %v5995
    %v5997 = vand.u32 %v4613, 4294901760
    %5998 = vmatpush.msra.mxu0 %v5997
    %v5999 = vand.u32 %v4609, 4294901760
    %6000 = vmatpush.msra.mxu0 %v5999
    %v6001 = vand.u32 %v4605, 4294901760
    %6002 = vmatpush.msra.mxu0 %v6001
    %v6003 = vand.u32 %v4601, 4294901760
    %6004 = vmatpush.msra.mxu0 %v6003
    %v6005 = vand.u32 %v4597, 4294901760
    %6006 = vmatpush.msra.mxu0 %v6005
    %v6007 = vand.u32 %v4593, 4294901760
    %6008 = vmatpush.msra.mxu0 %v6007
    %v6009 = vand.u32 %v4589, 4294901760
    %6010 = vmatpush.msra.mxu0 %v6009
    %v6011 = vand.u32 %v4585, 4294901760
    %6012 = vmatpush.msra.mxu0 %v6011
    %v6013 = vand.u32 %v4581, 4294901760
    %6014 = vmatpush.msra.mxu0 %v6013
    %v6015 = vand.u32 %v4577, 4294901760
    %6016 = vmatpush.msra.mxu0 %v6015
    %v6017 = vand.u32 %v4573, 4294901760
    %6018 = vmatpush.msra.mxu0 %v6017
    %v6019 = vand.u32 %v4569, 4294901760
    %6020 = vmatpush.msra.mxu0 %v6019
    %v6021 = vand.u32 %v4565, 4294901760
    %6022 = vmatpush.msra.mxu0 %v6021
    %v6023 = vand.u32 %v4559, 4294901760
    %v6024 = vsub.f32 %v4559, %v6023
    %v6025 = vand.u32 %v6024, 4294901760
    %6026 = vmatmul.f32.gmra.mxu0 %v6025
    %v6027 = vpop.f32.mrf.mxu0
    %v6028 = vadd.f32 %v5984, %v6027
    %v6029 = vand.u32 %v4561, 4294901760
    %v6030 = vsub.f32 %v4561, %v6029
    %v6031 = vand.u32 %v6030, 4294901760
    %6032 = vmatmul.f32.gmra.mxu0 %v6031
    %v6033 = vpop.f32.mrf.mxu0
    %v6034 = vadd.f32 %v5989, %v6033
    %6035 = vdwg.mxu0
    %v6036 = vand.u32 %v4625, 4294901760
    %v6037 = vsub.f32 %v4625, %v6036
    %v6038 = vand.u32 %v6037, 4294901760
    %6039 = vmatpush.msra.mxu0 %v6038
    %v6040 = vand.u32 %v4621, 4294901760
    %v6041 = vsub.f32 %v4621, %v6040
    %v6042 = vand.u32 %v6041, 4294901760
    %6043 = vmatpush.msra.mxu0 %v6042
    %v6044 = vand.u32 %v4617, 4294901760
    %v6045 = vsub.f32 %v4617, %v6044
    %v6046 = vand.u32 %v6045, 4294901760
    %6047 = vmatpush.msra.mxu0 %v6046
    %v6048 = vand.u32 %v4613, 4294901760
    %v6049 = vsub.f32 %v4613, %v6048
    %v6050 = vand.u32 %v6049, 4294901760
    %6051 = vmatpush.msra.mxu0 %v6050
    %v6052 = vand.u32 %v4609, 4294901760
    %v6053 = vsub.f32 %v4609, %v6052
    %v6054 = vand.u32 %v6053, 4294901760
    %6055 = vmatpush.msra.mxu0 %v6054
    %v6056 = vand.u32 %v4605, 4294901760
    %v6057 = vsub.f32 %v4605, %v6056
    %v6058 = vand.u32 %v6057, 4294901760
    %6059 = vmatpush.msra.mxu0 %v6058
    %v6060 = vand.u32 %v4601, 4294901760
    %v6061 = vsub.f32 %v4601, %v6060
    %v6062 = vand.u32 %v6061, 4294901760
    %6063 = vmatpush.msra.mxu0 %v6062
    %v6064 = vand.u32 %v4597, 4294901760
    %v6065 = vsub.f32 %v4597, %v6064
    %v6066 = vand.u32 %v6065, 4294901760
    %6067 = vmatpush.msra.mxu0 %v6066
    %v6068 = vand.u32 %v4593, 4294901760
    %v6069 = vsub.f32 %v4593, %v6068
    %v6070 = vand.u32 %v6069, 4294901760
    %6071 = vmatpush.msra.mxu0 %v6070
    %v6072 = vand.u32 %v4589, 4294901760
    %v6073 = vsub.f32 %v4589, %v6072
    %v6074 = vand.u32 %v6073, 4294901760
    %6075 = vmatpush.msra.mxu0 %v6074
    %v6076 = vand.u32 %v4585, 4294901760
    %v6077 = vsub.f32 %v4585, %v6076
    %v6078 = vand.u32 %v6077, 4294901760
    %6079 = vmatpush.msra.mxu0 %v6078
    %v6080 = vand.u32 %v4581, 4294901760
    %v6081 = vsub.f32 %v4581, %v6080
    %v6082 = vand.u32 %v6081, 4294901760
    %6083 = vmatpush.msra.mxu0 %v6082
    %v6084 = vand.u32 %v4577, 4294901760
    %v6085 = vsub.f32 %v4577, %v6084
    %v6086 = vand.u32 %v6085, 4294901760
    %6087 = vmatpush.msra.mxu0 %v6086
    %v6088 = vand.u32 %v4573, 4294901760
    %v6089 = vsub.f32 %v4573, %v6088
    %v6090 = vand.u32 %v6089, 4294901760
    %6091 = vmatpush.msra.mxu0 %v6090
    %v6092 = vand.u32 %v4569, 4294901760
    %v6093 = vsub.f32 %v4569, %v6092
    %v6094 = vand.u32 %v6093, 4294901760
    %6095 = vmatpush.msra.mxu0 %v6094
    %v6096 = vand.u32 %v4565, 4294901760
    %v6097 = vsub.f32 %v4565, %v6096
    %v6098 = vand.u32 %v6097, 4294901760
    %6099 = vmatpush.msra.mxu0 %v6098
    %v6100 = vand.u32 %v4559, 4294901760
    %6101 = vmatmul.f32.gmra.mxu0 %v6100
    %v6102 = vpop.f32.mrf.mxu0
    %v6103 = vadd.f32 %v6028, %v6102
    %v6104 = vand.u32 %v4561, 4294901760
    %6105 = vmatmul.f32.gmra.mxu0 %v6104
    %v6106 = vpop.f32.mrf.mxu0
    %v6107 = vadd.f32 %v6034, %v6106
    %6108 = vdwg.mxu0
    %v6109 = vand.u32 %v4625, 4294901760
    %6110 = vmatpush.msra.mxu0 %v6109
    %v6111 = vand.u32 %v4621, 4294901760
    %6112 = vmatpush.msra.mxu0 %v6111
    %v6113 = vand.u32 %v4617, 4294901760
    %6114 = vmatpush.msra.mxu0 %v6113
    %v6115 = vand.u32 %v4613, 4294901760
    %6116 = vmatpush.msra.mxu0 %v6115
    %v6117 = vand.u32 %v4609, 4294901760
    %6118 = vmatpush.msra.mxu0 %v6117
    %v6119 = vand.u32 %v4605, 4294901760
    %6120 = vmatpush.msra.mxu0 %v6119
    %v6121 = vand.u32 %v4601, 4294901760
    %6122 = vmatpush.msra.mxu0 %v6121
    %v6123 = vand.u32 %v4597, 4294901760
    %6124 = vmatpush.msra.mxu0 %v6123
    %v6125 = vand.u32 %v4593, 4294901760
    %6126 = vmatpush.msra.mxu0 %v6125
    %v6127 = vand.u32 %v4589, 4294901760
    %6128 = vmatpush.msra.mxu0 %v6127
    %v6129 = vand.u32 %v4585, 4294901760
    %6130 = vmatpush.msra.mxu0 %v6129
    %v6131 = vand.u32 %v4581, 4294901760
    %6132 = vmatpush.msra.mxu0 %v6131
    %v6133 = vand.u32 %v4577, 4294901760
    %6134 = vmatpush.msra.mxu0 %v6133
    %v6135 = vand.u32 %v4573, 4294901760
    %6136 = vmatpush.msra.mxu0 %v6135
    %v6137 = vand.u32 %v4569, 4294901760
    %6138 = vmatpush.msra.mxu0 %v6137
    %v6139 = vand.u32 %v4565, 4294901760
    %6140 = vmatpush.msra.mxu0 %v6139
    %v6141 = vand.u32 %v4559, 4294901760
    %6142 = vmatmul.f32.gmra.mxu0 %v6141
    %v6143 = vpop.f32.mrf.mxu0
    %v6144 = vadd.f32 %v6103, %v6143
    %v6145 = vand.u32 %v4561, 4294901760
    %6146 = vmatmul.f32.gmra.mxu0 %v6145
    %v6147 = vpop.f32.mrf.mxu0
    %v6148 = vadd.f32 %v6107, %v6147
    %6149 = vdwg.mxu0
    %6150 = vmatpush.msra.mxu0 0.0
    %6151 = vmatpush.msra.mxu0 0.0
    %6152 = vmatpush.msra.mxu0 0.0
    %6153 = vmatpush.msra.mxu0 0.0
    %6154 = vmatpush.msra.mxu0 0.0
    %6155 = vmatpush.msra.mxu0 0.0
    %6156 = vmatpush.msra.mxu0 0.0
    %6157 = vmatpush.msra.mxu0 0.0
    %6158 = vmatpush.msra.mxu0 0.0
    %6159 = vmatpush.msra.mxu0 0.0
    %6160 = vmatpush.msra.mxu0 0.0
    %6161 = vmatpush.msra.mxu0 0.0
    %6162 = vmatpush.msra.mxu0 0.0
    %6163 = vmatpush.msra.mxu0 0.0
    %v6164 = vand.u32 %v4633, 4294901760
    %6165 = vmatpush.msra.mxu0 %v6164
    %v6166 = vand.u32 %v4629, 4294901760
    %6167 = vmatpush.msra.mxu0 %v6166
    %v6168 = vand.u32 %v4649, 4294901760
    %v6169 = vsub.f32 %v4649, %v6168
    %v6170 = vand.u32 %v6169, 4294901760
    %v6171 = vsub.f32 %v6169, %v6170
    %v6172 = vand.u32 %v6171, 4294901760
    %6173 = vmatmul.f32.gmra.mxu0 %v6172
    %v6174 = vpop.f32.mrf.mxu0
    %v6175 = vadd.f32 %v6144, %v6174
    %v6176 = vand.u32 %v4652, 4294901760
    %v6177 = vsub.f32 %v4652, %v6176
    %v6178 = vand.u32 %v6177, 4294901760
    %v6179 = vsub.f32 %v6177, %v6178
    %v6180 = vand.u32 %v6179, 4294901760
    %6181 = vmatmul.f32.gmra.mxu0 %v6180
    %v6182 = vpop.f32.mrf.mxu0
    %v6183 = vadd.f32 %v6148, %v6182
    %6184 = vdwg.mxu0
    %6185 = vmatpush.msra.mxu0 0.0
    %6186 = vmatpush.msra.mxu0 0.0
    %6187 = vmatpush.msra.mxu0 0.0
    %6188 = vmatpush.msra.mxu0 0.0
    %6189 = vmatpush.msra.mxu0 0.0
    %6190 = vmatpush.msra.mxu0 0.0
    %6191 = vmatpush.msra.mxu0 0.0
    %6192 = vmatpush.msra.mxu0 0.0
    %6193 = vmatpush.msra.mxu0 0.0
    %6194 = vmatpush.msra.mxu0 0.0
    %6195 = vmatpush.msra.mxu0 0.0
    %6196 = vmatpush.msra.mxu0 0.0
    %6197 = vmatpush.msra.mxu0 0.0
    %6198 = vmatpush.msra.mxu0 0.0
    %v6199 = vand.u32 %v4633, 4294901760
    %v6200 = vsub.f32 %v4633, %v6199
    %v6201 = vand.u32 %v6200, 4294901760
    %v6202 = vsub.f32 %v6200, %v6201
    %v6203 = vand.u32 %v6202, 4294901760
    %6204 = vmatpush.msra.mxu0 %v6203
    %v6205 = vand.u32 %v4629, 4294901760
    %v6206 = vsub.f32 %v4629, %v6205
    %v6207 = vand.u32 %v6206, 4294901760
    %v6208 = vsub.f32 %v6206, %v6207
    %v6209 = vand.u32 %v6208, 4294901760
    %6210 = vmatpush.msra.mxu0 %v6209
    %v6211 = vand.u32 %v4649, 4294901760
    %6212 = vmatmul.f32.gmra.mxu0 %v6211
    %v6213 = vpop.f32.mrf.mxu0
    %v6214 = vadd.f32 %v6175, %v6213
    %v6215 = vand.u32 %v4652, 4294901760
    %6216 = vmatmul.f32.gmra.mxu0 %v6215
    %v6217 = vpop.f32.mrf.mxu0
    %v6218 = vadd.f32 %v6183, %v6217
    %6219 = vdwg.mxu0
    %6220 = vmatpush.msra.mxu0 0.0
    %6221 = vmatpush.msra.mxu0 0.0
    %6222 = vmatpush.msra.mxu0 0.0
    %6223 = vmatpush.msra.mxu0 0.0
    %6224 = vmatpush.msra.mxu0 0.0
    %6225 = vmatpush.msra.mxu0 0.0
    %6226 = vmatpush.msra.mxu0 0.0
    %6227 = vmatpush.msra.mxu0 0.0
    %6228 = vmatpush.msra.mxu0 0.0
    %6229 = vmatpush.msra.mxu0 0.0
    %6230 = vmatpush.msra.mxu0 0.0
    %6231 = vmatpush.msra.mxu0 0.0
    %6232 = vmatpush.msra.mxu0 0.0
    %6233 = vmatpush.msra.mxu0 0.0
    %v6234 = vand.u32 %v4633, 4294901760
    %v6235 = vsub.f32 %v4633, %v6234
    %6236 = vmatpush.msra.mxu0 %v6235
    %v6237 = vand.u32 %v4629, 4294901760
    %v6238 = vsub.f32 %v4629, %v6237
    %6239 = vmatpush.msra.mxu0 %v6238
    %v6240 = vand.u32 %v4649, 4294901760
    %v6241 = vsub.f32 %v4649, %v6240
    %6242 = vmatmul.f32.gmra.mxu0 %v6241
    %v6243 = vpop.f32.mrf.mxu0
    %v6244 = vadd.f32 %v6214, %v6243
    %v6245 = vand.u32 %v4652, 4294901760
    %v6246 = vsub.f32 %v4652, %v6245
    %6247 = vmatmul.f32.gmra.mxu0 %v6246
    %v6248 = vpop.f32.mrf.mxu0
    %v6249 = vadd.f32 %v6218, %v6248
    %6250 = vdwg.mxu0
    %6251 = vmatpush.msra.mxu0 0.0
    %6252 = vmatpush.msra.mxu0 0.0
    %6253 = vmatpush.msra.mxu0 0.0
    %6254 = vmatpush.msra.mxu0 0.0
    %6255 = vmatpush.msra.mxu0 0.0
    %6256 = vmatpush.msra.mxu0 0.0
    %6257 = vmatpush.msra.mxu0 0.0
    %6258 = vmatpush.msra.mxu0 0.0
    %6259 = vmatpush.msra.mxu0 0.0
    %6260 = vmatpush.msra.mxu0 0.0
    %6261 = vmatpush.msra.mxu0 0.0
    %6262 = vmatpush.msra.mxu0 0.0
    %6263 = vmatpush.msra.mxu0 0.0
    %6264 = vmatpush.msra.mxu0 0.0
    %v6265 = vand.u32 %v4633, 4294901760
    %6266 = vmatpush.msra.mxu0 %v6265
    %v6267 = vand.u32 %v4629, 4294901760
    %6268 = vmatpush.msra.mxu0 %v6267
    %v6269 = vand.u32 %v4649, 4294901760
    %v6270 = vsub.f32 %v4649, %v6269
    %v6271 = vand.u32 %v6270, 4294901760
    %6272 = vmatmul.f32.gmra.mxu0 %v6271
    %v6273 = vpop.f32.mrf.mxu0
    %v6274 = vadd.f32 %v6244, %v6273
    %v6275 = vand.u32 %v4652, 4294901760
    %v6276 = vsub.f32 %v4652, %v6275
    %v6277 = vand.u32 %v6276, 4294901760
    %6278 = vmatmul.f32.gmra.mxu0 %v6277
    %v6279 = vpop.f32.mrf.mxu0
    %v6280 = vadd.f32 %v6249, %v6279
    %6281 = vdwg.mxu0
    %6282 = vmatpush.msra.mxu0 0.0
    %6283 = vmatpush.msra.mxu0 0.0
    %6284 = vmatpush.msra.mxu0 0.0
    %6285 = vmatpush.msra.mxu0 0.0
    %6286 = vmatpush.msra.mxu0 0.0
    %6287 = vmatpush.msra.mxu0 0.0
    %6288 = vmatpush.msra.mxu0 0.0
    %6289 = vmatpush.msra.mxu0 0.0
    %6290 = vmatpush.msra.mxu0 0.0
    %6291 = vmatpush.msra.mxu0 0.0
    %6292 = vmatpush.msra.mxu0 0.0
    %6293 = vmatpush.msra.mxu0 0.0
    %6294 = vmatpush.msra.mxu0 0.0
    %6295 = vmatpush.msra.mxu0 0.0
    %v6296 = vand.u32 %v4633, 4294901760
    %v6297 = vsub.f32 %v4633, %v6296
    %v6298 = vand.u32 %v6297, 4294901760
    %6299 = vmatpush.msra.mxu0 %v6298
    %v6300 = vand.u32 %v4629, 4294901760
    %v6301 = vsub.f32 %v4629, %v6300
    %v6302 = vand.u32 %v6301, 4294901760
    %6303 = vmatpush.msra.mxu0 %v6302
    %v6304 = vand.u32 %v4649, 4294901760
    %6305 = vmatmul.f32.gmra.mxu0 %v6304
    %v6306 = vpop.f32.mrf.mxu0
    %v6307 = vadd.f32 %v6274, %v6306
    %v6308 = vand.u32 %v4652, 4294901760
    %6309 = vmatmul.f32.gmra.mxu0 %v6308
    %v6310 = vpop.f32.mrf.mxu0
    %v6311 = vadd.f32 %v6280, %v6310
    %6312 = vdwg.mxu0
    %6313 = vmatpush.msra.mxu0 0.0
    %6314 = vmatpush.msra.mxu0 0.0
    %6315 = vmatpush.msra.mxu0 0.0
    %6316 = vmatpush.msra.mxu0 0.0
    %6317 = vmatpush.msra.mxu0 0.0
    %6318 = vmatpush.msra.mxu0 0.0
    %6319 = vmatpush.msra.mxu0 0.0
    %6320 = vmatpush.msra.mxu0 0.0
    %6321 = vmatpush.msra.mxu0 0.0
    %6322 = vmatpush.msra.mxu0 0.0
    %6323 = vmatpush.msra.mxu0 0.0
    %6324 = vmatpush.msra.mxu0 0.0
    %6325 = vmatpush.msra.mxu0 0.0
    %6326 = vmatpush.msra.mxu0 0.0
    %v6327 = vand.u32 %v4633, 4294901760
    %6328 = vmatpush.msra.mxu0 %v6327
    %v6329 = vand.u32 %v4629, 4294901760
    %6330 = vmatpush.msra.mxu0 %v6329
    %v6331 = vand.u32 %v4649, 4294901760
    %6332 = vmatmul.f32.gmra.mxu0 %v6331
    %v6333 = vpop.f32.mrf.mxu0
    %v6334 = vadd.f32 %v6307, %v6333
    %v6335 = vand.u32 %v4652, 4294901760
    %6336 = vmatmul.f32.gmra.mxu0 %v6335
    %v6337 = vpop.f32.mrf.mxu0
    %v6338 = vadd.f32 %v6311, %v6337
    %6339 = vdwg.mxu0
    %v6340 = vand.u32 %v4626, 4294901760
    %6341 = vmatpush.msra.mxu0 %v6340
    %v6342 = vand.u32 %v4622, 4294901760
    %6343 = vmatpush.msra.mxu0 %v6342
    %v6344 = vand.u32 %v4618, 4294901760
    %6345 = vmatpush.msra.mxu0 %v6344
    %v6346 = vand.u32 %v4614, 4294901760
    %6347 = vmatpush.msra.mxu0 %v6346
    %v6348 = vand.u32 %v4610, 4294901760
    %6349 = vmatpush.msra.mxu0 %v6348
    %v6350 = vand.u32 %v4606, 4294901760
    %6351 = vmatpush.msra.mxu0 %v6350
    %v6352 = vand.u32 %v4602, 4294901760
    %6353 = vmatpush.msra.mxu0 %v6352
    %v6354 = vand.u32 %v4598, 4294901760
    %6355 = vmatpush.msra.mxu0 %v6354
    %v6356 = vand.u32 %v4594, 4294901760
    %6357 = vmatpush.msra.mxu0 %v6356
    %v6358 = vand.u32 %v4590, 4294901760
    %6359 = vmatpush.msra.mxu0 %v6358
    %v6360 = vand.u32 %v4586, 4294901760
    %6361 = vmatpush.msra.mxu0 %v6360
    %v6362 = vand.u32 %v4582, 4294901760
    %6363 = vmatpush.msra.mxu0 %v6362
    %v6364 = vand.u32 %v4578, 4294901760
    %6365 = vmatpush.msra.mxu0 %v6364
    %v6366 = vand.u32 %v4574, 4294901760
    %6367 = vmatpush.msra.mxu0 %v6366
    %v6368 = vand.u32 %v4570, 4294901760
    %6369 = vmatpush.msra.mxu0 %v6368
    %v6370 = vand.u32 %v4566, 4294901760
    %6371 = vmatpush.msra.mxu0 %v6370
    %v6372 = vand.u32 %v4559, 4294901760
    %v6373 = vsub.f32 %v4559, %v6372
    %v6374 = vand.u32 %v6373, 4294901760
    %v6375 = vsub.f32 %v6373, %v6374
    %v6376 = vand.u32 %v6375, 4294901760
    %6377 = vmatmul.f32.gmra.mxu0 %v6376
    %v6378 = vpop.f32.mrf.mxu0
    %v6379 = vadd.f32 %v4640, %v6378
    %v6380 = vand.u32 %v4561, 4294901760
    %v6381 = vsub.f32 %v4561, %v6380
    %v6382 = vand.u32 %v6381, 4294901760
    %v6383 = vsub.f32 %v6381, %v6382
    %v6384 = vand.u32 %v6383, 4294901760
    %6385 = vmatmul.f32.gmra.mxu0 %v6384
    %v6386 = vpop.f32.mrf.mxu0
    %v6387 = vadd.f32 %v4645, %v6386
    %6388 = vdwg.mxu0
    %v6389 = vand.u32 %v4626, 4294901760
    %v6390 = vsub.f32 %v4626, %v6389
    %v6391 = vand.u32 %v6390, 4294901760
    %v6392 = vsub.f32 %v6390, %v6391
    %v6393 = vand.u32 %v6392, 4294901760
    %6394 = vmatpush.msra.mxu0 %v6393
    %v6395 = vand.u32 %v4622, 4294901760
    %v6396 = vsub.f32 %v4622, %v6395
    %v6397 = vand.u32 %v6396, 4294901760
    %v6398 = vsub.f32 %v6396, %v6397
    %v6399 = vand.u32 %v6398, 4294901760
    %6400 = vmatpush.msra.mxu0 %v6399
    %v6401 = vand.u32 %v4618, 4294901760
    %v6402 = vsub.f32 %v4618, %v6401
    %v6403 = vand.u32 %v6402, 4294901760
    %v6404 = vsub.f32 %v6402, %v6403
    %v6405 = vand.u32 %v6404, 4294901760
    %6406 = vmatpush.msra.mxu0 %v6405
    %v6407 = vand.u32 %v4614, 4294901760
    %v6408 = vsub.f32 %v4614, %v6407
    %v6409 = vand.u32 %v6408, 4294901760
    %v6410 = vsub.f32 %v6408, %v6409
    %v6411 = vand.u32 %v6410, 4294901760
    %6412 = vmatpush.msra.mxu0 %v6411
    %v6413 = vand.u32 %v4610, 4294901760
    %v6414 = vsub.f32 %v4610, %v6413
    %v6415 = vand.u32 %v6414, 4294901760
    %v6416 = vsub.f32 %v6414, %v6415
    %v6417 = vand.u32 %v6416, 4294901760
    %6418 = vmatpush.msra.mxu0 %v6417
    %v6419 = vand.u32 %v4606, 4294901760
    %v6420 = vsub.f32 %v4606, %v6419
    %v6421 = vand.u32 %v6420, 4294901760
    %v6422 = vsub.f32 %v6420, %v6421
    %v6423 = vand.u32 %v6422, 4294901760
    %6424 = vmatpush.msra.mxu0 %v6423
    %v6425 = vand.u32 %v4602, 4294901760
    %v6426 = vsub.f32 %v4602, %v6425
    %v6427 = vand.u32 %v6426, 4294901760
    %v6428 = vsub.f32 %v6426, %v6427
    %v6429 = vand.u32 %v6428, 4294901760
    %6430 = vmatpush.msra.mxu0 %v6429
    %v6431 = vand.u32 %v4598, 4294901760
    %v6432 = vsub.f32 %v4598, %v6431
    %v6433 = vand.u32 %v6432, 4294901760
    %v6434 = vsub.f32 %v6432, %v6433
    %v6435 = vand.u32 %v6434, 4294901760
    %6436 = vmatpush.msra.mxu0 %v6435
    %v6437 = vand.u32 %v4594, 4294901760
    %v6438 = vsub.f32 %v4594, %v6437
    %v6439 = vand.u32 %v6438, 4294901760
    %v6440 = vsub.f32 %v6438, %v6439
    %v6441 = vand.u32 %v6440, 4294901760
    %6442 = vmatpush.msra.mxu0 %v6441
    %v6443 = vand.u32 %v4590, 4294901760
    %v6444 = vsub.f32 %v4590, %v6443
    %v6445 = vand.u32 %v6444, 4294901760
    %v6446 = vsub.f32 %v6444, %v6445
    %v6447 = vand.u32 %v6446, 4294901760
    %6448 = vmatpush.msra.mxu0 %v6447
    %v6449 = vand.u32 %v4586, 4294901760
    %v6450 = vsub.f32 %v4586, %v6449
    %v6451 = vand.u32 %v6450, 4294901760
    %v6452 = vsub.f32 %v6450, %v6451
    %v6453 = vand.u32 %v6452, 4294901760
    %6454 = vmatpush.msra.mxu0 %v6453
    %v6455 = vand.u32 %v4582, 4294901760
    %v6456 = vsub.f32 %v4582, %v6455
    %v6457 = vand.u32 %v6456, 4294901760
    %v6458 = vsub.f32 %v6456, %v6457
    %v6459 = vand.u32 %v6458, 4294901760
    %6460 = vmatpush.msra.mxu0 %v6459
    %v6461 = vand.u32 %v4578, 4294901760
    %v6462 = vsub.f32 %v4578, %v6461
    %v6463 = vand.u32 %v6462, 4294901760
    %v6464 = vsub.f32 %v6462, %v6463
    %v6465 = vand.u32 %v6464, 4294901760
    %6466 = vmatpush.msra.mxu0 %v6465
    %v6467 = vand.u32 %v4574, 4294901760
    %v6468 = vsub.f32 %v4574, %v6467
    %v6469 = vand.u32 %v6468, 4294901760
    %v6470 = vsub.f32 %v6468, %v6469
    %v6471 = vand.u32 %v6470, 4294901760
    %6472 = vmatpush.msra.mxu0 %v6471
    %v6473 = vand.u32 %v4570, 4294901760
    %v6474 = vsub.f32 %v4570, %v6473
    %v6475 = vand.u32 %v6474, 4294901760
    %v6476 = vsub.f32 %v6474, %v6475
    %v6477 = vand.u32 %v6476, 4294901760
    %6478 = vmatpush.msra.mxu0 %v6477
    %v6479 = vand.u32 %v4566, 4294901760
    %v6480 = vsub.f32 %v4566, %v6479
    %v6481 = vand.u32 %v6480, 4294901760
    %v6482 = vsub.f32 %v6480, %v6481
    %v6483 = vand.u32 %v6482, 4294901760
    %6484 = vmatpush.msra.mxu0 %v6483
    %v6485 = vand.u32 %v4559, 4294901760
    %6486 = vmatmul.f32.gmra.mxu0 %v6485
    %v6487 = vpop.f32.mrf.mxu0
    %v6488 = vadd.f32 %v6379, %v6487
    %v6489 = vand.u32 %v4561, 4294901760
    %6490 = vmatmul.f32.gmra.mxu0 %v6489
    %v6491 = vpop.f32.mrf.mxu0
    %v6492 = vadd.f32 %v6387, %v6491
    %6493 = vdwg.mxu0
    %v6494 = vand.u32 %v4626, 4294901760
    %v6495 = vsub.f32 %v4626, %v6494
    %6496 = vmatpush.msra.mxu0 %v6495
    %v6497 = vand.u32 %v4622, 4294901760
    %v6498 = vsub.f32 %v4622, %v6497
    %6499 = vmatpush.msra.mxu0 %v6498
    %v6500 = vand.u32 %v4618, 4294901760
    %v6501 = vsub.f32 %v4618, %v6500
    %6502 = vmatpush.msra.mxu0 %v6501
    %v6503 = vand.u32 %v4614, 4294901760
    %v6504 = vsub.f32 %v4614, %v6503
    %6505 = vmatpush.msra.mxu0 %v6504
    %v6506 = vand.u32 %v4610, 4294901760
    %v6507 = vsub.f32 %v4610, %v6506
    %6508 = vmatpush.msra.mxu0 %v6507
    %v6509 = vand.u32 %v4606, 4294901760
    %v6510 = vsub.f32 %v4606, %v6509
    %6511 = vmatpush.msra.mxu0 %v6510
    %v6512 = vand.u32 %v4602, 4294901760
    %v6513 = vsub.f32 %v4602, %v6512
    %6514 = vmatpush.msra.mxu0 %v6513
    %v6515 = vand.u32 %v4598, 4294901760
    %v6516 = vsub.f32 %v4598, %v6515
    %6517 = vmatpush.msra.mxu0 %v6516
    %v6518 = vand.u32 %v4594, 4294901760
    %v6519 = vsub.f32 %v4594, %v6518
    %6520 = vmatpush.msra.mxu0 %v6519
    %v6521 = vand.u32 %v4590, 4294901760
    %v6522 = vsub.f32 %v4590, %v6521
    %6523 = vmatpush.msra.mxu0 %v6522
    %v6524 = vand.u32 %v4586, 4294901760
    %v6525 = vsub.f32 %v4586, %v6524
    %6526 = vmatpush.msra.mxu0 %v6525
    %v6527 = vand.u32 %v4582, 4294901760
    %v6528 = vsub.f32 %v4582, %v6527
    %6529 = vmatpush.msra.mxu0 %v6528
    %v6530 = vand.u32 %v4578, 4294901760
    %v6531 = vsub.f32 %v4578, %v6530
    %6532 = vmatpush.msra.mxu0 %v6531
    %v6533 = vand.u32 %v4574, 4294901760
    %v6534 = vsub.f32 %v4574, %v6533
    %6535 = vmatpush.msra.mxu0 %v6534
    %v6536 = vand.u32 %v4570, 4294901760
    %v6537 = vsub.f32 %v4570, %v6536
    %6538 = vmatpush.msra.mxu0 %v6537
    %v6539 = vand.u32 %v4566, 4294901760
    %v6540 = vsub.f32 %v4566, %v6539
    %6541 = vmatpush.msra.mxu0 %v6540
    %v6542 = vand.u32 %v4559, 4294901760
    %v6543 = vsub.f32 %v4559, %v6542
    %6544 = vmatmul.f32.gmra.mxu0 %v6543
    %v6545 = vpop.f32.mrf.mxu0
    %v6546 = vadd.f32 %v6488, %v6545
    %v6547 = vand.u32 %v4561, 4294901760
    %v6548 = vsub.f32 %v4561, %v6547
    %6549 = vmatmul.f32.gmra.mxu0 %v6548
    %v6550 = vpop.f32.mrf.mxu0
    %v6551 = vadd.f32 %v6492, %v6550
    %6552 = vdwg.mxu0
    %v6553 = vand.u32 %v4626, 4294901760
    %6554 = vmatpush.msra.mxu0 %v6553
    %v6555 = vand.u32 %v4622, 4294901760
    %6556 = vmatpush.msra.mxu0 %v6555
    %v6557 = vand.u32 %v4618, 4294901760
    %6558 = vmatpush.msra.mxu0 %v6557
    %v6559 = vand.u32 %v4614, 4294901760
    %6560 = vmatpush.msra.mxu0 %v6559
    %v6561 = vand.u32 %v4610, 4294901760
    %6562 = vmatpush.msra.mxu0 %v6561
    %v6563 = vand.u32 %v4606, 4294901760
    %6564 = vmatpush.msra.mxu0 %v6563
    %v6565 = vand.u32 %v4602, 4294901760
    %6566 = vmatpush.msra.mxu0 %v6565
    %v6567 = vand.u32 %v4598, 4294901760
    %6568 = vmatpush.msra.mxu0 %v6567
    %v6569 = vand.u32 %v4594, 4294901760
    %6570 = vmatpush.msra.mxu0 %v6569
    %v6571 = vand.u32 %v4590, 4294901760
    %6572 = vmatpush.msra.mxu0 %v6571
    %v6573 = vand.u32 %v4586, 4294901760
    %6574 = vmatpush.msra.mxu0 %v6573
    %v6575 = vand.u32 %v4582, 4294901760
    %6576 = vmatpush.msra.mxu0 %v6575
    %v6577 = vand.u32 %v4578, 4294901760
    %6578 = vmatpush.msra.mxu0 %v6577
    %v6579 = vand.u32 %v4574, 4294901760
    %6580 = vmatpush.msra.mxu0 %v6579
    %v6581 = vand.u32 %v4570, 4294901760
    %6582 = vmatpush.msra.mxu0 %v6581
    %v6583 = vand.u32 %v4566, 4294901760
    %6584 = vmatpush.msra.mxu0 %v6583
    %v6585 = vand.u32 %v4559, 4294901760
    %v6586 = vsub.f32 %v4559, %v6585
    %v6587 = vand.u32 %v6586, 4294901760
    %6588 = vmatmul.f32.gmra.mxu0 %v6587
    %v6589 = vpop.f32.mrf.mxu0
    %v6590 = vadd.f32 %v6546, %v6589
    %v6591 = vand.u32 %v4561, 4294901760
    %v6592 = vsub.f32 %v4561, %v6591
    %v6593 = vand.u32 %v6592, 4294901760
    %6594 = vmatmul.f32.gmra.mxu0 %v6593
    %v6595 = vpop.f32.mrf.mxu0
    %v6596 = vadd.f32 %v6551, %v6595
    %6597 = vdwg.mxu0
    %v6598 = vand.u32 %v4626, 4294901760
    %v6599 = vsub.f32 %v4626, %v6598
    %v6600 = vand.u32 %v6599, 4294901760
    %6601 = vmatpush.msra.mxu0 %v6600
    %v6602 = vand.u32 %v4622, 4294901760
    %v6603 = vsub.f32 %v4622, %v6602
    %v6604 = vand.u32 %v6603, 4294901760
    %6605 = vmatpush.msra.mxu0 %v6604
    %v6606 = vand.u32 %v4618, 4294901760
    %v6607 = vsub.f32 %v4618, %v6606
    %v6608 = vand.u32 %v6607, 4294901760
    %6609 = vmatpush.msra.mxu0 %v6608
    %v6610 = vand.u32 %v4614, 4294901760
    %v6611 = vsub.f32 %v4614, %v6610
    %v6612 = vand.u32 %v6611, 4294901760
    %6613 = vmatpush.msra.mxu0 %v6612
    %v6614 = vand.u32 %v4610, 4294901760
    %v6615 = vsub.f32 %v4610, %v6614
    %v6616 = vand.u32 %v6615, 4294901760
    %6617 = vmatpush.msra.mxu0 %v6616
    %v6618 = vand.u32 %v4606, 4294901760
    %v6619 = vsub.f32 %v4606, %v6618
    %v6620 = vand.u32 %v6619, 4294901760
    %6621 = vmatpush.msra.mxu0 %v6620
    %v6622 = vand.u32 %v4602, 4294901760
    %v6623 = vsub.f32 %v4602, %v6622
    %v6624 = vand.u32 %v6623, 4294901760
    %6625 = vmatpush.msra.mxu0 %v6624
    %v6626 = vand.u32 %v4598, 4294901760
    %v6627 = vsub.f32 %v4598, %v6626
    %v6628 = vand.u32 %v6627, 4294901760
    %6629 = vmatpush.msra.mxu0 %v6628
    %v6630 = vand.u32 %v4594, 4294901760
    %v6631 = vsub.f32 %v4594, %v6630
    %v6632 = vand.u32 %v6631, 4294901760
    %6633 = vmatpush.msra.mxu0 %v6632
    %v6634 = vand.u32 %v4590, 4294901760
    %v6635 = vsub.f32 %v4590, %v6634
    %v6636 = vand.u32 %v6635, 4294901760
    %6637 = vmatpush.msra.mxu0 %v6636
    %v6638 = vand.u32 %v4586, 4294901760
    %v6639 = vsub.f32 %v4586, %v6638
    %v6640 = vand.u32 %v6639, 4294901760
    %6641 = vmatpush.msra.mxu0 %v6640
    %v6642 = vand.u32 %v4582, 4294901760
    %v6643 = vsub.f32 %v4582, %v6642
    %v6644 = vand.u32 %v6643, 4294901760
    %6645 = vmatpush.msra.mxu0 %v6644
    %v6646 = vand.u32 %v4578, 4294901760
    %v6647 = vsub.f32 %v4578, %v6646
    %v6648 = vand.u32 %v6647, 4294901760
    %6649 = vmatpush.msra.mxu0 %v6648
    %v6650 = vand.u32 %v4574, 4294901760
    %v6651 = vsub.f32 %v4574, %v6650
    %v6652 = vand.u32 %v6651, 4294901760
    %6653 = vmatpush.msra.mxu0 %v6652
    %v6654 = vand.u32 %v4570, 4294901760
    %v6655 = vsub.f32 %v4570, %v6654
    %v6656 = vand.u32 %v6655, 4294901760
    %6657 = vmatpush.msra.mxu0 %v6656
    %v6658 = vand.u32 %v4566, 4294901760
    %v6659 = vsub.f32 %v4566, %v6658
    %v6660 = vand.u32 %v6659, 4294901760
    %6661 = vmatpush.msra.mxu0 %v6660
    %v6662 = vand.u32 %v4559, 4294901760
    %6663 = vmatmul.f32.gmra.mxu0 %v6662
    %v6664 = vpop.f32.mrf.mxu0
    %v6665 = vadd.f32 %v6590, %v6664
    %v6666 = vand.u32 %v4561, 4294901760
    %6667 = vmatmul.f32.gmra.mxu0 %v6666
    %v6668 = vpop.f32.mrf.mxu0
    %v6669 = vadd.f32 %v6596, %v6668
    %6670 = vdwg.mxu0
    %v6671 = vand.u32 %v4626, 4294901760
    %6672 = vmatpush.msra.mxu0 %v6671
    %v6673 = vand.u32 %v4622, 4294901760
    %6674 = vmatpush.msra.mxu0 %v6673
    %v6675 = vand.u32 %v4618, 4294901760
    %6676 = vmatpush.msra.mxu0 %v6675
    %v6677 = vand.u32 %v4614, 4294901760
    %6678 = vmatpush.msra.mxu0 %v6677
    %v6679 = vand.u32 %v4610, 4294901760
    %6680 = vmatpush.msra.mxu0 %v6679
    %v6681 = vand.u32 %v4606, 4294901760
    %6682 = vmatpush.msra.mxu0 %v6681
    %v6683 = vand.u32 %v4602, 4294901760
    %6684 = vmatpush.msra.mxu0 %v6683
    %v6685 = vand.u32 %v4598, 4294901760
    %6686 = vmatpush.msra.mxu0 %v6685
    %v6687 = vand.u32 %v4594, 4294901760
    %6688 = vmatpush.msra.mxu0 %v6687
    %v6689 = vand.u32 %v4590, 4294901760
    %6690 = vmatpush.msra.mxu0 %v6689
    %v6691 = vand.u32 %v4586, 4294901760
    %6692 = vmatpush.msra.mxu0 %v6691
    %v6693 = vand.u32 %v4582, 4294901760
    %6694 = vmatpush.msra.mxu0 %v6693
    %v6695 = vand.u32 %v4578, 4294901760
    %6696 = vmatpush.msra.mxu0 %v6695
    %v6697 = vand.u32 %v4574, 4294901760
    %6698 = vmatpush.msra.mxu0 %v6697
    %v6699 = vand.u32 %v4570, 4294901760
    %6700 = vmatpush.msra.mxu0 %v6699
    %v6701 = vand.u32 %v4566, 4294901760
    %6702 = vmatpush.msra.mxu0 %v6701
    %v6703 = vand.u32 %v4559, 4294901760
    %6704 = vmatmul.f32.gmra.mxu0 %v6703
    %v6705 = vpop.f32.mrf.mxu0
    %v6706 = vadd.f32 %v6665, %v6705
    %v6707 = vand.u32 %v4561, 4294901760
    %6708 = vmatmul.f32.gmra.mxu0 %v6707
    %v6709 = vpop.f32.mrf.mxu0
    %v6710 = vadd.f32 %v6669, %v6709
    %6711 = vdwg.mxu0
    %6712 = vmatpush.msra.mxu0 0.0
    %6713 = vmatpush.msra.mxu0 0.0
    %6714 = vmatpush.msra.mxu0 0.0
    %6715 = vmatpush.msra.mxu0 0.0
    %6716 = vmatpush.msra.mxu0 0.0
    %6717 = vmatpush.msra.mxu0 0.0
    %6718 = vmatpush.msra.mxu0 0.0
    %6719 = vmatpush.msra.mxu0 0.0
    %6720 = vmatpush.msra.mxu0 0.0
    %6721 = vmatpush.msra.mxu0 0.0
    %6722 = vmatpush.msra.mxu0 0.0
    %6723 = vmatpush.msra.mxu0 0.0
    %6724 = vmatpush.msra.mxu0 0.0
    %6725 = vmatpush.msra.mxu0 0.0
    %v6726 = vand.u32 %v4634, 4294901760
    %6727 = vmatpush.msra.mxu0 %v6726
    %v6728 = vand.u32 %v4630, 4294901760
    %6729 = vmatpush.msra.mxu0 %v6728
    %v6730 = vand.u32 %v4649, 4294901760
    %v6731 = vsub.f32 %v4649, %v6730
    %v6732 = vand.u32 %v6731, 4294901760
    %v6733 = vsub.f32 %v6731, %v6732
    %v6734 = vand.u32 %v6733, 4294901760
    %6735 = vmatmul.f32.gmra.mxu0 %v6734
    %v6736 = vpop.f32.mrf.mxu0
    %v6737 = vadd.f32 %v6706, %v6736
    %v6738 = vand.u32 %v4652, 4294901760
    %v6739 = vsub.f32 %v4652, %v6738
    %v6740 = vand.u32 %v6739, 4294901760
    %v6741 = vsub.f32 %v6739, %v6740
    %v6742 = vand.u32 %v6741, 4294901760
    %6743 = vmatmul.f32.gmra.mxu0 %v6742
    %v6744 = vpop.f32.mrf.mxu0
    %v6745 = vadd.f32 %v6710, %v6744
    %6746 = vdwg.mxu0
    %6747 = vmatpush.msra.mxu0 0.0
    %6748 = vmatpush.msra.mxu0 0.0
    %6749 = vmatpush.msra.mxu0 0.0
    %6750 = vmatpush.msra.mxu0 0.0
    %6751 = vmatpush.msra.mxu0 0.0
    %6752 = vmatpush.msra.mxu0 0.0
    %6753 = vmatpush.msra.mxu0 0.0
    %6754 = vmatpush.msra.mxu0 0.0
    %6755 = vmatpush.msra.mxu0 0.0
    %6756 = vmatpush.msra.mxu0 0.0
    %6757 = vmatpush.msra.mxu0 0.0
    %6758 = vmatpush.msra.mxu0 0.0
    %6759 = vmatpush.msra.mxu0 0.0
    %6760 = vmatpush.msra.mxu0 0.0
    %v6761 = vand.u32 %v4634, 4294901760
    %v6762 = vsub.f32 %v4634, %v6761
    %v6763 = vand.u32 %v6762, 4294901760
    %v6764 = vsub.f32 %v6762, %v6763
    %v6765 = vand.u32 %v6764, 4294901760
    %6766 = vmatpush.msra.mxu0 %v6765
    %v6767 = vand.u32 %v4630, 4294901760
    %v6768 = vsub.f32 %v4630, %v6767
    %v6769 = vand.u32 %v6768, 4294901760
    %v6770 = vsub.f32 %v6768, %v6769
    %v6771 = vand.u32 %v6770, 4294901760
    %6772 = vmatpush.msra.mxu0 %v6771
    %v6773 = vand.u32 %v4649, 4294901760
    %6774 = vmatmul.f32.gmra.mxu0 %v6773
    %v6775 = vpop.f32.mrf.mxu0
    %v6776 = vadd.f32 %v6737, %v6775
    %v6777 = vand.u32 %v4652, 4294901760
    %6778 = vmatmul.f32.gmra.mxu0 %v6777
    %v6779 = vpop.f32.mrf.mxu0
    %v6780 = vadd.f32 %v6745, %v6779
    %6781 = vdwg.mxu0
    %6782 = vmatpush.msra.mxu0 0.0
    %6783 = vmatpush.msra.mxu0 0.0
    %6784 = vmatpush.msra.mxu0 0.0
    %6785 = vmatpush.msra.mxu0 0.0
    %6786 = vmatpush.msra.mxu0 0.0
    %6787 = vmatpush.msra.mxu0 0.0
    %6788 = vmatpush.msra.mxu0 0.0
    %6789 = vmatpush.msra.mxu0 0.0
    %6790 = vmatpush.msra.mxu0 0.0
    %6791 = vmatpush.msra.mxu0 0.0
    %6792 = vmatpush.msra.mxu0 0.0
    %6793 = vmatpush.msra.mxu0 0.0
    %6794 = vmatpush.msra.mxu0 0.0
    %6795 = vmatpush.msra.mxu0 0.0
    %v6796 = vand.u32 %v4634, 4294901760
    %v6797 = vsub.f32 %v4634, %v6796
    %6798 = vmatpush.msra.mxu0 %v6797
    %v6799 = vand.u32 %v4630, 4294901760
    %v6800 = vsub.f32 %v4630, %v6799
    %6801 = vmatpush.msra.mxu0 %v6800
    %v6802 = vand.u32 %v4649, 4294901760
    %v6803 = vsub.f32 %v4649, %v6802
    %6804 = vmatmul.f32.gmra.mxu0 %v6803
    %v6805 = vpop.f32.mrf.mxu0
    %v6806 = vadd.f32 %v6776, %v6805
    %v6807 = vand.u32 %v4652, 4294901760
    %v6808 = vsub.f32 %v4652, %v6807
    %6809 = vmatmul.f32.gmra.mxu0 %v6808
    %v6810 = vpop.f32.mrf.mxu0
    %v6811 = vadd.f32 %v6780, %v6810
    %6812 = vdwg.mxu0
    %6813 = vmatpush.msra.mxu0 0.0
    %6814 = vmatpush.msra.mxu0 0.0
    %6815 = vmatpush.msra.mxu0 0.0
    %6816 = vmatpush.msra.mxu0 0.0
    %6817 = vmatpush.msra.mxu0 0.0
    %6818 = vmatpush.msra.mxu0 0.0
    %6819 = vmatpush.msra.mxu0 0.0
    %6820 = vmatpush.msra.mxu0 0.0
    %6821 = vmatpush.msra.mxu0 0.0
    %6822 = vmatpush.msra.mxu0 0.0
    %6823 = vmatpush.msra.mxu0 0.0
    %6824 = vmatpush.msra.mxu0 0.0
    %6825 = vmatpush.msra.mxu0 0.0
    %6826 = vmatpush.msra.mxu0 0.0
    %v6827 = vand.u32 %v4634, 4294901760
    %6828 = vmatpush.msra.mxu0 %v6827
    %v6829 = vand.u32 %v4630, 4294901760
    %6830 = vmatpush.msra.mxu0 %v6829
    %v6831 = vand.u32 %v4649, 4294901760
    %v6832 = vsub.f32 %v4649, %v6831
    %v6833 = vand.u32 %v6832, 4294901760
    %6834 = vmatmul.f32.gmra.mxu0 %v6833
    %v6835 = vpop.f32.mrf.mxu0
    %v6836 = vadd.f32 %v6806, %v6835
    %v6837 = vand.u32 %v4652, 4294901760
    %v6838 = vsub.f32 %v4652, %v6837
    %v6839 = vand.u32 %v6838, 4294901760
    %6840 = vmatmul.f32.gmra.mxu0 %v6839
    %v6841 = vpop.f32.mrf.mxu0
    %v6842 = vadd.f32 %v6811, %v6841
    %6843 = vdwg.mxu0
    %6844 = vmatpush.msra.mxu0 0.0
    %6845 = vmatpush.msra.mxu0 0.0
    %6846 = vmatpush.msra.mxu0 0.0
    %6847 = vmatpush.msra.mxu0 0.0
    %6848 = vmatpush.msra.mxu0 0.0
    %6849 = vmatpush.msra.mxu0 0.0
    %6850 = vmatpush.msra.mxu0 0.0
    %6851 = vmatpush.msra.mxu0 0.0
    %6852 = vmatpush.msra.mxu0 0.0
    %6853 = vmatpush.msra.mxu0 0.0
    %6854 = vmatpush.msra.mxu0 0.0
    %6855 = vmatpush.msra.mxu0 0.0
    %6856 = vmatpush.msra.mxu0 0.0
    %6857 = vmatpush.msra.mxu0 0.0
    %v6858 = vand.u32 %v4634, 4294901760
    %v6859 = vsub.f32 %v4634, %v6858
    %v6860 = vand.u32 %v6859, 4294901760
    %6861 = vmatpush.msra.mxu0 %v6860
    %v6862 = vand.u32 %v4630, 4294901760
    %v6863 = vsub.f32 %v4630, %v6862
    %v6864 = vand.u32 %v6863, 4294901760
    %6865 = vmatpush.msra.mxu0 %v6864
    %v6866 = vand.u32 %v4649, 4294901760
    %6867 = vmatmul.f32.gmra.mxu0 %v6866
    %v6868 = vpop.f32.mrf.mxu0
    %v6869 = vadd.f32 %v6836, %v6868
    %v6870 = vand.u32 %v4652, 4294901760
    %6871 = vmatmul.f32.gmra.mxu0 %v6870
    %v6872 = vpop.f32.mrf.mxu0
    %v6873 = vadd.f32 %v6842, %v6872
    %6874 = vdwg.mxu0
    %6875 = vmatpush.msra.mxu0 0.0
    %6876 = vmatpush.msra.mxu0 0.0
    %6877 = vmatpush.msra.mxu0 0.0
    %6878 = vmatpush.msra.mxu0 0.0
    %6879 = vmatpush.msra.mxu0 0.0
    %6880 = vmatpush.msra.mxu0 0.0
    %6881 = vmatpush.msra.mxu0 0.0
    %6882 = vmatpush.msra.mxu0 0.0
    %6883 = vmatpush.msra.mxu0 0.0
    %6884 = vmatpush.msra.mxu0 0.0
    %6885 = vmatpush.msra.mxu0 0.0
    %6886 = vmatpush.msra.mxu0 0.0
    %6887 = vmatpush.msra.mxu0 0.0
    %6888 = vmatpush.msra.mxu0 0.0
    %v6889 = vand.u32 %v4634, 4294901760
    %6890 = vmatpush.msra.mxu0 %v6889
    %v6891 = vand.u32 %v4630, 4294901760
    %6892 = vmatpush.msra.mxu0 %v6891
    %v6893 = vand.u32 %v4649, 4294901760
    %6894 = vmatmul.f32.gmra.mxu0 %v6893
    %v6895 = vpop.f32.mrf.mxu0
    %v6896 = vadd.f32 %v6869, %v6895
    %v6897 = vand.u32 %v4652, 4294901760
    %6898 = vmatmul.f32.gmra.mxu0 %v6897
    %v6899 = vpop.f32.mrf.mxu0
    %v6900 = vadd.f32 %v6873, %v6899
    %6901 = vdwg.mxu0
    %6902 = vrot.lane.b32.xlu0 %v5210, 51
    %v6903 = vpop.permute.xlu0 %6902
    %6904 = vrot.lane.b32.xlu0 %v5214, 51
    %v6905 = vpop.permute.xlu0 %6904
    %6906 = vrot.lane.b32.xlu0 %v5772, 51
    %v6907 = vpop.permute.xlu0 %6906
    %6908 = vrot.lane.b32.xlu0 %v5776, 51
    %v6909 = vpop.permute.xlu0 %6908
    %6910 = vrot.lane.b32.xlu0 %v6334, 51
    %v6911 = vpop.permute.xlu0 %6910
    %6912 = vrot.lane.b32.xlu0 %v6338, 51
    %v6913 = vpop.permute.xlu0 %6912
    %6914 = vrot.lane.b32.xlu0 %v6896, 51
    %v6915 = vpop.permute.xlu0 %6914
    %6916 = vrot.lane.b32.xlu0 %v6900, 51
    %v6917 = vpop.permute.xlu0 %6916
    %vm6918 = vcmp.lt.s32.totalorder %v122, 51
    %v6919 = vsel %vm6918, %v6911, %v6915
    %v6920 = vsel %vm6918, %v6913, %v6917
    %v6921 = vsel %vm6918, %v6907, %v6911
    %v6922 = vsel %vm6918, %v6909, %v6913
    %v6923 = vsel %vm6918, %v6903, %v6907
    %v6924 = vsel %vm6918, %v6905, %v6909
    %v6925 = vsel %vm6918, %v6915, %v6903
    %v6926 = vsel %vm6918, %v6917, %v6905
    %s6927 = scalar_lea.vmem [#allocation4], 66
    %v6928 = vld [vmem:[%s6927] ss:$8 sm:$0xf]
    %v6930 = vperm.slane %v6928, 0
    %v6931 = vperm.slane %v6928, 1
    %v6932 = vperm.slane %v6928, 2
    %v6933 = vperm.slane %v6928, 3
    %v6938 = vmul.f32 %v6925, %v6930
    %v6939 = vmul.f32 %v6923, %v6931
    %v6940 = vmul.f32 %v6921, %v6932
    %v6941 = vmul.f32 %v6919, %v6933
    %v6942 = vmul.f32 %v6926, %v6930
    %v6943 = vmul.f32 %v6924, %v6931
    %v6944 = vmul.f32 %v6922, %v6932
    %v6945 = vmul.f32 %v6920, %v6933
    %6946 = vst [vmem:[#allocation2] sm:$0xff] %v6938
    %6947 = vst [vmem:[#allocation2 + $0x8] sm:$0xff] %v6939
    %6948 = vst [vmem:[#allocation2 + $0x10] sm:$0xff] %v6940
    %6949 = vst [vmem:[#allocation2 + $0x18] sm:$0xff] %v6941
    %6950 = vst [vmem:[#allocation2 + $0x20] sm:$0xff] %v6942
    %6951 = vst [vmem:[#allocation2 + $0x28] sm:$0xff] %v6943
    %6952 = vst [vmem:[#allocation2 + $0x30] sm:$0xff] %v6944
    %6953 = vst [vmem:[#allocation2 + $0x38] sm:$0xff] %v6945
    %6954 = vrot.lane.b32.xlu0 %v5210, 48
    %v6955 = vpop.permute.xlu0 %6954
    %6956 = vrot.lane.b32.xlu0 %v5214, 48
    %v6957 = vpop.permute.xlu0 %6956
    %6958 = vrot.lane.b32.xlu0 %v5772, 48
    %v6959 = vpop.permute.xlu0 %6958
    %6960 = vrot.lane.b32.xlu0 %v5776, 48
    %v6961 = vpop.permute.xlu0 %6960
    %6962 = vrot.lane.b32.xlu0 %v6334, 48
    %v6963 = vpop.permute.xlu0 %6962
    %6964 = vrot.lane.b32.xlu0 %v6338, 48
    %v6965 = vpop.permute.xlu0 %6964
    %6966 = vrot.lane.b32.xlu0 %v6896, 48
    %v6967 = vpop.permute.xlu0 %6966
    %6968 = vrot.lane.b32.xlu0 %v6900, 48
    %v6969 = vpop.permute.xlu0 %6968
    %vm6970 = vcmp.lt.s32.totalorder %v122, 48
    %v6971 = vsel %vm6970, %v6963, %v6967
    %v6972 = vsel %vm6970, %v6965, %v6969
    %v6973 = vsel %vm6970, %v6959, %v6963
    %v6974 = vsel %vm6970, %v6961, %v6965
    %v6975 = vsel %vm6970, %v6955, %v6959
    %v6976 = vsel %vm6970, %v6957, %v6961
    %v6977 = vsel %vm6970, %v6967, %v6955
    %v6978 = vsel %vm6970, %v6969, %v6957
    %s6979 = scalar_lea.vmem [#allocation4], 67
    %v6980 = vld [vmem:[%s6979] ss:$8 sm:$0xf]
    %v6982 = vperm.slane %v6980, 0
    %v6983 = vperm.slane %v6980, 1
    %v6984 = vperm.slane %v6980, 2
    %v6985 = vperm.slane %v6980, 3
    %v6990 = vmul.f32 %v6977, %v6982
    %v6991 = vmul.f32 %v6975, %v6983
    %v6992 = vmul.f32 %v6973, %v6984
    %v6993 = vmul.f32 %v6971, %v6985
    %v6994 = vmul.f32 %v6978, %v6982
    %v6995 = vmul.f32 %v6976, %v6983
    %v6996 = vmul.f32 %v6974, %v6984
    %v6997 = vmul.f32 %v6972, %v6985
    %6998 = vst [vmem:[#allocation2 + $0x40] sm:$0xff] %v6990
    %6999 = vst [vmem:[#allocation2 + $0x48] sm:$0xff] %v6991
    %7000 = vst [vmem:[#allocation2 + $0x50] sm:$0xff] %v6992
    %7001 = vst [vmem:[#allocation2 + $0x58] sm:$0xff] %v6993
    %7002 = vst [vmem:[#allocation2 + $0x60] sm:$0xff] %v6994
    %7003 = vst [vmem:[#allocation2 + $0x68] sm:$0xff] %v6995
    %7004 = vst [vmem:[#allocation2 + $0x70] sm:$0xff] %v6996
    %7005 = vst [vmem:[#allocation2 + $0x78] sm:$0xff] %v6997
    %7006 = vrot.lane.b32.xlu0 %v5210, 45
    %v7007 = vpop.permute.xlu0 %7006
    %7008 = vrot.lane.b32.xlu0 %v5214, 45
    %v7009 = vpop.permute.xlu0 %7008
    %7010 = vrot.lane.b32.xlu0 %v5772, 45
    %v7011 = vpop.permute.xlu0 %7010
    %7012 = vrot.lane.b32.xlu0 %v5776, 45
    %v7013 = vpop.permute.xlu0 %7012
    %7014 = vrot.lane.b32.xlu0 %v6334, 45
    %v7015 = vpop.permute.xlu0 %7014
    %7016 = vrot.lane.b32.xlu0 %v6338, 45
    %v7017 = vpop.permute.xlu0 %7016
    %7018 = vrot.lane.b32.xlu0 %v6896, 45
    %v7019 = vpop.permute.xlu0 %7018
    %7020 = vrot.lane.b32.xlu0 %v6900, 45
    %v7021 = vpop.permute.xlu0 %7020
    %vm7022 = vcmp.lt.s32.totalorder %v122, 45
    %v7023 = vsel %vm7022, %v7015, %v7019
    %v7024 = vsel %vm7022, %v7017, %v7021
    %v7025 = vsel %vm7022, %v7011, %v7015
    %v7026 = vsel %vm7022, %v7013, %v7017
    %v7027 = vsel %vm7022, %v7007, %v7011
    %v7028 = vsel %vm7022, %v7009, %v7013
    %v7029 = vsel %vm7022, %v7019, %v7007
    %v7030 = vsel %vm7022, %v7021, %v7009
    %s7031 = scalar_lea.vmem [#allocation4], 68
    %v7032 = vld [vmem:[%s7031] ss:$8 sm:$0xf]
    %v7034 = vperm.slane %v7032, 0
    %v7035 = vperm.slane %v7032, 1
    %v7036 = vperm.slane %v7032, 2
    %v7037 = vperm.slane %v7032, 3
    %v7042 = vmul.f32 %v7029, %v7034
    %v7043 = vmul.f32 %v7027, %v7035
    %v7044 = vmul.f32 %v7025, %v7036
    %v7045 = vmul.f32 %v7023, %v7037
    %v7046 = vmul.f32 %v7030, %v7034
    %v7047 = vmul.f32 %v7028, %v7035
    %v7048 = vmul.f32 %v7026, %v7036
    %v7049 = vmul.f32 %v7024, %v7037
    %7050 = vst [vmem:[#allocation2 + $0x80] sm:$0xff] %v7042
    %7051 = vst [vmem:[#allocation2 + $0x88] sm:$0xff] %v7043
    %7052 = vst [vmem:[#allocation2 + $0x90] sm:$0xff] %v7044
    %7053 = vst [vmem:[#allocation2 + $0x98] sm:$0xff] %v7045
    %7054 = vst [vmem:[#allocation2 + $0xa0] sm:$0xff] %v7046
    %7055 = vst [vmem:[#allocation2 + $0xa8] sm:$0xff] %v7047
    %7056 = vst [vmem:[#allocation2 + $0xb0] sm:$0xff] %v7048
    %7057 = vst [vmem:[#allocation2 + $0xb8] sm:$0xff] %v7049
    %7058 = vrot.lane.b32.xlu0 %v5210, 3
    %v7059 = vpop.permute.xlu0 %7058
    %7060 = vrot.lane.b32.xlu0 %v5214, 3
    %v7061 = vpop.permute.xlu0 %7060
    %7062 = vrot.lane.b32.xlu0 %v5772, 3
    %v7063 = vpop.permute.xlu0 %7062
    %7064 = vrot.lane.b32.xlu0 %v5776, 3
    %v7065 = vpop.permute.xlu0 %7064
    %7066 = vrot.lane.b32.xlu0 %v6334, 3
    %v7067 = vpop.permute.xlu0 %7066
    %7068 = vrot.lane.b32.xlu0 %v6338, 3
    %v7069 = vpop.permute.xlu0 %7068
    %7070 = vrot.lane.b32.xlu0 %v6896, 3
    %v7071 = vpop.permute.xlu0 %7070
    %7072 = vrot.lane.b32.xlu0 %v6900, 3
    %v7073 = vpop.permute.xlu0 %7072
    %vm7074 = vcmp.lt.s32.totalorder %v122, 3
    %v7075 = vsel %vm7074, %v7067, %v7071
    %v7076 = vsel %vm7074, %v7069, %v7073
    %v7077 = vsel %vm7074, %v7063, %v7067
    %v7078 = vsel %vm7074, %v7065, %v7069
    %v7079 = vsel %vm7074, %v7059, %v7063
    %v7080 = vsel %vm7074, %v7061, %v7065
    %v7081 = vsel %vm7074, %v7071, %v7059
    %v7082 = vsel %vm7074, %v7073, %v7061
    %s7083 = scalar_lea.vmem [#allocation4], 69
    %v7084 = vld [vmem:[%s7083] ss:$8 sm:$0xf]
    %v7086 = vperm.slane %v7084, 0
    %v7087 = vperm.slane %v7084, 1
    %v7088 = vperm.slane %v7084, 2
    %v7089 = vperm.slane %v7084, 3
    %v7094 = vmul.f32 %v7081, %v7086
    %v7095 = vmul.f32 %v7079, %v7087
    %v7096 = vmul.f32 %v7077, %v7088
    %v7097 = vmul.f32 %v7075, %v7089
    %v7098 = vmul.f32 %v7082, %v7086
    %v7099 = vmul.f32 %v7080, %v7087
    %v7100 = vmul.f32 %v7078, %v7088
    %v7101 = vmul.f32 %v7076, %v7089
    %7102 = vst [vmem:[#allocation2 + $0xc0] sm:$0xff] %v7094
    %7103 = vst [vmem:[#allocation2 + $0xc8] sm:$0xff] %v7095
    %7104 = vst [vmem:[#allocation2 + $0xd0] sm:$0xff] %v7096
    %7105 = vst [vmem:[#allocation2 + $0xd8] sm:$0xff] %v7097
    %7106 = vst [vmem:[#allocation2 + $0xe0] sm:$0xff] %v7098
    %7107 = vst [vmem:[#allocation2 + $0xe8] sm:$0xff] %v7099
    %7108 = vst [vmem:[#allocation2 + $0xf0] sm:$0xff] %v7100
    %7109 = vst [vmem:[#allocation2 + $0xf8] sm:$0xff] %v7101
    %7110 = vst [vmem:[#allocation2 + $0x100] sm:$0xff] %v5210
    %7111 = vst [vmem:[#allocation2 + $0x108] sm:$0xff] %v5772
    %7112 = vst [vmem:[#allocation2 + $0x110] sm:$0xff] %v6334
    %7113 = vst [vmem:[#allocation2 + $0x118] sm:$0xff] %v6896
    %7114 = vst [vmem:[#allocation2 + $0x120] sm:$0xff] %v5214
    %7115 = vst [vmem:[#allocation2 + $0x128] sm:$0xff] %v5776
    %7116 = vst [vmem:[#allocation2 + $0x130] sm:$0xff] %v6338
    %7117 = vst [vmem:[#allocation2 + $0x138] sm:$0xff] %v6900
    %7118 = vrot.lane.b32.xlu0 %v5210, 125
    %v7119 = vpop.permute.xlu0 %7118
    %7120 = vrot.lane.b32.xlu0 %v5214, 125
    %v7121 = vpop.permute.xlu0 %7120
    %7122 = vrot.lane.b32.xlu0 %v5772, 125
    %v7123 = vpop.permute.xlu0 %7122
    %7124 = vrot.lane.b32.xlu0 %v5776, 125
    %v7125 = vpop.permute.xlu0 %7124
    %7126 = vrot.lane.b32.xlu0 %v6334, 125
    %v7127 = vpop.permute.xlu0 %7126
    %7128 = vrot.lane.b32.xlu0 %v6338, 125
    %v7129 = vpop.permute.xlu0 %7128
    %7130 = vrot.lane.b32.xlu0 %v6896, 125
    %v7131 = vpop.permute.xlu0 %7130
    %7132 = vrot.lane.b32.xlu0 %v6900, 125
    %v7133 = vpop.permute.xlu0 %7132
    %vm7134 = vcmp.lt.s32.totalorder %v122, 125
    %v7135 = vsel %vm7134, %v7127, %v7131
    %v7136 = vsel %vm7134, %v7129, %v7133
    %v7137 = vsel %vm7134, %v7123, %v7127
    %v7138 = vsel %vm7134, %v7125, %v7129
    %v7139 = vsel %vm7134, %v7119, %v7123
    %v7140 = vsel %vm7134, %v7121, %v7125
    %v7141 = vsel %vm7134, %v7131, %v7119
    %v7142 = vsel %vm7134, %v7133, %v7121
    %s7143 = scalar_lea.vmem [#allocation4], 71
    %v7144 = vld [vmem:[%s7143] ss:$8 sm:$0xf]
    %v7146 = vperm.slane %v7144, 0
    %v7147 = vperm.slane %v7144, 1
    %v7148 = vperm.slane %v7144, 2
    %v7149 = vperm.slane %v7144, 3
    %v7154 = vmul.f32 %v7139, %v7146
    %v7155 = vmul.f32 %v7137, %v7147
    %v7156 = vmul.f32 %v7135, %v7148
    %v7157 = vmul.f32 %v7141, %v7149
    %v7158 = vmul.f32 %v7140, %v7146
    %v7159 = vmul.f32 %v7138, %v7147
    %v7160 = vmul.f32 %v7136, %v7148
    %v7161 = vmul.f32 %v7142, %v7149
    %7162 = vst [vmem:[#allocation2 + $0x140] sm:$0xff] %v7154
    %7163 = vst [vmem:[#allocation2 + $0x148] sm:$0xff] %v7155
    %7164 = vst [vmem:[#allocation2 + $0x150] sm:$0xff] %v7156
    %7165 = vst [vmem:[#allocation2 + $0x158] sm:$0xff] %v7157
    %7166 = vst [vmem:[#allocation2 + $0x160] sm:$0xff] %v7158
    %7167 = vst [vmem:[#allocation2 + $0x168] sm:$0xff] %v7159
    %7168 = vst [vmem:[#allocation2 + $0x170] sm:$0xff] %v7160
    %7169 = vst [vmem:[#allocation2 + $0x178] sm:$0xff] %v7161
    %7170 = vrot.lane.b32.xlu0 %v5210, 83
    %v7171 = vpop.permute.xlu0 %7170
    %7172 = vrot.lane.b32.xlu0 %v5214, 83
    %v7173 = vpop.permute.xlu0 %7172
    %7174 = vrot.lane.b32.xlu0 %v5772, 83
    %v7175 = vpop.permute.xlu0 %7174
    %7176 = vrot.lane.b32.xlu0 %v5776, 83
    %v7177 = vpop.permute.xlu0 %7176
    %7178 = vrot.lane.b32.xlu0 %v6334, 83
    %v7179 = vpop.permute.xlu0 %7178
    %7180 = vrot.lane.b32.xlu0 %v6338, 83
    %v7181 = vpop.permute.xlu0 %7180
    %7182 = vrot.lane.b32.xlu0 %v6896, 83
    %v7183 = vpop.permute.xlu0 %7182
    %7184 = vrot.lane.b32.xlu0 %v6900, 83
    %v7185 = vpop.permute.xlu0 %7184
    %vm7186 = vcmp.lt.s32.totalorder %v122, 83
    %v7187 = vsel %vm7186, %v7179, %v7183
    %v7188 = vsel %vm7186, %v7181, %v7185
    %v7189 = vsel %vm7186, %v7175, %v7179
    %v7190 = vsel %vm7186, %v7177, %v7181
    %v7191 = vsel %vm7186, %v7171, %v7175
    %v7192 = vsel %vm7186, %v7173, %v7177
    %v7193 = vsel %vm7186, %v7183, %v7171
    %v7194 = vsel %vm7186, %v7185, %v7173
    %s7195 = scalar_lea.vmem [#allocation4], 96
    %v7196 = vld [vmem:[%s7195] ss:$8 sm:$0xf]
    %v7198 = vperm.slane %v7196, 0
    %v7199 = vperm.slane %v7196, 1
    %v7200 = vperm.slane %v7196, 2
    %v7201 = vperm.slane %v7196, 3
    %v7206 = vmul.f32 %v7191, %v7198
    %v7207 = vmul.f32 %v7189, %v7199
    %v7208 = vmul.f32 %v7187, %v7200
    %v7209 = vmul.f32 %v7193, %v7201
    %v7210 = vmul.f32 %v7192, %v7198
    %v7211 = vmul.f32 %v7190, %v7199
    %v7212 = vmul.f32 %v7188, %v7200
    %v7213 = vmul.f32 %v7194, %v7201
    %7214 = vst [vmem:[#allocation2 + $0x180] sm:$0xff] %v7206
    %7215 = vst [vmem:[#allocation2 + $0x188] sm:$0xff] %v7207
    %7216 = vst [vmem:[#allocation2 + $0x190] sm:$0xff] %v7208
    %7217 = vst [vmem:[#allocation2 + $0x198] sm:$0xff] %v7209
    %7218 = vst [vmem:[#allocation2 + $0x1a0] sm:$0xff] %v7210
    %7219 = vst [vmem:[#allocation2 + $0x1a8] sm:$0xff] %v7211
    %7220 = vst [vmem:[#allocation2 + $0x1b0] sm:$0xff] %v7212
    %7221 = vst [vmem:[#allocation2 + $0x1b8] sm:$0xff] %v7213
    %7222 = vrot.lane.b32.xlu0 %v5210, 80
    %v7223 = vpop.permute.xlu0 %7222
    %7224 = vrot.lane.b32.xlu0 %v5214, 80
    %v7225 = vpop.permute.xlu0 %7224
    %7226 = vrot.lane.b32.xlu0 %v5772, 80
    %v7227 = vpop.permute.xlu0 %7226
    %7228 = vrot.lane.b32.xlu0 %v5776, 80
    %v7229 = vpop.permute.xlu0 %7228
    %7230 = vrot.lane.b32.xlu0 %v6334, 80
    %v7231 = vpop.permute.xlu0 %7230
    %7232 = vrot.lane.b32.xlu0 %v6338, 80
    %v7233 = vpop.permute.xlu0 %7232
    %7234 = vrot.lane.b32.xlu0 %v6896, 80
    %v7235 = vpop.permute.xlu0 %7234
    %7236 = vrot.lane.b32.xlu0 %v6900, 80
    %v7237 = vpop.permute.xlu0 %7236
    %vm7238 = vcmp.lt.s32.totalorder %v122, 80
    %v7239 = vsel %vm7238, %v7231, %v7235
    %v7240 = vsel %vm7238, %v7233, %v7237
    %v7241 = vsel %vm7238, %v7227, %v7231
    %v7242 = vsel %vm7238, %v7229, %v7233
    %v7243 = vsel %vm7238, %v7223, %v7227
    %v7244 = vsel %vm7238, %v7225, %v7229
    %v7245 = vsel %vm7238, %v7235, %v7223
    %v7246 = vsel %vm7238, %v7237, %v7225
    %s7247 = scalar_lea.vmem [#allocation4], 97
    %v7248 = vld [vmem:[%s7247] ss:$8 sm:$0xf]
    %v7250 = vperm.slane %v7248, 0
    %v7251 = vperm.slane %v7248, 1
    %v7252 = vperm.slane %v7248, 2
    %v7253 = vperm.slane %v7248, 3
    %v7258 = vmul.f32 %v7243, %v7250
    %v7259 = vmul.f32 %v7241, %v7251
    %v7260 = vmul.f32 %v7239, %v7252
    %v7261 = vmul.f32 %v7245, %v7253
    %v7262 = vmul.f32 %v7244, %v7250
    %v7263 = vmul.f32 %v7242, %v7251
    %v7264 = vmul.f32 %v7240, %v7252
    %v7265 = vmul.f32 %v7246, %v7253
    %7266 = vst [vmem:[#allocation2 + $0x1c0] sm:$0xff] %v7258
    %7267 = vst [vmem:[#allocation2 + $0x1c8] sm:$0xff] %v7259
    %7268 = vst [vmem:[#allocation2 + $0x1d0] sm:$0xff] %v7260
    %7269 = vst [vmem:[#allocation2 + $0x1d8] sm:$0xff] %v7261
    %7270 = vst [vmem:[#allocation2 + $0x1e0] sm:$0xff] %v7262
    %7271 = vst [vmem:[#allocation2 + $0x1e8] sm:$0xff] %v7263
    %7272 = vst [vmem:[#allocation2 + $0x1f0] sm:$0xff] %v7264
    %7273 = vst [vmem:[#allocation2 + $0x1f8] sm:$0xff] %v7265
    %7274 = vrot.lane.b32.xlu0 %v5210, 77
    %v7275 = vpop.permute.xlu0 %7274
    %7276 = vrot.lane.b32.xlu0 %v5214, 77
    %v7277 = vpop.permute.xlu0 %7276
    %7278 = vrot.lane.b32.xlu0 %v5772, 77
    %v7279 = vpop.permute.xlu0 %7278
    %7280 = vrot.lane.b32.xlu0 %v5776, 77
    %v7281 = vpop.permute.xlu0 %7280
    %7282 = vrot.lane.b32.xlu0 %v6334, 77
    %v7283 = vpop.permute.xlu0 %7282
    %7284 = vrot.lane.b32.xlu0 %v6338, 77
    %v7285 = vpop.permute.xlu0 %7284
    %7286 = vrot.lane.b32.xlu0 %v6896, 77
    %v7287 = vpop.permute.xlu0 %7286
    %7288 = vrot.lane.b32.xlu0 %v6900, 77
    %v7289 = vpop.permute.xlu0 %7288
    %vm7290 = vcmp.lt.s32.totalorder %v122, 77
    %v7291 = vsel %vm7290, %v7283, %v7287
    %v7292 = vsel %vm7290, %v7285, %v7289
    %v7293 = vsel %vm7290, %v7279, %v7283
    %v7294 = vsel %vm7290, %v7281, %v7285
    %v7295 = vsel %vm7290, %v7275, %v7279
    %v7296 = vsel %vm7290, %v7277, %v7281
    %v7297 = vsel %vm7290, %v7287, %v7275
    %v7298 = vsel %vm7290, %v7289, %v7277
    %s7299 = scalar_lea.vmem [#allocation4], 98
    %v7300 = vld [vmem:[%s7299] ss:$8 sm:$0xf]
    %v7302 = vperm.slane %v7300, 0
    %v7303 = vperm.slane %v7300, 1
    %v7304 = vperm.slane %v7300, 2
    %v7305 = vperm.slane %v7300, 3
    %v7310 = vmul.f32 %v7295, %v7302
    %v7311 = vmul.f32 %v7293, %v7303
    %v7312 = vmul.f32 %v7291, %v7304
    %v7313 = vmul.f32 %v7297, %v7305
    %v7314 = vmul.f32 %v7296, %v7302
    %v7315 = vmul.f32 %v7294, %v7303
    %v7316 = vmul.f32 %v7292, %v7304
    %v7317 = vmul.f32 %v7298, %v7305
    %7318 = vst [vmem:[#allocation2 + $0x200] sm:$0xff] %v7310
    %7319 = vst [vmem:[#allocation2 + $0x208] sm:$0xff] %v7311
    %7320 = vst [vmem:[#allocation2 + $0x210] sm:$0xff] %v7312
    %7321 = vst [vmem:[#allocation2 + $0x218] sm:$0xff] %v7313
    %7322 = vst [vmem:[#allocation2 + $0x220] sm:$0xff] %v7314
    %7323 = vst [vmem:[#allocation2 + $0x228] sm:$0xff] %v7315
    %7324 = vst [vmem:[#allocation2 + $0x230] sm:$0xff] %v7316
    %7325 = vst [vmem:[#allocation2 + $0x238] sm:$0xff] %v7317
    %v7326 = vld [vmem:[#allocation10] sm:$0xff]
    %v7327 = vld [vmem:[#allocation10 + $0x8] sm:$0xff]
    %v7328 = vld [vmem:[#allocation10 + $0x10] sm:$0xff]
    %v7329 = vld [vmem:[#allocation10 + $0x18] sm:$0xff]
    %v7330 = vld [vmem:[#allocation10 + $0x20] sm:$0xff]
    %v7331 = vld [vmem:[#allocation10 + $0x28] sm:$0xff]
    %v7332 = vld [vmem:[#allocation10 + $0x30] sm:$0xff]
    %v7333 = vld [vmem:[#allocation10 + $0x38] sm:$0xff]
    %v7334 = vld [vmem:[#allocation2] sm:$0xff]
    %v7335 = vld [vmem:[#allocation2 + $0x8] sm:$0xff]
    %v7336 = vld [vmem:[#allocation2 + $0x10] sm:$0xff]
    %v7337 = vld [vmem:[#allocation2 + $0x18] sm:$0xff]
    %v7338 = vld [vmem:[#allocation2 + $0x20] sm:$0xff]
    %v7339 = vld [vmem:[#allocation2 + $0x28] sm:$0xff]
    %v7340 = vld [vmem:[#allocation2 + $0x30] sm:$0xff]
    %v7341 = vld [vmem:[#allocation2 + $0x38] sm:$0xff]
    %v7342 = vld [vmem:[#allocation2 + $0x40] sm:$0xff]
    %v7343 = vld [vmem:[#allocation2 + $0x48] sm:$0xff]
    %v7344 = vld [vmem:[#allocation2 + $0x50] sm:$0xff]
    %v7345 = vld [vmem:[#allocation2 + $0x58] sm:$0xff]
    %v7346 = vld [vmem:[#allocation2 + $0x60] sm:$0xff]
    %v7347 = vld [vmem:[#allocation2 + $0x68] sm:$0xff]
    %v7348 = vld [vmem:[#allocation2 + $0x70] sm:$0xff]
    %v7349 = vld [vmem:[#allocation2 + $0x78] sm:$0xff]
    %v7350 = vld [vmem:[#allocation2 + $0x80] sm:$0xff]
    %v7351 = vld [vmem:[#allocation2 + $0x88] sm:$0xff]
    %v7352 = vld [vmem:[#allocation2 + $0x90] sm:$0xff]
    %v7353 = vld [vmem:[#allocation2 + $0x98] sm:$0xff]
    %v7354 = vld [vmem:[#allocation2 + $0xa0] sm:$0xff]
    %v7355 = vld [vmem:[#allocation2 + $0xa8] sm:$0xff]
    %v7356 = vld [vmem:[#allocation2 + $0xb0] sm:$0xff]
    %v7357 = vld [vmem:[#allocation2 + $0xb8] sm:$0xff]
    %v7358 = vld [vmem:[#allocation2 + $0xc0] sm:$0xff]
    %v7359 = vld [vmem:[#allocation2 + $0xc8] sm:$0xff]
    %v7360 = vld [vmem:[#allocation2 + $0xd0] sm:$0xff]
    %v7361 = vld [vmem:[#allocation2 + $0xd8] sm:$0xff]
    %v7362 = vld [vmem:[#allocation2 + $0xe0] sm:$0xff]
    %v7363 = vld [vmem:[#allocation2 + $0xe8] sm:$0xff]
    %v7364 = vld [vmem:[#allocation2 + $0xf0] sm:$0xff]
    %v7365 = vld [vmem:[#allocation2 + $0xf8] sm:$0xff]
    %v7366 = vld [vmem:[#allocation2 + $0x100] sm:$0xff]
    %v7367 = vld [vmem:[#allocation2 + $0x108] sm:$0xff]
    %v7368 = vld [vmem:[#allocation2 + $0x110] sm:$0xff]
    %v7369 = vld [vmem:[#allocation2 + $0x118] sm:$0xff]
    %v7370 = vld [vmem:[#allocation2 + $0x120] sm:$0xff]
    %v7371 = vld [vmem:[#allocation2 + $0x128] sm:$0xff]
    %v7372 = vld [vmem:[#allocation2 + $0x130] sm:$0xff]
    %v7373 = vld [vmem:[#allocation2 + $0x138] sm:$0xff]
    %v7374 = vld [vmem:[#allocation2 + $0x140] sm:$0xff]
    %v7375 = vld [vmem:[#allocation2 + $0x148] sm:$0xff]
    %v7376 = vld [vmem:[#allocation2 + $0x150] sm:$0xff]
    %v7377 = vld [vmem:[#allocation2 + $0x158] sm:$0xff]
    %v7378 = vld [vmem:[#allocation2 + $0x160] sm:$0xff]
    %v7379 = vld [vmem:[#allocation2 + $0x168] sm:$0xff]
    %v7380 = vld [vmem:[#allocation2 + $0x170] sm:$0xff]
    %v7381 = vld [vmem:[#allocation2 + $0x178] sm:$0xff]
    %v7382 = vld [vmem:[#allocation2 + $0x180] sm:$0xff]
    %v7383 = vld [vmem:[#allocation2 + $0x188] sm:$0xff]
    %v7384 = vld [vmem:[#allocation2 + $0x190] sm:$0xff]
    %v7385 = vld [vmem:[#allocation2 + $0x198] sm:$0xff]
    %v7386 = vld [vmem:[#allocation2 + $0x1a0] sm:$0xff]
    %v7387 = vld [vmem:[#allocation2 + $0x1a8] sm:$0xff]
    %v7388 = vld [vmem:[#allocation2 + $0x1b0] sm:$0xff]
    %v7389 = vld [vmem:[#allocation2 + $0x1b8] sm:$0xff]
    %v7390 = vld [vmem:[#allocation2 + $0x1c0] sm:$0xff]
    %v7391 = vld [vmem:[#allocation2 + $0x1c8] sm:$0xff]
    %v7392 = vld [vmem:[#allocation2 + $0x1d0] sm:$0xff]
    %v7393 = vld [vmem:[#allocation2 + $0x1d8] sm:$0xff]
    %v7394 = vld [vmem:[#allocation2 + $0x1e0] sm:$0xff]
    %v7395 = vld [vmem:[#allocation2 + $0x1e8] sm:$0xff]
    %v7396 = vld [vmem:[#allocation2 + $0x1f0] sm:$0xff]
    %v7397 = vld [vmem:[#allocation2 + $0x1f8] sm:$0xff]
    %v7398 = vld [vmem:[#allocation2 + $0x200] sm:$0xff]
    %v7399 = vld [vmem:[#allocation2 + $0x208] sm:$0xff]
    %v7400 = vld [vmem:[#allocation2 + $0x210] sm:$0xff]
    %v7401 = vld [vmem:[#allocation2 + $0x218] sm:$0xff]
    %v7402 = vld [vmem:[#allocation2 + $0x220] sm:$0xff]
    %v7403 = vld [vmem:[#allocation2 + $0x228] sm:$0xff]
    %v7404 = vld [vmem:[#allocation2 + $0x230] sm:$0xff]
    %v7405 = vld [vmem:[#allocation2 + $0x238] sm:$0xff]
    %v7406 = vld [vmem:[%s11] sm:$0xff]
    %v7407 = vld [vmem:[%s11 + $0x8] sm:$0xff]
    %v7408 = vld [vmem:[%s11 + $0x10] sm:$0xff]
    %v7409 = vld [vmem:[%s11 + $0x18] sm:$0xff]
    %7411 = vset.pattern.permute.xlu0 0
    %7412 = vperm.xlu0 %7411, %v7406
    %v7413 = vpop.permute.xlu0 %7412
    %7416 = vset.pattern.permute.xlu0 0
    %7417 = vperm.xlu0 %7416, %v7407
    %v7418 = vpop.permute.xlu0 %7417
    %7421 = vset.pattern.permute.xlu0 0
    %7422 = vperm.xlu0 %7421, %v7408
    %v7423 = vpop.permute.xlu0 %7422
    %7426 = vset.pattern.permute.xlu0 0
    %7427 = vperm.xlu0 %7426, %v7409
    %v7428 = vpop.permute.xlu0 %7427
    %v7431 = vsel %vm4647, %v7327, 0
    %v7434 = vsel %vm4647, %v7329, 0
    %v7437 = vsel %vm4647, %v7331, 0
    %v7440 = vsel %vm4647, %v7333, 0
    %v7442 = vand.u32 %v7394, 4294901760
    %7443 = vmatpush.msra.mxu0 %v7442
    %v7444 = vand.u32 %v7390, 4294901760
    %7445 = vmatpush.msra.mxu0 %v7444
    %v7446 = vand.u32 %v7386, 4294901760
    %7447 = vmatpush.msra.mxu0 %v7446
    %v7448 = vand.u32 %v7382, 4294901760
    %7449 = vmatpush.msra.mxu0 %v7448
    %v7450 = vand.u32 %v7378, 4294901760
    %7451 = vmatpush.msra.mxu0 %v7450
    %v7452 = vand.u32 %v7374, 4294901760
    %7453 = vmatpush.msra.mxu0 %v7452
    %v7454 = vand.u32 %v7370, 4294901760
    %7455 = vmatpush.msra.mxu0 %v7454
    %v7456 = vand.u32 %v7366, 4294901760
    %7457 = vmatpush.msra.mxu0 %v7456
    %v7458 = vand.u32 %v7362, 4294901760
    %7459 = vmatpush.msra.mxu0 %v7458
    %v7460 = vand.u32 %v7358, 4294901760
    %7461 = vmatpush.msra.mxu0 %v7460
    %v7462 = vand.u32 %v7354, 4294901760
    %7463 = vmatpush.msra.mxu0 %v7462
    %v7464 = vand.u32 %v7350, 4294901760
    %7465 = vmatpush.msra.mxu0 %v7464
    %v7466 = vand.u32 %v7346, 4294901760
    %7467 = vmatpush.msra.mxu0 %v7466
    %v7468 = vand.u32 %v7342, 4294901760
    %7469 = vmatpush.msra.mxu0 %v7468
    %v7470 = vand.u32 %v7338, 4294901760
    %7471 = vmatpush.msra.mxu0 %v7470
    %v7472 = vand.u32 %v7334, 4294901760
    %7473 = vmatpush.msra.mxu0 %v7472
    %v7474 = vand.u32 %v7326, 4294901760
    %v7475 = vsub.f32 %v7326, %v7474
    %v7476 = vand.u32 %v7475, 4294901760
    %v7477 = vsub.f32 %v7475, %v7476
    %v7478 = vand.u32 %v7477, 4294901760
    %7479 = vmatmul.f32.gmra.mxu0 %v7478
    %v7480 = vpop.f32.mrf.mxu0
    %v7481 = vadd.f32 %v7413, %v7480
    %v7482 = vand.u32 %v7328, 4294901760
    %v7483 = vsub.f32 %v7328, %v7482
    %v7484 = vand.u32 %v7483, 4294901760
    %v7485 = vsub.f32 %v7483, %v7484
    %v7486 = vand.u32 %v7485, 4294901760
    %7487 = vmatmul.f32.gmra.mxu0 %v7486
    %v7488 = vpop.f32.mrf.mxu0
    %v7489 = vadd.f32 %v7418, %v7488
    %v7490 = vand.u32 %v7330, 4294901760
    %v7491 = vsub.f32 %v7330, %v7490
    %v7492 = vand.u32 %v7491, 4294901760
    %v7493 = vsub.f32 %v7491, %v7492
    %v7494 = vand.u32 %v7493, 4294901760
    %7495 = vmatmul.f32.gmra.mxu0 %v7494
    %v7496 = vpop.f32.mrf.mxu0
    %v7497 = vadd.f32 %v7423, %v7496
    %v7498 = vand.u32 %v7332, 4294901760
    %v7499 = vsub.f32 %v7332, %v7498
    %v7500 = vand.u32 %v7499, 4294901760
    %v7501 = vsub.f32 %v7499, %v7500
    %v7502 = vand.u32 %v7501, 4294901760
    %7503 = vmatmul.f32.gmra.mxu0 %v7502
    %v7504 = vpop.f32.mrf.mxu0
    %v7505 = vadd.f32 %v7428, %v7504
    %7506 = vdwg.mxu0
    %v7507 = vand.u32 %v7394, 4294901760
    %v7508 = vsub.f32 %v7394, %v7507
    %v7509 = vand.u32 %v7508, 4294901760
    %v7510 = vsub.f32 %v7508, %v7509
    %v7511 = vand.u32 %v7510, 4294901760
    %7512 = vmatpush.msra.mxu0 %v7511
    %v7513 = vand.u32 %v7390, 4294901760
    %v7514 = vsub.f32 %v7390, %v7513
    %v7515 = vand.u32 %v7514, 4294901760
    %v7516 = vsub.f32 %v7514, %v7515
    %v7517 = vand.u32 %v7516, 4294901760
    %7518 = vmatpush.msra.mxu0 %v7517
    %v7519 = vand.u32 %v7386, 4294901760
    %v7520 = vsub.f32 %v7386, %v7519
    %v7521 = vand.u32 %v7520, 4294901760
    %v7522 = vsub.f32 %v7520, %v7521
    %v7523 = vand.u32 %v7522, 4294901760
    %7524 = vmatpush.msra.mxu0 %v7523
    %v7525 = vand.u32 %v7382, 4294901760
    %v7526 = vsub.f32 %v7382, %v7525
    %v7527 = vand.u32 %v7526, 4294901760
    %v7528 = vsub.f32 %v7526, %v7527
    %v7529 = vand.u32 %v7528, 4294901760
    %7530 = vmatpush.msra.mxu0 %v7529
    %v7531 = vand.u32 %v7378, 4294901760
    %v7532 = vsub.f32 %v7378, %v7531
    %v7533 = vand.u32 %v7532, 4294901760
    %v7534 = vsub.f32 %v7532, %v7533
    %v7535 = vand.u32 %v7534, 4294901760
    %7536 = vmatpush.msra.mxu0 %v7535
    %v7537 = vand.u32 %v7374, 4294901760
    %v7538 = vsub.f32 %v7374, %v7537
    %v7539 = vand.u32 %v7538, 4294901760
    %v7540 = vsub.f32 %v7538, %v7539
    %v7541 = vand.u32 %v7540, 4294901760
    %7542 = vmatpush.msra.mxu0 %v7541
    %v7543 = vand.u32 %v7370, 4294901760
    %v7544 = vsub.f32 %v7370, %v7543
    %v7545 = vand.u32 %v7544, 4294901760
    %v7546 = vsub.f32 %v7544, %v7545
    %v7547 = vand.u32 %v7546, 4294901760
    %7548 = vmatpush.msra.mxu0 %v7547
    %v7549 = vand.u32 %v7366, 4294901760
    %v7550 = vsub.f32 %v7366, %v7549
    %v7551 = vand.u32 %v7550, 4294901760
    %v7552 = vsub.f32 %v7550, %v7551
    %v7553 = vand.u32 %v7552, 4294901760
    %7554 = vmatpush.msra.mxu0 %v7553
    %v7555 = vand.u32 %v7362, 4294901760
    %v7556 = vsub.f32 %v7362, %v7555
    %v7557 = vand.u32 %v7556, 4294901760
    %v7558 = vsub.f32 %v7556, %v7557
    %v7559 = vand.u32 %v7558, 4294901760
    %7560 = vmatpush.msra.mxu0 %v7559
    %v7561 = vand.u32 %v7358, 4294901760
    %v7562 = vsub.f32 %v7358, %v7561
    %v7563 = vand.u32 %v7562, 4294901760
    %v7564 = vsub.f32 %v7562, %v7563
    %v7565 = vand.u32 %v7564, 4294901760
    %7566 = vmatpush.msra.mxu0 %v7565
    %v7567 = vand.u32 %v7354, 4294901760
    %v7568 = vsub.f32 %v7354, %v7567
    %v7569 = vand.u32 %v7568, 4294901760
    %v7570 = vsub.f32 %v7568, %v7569
    %v7571 = vand.u32 %v7570, 4294901760
    %7572 = vmatpush.msra.mxu0 %v7571
    %v7573 = vand.u32 %v7350, 4294901760
    %v7574 = vsub.f32 %v7350, %v7573
    %v7575 = vand.u32 %v7574, 4294901760
    %v7576 = vsub.f32 %v7574, %v7575
    %v7577 = vand.u32 %v7576, 4294901760
    %7578 = vmatpush.msra.mxu0 %v7577
    %v7579 = vand.u32 %v7346, 4294901760
    %v7580 = vsub.f32 %v7346, %v7579
    %v7581 = vand.u32 %v7580, 4294901760
    %v7582 = vsub.f32 %v7580, %v7581
    %v7583 = vand.u32 %v7582, 4294901760
    %7584 = vmatpush.msra.mxu0 %v7583
    %v7585 = vand.u32 %v7342, 4294901760
    %v7586 = vsub.f32 %v7342, %v7585
    %v7587 = vand.u32 %v7586, 4294901760
    %v7588 = vsub.f32 %v7586, %v7587
    %v7589 = vand.u32 %v7588, 4294901760
    %7590 = vmatpush.msra.mxu0 %v7589
    %v7591 = vand.u32 %v7338, 4294901760
    %v7592 = vsub.f32 %v7338, %v7591
    %v7593 = vand.u32 %v7592, 4294901760
    %v7594 = vsub.f32 %v7592, %v7593
    %v7595 = vand.u32 %v7594, 4294901760
    %7596 = vmatpush.msra.mxu0 %v7595
    %v7597 = vand.u32 %v7334, 4294901760
    %v7598 = vsub.f32 %v7334, %v7597
    %v7599 = vand.u32 %v7598, 4294901760
    %v7600 = vsub.f32 %v7598, %v7599
    %v7601 = vand.u32 %v7600, 4294901760
    %7602 = vmatpush.msra.mxu0 %v7601
    %v7603 = vand.u32 %v7326, 4294901760
    %7604 = vmatmul.f32.gmra.mxu0 %v7603
    %v7605 = vpop.f32.mrf.mxu0
    %v7606 = vadd.f32 %v7481, %v7605
    %v7607 = vand.u32 %v7328, 4294901760
    %7608 = vmatmul.f32.gmra.mxu0 %v7607
    %v7609 = vpop.f32.mrf.mxu0
    %v7610 = vadd.f32 %v7489, %v7609
    %v7611 = vand.u32 %v7330, 4294901760
    %7612 = vmatmul.f32.gmra.mxu0 %v7611
    %v7613 = vpop.f32.mrf.mxu0
    %v7614 = vadd.f32 %v7497, %v7613
    %v7615 = vand.u32 %v7332, 4294901760
    %7616 = vmatmul.f32.gmra.mxu0 %v7615
    %v7617 = vpop.f32.mrf.mxu0
    %v7618 = vadd.f32 %v7505, %v7617
    %7619 = vdwg.mxu0
    %v7620 = vand.u32 %v7394, 4294901760
    %v7621 = vsub.f32 %v7394, %v7620
    %7622 = vmatpush.msra.mxu0 %v7621
    %v7623 = vand.u32 %v7390, 4294901760
    %v7624 = vsub.f32 %v7390, %v7623
    %7625 = vmatpush.msra.mxu0 %v7624
    %v7626 = vand.u32 %v7386, 4294901760
    %v7627 = vsub.f32 %v7386, %v7626
    %7628 = vmatpush.msra.mxu0 %v7627
    %v7629 = vand.u32 %v7382, 4294901760
    %v7630 = vsub.f32 %v7382, %v7629
    %7631 = vmatpush.msra.mxu0 %v7630
    %v7632 = vand.u32 %v7378, 4294901760
    %v7633 = vsub.f32 %v7378, %v7632
    %7634 = vmatpush.msra.mxu0 %v7633
    %v7635 = vand.u32 %v7374, 4294901760
    %v7636 = vsub.f32 %v7374, %v7635
    %7637 = vmatpush.msra.mxu0 %v7636
    %v7638 = vand.u32 %v7370, 4294901760
    %v7639 = vsub.f32 %v7370, %v7638
    %7640 = vmatpush.msra.mxu0 %v7639
    %v7641 = vand.u32 %v7366, 4294901760
    %v7642 = vsub.f32 %v7366, %v7641
    %7643 = vmatpush.msra.mxu0 %v7642
    %v7644 = vand.u32 %v7362, 4294901760
    %v7645 = vsub.f32 %v7362, %v7644
    %7646 = vmatpush.msra.mxu0 %v7645
    %v7647 = vand.u32 %v7358, 4294901760
    %v7648 = vsub.f32 %v7358, %v7647
    %7649 = vmatpush.msra.mxu0 %v7648
    %v7650 = vand.u32 %v7354, 4294901760
    %v7651 = vsub.f32 %v7354, %v7650
    %7652 = vmatpush.msra.mxu0 %v7651
    %v7653 = vand.u32 %v7350, 4294901760
    %v7654 = vsub.f32 %v7350, %v7653
    %7655 = vmatpush.msra.mxu0 %v7654
    %v7656 = vand.u32 %v7346, 4294901760
    %v7657 = vsub.f32 %v7346, %v7656
    %7658 = vmatpush.msra.mxu0 %v7657
    %v7659 = vand.u32 %v7342, 4294901760
    %v7660 = vsub.f32 %v7342, %v7659
    %7661 = vmatpush.msra.mxu0 %v7660
    %v7662 = vand.u32 %v7338, 4294901760
    %v7663 = vsub.f32 %v7338, %v7662
    %7664 = vmatpush.msra.mxu0 %v7663
    %v7665 = vand.u32 %v7334, 4294901760
    %v7666 = vsub.f32 %v7334, %v7665
    %7667 = vmatpush.msra.mxu0 %v7666
    %v7668 = vand.u32 %v7326, 4294901760
    %v7669 = vsub.f32 %v7326, %v7668
    %7670 = vmatmul.f32.gmra.mxu0 %v7669
    %v7671 = vpop.f32.mrf.mxu0
    %v7672 = vadd.f32 %v7606, %v7671
    %v7673 = vand.u32 %v7328, 4294901760
    %v7674 = vsub.f32 %v7328, %v7673
    %7675 = vmatmul.f32.gmra.mxu0 %v7674
    %v7676 = vpop.f32.mrf.mxu0
    %v7677 = vadd.f32 %v7610, %v7676
    %v7678 = vand.u32 %v7330, 4294901760
    %v7679 = vsub.f32 %v7330, %v7678
    %7680 = vmatmul.f32.gmra.mxu0 %v7679
    %v7681 = vpop.f32.mrf.mxu0
    %v7682 = vadd.f32 %v7614, %v7681
    %v7683 = vand.u32 %v7332, 4294901760
    %v7684 = vsub.f32 %v7332, %v7683
    %7685 = vmatmul.f32.gmra.mxu0 %v7684
    %v7686 = vpop.f32.mrf.mxu0
    %v7687 = vadd.f32 %v7618, %v7686
    %7688 = vdwg.mxu0
    %v7689 = vand.u32 %v7394, 4294901760
    %7690 = vmatpush.msra.mxu0 %v7689
    %v7691 = vand.u32 %v7390, 4294901760
    %7692 = vmatpush.msra.mxu0 %v7691
    %v7693 = vand.u32 %v7386, 4294901760
    %7694 = vmatpush.msra.mxu0 %v7693
    %v7695 = vand.u32 %v7382, 4294901760
    %7696 = vmatpush.msra.mxu0 %v7695
    %v7697 = vand.u32 %v7378, 4294901760
    %7698 = vmatpush.msra.mxu0 %v7697
    %v7699 = vand.u32 %v7374, 4294901760
    %7700 = vmatpush.msra.mxu0 %v7699
    %v7701 = vand.u32 %v7370, 4294901760
    %7702 = vmatpush.msra.mxu0 %v7701
    %v7703 = vand.u32 %v7366, 4294901760
    %7704 = vmatpush.msra.mxu0 %v7703
    %v7705 = vand.u32 %v7362, 4294901760
    %7706 = vmatpush.msra.mxu0 %v7705
    %v7707 = vand.u32 %v7358, 4294901760
    %7708 = vmatpush.msra.mxu0 %v7707
    %v7709 = vand.u32 %v7354, 4294901760
    %7710 = vmatpush.msra.mxu0 %v7709
    %v7711 = vand.u32 %v7350, 4294901760
    %7712 = vmatpush.msra.mxu0 %v7711
    %v7713 = vand.u32 %v7346, 4294901760
    %7714 = vmatpush.msra.mxu0 %v7713
    %v7715 = vand.u32 %v7342, 4294901760
    %7716 = vmatpush.msra.mxu0 %v7715
    %v7717 = vand.u32 %v7338, 4294901760
    %7718 = vmatpush.msra.mxu0 %v7717
    %v7719 = vand.u32 %v7334, 4294901760
    %7720 = vmatpush.msra.mxu0 %v7719
    %v7721 = vand.u32 %v7326, 4294901760
    %v7722 = vsub.f32 %v7326, %v7721
    %v7723 = vand.u32 %v7722, 4294901760
    %7724 = vmatmul.f32.gmra.mxu0 %v7723
    %v7725 = vpop.f32.mrf.mxu0
    %v7726 = vadd.f32 %v7672, %v7725
    %v7727 = vand.u32 %v7328, 4294901760
    %v7728 = vsub.f32 %v7328, %v7727
    %v7729 = vand.u32 %v7728, 4294901760
    %7730 = vmatmul.f32.gmra.mxu0 %v7729
    %v7731 = vpop.f32.mrf.mxu0
    %v7732 = vadd.f32 %v7677, %v7731
    %v7733 = vand.u32 %v7330, 4294901760
    %v7734 = vsub.f32 %v7330, %v7733
    %v7735 = vand.u32 %v7734, 4294901760
    %7736 = vmatmul.f32.gmra.mxu0 %v7735
    %v7737 = vpop.f32.mrf.mxu0
    %v7738 = vadd.f32 %v7682, %v7737
    %v7739 = vand.u32 %v7332, 4294901760
    %v7740 = vsub.f32 %v7332, %v7739
    %v7741 = vand.u32 %v7740, 4294901760
    %7742 = vmatmul.f32.gmra.mxu0 %v7741
    %v7743 = vpop.f32.mrf.mxu0
    %v7744 = vadd.f32 %v7687, %v7743
    %7745 = vdwg.mxu0
    %v7746 = vand.u32 %v7394, 4294901760
    %v7747 = vsub.f32 %v7394, %v7746
    %v7748 = vand.u32 %v7747, 4294901760
    %7749 = vmatpush.msra.mxu0 %v7748
    %v7750 = vand.u32 %v7390, 4294901760
    %v7751 = vsub.f32 %v7390, %v7750
    %v7752 = vand.u32 %v7751, 4294901760
    %7753 = vmatpush.msra.mxu0 %v7752
    %v7754 = vand.u32 %v7386, 4294901760
    %v7755 = vsub.f32 %v7386, %v7754
    %v7756 = vand.u32 %v7755, 4294901760
    %7757 = vmatpush.msra.mxu0 %v7756
    %v7758 = vand.u32 %v7382, 4294901760
    %v7759 = vsub.f32 %v7382, %v7758
    %v7760 = vand.u32 %v7759, 4294901760
    %7761 = vmatpush.msra.mxu0 %v7760
    %v7762 = vand.u32 %v7378, 4294901760
    %v7763 = vsub.f32 %v7378, %v7762
    %v7764 = vand.u32 %v7763, 4294901760
    %7765 = vmatpush.msra.mxu0 %v7764
    %v7766 = vand.u32 %v7374, 4294901760
    %v7767 = vsub.f32 %v7374, %v7766
    %v7768 = vand.u32 %v7767, 4294901760
    %7769 = vmatpush.msra.mxu0 %v7768
    %v7770 = vand.u32 %v7370, 4294901760
    %v7771 = vsub.f32 %v7370, %v7770
    %v7772 = vand.u32 %v7771, 4294901760
    %7773 = vmatpush.msra.mxu0 %v7772
    %v7774 = vand.u32 %v7366, 4294901760
    %v7775 = vsub.f32 %v7366, %v7774
    %v7776 = vand.u32 %v7775, 4294901760
    %7777 = vmatpush.msra.mxu0 %v7776
    %v7778 = vand.u32 %v7362, 4294901760
    %v7779 = vsub.f32 %v7362, %v7778
    %v7780 = vand.u32 %v7779, 4294901760
    %7781 = vmatpush.msra.mxu0 %v7780
    %v7782 = vand.u32 %v7358, 4294901760
    %v7783 = vsub.f32 %v7358, %v7782
    %v7784 = vand.u32 %v7783, 4294901760
    %7785 = vmatpush.msra.mxu0 %v7784
    %v7786 = vand.u32 %v7354, 4294901760
    %v7787 = vsub.f32 %v7354, %v7786
    %v7788 = vand.u32 %v7787, 4294901760
    %7789 = vmatpush.msra.mxu0 %v7788
    %v7790 = vand.u32 %v7350, 4294901760
    %v7791 = vsub.f32 %v7350, %v7790
    %v7792 = vand.u32 %v7791, 4294901760
    %7793 = vmatpush.msra.mxu0 %v7792
    %v7794 = vand.u32 %v7346, 4294901760
    %v7795 = vsub.f32 %v7346, %v7794
    %v7796 = vand.u32 %v7795, 4294901760
    %7797 = vmatpush.msra.mxu0 %v7796
    %v7798 = vand.u32 %v7342, 4294901760
    %v7799 = vsub.f32 %v7342, %v7798
    %v7800 = vand.u32 %v7799, 4294901760
    %7801 = vmatpush.msra.mxu0 %v7800
    %v7802 = vand.u32 %v7338, 4294901760
    %v7803 = vsub.f32 %v7338, %v7802
    %v7804 = vand.u32 %v7803, 4294901760
    %7805 = vmatpush.msra.mxu0 %v7804
    %v7806 = vand.u32 %v7334, 4294901760
    %v7807 = vsub.f32 %v7334, %v7806
    %v7808 = vand.u32 %v7807, 4294901760
    %7809 = vmatpush.msra.mxu0 %v7808
    %v7810 = vand.u32 %v7326, 4294901760
    %7811 = vmatmul.f32.gmra.mxu0 %v7810
    %v7812 = vpop.f32.mrf.mxu0
    %v7813 = vadd.f32 %v7726, %v7812
    %v7814 = vand.u32 %v7328, 4294901760
    %7815 = vmatmul.f32.gmra.mxu0 %v7814
    %v7816 = vpop.f32.mrf.mxu0
    %v7817 = vadd.f32 %v7732, %v7816
    %v7818 = vand.u32 %v7330, 4294901760
    %7819 = vmatmul.f32.gmra.mxu0 %v7818
    %v7820 = vpop.f32.mrf.mxu0
    %v7821 = vadd.f32 %v7738, %v7820
    %v7822 = vand.u32 %v7332, 4294901760
    %7823 = vmatmul.f32.gmra.mxu0 %v7822
    %v7824 = vpop.f32.mrf.mxu0
    %v7825 = vadd.f32 %v7744, %v7824
    %7826 = vdwg.mxu0
    %v7827 = vand.u32 %v7394, 4294901760
    %7828 = vmatpush.msra.mxu0 %v7827
    %v7829 = vand.u32 %v7390, 4294901760
    %7830 = vmatpush.msra.mxu0 %v7829
    %v7831 = vand.u32 %v7386, 4294901760
    %7832 = vmatpush.msra.mxu0 %v7831
    %v7833 = vand.u32 %v7382, 4294901760
    %7834 = vmatpush.msra.mxu0 %v7833
    %v7835 = vand.u32 %v7378, 4294901760
    %7836 = vmatpush.msra.mxu0 %v7835
    %v7837 = vand.u32 %v7374, 4294901760
    %7838 = vmatpush.msra.mxu0 %v7837
    %v7839 = vand.u32 %v7370, 4294901760
    %7840 = vmatpush.msra.mxu0 %v7839
    %v7841 = vand.u32 %v7366, 4294901760
    %7842 = vmatpush.msra.mxu0 %v7841
    %v7843 = vand.u32 %v7362, 4294901760
    %7844 = vmatpush.msra.mxu0 %v7843
    %v7845 = vand.u32 %v7358, 4294901760
    %7846 = vmatpush.msra.mxu0 %v7845
    %v7847 = vand.u32 %v7354, 4294901760
    %7848 = vmatpush.msra.mxu0 %v7847
    %v7849 = vand.u32 %v7350, 4294901760
    %7850 = vmatpush.msra.mxu0 %v7849
    %v7851 = vand.u32 %v7346, 4294901760
    %7852 = vmatpush.msra.mxu0 %v7851
    %v7853 = vand.u32 %v7342, 4294901760
    %7854 = vmatpush.msra.mxu0 %v7853
    %v7855 = vand.u32 %v7338, 4294901760
    %7856 = vmatpush.msra.mxu0 %v7855
    %v7857 = vand.u32 %v7334, 4294901760
    %7858 = vmatpush.msra.mxu0 %v7857
    %v7859 = vand.u32 %v7326, 4294901760
    %7860 = vmatmul.f32.gmra.mxu0 %v7859
    %v7861 = vpop.f32.mrf.mxu0
    %v7862 = vadd.f32 %v7813, %v7861
    %v7863 = vand.u32 %v7328, 4294901760
    %7864 = vmatmul.f32.gmra.mxu0 %v7863
    %v7865 = vpop.f32.mrf.mxu0
    %v7866 = vadd.f32 %v7817, %v7865
    %v7867 = vand.u32 %v7330, 4294901760
    %7868 = vmatmul.f32.gmra.mxu0 %v7867
    %v7869 = vpop.f32.mrf.mxu0
    %v7870 = vadd.f32 %v7821, %v7869
    %v7871 = vand.u32 %v7332, 4294901760
    %7872 = vmatmul.f32.gmra.mxu0 %v7871
    %v7873 = vpop.f32.mrf.mxu0
    %v7874 = vadd.f32 %v7825, %v7873
    %7875 = vdwg.mxu0
    %7876 = vmatpush.msra.mxu0 0.0
    %7877 = vmatpush.msra.mxu0 0.0
    %7878 = vmatpush.msra.mxu0 0.0
    %7879 = vmatpush.msra.mxu0 0.0
    %7880 = vmatpush.msra.mxu0 0.0
    %7881 = vmatpush.msra.mxu0 0.0
    %7882 = vmatpush.msra.mxu0 0.0
    %7883 = vmatpush.msra.mxu0 0.0
    %7884 = vmatpush.msra.mxu0 0.0
    %7885 = vmatpush.msra.mxu0 0.0
    %7886 = vmatpush.msra.mxu0 0.0
    %7887 = vmatpush.msra.mxu0 0.0
    %7888 = vmatpush.msra.mxu0 0.0
    %7889 = vmatpush.msra.mxu0 0.0
    %v7890 = vand.u32 %v7402, 4294901760
    %7891 = vmatpush.msra.mxu0 %v7890
    %v7892 = vand.u32 %v7398, 4294901760
    %7893 = vmatpush.msra.mxu0 %v7892
    %v7894 = vand.u32 %v7431, 4294901760
    %v7895 = vsub.f32 %v7431, %v7894
    %v7896 = vand.u32 %v7895, 4294901760
    %v7897 = vsub.f32 %v7895, %v7896
    %v7898 = vand.u32 %v7897, 4294901760
    %7899 = vmatmul.f32.gmra.mxu0 %v7898
    %v7900 = vpop.f32.mrf.mxu0
    %v7901 = vadd.f32 %v7862, %v7900
    %v7902 = vand.u32 %v7434, 4294901760
    %v7903 = vsub.f32 %v7434, %v7902
    %v7904 = vand.u32 %v7903, 4294901760
    %v7905 = vsub.f32 %v7903, %v7904
    %v7906 = vand.u32 %v7905, 4294901760
    %7907 = vmatmul.f32.gmra.mxu0 %v7906
    %v7908 = vpop.f32.mrf.mxu0
    %v7909 = vadd.f32 %v7866, %v7908
    %v7910 = vand.u32 %v7437, 4294901760
    %v7911 = vsub.f32 %v7437, %v7910
    %v7912 = vand.u32 %v7911, 4294901760
    %v7913 = vsub.f32 %v7911, %v7912
    %v7914 = vand.u32 %v7913, 4294901760
    %7915 = vmatmul.f32.gmra.mxu0 %v7914
    %v7916 = vpop.f32.mrf.mxu0
    %v7917 = vadd.f32 %v7870, %v7916
    %v7918 = vand.u32 %v7440, 4294901760
    %v7919 = vsub.f32 %v7440, %v7918
    %v7920 = vand.u32 %v7919, 4294901760
    %v7921 = vsub.f32 %v7919, %v7920
    %v7922 = vand.u32 %v7921, 4294901760
    %7923 = vmatmul.f32.gmra.mxu0 %v7922
    %v7924 = vpop.f32.mrf.mxu0
    %v7925 = vadd.f32 %v7874, %v7924
    %7926 = vdwg.mxu0
    %7927 = vmatpush.msra.mxu0 0.0
    %7928 = vmatpush.msra.mxu0 0.0
    %7929 = vmatpush.msra.mxu0 0.0
    %7930 = vmatpush.msra.mxu0 0.0
    %7931 = vmatpush.msra.mxu0 0.0
    %7932 = vmatpush.msra.mxu0 0.0
    %7933 = vmatpush.msra.mxu0 0.0
    %7934 = vmatpush.msra.mxu0 0.0
    %7935 = vmatpush.msra.mxu0 0.0
    %7936 = vmatpush.msra.mxu0 0.0
    %7937 = vmatpush.msra.mxu0 0.0
    %7938 = vmatpush.msra.mxu0 0.0
    %7939 = vmatpush.msra.mxu0 0.0
    %7940 = vmatpush.msra.mxu0 0.0
    %v7941 = vand.u32 %v7402, 4294901760
    %v7942 = vsub.f32 %v7402, %v7941
    %v7943 = vand.u32 %v7942, 4294901760
    %v7944 = vsub.f32 %v7942, %v7943
    %v7945 = vand.u32 %v7944, 4294901760
    %7946 = vmatpush.msra.mxu0 %v7945
    %v7947 = vand.u32 %v7398, 4294901760
    %v7948 = vsub.f32 %v7398, %v7947
    %v7949 = vand.u32 %v7948, 4294901760
    %v7950 = vsub.f32 %v7948, %v7949
    %v7951 = vand.u32 %v7950, 4294901760
    %7952 = vmatpush.msra.mxu0 %v7951
    %v7953 = vand.u32 %v7431, 4294901760
    %7954 = vmatmul.f32.gmra.mxu0 %v7953
    %v7955 = vpop.f32.mrf.mxu0
    %v7956 = vadd.f32 %v7901, %v7955
    %v7957 = vand.u32 %v7434, 4294901760
    %7958 = vmatmul.f32.gmra.mxu0 %v7957
    %v7959 = vpop.f32.mrf.mxu0
    %v7960 = vadd.f32 %v7909, %v7959
    %v7961 = vand.u32 %v7437, 4294901760
    %7962 = vmatmul.f32.gmra.mxu0 %v7961
    %v7963 = vpop.f32.mrf.mxu0
    %v7964 = vadd.f32 %v7917, %v7963
    %v7965 = vand.u32 %v7440, 4294901760
    %7966 = vmatmul.f32.gmra.mxu0 %v7965
    %v7967 = vpop.f32.mrf.mxu0
    %v7968 = vadd.f32 %v7925, %v7967
    %7969 = vdwg.mxu0
    %7970 = vmatpush.msra.mxu0 0.0
    %7971 = vmatpush.msra.mxu0 0.0
    %7972 = vmatpush.msra.mxu0 0.0
    %7973 = vmatpush.msra.mxu0 0.0
    %7974 = vmatpush.msra.mxu0 0.0
    %7975 = vmatpush.msra.mxu0 0.0
    %7976 = vmatpush.msra.mxu0 0.0
    %7977 = vmatpush.msra.mxu0 0.0
    %7978 = vmatpush.msra.mxu0 0.0
    %7979 = vmatpush.msra.mxu0 0.0
    %7980 = vmatpush.msra.mxu0 0.0
    %7981 = vmatpush.msra.mxu0 0.0
    %7982 = vmatpush.msra.mxu0 0.0
    %7983 = vmatpush.msra.mxu0 0.0
    %v7984 = vand.u32 %v7402, 4294901760
    %v7985 = vsub.f32 %v7402, %v7984
    %7986 = vmatpush.msra.mxu0 %v7985
    %v7987 = vand.u32 %v7398, 4294901760
    %v7988 = vsub.f32 %v7398, %v7987
    %7989 = vmatpush.msra.mxu0 %v7988
    %v7990 = vand.u32 %v7431, 4294901760
    %v7991 = vsub.f32 %v7431, %v7990
    %7992 = vmatmul.f32.gmra.mxu0 %v7991
    %v7993 = vpop.f32.mrf.mxu0
    %v7994 = vadd.f32 %v7956, %v7993
    %v7995 = vand.u32 %v7434, 4294901760
    %v7996 = vsub.f32 %v7434, %v7995
    %7997 = vmatmul.f32.gmra.mxu0 %v7996
    %v7998 = vpop.f32.mrf.mxu0
    %v7999 = vadd.f32 %v7960, %v7998
    %v8000 = vand.u32 %v7437, 4294901760
    %v8001 = vsub.f32 %v7437, %v8000
    %8002 = vmatmul.f32.gmra.mxu0 %v8001
    %v8003 = vpop.f32.mrf.mxu0
    %v8004 = vadd.f32 %v7964, %v8003
    %v8005 = vand.u32 %v7440, 4294901760
    %v8006 = vsub.f32 %v7440, %v8005
    %8007 = vmatmul.f32.gmra.mxu0 %v8006
    %v8008 = vpop.f32.mrf.mxu0
    %v8009 = vadd.f32 %v7968, %v8008
    %8010 = vdwg.mxu0
    %8011 = vmatpush.msra.mxu0 0.0
    %8012 = vmatpush.msra.mxu0 0.0
    %8013 = vmatpush.msra.mxu0 0.0
    %8014 = vmatpush.msra.mxu0 0.0
    %8015 = vmatpush.msra.mxu0 0.0
    %8016 = vmatpush.msra.mxu0 0.0
    %8017 = vmatpush.msra.mxu0 0.0
    %8018 = vmatpush.msra.mxu0 0.0
    %8019 = vmatpush.msra.mxu0 0.0
    %8020 = vmatpush.msra.mxu0 0.0
    %8021 = vmatpush.msra.mxu0 0.0
    %8022 = vmatpush.msra.mxu0 0.0
    %8023 = vmatpush.msra.mxu0 0.0
    %8024 = vmatpush.msra.mxu0 0.0
    %v8025 = vand.u32 %v7402, 4294901760
    %8026 = vmatpush.msra.mxu0 %v8025
    %v8027 = vand.u32 %v7398, 4294901760
    %8028 = vmatpush.msra.mxu0 %v8027
    %v8029 = vand.u32 %v7431, 4294901760
    %v8030 = vsub.f32 %v7431, %v8029
    %v8031 = vand.u32 %v8030, 4294901760
    %8032 = vmatmul.f32.gmra.mxu0 %v8031
    %v8033 = vpop.f32.mrf.mxu0
    %v8034 = vadd.f32 %v7994, %v8033
    %v8035 = vand.u32 %v7434, 4294901760
    %v8036 = vsub.f32 %v7434, %v8035
    %v8037 = vand.u32 %v8036, 4294901760
    %8038 = vmatmul.f32.gmra.mxu0 %v8037
    %v8039 = vpop.f32.mrf.mxu0
    %v8040 = vadd.f32 %v7999, %v8039
    %v8041 = vand.u32 %v7437, 4294901760
    %v8042 = vsub.f32 %v7437, %v8041
    %v8043 = vand.u32 %v8042, 4294901760
    %8044 = vmatmul.f32.gmra.mxu0 %v8043
    %v8045 = vpop.f32.mrf.mxu0
    %v8046 = vadd.f32 %v8004, %v8045
    %v8047 = vand.u32 %v7440, 4294901760
    %v8048 = vsub.f32 %v7440, %v8047
    %v8049 = vand.u32 %v8048, 4294901760
    %8050 = vmatmul.f32.gmra.mxu0 %v8049
    %v8051 = vpop.f32.mrf.mxu0
    %v8052 = vadd.f32 %v8009, %v8051
    %8053 = vdwg.mxu0
    %8054 = vmatpush.msra.mxu0 0.0
    %8055 = vmatpush.msra.mxu0 0.0
    %8056 = vmatpush.msra.mxu0 0.0
    %8057 = vmatpush.msra.mxu0 0.0
    %8058 = vmatpush.msra.mxu0 0.0
    %8059 = vmatpush.msra.mxu0 0.0
    %8060 = vmatpush.msra.mxu0 0.0
    %8061 = vmatpush.msra.mxu0 0.0
    %8062 = vmatpush.msra.mxu0 0.0
    %8063 = vmatpush.msra.mxu0 0.0
    %8064 = vmatpush.msra.mxu0 0.0
    %8065 = vmatpush.msra.mxu0 0.0
    %8066 = vmatpush.msra.mxu0 0.0
    %8067 = vmatpush.msra.mxu0 0.0
    %v8068 = vand.u32 %v7402, 4294901760
    %v8069 = vsub.f32 %v7402, %v8068
    %v8070 = vand.u32 %v8069, 4294901760
    %8071 = vmatpush.msra.mxu0 %v8070
    %v8072 = vand.u32 %v7398, 4294901760
    %v8073 = vsub.f32 %v7398, %v8072
    %v8074 = vand.u32 %v8073, 4294901760
    %8075 = vmatpush.msra.mxu0 %v8074
    %v8076 = vand.u32 %v7431, 4294901760
    %8077 = vmatmul.f32.gmra.mxu0 %v8076
    %v8078 = vpop.f32.mrf.mxu0
    %v8079 = vadd.f32 %v8034, %v8078
    %v8080 = vand.u32 %v7434, 4294901760
    %8081 = vmatmul.f32.gmra.mxu0 %v8080
    %v8082 = vpop.f32.mrf.mxu0
    %v8083 = vadd.f32 %v8040, %v8082
    %v8084 = vand.u32 %v7437, 4294901760
    %8085 = vmatmul.f32.gmra.mxu0 %v8084
    %v8086 = vpop.f32.mrf.mxu0
    %v8087 = vadd.f32 %v8046, %v8086
    %v8088 = vand.u32 %v7440, 4294901760
    %8089 = vmatmul.f32.gmra.mxu0 %v8088
    %v8090 = vpop.f32.mrf.mxu0
    %v8091 = vadd.f32 %v8052, %v8090
    %8092 = vdwg.mxu0
    %8093 = vmatpush.msra.mxu0 0.0
    %8094 = vmatpush.msra.mxu0 0.0
    %8095 = vmatpush.msra.mxu0 0.0
    %8096 = vmatpush.msra.mxu0 0.0
    %8097 = vmatpush.msra.mxu0 0.0
    %8098 = vmatpush.msra.mxu0 0.0
    %8099 = vmatpush.msra.mxu0 0.0
    %8100 = vmatpush.msra.mxu0 0.0
    %8101 = vmatpush.msra.mxu0 0.0
    %8102 = vmatpush.msra.mxu0 0.0
    %8103 = vmatpush.msra.mxu0 0.0
    %8104 = vmatpush.msra.mxu0 0.0
    %8105 = vmatpush.msra.mxu0 0.0
    %8106 = vmatpush.msra.mxu0 0.0
    %v8107 = vand.u32 %v7402, 4294901760
    %8108 = vmatpush.msra.mxu0 %v8107
    %v8109 = vand.u32 %v7398, 4294901760
    %8110 = vmatpush.msra.mxu0 %v8109
    %v8111 = vand.u32 %v7431, 4294901760
    %8112 = vmatmul.f32.gmra.mxu0 %v8111
    %v8113 = vpop.f32.mrf.mxu0
    %v8114 = vadd.f32 %v8079, %v8113
    %v8115 = vand.u32 %v7434, 4294901760
    %8116 = vmatmul.f32.gmra.mxu0 %v8115
    %v8117 = vpop.f32.mrf.mxu0
    %v8118 = vadd.f32 %v8083, %v8117
    %v8119 = vand.u32 %v7437, 4294901760
    %8120 = vmatmul.f32.gmra.mxu0 %v8119
    %v8121 = vpop.f32.mrf.mxu0
    %v8122 = vadd.f32 %v8087, %v8121
    %v8123 = vand.u32 %v7440, 4294901760
    %8124 = vmatmul.f32.gmra.mxu0 %v8123
    %v8125 = vpop.f32.mrf.mxu0
    %v8126 = vadd.f32 %v8091, %v8125
    %8127 = vdwg.mxu0
    %v8128 = vand.u32 %v7395, 4294901760
    %8129 = vmatpush.msra.mxu0 %v8128
    %v8130 = vand.u32 %v7391, 4294901760
    %8131 = vmatpush.msra.mxu0 %v8130
    %v8132 = vand.u32 %v7387, 4294901760
    %8133 = vmatpush.msra.mxu0 %v8132
    %v8134 = vand.u32 %v7383, 4294901760
    %8135 = vmatpush.msra.mxu0 %v8134
    %v8136 = vand.u32 %v7379, 4294901760
    %8137 = vmatpush.msra.mxu0 %v8136
    %v8138 = vand.u32 %v7375, 4294901760
    %8139 = vmatpush.msra.mxu0 %v8138
    %v8140 = vand.u32 %v7371, 4294901760
    %8141 = vmatpush.msra.mxu0 %v8140
    %v8142 = vand.u32 %v7367, 4294901760
    %8143 = vmatpush.msra.mxu0 %v8142
    %v8144 = vand.u32 %v7363, 4294901760
    %8145 = vmatpush.msra.mxu0 %v8144
    %v8146 = vand.u32 %v7359, 4294901760
    %8147 = vmatpush.msra.mxu0 %v8146
    %v8148 = vand.u32 %v7355, 4294901760
    %8149 = vmatpush.msra.mxu0 %v8148
    %v8150 = vand.u32 %v7351, 4294901760
    %8151 = vmatpush.msra.mxu0 %v8150
    %v8152 = vand.u32 %v7347, 4294901760
    %8153 = vmatpush.msra.mxu0 %v8152
    %v8154 = vand.u32 %v7343, 4294901760
    %8155 = vmatpush.msra.mxu0 %v8154
    %v8156 = vand.u32 %v7339, 4294901760
    %8157 = vmatpush.msra.mxu0 %v8156
    %v8158 = vand.u32 %v7335, 4294901760
    %8159 = vmatpush.msra.mxu0 %v8158
    %v8160 = vand.u32 %v7326, 4294901760
    %v8161 = vsub.f32 %v7326, %v8160
    %v8162 = vand.u32 %v8161, 4294901760
    %v8163 = vsub.f32 %v8161, %v8162
    %v8164 = vand.u32 %v8163, 4294901760
    %8165 = vmatmul.f32.gmra.mxu0 %v8164
    %v8166 = vpop.f32.mrf.mxu0
    %v8167 = vadd.f32 %v7413, %v8166
    %v8168 = vand.u32 %v7328, 4294901760
    %v8169 = vsub.f32 %v7328, %v8168
    %v8170 = vand.u32 %v8169, 4294901760
    %v8171 = vsub.f32 %v8169, %v8170
    %v8172 = vand.u32 %v8171, 4294901760
    %8173 = vmatmul.f32.gmra.mxu0 %v8172
    %v8174 = vpop.f32.mrf.mxu0
    %v8175 = vadd.f32 %v7418, %v8174
    %v8176 = vand.u32 %v7330, 4294901760
    %v8177 = vsub.f32 %v7330, %v8176
    %v8178 = vand.u32 %v8177, 4294901760
    %v8179 = vsub.f32 %v8177, %v8178
    %v8180 = vand.u32 %v8179, 4294901760
    %8181 = vmatmul.f32.gmra.mxu0 %v8180
    %v8182 = vpop.f32.mrf.mxu0
    %v8183 = vadd.f32 %v7423, %v8182
    %v8184 = vand.u32 %v7332, 4294901760
    %v8185 = vsub.f32 %v7332, %v8184
    %v8186 = vand.u32 %v8185, 4294901760
    %v8187 = vsub.f32 %v8185, %v8186
    %v8188 = vand.u32 %v8187, 4294901760
    %8189 = vmatmul.f32.gmra.mxu0 %v8188
    %v8190 = vpop.f32.mrf.mxu0
    %v8191 = vadd.f32 %v7428, %v8190
    %8192 = vdwg.mxu0
    %v8193 = vand.u32 %v7395, 4294901760
    %v8194 = vsub.f32 %v7395, %v8193
    %v8195 = vand.u32 %v8194, 4294901760
    %v8196 = vsub.f32 %v8194, %v8195
    %v8197 = vand.u32 %v8196, 4294901760
    %8198 = vmatpush.msra.mxu0 %v8197
    %v8199 = vand.u32 %v7391, 4294901760
    %v8200 = vsub.f32 %v7391, %v8199
    %v8201 = vand.u32 %v8200, 4294901760
    %v8202 = vsub.f32 %v8200, %v8201
    %v8203 = vand.u32 %v8202, 4294901760
    %8204 = vmatpush.msra.mxu0 %v8203
    %v8205 = vand.u32 %v7387, 4294901760
    %v8206 = vsub.f32 %v7387, %v8205
    %v8207 = vand.u32 %v8206, 4294901760
    %v8208 = vsub.f32 %v8206, %v8207
    %v8209 = vand.u32 %v8208, 4294901760
    %8210 = vmatpush.msra.mxu0 %v8209
    %v8211 = vand.u32 %v7383, 4294901760
    %v8212 = vsub.f32 %v7383, %v8211
    %v8213 = vand.u32 %v8212, 4294901760
    %v8214 = vsub.f32 %v8212, %v8213
    %v8215 = vand.u32 %v8214, 4294901760
    %8216 = vmatpush.msra.mxu0 %v8215
    %v8217 = vand.u32 %v7379, 4294901760
    %v8218 = vsub.f32 %v7379, %v8217
    %v8219 = vand.u32 %v8218, 4294901760
    %v8220 = vsub.f32 %v8218, %v8219
    %v8221 = vand.u32 %v8220, 4294901760
    %8222 = vmatpush.msra.mxu0 %v8221
    %v8223 = vand.u32 %v7375, 4294901760
    %v8224 = vsub.f32 %v7375, %v8223
    %v8225 = vand.u32 %v8224, 4294901760
    %v8226 = vsub.f32 %v8224, %v8225
    %v8227 = vand.u32 %v8226, 4294901760
    %8228 = vmatpush.msra.mxu0 %v8227
    %v8229 = vand.u32 %v7371, 4294901760
    %v8230 = vsub.f32 %v7371, %v8229
    %v8231 = vand.u32 %v8230, 4294901760
    %v8232 = vsub.f32 %v8230, %v8231
    %v8233 = vand.u32 %v8232, 4294901760
    %8234 = vmatpush.msra.mxu0 %v8233
    %v8235 = vand.u32 %v7367, 4294901760
    %v8236 = vsub.f32 %v7367, %v8235
    %v8237 = vand.u32 %v8236, 4294901760
    %v8238 = vsub.f32 %v8236, %v8237
    %v8239 = vand.u32 %v8238, 4294901760
    %8240 = vmatpush.msra.mxu0 %v8239
    %v8241 = vand.u32 %v7363, 4294901760
    %v8242 = vsub.f32 %v7363, %v8241
    %v8243 = vand.u32 %v8242, 4294901760
    %v8244 = vsub.f32 %v8242, %v8243
    %v8245 = vand.u32 %v8244, 4294901760
    %8246 = vmatpush.msra.mxu0 %v8245
    %v8247 = vand.u32 %v7359, 4294901760
    %v8248 = vsub.f32 %v7359, %v8247
    %v8249 = vand.u32 %v8248, 4294901760
    %v8250 = vsub.f32 %v8248, %v8249
    %v8251 = vand.u32 %v8250, 4294901760
    %8252 = vmatpush.msra.mxu0 %v8251
    %v8253 = vand.u32 %v7355, 4294901760
    %v8254 = vsub.f32 %v7355, %v8253
    %v8255 = vand.u32 %v8254, 4294901760
    %v8256 = vsub.f32 %v8254, %v8255
    %v8257 = vand.u32 %v8256, 4294901760
    %8258 = vmatpush.msra.mxu0 %v8257
    %v8259 = vand.u32 %v7351, 4294901760
    %v8260 = vsub.f32 %v7351, %v8259
    %v8261 = vand.u32 %v8260, 4294901760
    %v8262 = vsub.f32 %v8260, %v8261
    %v8263 = vand.u32 %v8262, 4294901760
    %8264 = vmatpush.msra.mxu0 %v8263
    %v8265 = vand.u32 %v7347, 4294901760
    %v8266 = vsub.f32 %v7347, %v8265
    %v8267 = vand.u32 %v8266, 4294901760
    %v8268 = vsub.f32 %v8266, %v8267
    %v8269 = vand.u32 %v8268, 4294901760
    %8270 = vmatpush.msra.mxu0 %v8269
    %v8271 = vand.u32 %v7343, 4294901760
    %v8272 = vsub.f32 %v7343, %v8271
    %v8273 = vand.u32 %v8272, 4294901760
    %v8274 = vsub.f32 %v8272, %v8273
    %v8275 = vand.u32 %v8274, 4294901760
    %8276 = vmatpush.msra.mxu0 %v8275
    %v8277 = vand.u32 %v7339, 4294901760
    %v8278 = vsub.f32 %v7339, %v8277
    %v8279 = vand.u32 %v8278, 4294901760
    %v8280 = vsub.f32 %v8278, %v8279
    %v8281 = vand.u32 %v8280, 4294901760
    %8282 = vmatpush.msra.mxu0 %v8281
    %v8283 = vand.u32 %v7335, 4294901760
    %v8284 = vsub.f32 %v7335, %v8283
    %v8285 = vand.u32 %v8284, 4294901760
    %v8286 = vsub.f32 %v8284, %v8285
    %v8287 = vand.u32 %v8286, 4294901760
    %8288 = vmatpush.msra.mxu0 %v8287
    %v8289 = vand.u32 %v7326, 4294901760
    %8290 = vmatmul.f32.gmra.mxu0 %v8289
    %v8291 = vpop.f32.mrf.mxu0
    %v8292 = vadd.f32 %v8167, %v8291
    %v8293 = vand.u32 %v7328, 4294901760
    %8294 = vmatmul.f32.gmra.mxu0 %v8293
    %v8295 = vpop.f32.mrf.mxu0
    %v8296 = vadd.f32 %v8175, %v8295
    %v8297 = vand.u32 %v7330, 4294901760
    %8298 = vmatmul.f32.gmra.mxu0 %v8297
    %v8299 = vpop.f32.mrf.mxu0
    %v8300 = vadd.f32 %v8183, %v8299
    %v8301 = vand.u32 %v7332, 4294901760
    %8302 = vmatmul.f32.gmra.mxu0 %v8301
    %v8303 = vpop.f32.mrf.mxu0
    %v8304 = vadd.f32 %v8191, %v8303
    %8305 = vdwg.mxu0
    %v8306 = vand.u32 %v7395, 4294901760
    %v8307 = vsub.f32 %v7395, %v8306
    %8308 = vmatpush.msra.mxu0 %v8307
    %v8309 = vand.u32 %v7391, 4294901760
    %v8310 = vsub.f32 %v7391, %v8309
    %8311 = vmatpush.msra.mxu0 %v8310
    %v8312 = vand.u32 %v7387, 4294901760
    %v8313 = vsub.f32 %v7387, %v8312
    %8314 = vmatpush.msra.mxu0 %v8313
    %v8315 = vand.u32 %v7383, 4294901760
    %v8316 = vsub.f32 %v7383, %v8315
    %8317 = vmatpush.msra.mxu0 %v8316
    %v8318 = vand.u32 %v7379, 4294901760
    %v8319 = vsub.f32 %v7379, %v8318
    %8320 = vmatpush.msra.mxu0 %v8319
    %v8321 = vand.u32 %v7375, 4294901760
    %v8322 = vsub.f32 %v7375, %v8321
    %8323 = vmatpush.msra.mxu0 %v8322
    %v8324 = vand.u32 %v7371, 4294901760
    %v8325 = vsub.f32 %v7371, %v8324
    %8326 = vmatpush.msra.mxu0 %v8325
    %v8327 = vand.u32 %v7367, 4294901760
    %v8328 = vsub.f32 %v7367, %v8327
    %8329 = vmatpush.msra.mxu0 %v8328
    %v8330 = vand.u32 %v7363, 4294901760
    %v8331 = vsub.f32 %v7363, %v8330
    %8332 = vmatpush.msra.mxu0 %v8331
    %v8333 = vand.u32 %v7359, 4294901760
    %v8334 = vsub.f32 %v7359, %v8333
    %8335 = vmatpush.msra.mxu0 %v8334
    %v8336 = vand.u32 %v7355, 4294901760
    %v8337 = vsub.f32 %v7355, %v8336
    %8338 = vmatpush.msra.mxu0 %v8337
    %v8339 = vand.u32 %v7351, 4294901760
    %v8340 = vsub.f32 %v7351, %v8339
    %8341 = vmatpush.msra.mxu0 %v8340
    %v8342 = vand.u32 %v7347, 4294901760
    %v8343 = vsub.f32 %v7347, %v8342
    %8344 = vmatpush.msra.mxu0 %v8343
    %v8345 = vand.u32 %v7343, 4294901760
    %v8346 = vsub.f32 %v7343, %v8345
    %8347 = vmatpush.msra.mxu0 %v8346
    %v8348 = vand.u32 %v7339, 4294901760
    %v8349 = vsub.f32 %v7339, %v8348
    %8350 = vmatpush.msra.mxu0 %v8349
    %v8351 = vand.u32 %v7335, 4294901760
    %v8352 = vsub.f32 %v7335, %v8351
    %8353 = vmatpush.msra.mxu0 %v8352
    %v8354 = vand.u32 %v7326, 4294901760
    %v8355 = vsub.f32 %v7326, %v8354
    %8356 = vmatmul.f32.gmra.mxu0 %v8355
    %v8357 = vpop.f32.mrf.mxu0
    %v8358 = vadd.f32 %v8292, %v8357
    %v8359 = vand.u32 %v7328, 4294901760
    %v8360 = vsub.f32 %v7328, %v8359
    %8361 = vmatmul.f32.gmra.mxu0 %v8360
    %v8362 = vpop.f32.mrf.mxu0
    %v8363 = vadd.f32 %v8296, %v8362
    %v8364 = vand.u32 %v7330, 4294901760
    %v8365 = vsub.f32 %v7330, %v8364
    %8366 = vmatmul.f32.gmra.mxu0 %v8365
    %v8367 = vpop.f32.mrf.mxu0
    %v8368 = vadd.f32 %v8300, %v8367
    %v8369 = vand.u32 %v7332, 4294901760
    %v8370 = vsub.f32 %v7332, %v8369
    %8371 = vmatmul.f32.gmra.mxu0 %v8370
    %v8372 = vpop.f32.mrf.mxu0
    %v8373 = vadd.f32 %v8304, %v8372
    %8374 = vdwg.mxu0
    %v8375 = vand.u32 %v7395, 4294901760
    %8376 = vmatpush.msra.mxu0 %v8375
    %v8377 = vand.u32 %v7391, 4294901760
    %8378 = vmatpush.msra.mxu0 %v8377
    %v8379 = vand.u32 %v7387, 4294901760
    %8380 = vmatpush.msra.mxu0 %v8379
    %v8381 = vand.u32 %v7383, 4294901760
    %8382 = vmatpush.msra.mxu0 %v8381
    %v8383 = vand.u32 %v7379, 4294901760
    %8384 = vmatpush.msra.mxu0 %v8383
    %v8385 = vand.u32 %v7375, 4294901760
    %8386 = vmatpush.msra.mxu0 %v8385
    %v8387 = vand.u32 %v7371, 4294901760
    %8388 = vmatpush.msra.mxu0 %v8387
    %v8389 = vand.u32 %v7367, 4294901760
    %8390 = vmatpush.msra.mxu0 %v8389
    %v8391 = vand.u32 %v7363, 4294901760
    %8392 = vmatpush.msra.mxu0 %v8391
    %v8393 = vand.u32 %v7359, 4294901760
    %8394 = vmatpush.msra.mxu0 %v8393
    %v8395 = vand.u32 %v7355, 4294901760
    %8396 = vmatpush.msra.mxu0 %v8395
    %v8397 = vand.u32 %v7351, 4294901760
    %8398 = vmatpush.msra.mxu0 %v8397
    %v8399 = vand.u32 %v7347, 4294901760
    %8400 = vmatpush.msra.mxu0 %v8399
    %v8401 = vand.u32 %v7343, 4294901760
    %8402 = vmatpush.msra.mxu0 %v8401
    %v8403 = vand.u32 %v7339, 4294901760
    %8404 = vmatpush.msra.mxu0 %v8403
    %v8405 = vand.u32 %v7335, 4294901760
    %8406 = vmatpush.msra.mxu0 %v8405
    %v8407 = vand.u32 %v7326, 4294901760
    %v8408 = vsub.f32 %v7326, %v8407
    %v8409 = vand.u32 %v8408, 4294901760
    %8410 = vmatmul.f32.gmra.mxu0 %v8409
    %v8411 = vpop.f32.mrf.mxu0
    %v8412 = vadd.f32 %v8358, %v8411
    %v8413 = vand.u32 %v7328, 4294901760
    %v8414 = vsub.f32 %v7328, %v8413
    %v8415 = vand.u32 %v8414, 4294901760
    %8416 = vmatmul.f32.gmra.mxu0 %v8415
    %v8417 = vpop.f32.mrf.mxu0
    %v8418 = vadd.f32 %v8363, %v8417
    %v8419 = vand.u32 %v7330, 4294901760
    %v8420 = vsub.f32 %v7330, %v8419
    %v8421 = vand.u32 %v8420, 4294901760
    %8422 = vmatmul.f32.gmra.mxu0 %v8421
    %v8423 = vpop.f32.mrf.mxu0
    %v8424 = vadd.f32 %v8368, %v8423
    %v8425 = vand.u32 %v7332, 4294901760
    %v8426 = vsub.f32 %v7332, %v8425
    %v8427 = vand.u32 %v8426, 4294901760
    %8428 = vmatmul.f32.gmra.mxu0 %v8427
    %v8429 = vpop.f32.mrf.mxu0
    %v8430 = vadd.f32 %v8373, %v8429
    %8431 = vdwg.mxu0
    %v8432 = vand.u32 %v7395, 4294901760
    %v8433 = vsub.f32 %v7395, %v8432
    %v8434 = vand.u32 %v8433, 4294901760
    %8435 = vmatpush.msra.mxu0 %v8434
    %v8436 = vand.u32 %v7391, 4294901760
    %v8437 = vsub.f32 %v7391, %v8436
    %v8438 = vand.u32 %v8437, 4294901760
    %8439 = vmatpush.msra.mxu0 %v8438
    %v8440 = vand.u32 %v7387, 4294901760
    %v8441 = vsub.f32 %v7387, %v8440
    %v8442 = vand.u32 %v8441, 4294901760
    %8443 = vmatpush.msra.mxu0 %v8442
    %v8444 = vand.u32 %v7383, 4294901760
    %v8445 = vsub.f32 %v7383, %v8444
    %v8446 = vand.u32 %v8445, 4294901760
    %8447 = vmatpush.msra.mxu0 %v8446
    %v8448 = vand.u32 %v7379, 4294901760
    %v8449 = vsub.f32 %v7379, %v8448
    %v8450 = vand.u32 %v8449, 4294901760
    %8451 = vmatpush.msra.mxu0 %v8450
    %v8452 = vand.u32 %v7375, 4294901760
    %v8453 = vsub.f32 %v7375, %v8452
    %v8454 = vand.u32 %v8453, 4294901760
    %8455 = vmatpush.msra.mxu0 %v8454
    %v8456 = vand.u32 %v7371, 4294901760
    %v8457 = vsub.f32 %v7371, %v8456
    %v8458 = vand.u32 %v8457, 4294901760
    %8459 = vmatpush.msra.mxu0 %v8458
    %v8460 = vand.u32 %v7367, 4294901760
    %v8461 = vsub.f32 %v7367, %v8460
    %v8462 = vand.u32 %v8461, 4294901760
    %8463 = vmatpush.msra.mxu0 %v8462
    %v8464 = vand.u32 %v7363, 4294901760
    %v8465 = vsub.f32 %v7363, %v8464
    %v8466 = vand.u32 %v8465, 4294901760
    %8467 = vmatpush.msra.mxu0 %v8466
    %v8468 = vand.u32 %v7359, 4294901760
    %v8469 = vsub.f32 %v7359, %v8468
    %v8470 = vand.u32 %v8469, 4294901760
    %8471 = vmatpush.msra.mxu0 %v8470
    %v8472 = vand.u32 %v7355, 4294901760
    %v8473 = vsub.f32 %v7355, %v8472
    %v8474 = vand.u32 %v8473, 4294901760
    %8475 = vmatpush.msra.mxu0 %v8474
    %v8476 = vand.u32 %v7351, 4294901760
    %v8477 = vsub.f32 %v7351, %v8476
    %v8478 = vand.u32 %v8477, 4294901760
    %8479 = vmatpush.msra.mxu0 %v8478
    %v8480 = vand.u32 %v7347, 4294901760
    %v8481 = vsub.f32 %v7347, %v8480
    %v8482 = vand.u32 %v8481, 4294901760
    %8483 = vmatpush.msra.mxu0 %v8482
    %v8484 = vand.u32 %v7343, 4294901760
    %v8485 = vsub.f32 %v7343, %v8484
    %v8486 = vand.u32 %v8485, 4294901760
    %8487 = vmatpush.msra.mxu0 %v8486
    %v8488 = vand.u32 %v7339, 4294901760
    %v8489 = vsub.f32 %v7339, %v8488
    %v8490 = vand.u32 %v8489, 4294901760
    %8491 = vmatpush.msra.mxu0 %v8490
    %v8492 = vand.u32 %v7335, 4294901760
    %v8493 = vsub.f32 %v7335, %v8492
    %v8494 = vand.u32 %v8493, 4294901760
    %8495 = vmatpush.msra.mxu0 %v8494
    %v8496 = vand.u32 %v7326, 4294901760
    %8497 = vmatmul.f32.gmra.mxu0 %v8496
    %v8498 = vpop.f32.mrf.mxu0
    %v8499 = vadd.f32 %v8412, %v8498
    %v8500 = vand.u32 %v7328, 4294901760
    %8501 = vmatmul.f32.gmra.mxu0 %v8500
    %v8502 = vpop.f32.mrf.mxu0
    %v8503 = vadd.f32 %v8418, %v8502
    %v8504 = vand.u32 %v7330, 4294901760
    %8505 = vmatmul.f32.gmra.mxu0 %v8504
    %v8506 = vpop.f32.mrf.mxu0
    %v8507 = vadd.f32 %v8424, %v8506
    %v8508 = vand.u32 %v7332, 4294901760
    %8509 = vmatmul.f32.gmra.mxu0 %v8508
    %v8510 = vpop.f32.mrf.mxu0
    %v8511 = vadd.f32 %v8430, %v8510
    %8512 = vdwg.mxu0
    %v8513 = vand.u32 %v7395, 4294901760
    %8514 = vmatpush.msra.mxu0 %v8513
    %v8515 = vand.u32 %v7391, 4294901760
    %8516 = vmatpush.msra.mxu0 %v8515
    %v8517 = vand.u32 %v7387, 4294901760
    %8518 = vmatpush.msra.mxu0 %v8517
    %v8519 = vand.u32 %v7383, 4294901760
    %8520 = vmatpush.msra.mxu0 %v8519
    %v8521 = vand.u32 %v7379, 4294901760
    %8522 = vmatpush.msra.mxu0 %v8521
    %v8523 = vand.u32 %v7375, 4294901760
    %8524 = vmatpush.msra.mxu0 %v8523
    %v8525 = vand.u32 %v7371, 4294901760
    %8526 = vmatpush.msra.mxu0 %v8525
    %v8527 = vand.u32 %v7367, 4294901760
    %8528 = vmatpush.msra.mxu0 %v8527
    %v8529 = vand.u32 %v7363, 4294901760
    %8530 = vmatpush.msra.mxu0 %v8529
    %v8531 = vand.u32 %v7359, 4294901760
    %8532 = vmatpush.msra.mxu0 %v8531
    %v8533 = vand.u32 %v7355, 4294901760
    %8534 = vmatpush.msra.mxu0 %v8533
    %v8535 = vand.u32 %v7351, 4294901760
    %8536 = vmatpush.msra.mxu0 %v8535
    %v8537 = vand.u32 %v7347, 4294901760
    %8538 = vmatpush.msra.mxu0 %v8537
    %v8539 = vand.u32 %v7343, 4294901760
    %8540 = vmatpush.msra.mxu0 %v8539
    %v8541 = vand.u32 %v7339, 4294901760
    %8542 = vmatpush.msra.mxu0 %v8541
    %v8543 = vand.u32 %v7335, 4294901760
    %8544 = vmatpush.msra.mxu0 %v8543
    %v8545 = vand.u32 %v7326, 4294901760
    %8546 = vmatmul.f32.gmra.mxu0 %v8545
    %v8547 = vpop.f32.mrf.mxu0
    %v8548 = vadd.f32 %v8499, %v8547
    %v8549 = vand.u32 %v7328, 4294901760
    %8550 = vmatmul.f32.gmra.mxu0 %v8549
    %v8551 = vpop.f32.mrf.mxu0
    %v8552 = vadd.f32 %v8503, %v8551
    %v8553 = vand.u32 %v7330, 4294901760
    %8554 = vmatmul.f32.gmra.mxu0 %v8553
    %v8555 = vpop.f32.mrf.mxu0
    %v8556 = vadd.f32 %v8507, %v8555
    %v8557 = vand.u32 %v7332, 4294901760
    %8558 = vmatmul.f32.gmra.mxu0 %v8557
    %v8559 = vpop.f32.mrf.mxu0
    %v8560 = vadd.f32 %v8511, %v8559
    %8561 = vdwg.mxu0
    %8562 = vmatpush.msra.mxu0 0.0
    %8563 = vmatpush.msra.mxu0 0.0
    %8564 = vmatpush.msra.mxu0 0.0
    %8565 = vmatpush.msra.mxu0 0.0
    %8566 = vmatpush.msra.mxu0 0.0
    %8567 = vmatpush.msra.mxu0 0.0
    %8568 = vmatpush.msra.mxu0 0.0
    %8569 = vmatpush.msra.mxu0 0.0
    %8570 = vmatpush.msra.mxu0 0.0
    %8571 = vmatpush.msra.mxu0 0.0
    %8572 = vmatpush.msra.mxu0 0.0
    %8573 = vmatpush.msra.mxu0 0.0
    %8574 = vmatpush.msra.mxu0 0.0
    %8575 = vmatpush.msra.mxu0 0.0
    %v8576 = vand.u32 %v7403, 4294901760
    %8577 = vmatpush.msra.mxu0 %v8576
    %v8578 = vand.u32 %v7399, 4294901760
    %8579 = vmatpush.msra.mxu0 %v8578
    %v8580 = vand.u32 %v7431, 4294901760
    %v8581 = vsub.f32 %v7431, %v8580
    %v8582 = vand.u32 %v8581, 4294901760
    %v8583 = vsub.f32 %v8581, %v8582
    %v8584 = vand.u32 %v8583, 4294901760
    %8585 = vmatmul.f32.gmra.mxu0 %v8584
    %v8586 = vpop.f32.mrf.mxu0
    %v8587 = vadd.f32 %v8548, %v8586
    %v8588 = vand.u32 %v7434, 4294901760
    %v8589 = vsub.f32 %v7434, %v8588
    %v8590 = vand.u32 %v8589, 4294901760
    %v8591 = vsub.f32 %v8589, %v8590
    %v8592 = vand.u32 %v8591, 4294901760
    %8593 = vmatmul.f32.gmra.mxu0 %v8592
    %v8594 = vpop.f32.mrf.mxu0
    %v8595 = vadd.f32 %v8552, %v8594
    %v8596 = vand.u32 %v7437, 4294901760
    %v8597 = vsub.f32 %v7437, %v8596
    %v8598 = vand.u32 %v8597, 4294901760
    %v8599 = vsub.f32 %v8597, %v8598
    %v8600 = vand.u32 %v8599, 4294901760
    %8601 = vmatmul.f32.gmra.mxu0 %v8600
    %v8602 = vpop.f32.mrf.mxu0
    %v8603 = vadd.f32 %v8556, %v8602
    %v8604 = vand.u32 %v7440, 4294901760
    %v8605 = vsub.f32 %v7440, %v8604
    %v8606 = vand.u32 %v8605, 4294901760
    %v8607 = vsub.f32 %v8605, %v8606
    %v8608 = vand.u32 %v8607, 4294901760
    %8609 = vmatmul.f32.gmra.mxu0 %v8608
    %v8610 = vpop.f32.mrf.mxu0
    %v8611 = vadd.f32 %v8560, %v8610
    %8612 = vdwg.mxu0
    %8613 = vmatpush.msra.mxu0 0.0
    %8614 = vmatpush.msra.mxu0 0.0
    %8615 = vmatpush.msra.mxu0 0.0
    %8616 = vmatpush.msra.mxu0 0.0
    %8617 = vmatpush.msra.mxu0 0.0
    %8618 = vmatpush.msra.mxu0 0.0
    %8619 = vmatpush.msra.mxu0 0.0
    %8620 = vmatpush.msra.mxu0 0.0
    %8621 = vmatpush.msra.mxu0 0.0
    %8622 = vmatpush.msra.mxu0 0.0
    %8623 = vmatpush.msra.mxu0 0.0
    %8624 = vmatpush.msra.mxu0 0.0
    %8625 = vmatpush.msra.mxu0 0.0
    %8626 = vmatpush.msra.mxu0 0.0
    %v8627 = vand.u32 %v7403, 4294901760
    %v8628 = vsub.f32 %v7403, %v8627
    %v8629 = vand.u32 %v8628, 4294901760
    %v8630 = vsub.f32 %v8628, %v8629
    %v8631 = vand.u32 %v8630, 4294901760
    %8632 = vmatpush.msra.mxu0 %v8631
    %v8633 = vand.u32 %v7399, 4294901760
    %v8634 = vsub.f32 %v7399, %v8633
    %v8635 = vand.u32 %v8634, 4294901760
    %v8636 = vsub.f32 %v8634, %v8635
    %v8637 = vand.u32 %v8636, 4294901760
    %8638 = vmatpush.msra.mxu0 %v8637
    %v8639 = vand.u32 %v7431, 4294901760
    %8640 = vmatmul.f32.gmra.mxu0 %v8639
    %v8641 = vpop.f32.mrf.mxu0
    %v8642 = vadd.f32 %v8587, %v8641
    %v8643 = vand.u32 %v7434, 4294901760
    %8644 = vmatmul.f32.gmra.mxu0 %v8643
    %v8645 = vpop.f32.mrf.mxu0
    %v8646 = vadd.f32 %v8595, %v8645
    %v8647 = vand.u32 %v7437, 4294901760
    %8648 = vmatmul.f32.gmra.mxu0 %v8647
    %v8649 = vpop.f32.mrf.mxu0
    %v8650 = vadd.f32 %v8603, %v8649
    %v8651 = vand.u32 %v7440, 4294901760
    %8652 = vmatmul.f32.gmra.mxu0 %v8651
    %v8653 = vpop.f32.mrf.mxu0
    %v8654 = vadd.f32 %v8611, %v8653
    %8655 = vdwg.mxu0
    %8656 = vmatpush.msra.mxu0 0.0
    %8657 = vmatpush.msra.mxu0 0.0
    %8658 = vmatpush.msra.mxu0 0.0
    %8659 = vmatpush.msra.mxu0 0.0
    %8660 = vmatpush.msra.mxu0 0.0
    %8661 = vmatpush.msra.mxu0 0.0
    %8662 = vmatpush.msra.mxu0 0.0
    %8663 = vmatpush.msra.mxu0 0.0
    %8664 = vmatpush.msra.mxu0 0.0
    %8665 = vmatpush.msra.mxu0 0.0
    %8666 = vmatpush.msra.mxu0 0.0
    %8667 = vmatpush.msra.mxu0 0.0
    %8668 = vmatpush.msra.mxu0 0.0
    %8669 = vmatpush.msra.mxu0 0.0
    %v8670 = vand.u32 %v7403, 4294901760
    %v8671 = vsub.f32 %v7403, %v8670
    %8672 = vmatpush.msra.mxu0 %v8671
    %v8673 = vand.u32 %v7399, 4294901760
    %v8674 = vsub.f32 %v7399, %v8673
    %8675 = vmatpush.msra.mxu0 %v8674
    %v8676 = vand.u32 %v7431, 4294901760
    %v8677 = vsub.f32 %v7431, %v8676
    %8678 = vmatmul.f32.gmra.mxu0 %v8677
    %v8679 = vpop.f32.mrf.mxu0
    %v8680 = vadd.f32 %v8642, %v8679
    %v8681 = vand.u32 %v7434, 4294901760
    %v8682 = vsub.f32 %v7434, %v8681
    %8683 = vmatmul.f32.gmra.mxu0 %v8682
    %v8684 = vpop.f32.mrf.mxu0
    %v8685 = vadd.f32 %v8646, %v8684
    %v8686 = vand.u32 %v7437, 4294901760
    %v8687 = vsub.f32 %v7437, %v8686
    %8688 = vmatmul.f32.gmra.mxu0 %v8687
    %v8689 = vpop.f32.mrf.mxu0
    %v8690 = vadd.f32 %v8650, %v8689
    %v8691 = vand.u32 %v7440, 4294901760
    %v8692 = vsub.f32 %v7440, %v8691
    %8693 = vmatmul.f32.gmra.mxu0 %v8692
    %v8694 = vpop.f32.mrf.mxu0
    %v8695 = vadd.f32 %v8654, %v8694
    %8696 = vdwg.mxu0
    %8697 = vmatpush.msra.mxu0 0.0
    %8698 = vmatpush.msra.mxu0 0.0
    %8699 = vmatpush.msra.mxu0 0.0
    %8700 = vmatpush.msra.mxu0 0.0
    %8701 = vmatpush.msra.mxu0 0.0
    %8702 = vmatpush.msra.mxu0 0.0
    %8703 = vmatpush.msra.mxu0 0.0
    %8704 = vmatpush.msra.mxu0 0.0
    %8705 = vmatpush.msra.mxu0 0.0
    %8706 = vmatpush.msra.mxu0 0.0
    %8707 = vmatpush.msra.mxu0 0.0
    %8708 = vmatpush.msra.mxu0 0.0
    %8709 = vmatpush.msra.mxu0 0.0
    %8710 = vmatpush.msra.mxu0 0.0
    %v8711 = vand.u32 %v7403, 4294901760
    %8712 = vmatpush.msra.mxu0 %v8711
    %v8713 = vand.u32 %v7399, 4294901760
    %8714 = vmatpush.msra.mxu0 %v8713
    %v8715 = vand.u32 %v7431, 4294901760
    %v8716 = vsub.f32 %v7431, %v8715
    %v8717 = vand.u32 %v8716, 4294901760
    %8718 = vmatmul.f32.gmra.mxu0 %v8717
    %v8719 = vpop.f32.mrf.mxu0
    %v8720 = vadd.f32 %v8680, %v8719
    %v8721 = vand.u32 %v7434, 4294901760
    %v8722 = vsub.f32 %v7434, %v8721
    %v8723 = vand.u32 %v8722, 4294901760
    %8724 = vmatmul.f32.gmra.mxu0 %v8723
    %v8725 = vpop.f32.mrf.mxu0
    %v8726 = vadd.f32 %v8685, %v8725
    %v8727 = vand.u32 %v7437, 4294901760
    %v8728 = vsub.f32 %v7437, %v8727
    %v8729 = vand.u32 %v8728, 4294901760
    %8730 = vmatmul.f32.gmra.mxu0 %v8729
    %v8731 = vpop.f32.mrf.mxu0
    %v8732 = vadd.f32 %v8690, %v8731
    %v8733 = vand.u32 %v7440, 4294901760
    %v8734 = vsub.f32 %v7440, %v8733
    %v8735 = vand.u32 %v8734, 4294901760
    %8736 = vmatmul.f32.gmra.mxu0 %v8735
    %v8737 = vpop.f32.mrf.mxu0
    %v8738 = vadd.f32 %v8695, %v8737
    %8739 = vdwg.mxu0
    %8740 = vmatpush.msra.mxu0 0.0
    %8741 = vmatpush.msra.mxu0 0.0
    %8742 = vmatpush.msra.mxu0 0.0
    %8743 = vmatpush.msra.mxu0 0.0
    %8744 = vmatpush.msra.mxu0 0.0
    %8745 = vmatpush.msra.mxu0 0.0
    %8746 = vmatpush.msra.mxu0 0.0
    %8747 = vmatpush.msra.mxu0 0.0
    %8748 = vmatpush.msra.mxu0 0.0
    %8749 = vmatpush.msra.mxu0 0.0
    %8750 = vmatpush.msra.mxu0 0.0
    %8751 = vmatpush.msra.mxu0 0.0
    %8752 = vmatpush.msra.mxu0 0.0
    %8753 = vmatpush.msra.mxu0 0.0
    %v8754 = vand.u32 %v7403, 4294901760
    %v8755 = vsub.f32 %v7403, %v8754
    %v8756 = vand.u32 %v8755, 4294901760
    %8757 = vmatpush.msra.mxu0 %v8756
    %v8758 = vand.u32 %v7399, 4294901760
    %v8759 = vsub.f32 %v7399, %v8758
    %v8760 = vand.u32 %v8759, 4294901760
    %8761 = vmatpush.msra.mxu0 %v8760
    %v8762 = vand.u32 %v7431, 4294901760
    %8763 = vmatmul.f32.gmra.mxu0 %v8762
    %v8764 = vpop.f32.mrf.mxu0
    %v8765 = vadd.f32 %v8720, %v8764
    %v8766 = vand.u32 %v7434, 4294901760
    %8767 = vmatmul.f32.gmra.mxu0 %v8766
    %v8768 = vpop.f32.mrf.mxu0
    %v8769 = vadd.f32 %v8726, %v8768
    %v8770 = vand.u32 %v7437, 4294901760
    %8771 = vmatmul.f32.gmra.mxu0 %v8770
    %v8772 = vpop.f32.mrf.mxu0
    %v8773 = vadd.f32 %v8732, %v8772
    %v8774 = vand.u32 %v7440, 4294901760
    %8775 = vmatmul.f32.gmra.mxu0 %v8774
    %v8776 = vpop.f32.mrf.mxu0
    %v8777 = vadd.f32 %v8738, %v8776
    %8778 = vdwg.mxu0
    %8779 = vmatpush.msra.mxu0 0.0
    %8780 = vmatpush.msra.mxu0 0.0
    %8781 = vmatpush.msra.mxu0 0.0
    %8782 = vmatpush.msra.mxu0 0.0
    %8783 = vmatpush.msra.mxu0 0.0
    %8784 = vmatpush.msra.mxu0 0.0
    %8785 = vmatpush.msra.mxu0 0.0
    %8786 = vmatpush.msra.mxu0 0.0
    %8787 = vmatpush.msra.mxu0 0.0
    %8788 = vmatpush.msra.mxu0 0.0
    %8789 = vmatpush.msra.mxu0 0.0
    %8790 = vmatpush.msra.mxu0 0.0
    %8791 = vmatpush.msra.mxu0 0.0
    %8792 = vmatpush.msra.mxu0 0.0
    %v8793 = vand.u32 %v7403, 4294901760
    %8794 = vmatpush.msra.mxu0 %v8793
    %v8795 = vand.u32 %v7399, 4294901760
    %8796 = vmatpush.msra.mxu0 %v8795
    %v8797 = vand.u32 %v7431, 4294901760
    %8798 = vmatmul.f32.gmra.mxu0 %v8797
    %v8799 = vpop.f32.mrf.mxu0
    %v8800 = vadd.f32 %v8765, %v8799
    %v8801 = vand.u32 %v7434, 4294901760
    %8802 = vmatmul.f32.gmra.mxu0 %v8801
    %v8803 = vpop.f32.mrf.mxu0
    %v8804 = vadd.f32 %v8769, %v8803
    %v8805 = vand.u32 %v7437, 4294901760
    %8806 = vmatmul.f32.gmra.mxu0 %v8805
    %v8807 = vpop.f32.mrf.mxu0
    %v8808 = vadd.f32 %v8773, %v8807
    %v8809 = vand.u32 %v7440, 4294901760
    %8810 = vmatmul.f32.gmra.mxu0 %v8809
    %v8811 = vpop.f32.mrf.mxu0
    %v8812 = vadd.f32 %v8777, %v8811
    %8813 = vdwg.mxu0
    %v8814 = vand.u32 %v7396, 4294901760
    %8815 = vmatpush.msra.mxu0 %v8814
    %v8816 = vand.u32 %v7392, 4294901760
    %8817 = vmatpush.msra.mxu0 %v8816
    %v8818 = vand.u32 %v7388, 4294901760
    %8819 = vmatpush.msra.mxu0 %v8818
    %v8820 = vand.u32 %v7384, 4294901760
    %8821 = vmatpush.msra.mxu0 %v8820
    %v8822 = vand.u32 %v7380, 4294901760
    %8823 = vmatpush.msra.mxu0 %v8822
    %v8824 = vand.u32 %v7376, 4294901760
    %8825 = vmatpush.msra.mxu0 %v8824
    %v8826 = vand.u32 %v7372, 4294901760
    %8827 = vmatpush.msra.mxu0 %v8826
    %v8828 = vand.u32 %v7368, 4294901760
    %8829 = vmatpush.msra.mxu0 %v8828
    %v8830 = vand.u32 %v7364, 4294901760
    %8831 = vmatpush.msra.mxu0 %v8830
    %v8832 = vand.u32 %v7360, 4294901760
    %8833 = vmatpush.msra.mxu0 %v8832
    %v8834 = vand.u32 %v7356, 4294901760
    %8835 = vmatpush.msra.mxu0 %v8834
    %v8836 = vand.u32 %v7352, 4294901760
    %8837 = vmatpush.msra.mxu0 %v8836
    %v8838 = vand.u32 %v7348, 4294901760
    %8839 = vmatpush.msra.mxu0 %v8838
    %v8840 = vand.u32 %v7344, 4294901760
    %8841 = vmatpush.msra.mxu0 %v8840
    %v8842 = vand.u32 %v7340, 4294901760
    %8843 = vmatpush.msra.mxu0 %v8842
    %v8844 = vand.u32 %v7336, 4294901760
    %8845 = vmatpush.msra.mxu0 %v8844
    %v8846 = vand.u32 %v7326, 4294901760
    %v8847 = vsub.f32 %v7326, %v8846
    %v8848 = vand.u32 %v8847, 4294901760
    %v8849 = vsub.f32 %v8847, %v8848
    %v8850 = vand.u32 %v8849, 4294901760
    %8851 = vmatmul.f32.gmra.mxu0 %v8850
    %v8852 = vpop.f32.mrf.mxu0
    %v8853 = vadd.f32 %v7413, %v8852
    %v8854 = vand.u32 %v7328, 4294901760
    %v8855 = vsub.f32 %v7328, %v8854
    %v8856 = vand.u32 %v8855, 4294901760
    %v8857 = vsub.f32 %v8855, %v8856
    %v8858 = vand.u32 %v8857, 4294901760
    %8859 = vmatmul.f32.gmra.mxu0 %v8858
    %v8860 = vpop.f32.mrf.mxu0
    %v8861 = vadd.f32 %v7418, %v8860
    %v8862 = vand.u32 %v7330, 4294901760
    %v8863 = vsub.f32 %v7330, %v8862
    %v8864 = vand.u32 %v8863, 4294901760
    %v8865 = vsub.f32 %v8863, %v8864
    %v8866 = vand.u32 %v8865, 4294901760
    %8867 = vmatmul.f32.gmra.mxu0 %v8866
    %v8868 = vpop.f32.mrf.mxu0
    %v8869 = vadd.f32 %v7423, %v8868
    %v8870 = vand.u32 %v7332, 4294901760
    %v8871 = vsub.f32 %v7332, %v8870
    %v8872 = vand.u32 %v8871, 4294901760
    %v8873 = vsub.f32 %v8871, %v8872
    %v8874 = vand.u32 %v8873, 4294901760
    %8875 = vmatmul.f32.gmra.mxu0 %v8874
    %v8876 = vpop.f32.mrf.mxu0
    %v8877 = vadd.f32 %v7428, %v8876
    %8878 = vdwg.mxu0
    %v8879 = vand.u32 %v7396, 4294901760
    %v8880 = vsub.f32 %v7396, %v8879
    %v8881 = vand.u32 %v8880, 4294901760
    %v8882 = vsub.f32 %v8880, %v8881
    %v8883 = vand.u32 %v8882, 4294901760
    %8884 = vmatpush.msra.mxu0 %v8883
    %v8885 = vand.u32 %v7392, 4294901760
    %v8886 = vsub.f32 %v7392, %v8885
    %v8887 = vand.u32 %v8886, 4294901760
    %v8888 = vsub.f32 %v8886, %v8887
    %v8889 = vand.u32 %v8888, 4294901760
    %8890 = vmatpush.msra.mxu0 %v8889
    %v8891 = vand.u32 %v7388, 4294901760
    %v8892 = vsub.f32 %v7388, %v8891
    %v8893 = vand.u32 %v8892, 4294901760
    %v8894 = vsub.f32 %v8892, %v8893
    %v8895 = vand.u32 %v8894, 4294901760
    %8896 = vmatpush.msra.mxu0 %v8895
    %v8897 = vand.u32 %v7384, 4294901760
    %v8898 = vsub.f32 %v7384, %v8897
    %v8899 = vand.u32 %v8898, 4294901760
    %v8900 = vsub.f32 %v8898, %v8899
    %v8901 = vand.u32 %v8900, 4294901760
    %8902 = vmatpush.msra.mxu0 %v8901
    %v8903 = vand.u32 %v7380, 4294901760
    %v8904 = vsub.f32 %v7380, %v8903
    %v8905 = vand.u32 %v8904, 4294901760
    %v8906 = vsub.f32 %v8904, %v8905
    %v8907 = vand.u32 %v8906, 4294901760
    %8908 = vmatpush.msra.mxu0 %v8907
    %v8909 = vand.u32 %v7376, 4294901760
    %v8910 = vsub.f32 %v7376, %v8909
    %v8911 = vand.u32 %v8910, 4294901760
    %v8912 = vsub.f32 %v8910, %v8911
    %v8913 = vand.u32 %v8912, 4294901760
    %8914 = vmatpush.msra.mxu0 %v8913
    %v8915 = vand.u32 %v7372, 4294901760
    %v8916 = vsub.f32 %v7372, %v8915
    %v8917 = vand.u32 %v8916, 4294901760
    %v8918 = vsub.f32 %v8916, %v8917
    %v8919 = vand.u32 %v8918, 4294901760
    %8920 = vmatpush.msra.mxu0 %v8919
    %v8921 = vand.u32 %v7368, 4294901760
    %v8922 = vsub.f32 %v7368, %v8921
    %v8923 = vand.u32 %v8922, 4294901760
    %v8924 = vsub.f32 %v8922, %v8923
    %v8925 = vand.u32 %v8924, 4294901760
    %8926 = vmatpush.msra.mxu0 %v8925
    %v8927 = vand.u32 %v7364, 4294901760
    %v8928 = vsub.f32 %v7364, %v8927
    %v8929 = vand.u32 %v8928, 4294901760
    %v8930 = vsub.f32 %v8928, %v8929
    %v8931 = vand.u32 %v8930, 4294901760
    %8932 = vmatpush.msra.mxu0 %v8931
    %v8933 = vand.u32 %v7360, 4294901760
    %v8934 = vsub.f32 %v7360, %v8933
    %v8935 = vand.u32 %v8934, 4294901760
    %v8936 = vsub.f32 %v8934, %v8935
    %v8937 = vand.u32 %v8936, 4294901760
    %8938 = vmatpush.msra.mxu0 %v8937
    %v8939 = vand.u32 %v7356, 4294901760
    %v8940 = vsub.f32 %v7356, %v8939
    %v8941 = vand.u32 %v8940, 4294901760
    %v8942 = vsub.f32 %v8940, %v8941
    %v8943 = vand.u32 %v8942, 4294901760
    %8944 = vmatpush.msra.mxu0 %v8943
    %v8945 = vand.u32 %v7352, 4294901760
    %v8946 = vsub.f32 %v7352, %v8945
    %v8947 = vand.u32 %v8946, 4294901760
    %v8948 = vsub.f32 %v8946, %v8947
    %v8949 = vand.u32 %v8948, 4294901760
    %8950 = vmatpush.msra.mxu0 %v8949
    %v8951 = vand.u32 %v7348, 4294901760
    %v8952 = vsub.f32 %v7348, %v8951
    %v8953 = vand.u32 %v8952, 4294901760
    %v8954 = vsub.f32 %v8952, %v8953
    %v8955 = vand.u32 %v8954, 4294901760
    %8956 = vmatpush.msra.mxu0 %v8955
    %v8957 = vand.u32 %v7344, 4294901760
    %v8958 = vsub.f32 %v7344, %v8957
    %v8959 = vand.u32 %v8958, 4294901760
    %v8960 = vsub.f32 %v8958, %v8959
    %v8961 = vand.u32 %v8960, 4294901760
    %8962 = vmatpush.msra.mxu0 %v8961
    %v8963 = vand.u32 %v7340, 4294901760
    %v8964 = vsub.f32 %v7340, %v8963
    %v8965 = vand.u32 %v8964, 4294901760
    %v8966 = vsub.f32 %v8964, %v8965
    %v8967 = vand.u32 %v8966, 4294901760
    %8968 = vmatpush.msra.mxu0 %v8967
    %v8969 = vand.u32 %v7336, 4294901760
    %v8970 = vsub.f32 %v7336, %v8969
    %v8971 = vand.u32 %v8970, 4294901760
    %v8972 = vsub.f32 %v8970, %v8971
    %v8973 = vand.u32 %v8972, 4294901760
    %8974 = vmatpush.msra.mxu0 %v8973
    %v8975 = vand.u32 %v7326, 4294901760
    %8976 = vmatmul.f32.gmra.mxu0 %v8975
    %v8977 = vpop.f32.mrf.mxu0
    %v8978 = vadd.f32 %v8853, %v8977
    %v8979 = vand.u32 %v7328, 4294901760
    %8980 = vmatmul.f32.gmra.mxu0 %v8979
    %v8981 = vpop.f32.mrf.mxu0
    %v8982 = vadd.f32 %v8861, %v8981
    %v8983 = vand.u32 %v7330, 4294901760
    %8984 = vmatmul.f32.gmra.mxu0 %v8983
    %v8985 = vpop.f32.mrf.mxu0
    %v8986 = vadd.f32 %v8869, %v8985
    %v8987 = vand.u32 %v7332, 4294901760
    %8988 = vmatmul.f32.gmra.mxu0 %v8987
    %v8989 = vpop.f32.mrf.mxu0
    %v8990 = vadd.f32 %v8877, %v8989
    %8991 = vdwg.mxu0
    %v8992 = vand.u32 %v7396, 4294901760
    %v8993 = vsub.f32 %v7396, %v8992
    %8994 = vmatpush.msra.mxu0 %v8993
    %v8995 = vand.u32 %v7392, 4294901760
    %v8996 = vsub.f32 %v7392, %v8995
    %8997 = vmatpush.msra.mxu0 %v8996
    %v8998 = vand.u32 %v7388, 4294901760
    %v8999 = vsub.f32 %v7388, %v8998
    %9000 = vmatpush.msra.mxu0 %v8999
    %v9001 = vand.u32 %v7384, 4294901760
    %v9002 = vsub.f32 %v7384, %v9001
    %9003 = vmatpush.msra.mxu0 %v9002
    %v9004 = vand.u32 %v7380, 4294901760
    %v9005 = vsub.f32 %v7380, %v9004
    %9006 = vmatpush.msra.mxu0 %v9005
    %v9007 = vand.u32 %v7376, 4294901760
    %v9008 = vsub.f32 %v7376, %v9007
    %9009 = vmatpush.msra.mxu0 %v9008
    %v9010 = vand.u32 %v7372, 4294901760
    %v9011 = vsub.f32 %v7372, %v9010
    %9012 = vmatpush.msra.mxu0 %v9011
    %v9013 = vand.u32 %v7368, 4294901760
    %v9014 = vsub.f32 %v7368, %v9013
    %9015 = vmatpush.msra.mxu0 %v9014
    %v9016 = vand.u32 %v7364, 4294901760
    %v9017 = vsub.f32 %v7364, %v9016
    %9018 = vmatpush.msra.mxu0 %v9017
    %v9019 = vand.u32 %v7360, 4294901760
    %v9020 = vsub.f32 %v7360, %v9019
    %9021 = vmatpush.msra.mxu0 %v9020
    %v9022 = vand.u32 %v7356, 4294901760
    %v9023 = vsub.f32 %v7356, %v9022
    %9024 = vmatpush.msra.mxu0 %v9023
    %v9025 = vand.u32 %v7352, 4294901760
    %v9026 = vsub.f32 %v7352, %v9025
    %9027 = vmatpush.msra.mxu0 %v9026
    %v9028 = vand.u32 %v7348, 4294901760
    %v9029 = vsub.f32 %v7348, %v9028
    %9030 = vmatpush.msra.mxu0 %v9029
    %v9031 = vand.u32 %v7344, 4294901760
    %v9032 = vsub.f32 %v7344, %v9031
    %9033 = vmatpush.msra.mxu0 %v9032
    %v9034 = vand.u32 %v7340, 4294901760
    %v9035 = vsub.f32 %v7340, %v9034
    %9036 = vmatpush.msra.mxu0 %v9035
    %v9037 = vand.u32 %v7336, 4294901760
    %v9038 = vsub.f32 %v7336, %v9037
    %9039 = vmatpush.msra.mxu0 %v9038
    %v9040 = vand.u32 %v7326, 4294901760
    %v9041 = vsub.f32 %v7326, %v9040
    %9042 = vmatmul.f32.gmra.mxu0 %v9041
    %v9043 = vpop.f32.mrf.mxu0
    %v9044 = vadd.f32 %v8978, %v9043
    %v9045 = vand.u32 %v7328, 4294901760
    %v9046 = vsub.f32 %v7328, %v9045
    %9047 = vmatmul.f32.gmra.mxu0 %v9046
    %v9048 = vpop.f32.mrf.mxu0
    %v9049 = vadd.f32 %v8982, %v9048
    %v9050 = vand.u32 %v7330, 4294901760
    %v9051 = vsub.f32 %v7330, %v9050
    %9052 = vmatmul.f32.gmra.mxu0 %v9051
    %v9053 = vpop.f32.mrf.mxu0
    %v9054 = vadd.f32 %v8986, %v9053
    %v9055 = vand.u32 %v7332, 4294901760
    %v9056 = vsub.f32 %v7332, %v9055
    %9057 = vmatmul.f32.gmra.mxu0 %v9056
    %v9058 = vpop.f32.mrf.mxu0
    %v9059 = vadd.f32 %v8990, %v9058
    %9060 = vdwg.mxu0
    %v9061 = vand.u32 %v7396, 4294901760
    %9062 = vmatpush.msra.mxu0 %v9061
    %v9063 = vand.u32 %v7392, 4294901760
    %9064 = vmatpush.msra.mxu0 %v9063
    %v9065 = vand.u32 %v7388, 4294901760
    %9066 = vmatpush.msra.mxu0 %v9065
    %v9067 = vand.u32 %v7384, 4294901760
    %9068 = vmatpush.msra.mxu0 %v9067
    %v9069 = vand.u32 %v7380, 4294901760
    %9070 = vmatpush.msra.mxu0 %v9069
    %v9071 = vand.u32 %v7376, 4294901760
    %9072 = vmatpush.msra.mxu0 %v9071
    %v9073 = vand.u32 %v7372, 4294901760
    %9074 = vmatpush.msra.mxu0 %v9073
    %v9075 = vand.u32 %v7368, 4294901760
    %9076 = vmatpush.msra.mxu0 %v9075
    %v9077 = vand.u32 %v7364, 4294901760
    %9078 = vmatpush.msra.mxu0 %v9077
    %v9079 = vand.u32 %v7360, 4294901760
    %9080 = vmatpush.msra.mxu0 %v9079
    %v9081 = vand.u32 %v7356, 4294901760
    %9082 = vmatpush.msra.mxu0 %v9081
    %v9083 = vand.u32 %v7352, 4294901760
    %9084 = vmatpush.msra.mxu0 %v9083
    %v9085 = vand.u32 %v7348, 4294901760
    %9086 = vmatpush.msra.mxu0 %v9085
    %v9087 = vand.u32 %v7344, 4294901760
    %9088 = vmatpush.msra.mxu0 %v9087
    %v9089 = vand.u32 %v7340, 4294901760
    %9090 = vmatpush.msra.mxu0 %v9089
    %v9091 = vand.u32 %v7336, 4294901760
    %9092 = vmatpush.msra.mxu0 %v9091
    %v9093 = vand.u32 %v7326, 4294901760
    %v9094 = vsub.f32 %v7326, %v9093
    %v9095 = vand.u32 %v9094, 4294901760
    %9096 = vmatmul.f32.gmra.mxu0 %v9095
    %v9097 = vpop.f32.mrf.mxu0
    %v9098 = vadd.f32 %v9044, %v9097
    %v9099 = vand.u32 %v7328, 4294901760
    %v9100 = vsub.f32 %v7328, %v9099
    %v9101 = vand.u32 %v9100, 4294901760
    %9102 = vmatmul.f32.gmra.mxu0 %v9101
    %v9103 = vpop.f32.mrf.mxu0
    %v9104 = vadd.f32 %v9049, %v9103
    %v9105 = vand.u32 %v7330, 4294901760
    %v9106 = vsub.f32 %v7330, %v9105
    %v9107 = vand.u32 %v9106, 4294901760
    %9108 = vmatmul.f32.gmra.mxu0 %v9107
    %v9109 = vpop.f32.mrf.mxu0
    %v9110 = vadd.f32 %v9054, %v9109
    %v9111 = vand.u32 %v7332, 4294901760
    %v9112 = vsub.f32 %v7332, %v9111
    %v9113 = vand.u32 %v9112, 4294901760
    %9114 = vmatmul.f32.gmra.mxu0 %v9113
    %v9115 = vpop.f32.mrf.mxu0
    %v9116 = vadd.f32 %v9059, %v9115
    %9117 = vdwg.mxu0
    %v9118 = vand.u32 %v7396, 4294901760
    %v9119 = vsub.f32 %v7396, %v9118
    %v9120 = vand.u32 %v9119, 4294901760
    %9121 = vmatpush.msra.mxu0 %v9120
    %v9122 = vand.u32 %v7392, 4294901760
    %v9123 = vsub.f32 %v7392, %v9122
    %v9124 = vand.u32 %v9123, 4294901760
    %9125 = vmatpush.msra.mxu0 %v9124
    %v9126 = vand.u32 %v7388, 4294901760
    %v9127 = vsub.f32 %v7388, %v9126
    %v9128 = vand.u32 %v9127, 4294901760
    %9129 = vmatpush.msra.mxu0 %v9128
    %v9130 = vand.u32 %v7384, 4294901760
    %v9131 = vsub.f32 %v7384, %v9130
    %v9132 = vand.u32 %v9131, 4294901760
    %9133 = vmatpush.msra.mxu0 %v9132
    %v9134 = vand.u32 %v7380, 4294901760
    %v9135 = vsub.f32 %v7380, %v9134
    %v9136 = vand.u32 %v9135, 4294901760
    %9137 = vmatpush.msra.mxu0 %v9136
    %v9138 = vand.u32 %v7376, 4294901760
    %v9139 = vsub.f32 %v7376, %v9138
    %v9140 = vand.u32 %v9139, 4294901760
    %9141 = vmatpush.msra.mxu0 %v9140
    %v9142 = vand.u32 %v7372, 4294901760
    %v9143 = vsub.f32 %v7372, %v9142
    %v9144 = vand.u32 %v9143, 4294901760
    %9145 = vmatpush.msra.mxu0 %v9144
    %v9146 = vand.u32 %v7368, 4294901760
    %v9147 = vsub.f32 %v7368, %v9146
    %v9148 = vand.u32 %v9147, 4294901760
    %9149 = vmatpush.msra.mxu0 %v9148
    %v9150 = vand.u32 %v7364, 4294901760
    %v9151 = vsub.f32 %v7364, %v9150
    %v9152 = vand.u32 %v9151, 4294901760
    %9153 = vmatpush.msra.mxu0 %v9152
    %v9154 = vand.u32 %v7360, 4294901760
    %v9155 = vsub.f32 %v7360, %v9154
    %v9156 = vand.u32 %v9155, 4294901760
    %9157 = vmatpush.msra.mxu0 %v9156
    %v9158 = vand.u32 %v7356, 4294901760
    %v9159 = vsub.f32 %v7356, %v9158
    %v9160 = vand.u32 %v9159, 4294901760
    %9161 = vmatpush.msra.mxu0 %v9160
    %v9162 = vand.u32 %v7352, 4294901760
    %v9163 = vsub.f32 %v7352, %v9162
    %v9164 = vand.u32 %v9163, 4294901760
    %9165 = vmatpush.msra.mxu0 %v9164
    %v9166 = vand.u32 %v7348, 4294901760
    %v9167 = vsub.f32 %v7348, %v9166
    %v9168 = vand.u32 %v9167, 4294901760
    %9169 = vmatpush.msra.mxu0 %v9168
    %v9170 = vand.u32 %v7344, 4294901760
    %v9171 = vsub.f32 %v7344, %v9170
    %v9172 = vand.u32 %v9171, 4294901760
    %9173 = vmatpush.msra.mxu0 %v9172
    %v9174 = vand.u32 %v7340, 4294901760
    %v9175 = vsub.f32 %v7340, %v9174
    %v9176 = vand.u32 %v9175, 4294901760
    %9177 = vmatpush.msra.mxu0 %v9176
    %v9178 = vand.u32 %v7336, 4294901760
    %v9179 = vsub.f32 %v7336, %v9178
    %v9180 = vand.u32 %v9179, 4294901760
    %9181 = vmatpush.msra.mxu0 %v9180
    %v9182 = vand.u32 %v7326, 4294901760
    %9183 = vmatmul.f32.gmra.mxu0 %v9182
    %v9184 = vpop.f32.mrf.mxu0
    %v9185 = vadd.f32 %v9098, %v9184
    %v9186 = vand.u32 %v7328, 4294901760
    %9187 = vmatmul.f32.gmra.mxu0 %v9186
    %v9188 = vpop.f32.mrf.mxu0
    %v9189 = vadd.f32 %v9104, %v9188
    %v9190 = vand.u32 %v7330, 4294901760
    %9191 = vmatmul.f32.gmra.mxu0 %v9190
    %v9192 = vpop.f32.mrf.mxu0
    %v9193 = vadd.f32 %v9110, %v9192
    %v9194 = vand.u32 %v7332, 4294901760
    %9195 = vmatmul.f32.gmra.mxu0 %v9194
    %v9196 = vpop.f32.mrf.mxu0
    %v9197 = vadd.f32 %v9116, %v9196
    %9198 = vdwg.mxu0
    %v9199 = vand.u32 %v7396, 4294901760
    %9200 = vmatpush.msra.mxu0 %v9199
    %v9201 = vand.u32 %v7392, 4294901760
    %9202 = vmatpush.msra.mxu0 %v9201
    %v9203 = vand.u32 %v7388, 4294901760
    %9204 = vmatpush.msra.mxu0 %v9203
    %v9205 = vand.u32 %v7384, 4294901760
    %9206 = vmatpush.msra.mxu0 %v9205
    %v9207 = vand.u32 %v7380, 4294901760
    %9208 = vmatpush.msra.mxu0 %v9207
    %v9209 = vand.u32 %v7376, 4294901760
    %9210 = vmatpush.msra.mxu0 %v9209
    %v9211 = vand.u32 %v7372, 4294901760
    %9212 = vmatpush.msra.mxu0 %v9211
    %v9213 = vand.u32 %v7368, 4294901760
    %9214 = vmatpush.msra.mxu0 %v9213
    %v9215 = vand.u32 %v7364, 4294901760
    %9216 = vmatpush.msra.mxu0 %v9215
    %v9217 = vand.u32 %v7360, 4294901760
    %9218 = vmatpush.msra.mxu0 %v9217
    %v9219 = vand.u32 %v7356, 4294901760
    %9220 = vmatpush.msra.mxu0 %v9219
    %v9221 = vand.u32 %v7352, 4294901760
    %9222 = vmatpush.msra.mxu0 %v9221
    %v9223 = vand.u32 %v7348, 4294901760
    %9224 = vmatpush.msra.mxu0 %v9223
    %v9225 = vand.u32 %v7344, 4294901760
    %9226 = vmatpush.msra.mxu0 %v9225
    %v9227 = vand.u32 %v7340, 4294901760
    %9228 = vmatpush.msra.mxu0 %v9227
    %v9229 = vand.u32 %v7336, 4294901760
    %9230 = vmatpush.msra.mxu0 %v9229
    %v9231 = vand.u32 %v7326, 4294901760
    %9232 = vmatmul.f32.gmra.mxu0 %v9231
    %v9233 = vpop.f32.mrf.mxu0
    %v9234 = vadd.f32 %v9185, %v9233
    %v9235 = vand.u32 %v7328, 4294901760
    %9236 = vmatmul.f32.gmra.mxu0 %v9235
    %v9237 = vpop.f32.mrf.mxu0
    %v9238 = vadd.f32 %v9189, %v9237
    %v9239 = vand.u32 %v7330, 4294901760
    %9240 = vmatmul.f32.gmra.mxu0 %v9239
    %v9241 = vpop.f32.mrf.mxu0
    %v9242 = vadd.f32 %v9193, %v9241
    %v9243 = vand.u32 %v7332, 4294901760
    %9244 = vmatmul.f32.gmra.mxu0 %v9243
    %v9245 = vpop.f32.mrf.mxu0
    %v9246 = vadd.f32 %v9197, %v9245
    %9247 = vdwg.mxu0
    %9248 = vmatpush.msra.mxu0 0.0
    %9249 = vmatpush.msra.mxu0 0.0
    %9250 = vmatpush.msra.mxu0 0.0
    %9251 = vmatpush.msra.mxu0 0.0
    %9252 = vmatpush.msra.mxu0 0.0
    %9253 = vmatpush.msra.mxu0 0.0
    %9254 = vmatpush.msra.mxu0 0.0
    %9255 = vmatpush.msra.mxu0 0.0
    %9256 = vmatpush.msra.mxu0 0.0
    %9257 = vmatpush.msra.mxu0 0.0
    %9258 = vmatpush.msra.mxu0 0.0
    %9259 = vmatpush.msra.mxu0 0.0
    %9260 = vmatpush.msra.mxu0 0.0
    %9261 = vmatpush.msra.mxu0 0.0
    %v9262 = vand.u32 %v7404, 4294901760
    %9263 = vmatpush.msra.mxu0 %v9262
    %v9264 = vand.u32 %v7400, 4294901760
    %9265 = vmatpush.msra.mxu0 %v9264
    %v9266 = vand.u32 %v7431, 4294901760
    %v9267 = vsub.f32 %v7431, %v9266
    %v9268 = vand.u32 %v9267, 4294901760
    %v9269 = vsub.f32 %v9267, %v9268
    %v9270 = vand.u32 %v9269, 4294901760
    %9271 = vmatmul.f32.gmra.mxu0 %v9270
    %v9272 = vpop.f32.mrf.mxu0
    %v9273 = vadd.f32 %v9234, %v9272
    %v9274 = vand.u32 %v7434, 4294901760
    %v9275 = vsub.f32 %v7434, %v9274
    %v9276 = vand.u32 %v9275, 4294901760
    %v9277 = vsub.f32 %v9275, %v9276
    %v9278 = vand.u32 %v9277, 4294901760
    %9279 = vmatmul.f32.gmra.mxu0 %v9278
    %v9280 = vpop.f32.mrf.mxu0
    %v9281 = vadd.f32 %v9238, %v9280
    %v9282 = vand.u32 %v7437, 4294901760
    %v9283 = vsub.f32 %v7437, %v9282
    %v9284 = vand.u32 %v9283, 4294901760
    %v9285 = vsub.f32 %v9283, %v9284
    %v9286 = vand.u32 %v9285, 4294901760
    %9287 = vmatmul.f32.gmra.mxu0 %v9286
    %v9288 = vpop.f32.mrf.mxu0
    %v9289 = vadd.f32 %v9242, %v9288
    %v9290 = vand.u32 %v7440, 4294901760
    %v9291 = vsub.f32 %v7440, %v9290
    %v9292 = vand.u32 %v9291, 4294901760
    %v9293 = vsub.f32 %v9291, %v9292
    %v9294 = vand.u32 %v9293, 4294901760
    %9295 = vmatmul.f32.gmra.mxu0 %v9294
    %v9296 = vpop.f32.mrf.mxu0
    %v9297 = vadd.f32 %v9246, %v9296
    %9298 = vdwg.mxu0
    %9299 = vmatpush.msra.mxu0 0.0
    %9300 = vmatpush.msra.mxu0 0.0
    %9301 = vmatpush.msra.mxu0 0.0
    %9302 = vmatpush.msra.mxu0 0.0
    %9303 = vmatpush.msra.mxu0 0.0
    %9304 = vmatpush.msra.mxu0 0.0
    %9305 = vmatpush.msra.mxu0 0.0
    %9306 = vmatpush.msra.mxu0 0.0
    %9307 = vmatpush.msra.mxu0 0.0
    %9308 = vmatpush.msra.mxu0 0.0
    %9309 = vmatpush.msra.mxu0 0.0
    %9310 = vmatpush.msra.mxu0 0.0
    %9311 = vmatpush.msra.mxu0 0.0
    %9312 = vmatpush.msra.mxu0 0.0
    %v9313 = vand.u32 %v7404, 4294901760
    %v9314 = vsub.f32 %v7404, %v9313
    %v9315 = vand.u32 %v9314, 4294901760
    %v9316 = vsub.f32 %v9314, %v9315
    %v9317 = vand.u32 %v9316, 4294901760
    %9318 = vmatpush.msra.mxu0 %v9317
    %v9319 = vand.u32 %v7400, 4294901760
    %v9320 = vsub.f32 %v7400, %v9319
    %v9321 = vand.u32 %v9320, 4294901760
    %v9322 = vsub.f32 %v9320, %v9321
    %v9323 = vand.u32 %v9322, 4294901760
    %9324 = vmatpush.msra.mxu0 %v9323
    %v9325 = vand.u32 %v7431, 4294901760
    %9326 = vmatmul.f32.gmra.mxu0 %v9325
    %v9327 = vpop.f32.mrf.mxu0
    %v9328 = vadd.f32 %v9273, %v9327
    %v9329 = vand.u32 %v7434, 4294901760
    %9330 = vmatmul.f32.gmra.mxu0 %v9329
    %v9331 = vpop.f32.mrf.mxu0
    %v9332 = vadd.f32 %v9281, %v9331
    %v9333 = vand.u32 %v7437, 4294901760
    %9334 = vmatmul.f32.gmra.mxu0 %v9333
    %v9335 = vpop.f32.mrf.mxu0
    %v9336 = vadd.f32 %v9289, %v9335
    %v9337 = vand.u32 %v7440, 4294901760
    %9338 = vmatmul.f32.gmra.mxu0 %v9337
    %v9339 = vpop.f32.mrf.mxu0
    %v9340 = vadd.f32 %v9297, %v9339
    %9341 = vdwg.mxu0
    %9342 = vmatpush.msra.mxu0 0.0
    %9343 = vmatpush.msra.mxu0 0.0
    %9344 = vmatpush.msra.mxu0 0.0
    %9345 = vmatpush.msra.mxu0 0.0
    %9346 = vmatpush.msra.mxu0 0.0
    %9347 = vmatpush.msra.mxu0 0.0
    %9348 = vmatpush.msra.mxu0 0.0
    %9349 = vmatpush.msra.mxu0 0.0
    %9350 = vmatpush.msra.mxu0 0.0
    %9351 = vmatpush.msra.mxu0 0.0
    %9352 = vmatpush.msra.mxu0 0.0
    %9353 = vmatpush.msra.mxu0 0.0
    %9354 = vmatpush.msra.mxu0 0.0
    %9355 = vmatpush.msra.mxu0 0.0
    %v9356 = vand.u32 %v7404, 4294901760
    %v9357 = vsub.f32 %v7404, %v9356
    %9358 = vmatpush.msra.mxu0 %v9357
    %v9359 = vand.u32 %v7400, 4294901760
    %v9360 = vsub.f32 %v7400, %v9359
    %9361 = vmatpush.msra.mxu0 %v9360
    %v9362 = vand.u32 %v7431, 4294901760
    %v9363 = vsub.f32 %v7431, %v9362
    %9364 = vmatmul.f32.gmra.mxu0 %v9363
    %v9365 = vpop.f32.mrf.mxu0
    %v9366 = vadd.f32 %v9328, %v9365
    %v9367 = vand.u32 %v7434, 4294901760
    %v9368 = vsub.f32 %v7434, %v9367
    %9369 = vmatmul.f32.gmra.mxu0 %v9368
    %v9370 = vpop.f32.mrf.mxu0
    %v9371 = vadd.f32 %v9332, %v9370
    %v9372 = vand.u32 %v7437, 4294901760
    %v9373 = vsub.f32 %v7437, %v9372
    %9374 = vmatmul.f32.gmra.mxu0 %v9373
    %v9375 = vpop.f32.mrf.mxu0
    %v9376 = vadd.f32 %v9336, %v9375
    %v9377 = vand.u32 %v7440, 4294901760
    %v9378 = vsub.f32 %v7440, %v9377
    %9379 = vmatmul.f32.gmra.mxu0 %v9378
    %v9380 = vpop.f32.mrf.mxu0
    %v9381 = vadd.f32 %v9340, %v9380
    %9382 = vdwg.mxu0
    %9383 = vmatpush.msra.mxu0 0.0
    %9384 = vmatpush.msra.mxu0 0.0
    %9385 = vmatpush.msra.mxu0 0.0
    %9386 = vmatpush.msra.mxu0 0.0
    %9387 = vmatpush.msra.mxu0 0.0
    %9388 = vmatpush.msra.mxu0 0.0
    %9389 = vmatpush.msra.mxu0 0.0
    %9390 = vmatpush.msra.mxu0 0.0
    %9391 = vmatpush.msra.mxu0 0.0
    %9392 = vmatpush.msra.mxu0 0.0
    %9393 = vmatpush.msra.mxu0 0.0
    %9394 = vmatpush.msra.mxu0 0.0
    %9395 = vmatpush.msra.mxu0 0.0
    %9396 = vmatpush.msra.mxu0 0.0
    %v9397 = vand.u32 %v7404, 4294901760
    %9398 = vmatpush.msra.mxu0 %v9397
    %v9399 = vand.u32 %v7400, 4294901760
    %9400 = vmatpush.msra.mxu0 %v9399
    %v9401 = vand.u32 %v7431, 4294901760
    %v9402 = vsub.f32 %v7431, %v9401
    %v9403 = vand.u32 %v9402, 4294901760
    %9404 = vmatmul.f32.gmra.mxu0 %v9403
    %v9405 = vpop.f32.mrf.mxu0
    %v9406 = vadd.f32 %v9366, %v9405
    %v9407 = vand.u32 %v7434, 4294901760
    %v9408 = vsub.f32 %v7434, %v9407
    %v9409 = vand.u32 %v9408, 4294901760
    %9410 = vmatmul.f32.gmra.mxu0 %v9409
    %v9411 = vpop.f32.mrf.mxu0
    %v9412 = vadd.f32 %v9371, %v9411
    %v9413 = vand.u32 %v7437, 4294901760
    %v9414 = vsub.f32 %v7437, %v9413
    %v9415 = vand.u32 %v9414, 4294901760
    %9416 = vmatmul.f32.gmra.mxu0 %v9415
    %v9417 = vpop.f32.mrf.mxu0
    %v9418 = vadd.f32 %v9376, %v9417
    %v9419 = vand.u32 %v7440, 4294901760
    %v9420 = vsub.f32 %v7440, %v9419
    %v9421 = vand.u32 %v9420, 4294901760
    %9422 = vmatmul.f32.gmra.mxu0 %v9421
    %v9423 = vpop.f32.mrf.mxu0
    %v9424 = vadd.f32 %v9381, %v9423
    %9425 = vdwg.mxu0
    %9426 = vmatpush.msra.mxu0 0.0
    %9427 = vmatpush.msra.mxu0 0.0
    %9428 = vmatpush.msra.mxu0 0.0
    %9429 = vmatpush.msra.mxu0 0.0
    %9430 = vmatpush.msra.mxu0 0.0
    %9431 = vmatpush.msra.mxu0 0.0
    %9432 = vmatpush.msra.mxu0 0.0
    %9433 = vmatpush.msra.mxu0 0.0
    %9434 = vmatpush.msra.mxu0 0.0
    %9435 = vmatpush.msra.mxu0 0.0
    %9436 = vmatpush.msra.mxu0 0.0
    %9437 = vmatpush.msra.mxu0 0.0
    %9438 = vmatpush.msra.mxu0 0.0
    %9439 = vmatpush.msra.mxu0 0.0
    %v9440 = vand.u32 %v7404, 4294901760
    %v9441 = vsub.f32 %v7404, %v9440
    %v9442 = vand.u32 %v9441, 4294901760
    %9443 = vmatpush.msra.mxu0 %v9442
    %v9444 = vand.u32 %v7400, 4294901760
    %v9445 = vsub.f32 %v7400, %v9444
    %v9446 = vand.u32 %v9445, 4294901760
    %9447 = vmatpush.msra.mxu0 %v9446
    %v9448 = vand.u32 %v7431, 4294901760
    %9449 = vmatmul.f32.gmra.mxu0 %v9448
    %v9450 = vpop.f32.mrf.mxu0
    %v9451 = vadd.f32 %v9406, %v9450
    %v9452 = vand.u32 %v7434, 4294901760
    %9453 = vmatmul.f32.gmra.mxu0 %v9452
    %v9454 = vpop.f32.mrf.mxu0
    %v9455 = vadd.f32 %v9412, %v9454
    %v9456 = vand.u32 %v7437, 4294901760
    %9457 = vmatmul.f32.gmra.mxu0 %v9456
    %v9458 = vpop.f32.mrf.mxu0
    %v9459 = vadd.f32 %v9418, %v9458
    %v9460 = vand.u32 %v7440, 4294901760
    %9461 = vmatmul.f32.gmra.mxu0 %v9460
    %v9462 = vpop.f32.mrf.mxu0
    %v9463 = vadd.f32 %v9424, %v9462
    %9464 = vdwg.mxu0
    %9465 = vmatpush.msra.mxu0 0.0
    %9466 = vmatpush.msra.mxu0 0.0
    %9467 = vmatpush.msra.mxu0 0.0
    %9468 = vmatpush.msra.mxu0 0.0
    %9469 = vmatpush.msra.mxu0 0.0
    %9470 = vmatpush.msra.mxu0 0.0
    %9471 = vmatpush.msra.mxu0 0.0
    %9472 = vmatpush.msra.mxu0 0.0
    %9473 = vmatpush.msra.mxu0 0.0
    %9474 = vmatpush.msra.mxu0 0.0
    %9475 = vmatpush.msra.mxu0 0.0
    %9476 = vmatpush.msra.mxu0 0.0
    %9477 = vmatpush.msra.mxu0 0.0
    %9478 = vmatpush.msra.mxu0 0.0
    %v9479 = vand.u32 %v7404, 4294901760
    %9480 = vmatpush.msra.mxu0 %v9479
    %v9481 = vand.u32 %v7400, 4294901760
    %9482 = vmatpush.msra.mxu0 %v9481
    %v9483 = vand.u32 %v7431, 4294901760
    %9484 = vmatmul.f32.gmra.mxu0 %v9483
    %v9485 = vpop.f32.mrf.mxu0
    %v9486 = vadd.f32 %v9451, %v9485
    %v9487 = vand.u32 %v7434, 4294901760
    %9488 = vmatmul.f32.gmra.mxu0 %v9487
    %v9489 = vpop.f32.mrf.mxu0
    %v9490 = vadd.f32 %v9455, %v9489
    %v9491 = vand.u32 %v7437, 4294901760
    %9492 = vmatmul.f32.gmra.mxu0 %v9491
    %v9493 = vpop.f32.mrf.mxu0
    %v9494 = vadd.f32 %v9459, %v9493
    %v9495 = vand.u32 %v7440, 4294901760
    %9496 = vmatmul.f32.gmra.mxu0 %v9495
    %v9497 = vpop.f32.mrf.mxu0
    %v9498 = vadd.f32 %v9463, %v9497
    %9499 = vdwg.mxu0
    %v9500 = vand.u32 %v7397, 4294901760
    %9501 = vmatpush.msra.mxu0 %v9500
    %v9502 = vand.u32 %v7393, 4294901760
    %9503 = vmatpush.msra.mxu0 %v9502
    %v9504 = vand.u32 %v7389, 4294901760
    %9505 = vmatpush.msra.mxu0 %v9504
    %v9506 = vand.u32 %v7385, 4294901760
    %9507 = vmatpush.msra.mxu0 %v9506
    %v9508 = vand.u32 %v7381, 4294901760
    %9509 = vmatpush.msra.mxu0 %v9508
    %v9510 = vand.u32 %v7377, 4294901760
    %9511 = vmatpush.msra.mxu0 %v9510
    %v9512 = vand.u32 %v7373, 4294901760
    %9513 = vmatpush.msra.mxu0 %v9512
    %v9514 = vand.u32 %v7369, 4294901760
    %9515 = vmatpush.msra.mxu0 %v9514
    %v9516 = vand.u32 %v7365, 4294901760
    %9517 = vmatpush.msra.mxu0 %v9516
    %v9518 = vand.u32 %v7361, 4294901760
    %9519 = vmatpush.msra.mxu0 %v9518
    %v9520 = vand.u32 %v7357, 4294901760
    %9521 = vmatpush.msra.mxu0 %v9520
    %v9522 = vand.u32 %v7353, 4294901760
    %9523 = vmatpush.msra.mxu0 %v9522
    %v9524 = vand.u32 %v7349, 4294901760
    %9525 = vmatpush.msra.mxu0 %v9524
    %v9526 = vand.u32 %v7345, 4294901760
    %9527 = vmatpush.msra.mxu0 %v9526
    %v9528 = vand.u32 %v7341, 4294901760
    %9529 = vmatpush.msra.mxu0 %v9528
    %v9530 = vand.u32 %v7337, 4294901760
    %9531 = vmatpush.msra.mxu0 %v9530
    %v9532 = vand.u32 %v7326, 4294901760
    %v9533 = vsub.f32 %v7326, %v9532
    %v9534 = vand.u32 %v9533, 4294901760
    %v9535 = vsub.f32 %v9533, %v9534
    %v9536 = vand.u32 %v9535, 4294901760
    %9537 = vmatmul.f32.gmra.mxu0 %v9536
    %v9538 = vpop.f32.mrf.mxu0
    %v9539 = vadd.f32 %v7413, %v9538
    %v9540 = vand.u32 %v7328, 4294901760
    %v9541 = vsub.f32 %v7328, %v9540
    %v9542 = vand.u32 %v9541, 4294901760
    %v9543 = vsub.f32 %v9541, %v9542
    %v9544 = vand.u32 %v9543, 4294901760
    %9545 = vmatmul.f32.gmra.mxu0 %v9544
    %v9546 = vpop.f32.mrf.mxu0
    %v9547 = vadd.f32 %v7418, %v9546
    %v9548 = vand.u32 %v7330, 4294901760
    %v9549 = vsub.f32 %v7330, %v9548
    %v9550 = vand.u32 %v9549, 4294901760
    %v9551 = vsub.f32 %v9549, %v9550
    %v9552 = vand.u32 %v9551, 4294901760
    %9553 = vmatmul.f32.gmra.mxu0 %v9552
    %v9554 = vpop.f32.mrf.mxu0
    %v9555 = vadd.f32 %v7423, %v9554
    %v9556 = vand.u32 %v7332, 4294901760
    %v9557 = vsub.f32 %v7332, %v9556
    %v9558 = vand.u32 %v9557, 4294901760
    %v9559 = vsub.f32 %v9557, %v9558
    %v9560 = vand.u32 %v9559, 4294901760
    %9561 = vmatmul.f32.gmra.mxu0 %v9560
    %v9562 = vpop.f32.mrf.mxu0
    %v9563 = vadd.f32 %v7428, %v9562
    %9564 = vdwg.mxu0
    %v9565 = vand.u32 %v7397, 4294901760
    %v9566 = vsub.f32 %v7397, %v9565
    %v9567 = vand.u32 %v9566, 4294901760
    %v9568 = vsub.f32 %v9566, %v9567
    %v9569 = vand.u32 %v9568, 4294901760
    %9570 = vmatpush.msra.mxu0 %v9569
    %v9571 = vand.u32 %v7393, 4294901760
    %v9572 = vsub.f32 %v7393, %v9571
    %v9573 = vand.u32 %v9572, 4294901760
    %v9574 = vsub.f32 %v9572, %v9573
    %v9575 = vand.u32 %v9574, 4294901760
    %9576 = vmatpush.msra.mxu0 %v9575
    %v9577 = vand.u32 %v7389, 4294901760
    %v9578 = vsub.f32 %v7389, %v9577
    %v9579 = vand.u32 %v9578, 4294901760
    %v9580 = vsub.f32 %v9578, %v9579
    %v9581 = vand.u32 %v9580, 4294901760
    %9582 = vmatpush.msra.mxu0 %v9581
    %v9583 = vand.u32 %v7385, 4294901760
    %v9584 = vsub.f32 %v7385, %v9583
    %v9585 = vand.u32 %v9584, 4294901760
    %v9586 = vsub.f32 %v9584, %v9585
    %v9587 = vand.u32 %v9586, 4294901760
    %9588 = vmatpush.msra.mxu0 %v9587
    %v9589 = vand.u32 %v7381, 4294901760
    %v9590 = vsub.f32 %v7381, %v9589
    %v9591 = vand.u32 %v9590, 4294901760
    %v9592 = vsub.f32 %v9590, %v9591
    %v9593 = vand.u32 %v9592, 4294901760
    %9594 = vmatpush.msra.mxu0 %v9593
    %v9595 = vand.u32 %v7377, 4294901760
    %v9596 = vsub.f32 %v7377, %v9595
    %v9597 = vand.u32 %v9596, 4294901760
    %v9598 = vsub.f32 %v9596, %v9597
    %v9599 = vand.u32 %v9598, 4294901760
    %9600 = vmatpush.msra.mxu0 %v9599
    %v9601 = vand.u32 %v7373, 4294901760
    %v9602 = vsub.f32 %v7373, %v9601
    %v9603 = vand.u32 %v9602, 4294901760
    %v9604 = vsub.f32 %v9602, %v9603
    %v9605 = vand.u32 %v9604, 4294901760
    %9606 = vmatpush.msra.mxu0 %v9605
    %v9607 = vand.u32 %v7369, 4294901760
    %v9608 = vsub.f32 %v7369, %v9607
    %v9609 = vand.u32 %v9608, 4294901760
    %v9610 = vsub.f32 %v9608, %v9609
    %v9611 = vand.u32 %v9610, 4294901760
    %9612 = vmatpush.msra.mxu0 %v9611
    %v9613 = vand.u32 %v7365, 4294901760
    %v9614 = vsub.f32 %v7365, %v9613
    %v9615 = vand.u32 %v9614, 4294901760
    %v9616 = vsub.f32 %v9614, %v9615
    %v9617 = vand.u32 %v9616, 4294901760
    %9618 = vmatpush.msra.mxu0 %v9617
    %v9619 = vand.u32 %v7361, 4294901760
    %v9620 = vsub.f32 %v7361, %v9619
    %v9621 = vand.u32 %v9620, 4294901760
    %v9622 = vsub.f32 %v9620, %v9621
    %v9623 = vand.u32 %v9622, 4294901760
    %9624 = vmatpush.msra.mxu0 %v9623
    %v9625 = vand.u32 %v7357, 4294901760
    %v9626 = vsub.f32 %v7357, %v9625
    %v9627 = vand.u32 %v9626, 4294901760
    %v9628 = vsub.f32 %v9626, %v9627
    %v9629 = vand.u32 %v9628, 4294901760
    %9630 = vmatpush.msra.mxu0 %v9629
    %v9631 = vand.u32 %v7353, 4294901760
    %v9632 = vsub.f32 %v7353, %v9631
    %v9633 = vand.u32 %v9632, 4294901760
    %v9634 = vsub.f32 %v9632, %v9633
    %v9635 = vand.u32 %v9634, 4294901760
    %9636 = vmatpush.msra.mxu0 %v9635
    %v9637 = vand.u32 %v7349, 4294901760
    %v9638 = vsub.f32 %v7349, %v9637
    %v9639 = vand.u32 %v9638, 4294901760
    %v9640 = vsub.f32 %v9638, %v9639
    %v9641 = vand.u32 %v9640, 4294901760
    %9642 = vmatpush.msra.mxu0 %v9641
    %v9643 = vand.u32 %v7345, 4294901760
    %v9644 = vsub.f32 %v7345, %v9643
    %v9645 = vand.u32 %v9644, 4294901760
    %v9646 = vsub.f32 %v9644, %v9645
    %v9647 = vand.u32 %v9646, 4294901760
    %9648 = vmatpush.msra.mxu0 %v9647
    %v9649 = vand.u32 %v7341, 4294901760
    %v9650 = vsub.f32 %v7341, %v9649
    %v9651 = vand.u32 %v9650, 4294901760
    %v9652 = vsub.f32 %v9650, %v9651
    %v9653 = vand.u32 %v9652, 4294901760
    %9654 = vmatpush.msra.mxu0 %v9653
    %v9655 = vand.u32 %v7337, 4294901760
    %v9656 = vsub.f32 %v7337, %v9655
    %v9657 = vand.u32 %v9656, 4294901760
    %v9658 = vsub.f32 %v9656, %v9657
    %v9659 = vand.u32 %v9658, 4294901760
    %9660 = vmatpush.msra.mxu0 %v9659
    %v9661 = vand.u32 %v7326, 4294901760
    %9662 = vmatmul.f32.gmra.mxu0 %v9661
    %v9663 = vpop.f32.mrf.mxu0
    %v9664 = vadd.f32 %v9539, %v9663
    %v9665 = vand.u32 %v7328, 4294901760
    %9666 = vmatmul.f32.gmra.mxu0 %v9665
    %v9667 = vpop.f32.mrf.mxu0
    %v9668 = vadd.f32 %v9547, %v9667
    %v9669 = vand.u32 %v7330, 4294901760
    %9670 = vmatmul.f32.gmra.mxu0 %v9669
    %v9671 = vpop.f32.mrf.mxu0
    %v9672 = vadd.f32 %v9555, %v9671
    %v9673 = vand.u32 %v7332, 4294901760
    %9674 = vmatmul.f32.gmra.mxu0 %v9673
    %v9675 = vpop.f32.mrf.mxu0
    %v9676 = vadd.f32 %v9563, %v9675
    %9677 = vdwg.mxu0
    %v9678 = vand.u32 %v7397, 4294901760
    %v9679 = vsub.f32 %v7397, %v9678
    %9680 = vmatpush.msra.mxu0 %v9679
    %v9681 = vand.u32 %v7393, 4294901760
    %v9682 = vsub.f32 %v7393, %v9681
    %9683 = vmatpush.msra.mxu0 %v9682
    %v9684 = vand.u32 %v7389, 4294901760
    %v9685 = vsub.f32 %v7389, %v9684
    %9686 = vmatpush.msra.mxu0 %v9685
    %v9687 = vand.u32 %v7385, 4294901760
    %v9688 = vsub.f32 %v7385, %v9687
    %9689 = vmatpush.msra.mxu0 %v9688
    %v9690 = vand.u32 %v7381, 4294901760
    %v9691 = vsub.f32 %v7381, %v9690
    %9692 = vmatpush.msra.mxu0 %v9691
    %v9693 = vand.u32 %v7377, 4294901760
    %v9694 = vsub.f32 %v7377, %v9693
    %9695 = vmatpush.msra.mxu0 %v9694
    %v9696 = vand.u32 %v7373, 4294901760
    %v9697 = vsub.f32 %v7373, %v9696
    %9698 = vmatpush.msra.mxu0 %v9697
    %v9699 = vand.u32 %v7369, 4294901760
    %v9700 = vsub.f32 %v7369, %v9699
    %9701 = vmatpush.msra.mxu0 %v9700
    %v9702 = vand.u32 %v7365, 4294901760
    %v9703 = vsub.f32 %v7365, %v9702
    %9704 = vmatpush.msra.mxu0 %v9703
    %v9705 = vand.u32 %v7361, 4294901760
    %v9706 = vsub.f32 %v7361, %v9705
    %9707 = vmatpush.msra.mxu0 %v9706
    %v9708 = vand.u32 %v7357, 4294901760
    %v9709 = vsub.f32 %v7357, %v9708
    %9710 = vmatpush.msra.mxu0 %v9709
    %v9711 = vand.u32 %v7353, 4294901760
    %v9712 = vsub.f32 %v7353, %v9711
    %9713 = vmatpush.msra.mxu0 %v9712
    %v9714 = vand.u32 %v7349, 4294901760
    %v9715 = vsub.f32 %v7349, %v9714
    %9716 = vmatpush.msra.mxu0 %v9715
    %v9717 = vand.u32 %v7345, 4294901760
    %v9718 = vsub.f32 %v7345, %v9717
    %9719 = vmatpush.msra.mxu0 %v9718
    %v9720 = vand.u32 %v7341, 4294901760
    %v9721 = vsub.f32 %v7341, %v9720
    %9722 = vmatpush.msra.mxu0 %v9721
    %v9723 = vand.u32 %v7337, 4294901760
    %v9724 = vsub.f32 %v7337, %v9723
    %9725 = vmatpush.msra.mxu0 %v9724
    %v9726 = vand.u32 %v7326, 4294901760
    %v9727 = vsub.f32 %v7326, %v9726
    %9728 = vmatmul.f32.gmra.mxu0 %v9727
    %v9729 = vpop.f32.mrf.mxu0
    %v9730 = vadd.f32 %v9664, %v9729
    %v9731 = vand.u32 %v7328, 4294901760
    %v9732 = vsub.f32 %v7328, %v9731
    %9733 = vmatmul.f32.gmra.mxu0 %v9732
    %v9734 = vpop.f32.mrf.mxu0
    %v9735 = vadd.f32 %v9668, %v9734
    %v9736 = vand.u32 %v7330, 4294901760
    %v9737 = vsub.f32 %v7330, %v9736
    %9738 = vmatmul.f32.gmra.mxu0 %v9737
    %v9739 = vpop.f32.mrf.mxu0
    %v9740 = vadd.f32 %v9672, %v9739
    %v9741 = vand.u32 %v7332, 4294901760
    %v9742 = vsub.f32 %v7332, %v9741
    %9743 = vmatmul.f32.gmra.mxu0 %v9742
    %v9744 = vpop.f32.mrf.mxu0
    %v9745 = vadd.f32 %v9676, %v9744
    %9746 = vdwg.mxu0
    %v9747 = vand.u32 %v7397, 4294901760
    %9748 = vmatpush.msra.mxu0 %v9747
    %v9749 = vand.u32 %v7393, 4294901760
    %9750 = vmatpush.msra.mxu0 %v9749
    %v9751 = vand.u32 %v7389, 4294901760
    %9752 = vmatpush.msra.mxu0 %v9751
    %v9753 = vand.u32 %v7385, 4294901760
    %9754 = vmatpush.msra.mxu0 %v9753
    %v9755 = vand.u32 %v7381, 4294901760
    %9756 = vmatpush.msra.mxu0 %v9755
    %v9757 = vand.u32 %v7377, 4294901760
    %9758 = vmatpush.msra.mxu0 %v9757
    %v9759 = vand.u32 %v7373, 4294901760
    %9760 = vmatpush.msra.mxu0 %v9759
    %v9761 = vand.u32 %v7369, 4294901760
    %9762 = vmatpush.msra.mxu0 %v9761
    %v9763 = vand.u32 %v7365, 4294901760
    %9764 = vmatpush.msra.mxu0 %v9763
    %v9765 = vand.u32 %v7361, 4294901760
    %9766 = vmatpush.msra.mxu0 %v9765
    %v9767 = vand.u32 %v7357, 4294901760
    %9768 = vmatpush.msra.mxu0 %v9767
    %v9769 = vand.u32 %v7353, 4294901760
    %9770 = vmatpush.msra.mxu0 %v9769
    %v9771 = vand.u32 %v7349, 4294901760
    %9772 = vmatpush.msra.mxu0 %v9771
    %v9773 = vand.u32 %v7345, 4294901760
    %9774 = vmatpush.msra.mxu0 %v9773
    %v9775 = vand.u32 %v7341, 4294901760
    %9776 = vmatpush.msra.mxu0 %v9775
    %v9777 = vand.u32 %v7337, 4294901760
    %9778 = vmatpush.msra.mxu0 %v9777
    %v9779 = vand.u32 %v7326, 4294901760
    %v9780 = vsub.f32 %v7326, %v9779
    %v9781 = vand.u32 %v9780, 4294901760
    %9782 = vmatmul.f32.gmra.mxu0 %v9781
    %v9783 = vpop.f32.mrf.mxu0
    %v9784 = vadd.f32 %v9730, %v9783
    %v9785 = vand.u32 %v7328, 4294901760
    %v9786 = vsub.f32 %v7328, %v9785
    %v9787 = vand.u32 %v9786, 4294901760
    %9788 = vmatmul.f32.gmra.mxu0 %v9787
    %v9789 = vpop.f32.mrf.mxu0
    %v9790 = vadd.f32 %v9735, %v9789
    %v9791 = vand.u32 %v7330, 4294901760
    %v9792 = vsub.f32 %v7330, %v9791
    %v9793 = vand.u32 %v9792, 4294901760
    %9794 = vmatmul.f32.gmra.mxu0 %v9793
    %v9795 = vpop.f32.mrf.mxu0
    %v9796 = vadd.f32 %v9740, %v9795
    %v9797 = vand.u32 %v7332, 4294901760
    %v9798 = vsub.f32 %v7332, %v9797
    %v9799 = vand.u32 %v9798, 4294901760
    %9800 = vmatmul.f32.gmra.mxu0 %v9799
    %v9801 = vpop.f32.mrf.mxu0
    %v9802 = vadd.f32 %v9745, %v9801
    %9803 = vdwg.mxu0
    %v9804 = vand.u32 %v7397, 4294901760
    %v9805 = vsub.f32 %v7397, %v9804
    %v9806 = vand.u32 %v9805, 4294901760
    %9807 = vmatpush.msra.mxu0 %v9806
    %v9808 = vand.u32 %v7393, 4294901760
    %v9809 = vsub.f32 %v7393, %v9808
    %v9810 = vand.u32 %v9809, 4294901760
    %9811 = vmatpush.msra.mxu0 %v9810
    %v9812 = vand.u32 %v7389, 4294901760
    %v9813 = vsub.f32 %v7389, %v9812
    %v9814 = vand.u32 %v9813, 4294901760
    %9815 = vmatpush.msra.mxu0 %v9814
    %v9816 = vand.u32 %v7385, 4294901760
    %v9817 = vsub.f32 %v7385, %v9816
    %v9818 = vand.u32 %v9817, 4294901760
    %9819 = vmatpush.msra.mxu0 %v9818
    %v9820 = vand.u32 %v7381, 4294901760
    %v9821 = vsub.f32 %v7381, %v9820
    %v9822 = vand.u32 %v9821, 4294901760
    %9823 = vmatpush.msra.mxu0 %v9822
    %v9824 = vand.u32 %v7377, 4294901760
    %v9825 = vsub.f32 %v7377, %v9824
    %v9826 = vand.u32 %v9825, 4294901760
    %9827 = vmatpush.msra.mxu0 %v9826
    %v9828 = vand.u32 %v7373, 4294901760
    %v9829 = vsub.f32 %v7373, %v9828
    %v9830 = vand.u32 %v9829, 4294901760
    %9831 = vmatpush.msra.mxu0 %v9830
    %v9832 = vand.u32 %v7369, 4294901760
    %v9833 = vsub.f32 %v7369, %v9832
    %v9834 = vand.u32 %v9833, 4294901760
    %9835 = vmatpush.msra.mxu0 %v9834
    %v9836 = vand.u32 %v7365, 4294901760
    %v9837 = vsub.f32 %v7365, %v9836
    %v9838 = vand.u32 %v9837, 4294901760
    %9839 = vmatpush.msra.mxu0 %v9838
    %v9840 = vand.u32 %v7361, 4294901760
    %v9841 = vsub.f32 %v7361, %v9840
    %v9842 = vand.u32 %v9841, 4294901760
    %9843 = vmatpush.msra.mxu0 %v9842
    %v9844 = vand.u32 %v7357, 4294901760
    %v9845 = vsub.f32 %v7357, %v9844
    %v9846 = vand.u32 %v9845, 4294901760
    %9847 = vmatpush.msra.mxu0 %v9846
    %v9848 = vand.u32 %v7353, 4294901760
    %v9849 = vsub.f32 %v7353, %v9848
    %v9850 = vand.u32 %v9849, 4294901760
    %9851 = vmatpush.msra.mxu0 %v9850
    %v9852 = vand.u32 %v7349, 4294901760
    %v9853 = vsub.f32 %v7349, %v9852
    %v9854 = vand.u32 %v9853, 4294901760
    %9855 = vmatpush.msra.mxu0 %v9854
    %v9856 = vand.u32 %v7345, 4294901760
    %v9857 = vsub.f32 %v7345, %v9856
    %v9858 = vand.u32 %v9857, 4294901760
    %9859 = vmatpush.msra.mxu0 %v9858
    %v9860 = vand.u32 %v7341, 4294901760
    %v9861 = vsub.f32 %v7341, %v9860
    %v9862 = vand.u32 %v9861, 4294901760
    %9863 = vmatpush.msra.mxu0 %v9862
    %v9864 = vand.u32 %v7337, 4294901760
    %v9865 = vsub.f32 %v7337, %v9864
    %v9866 = vand.u32 %v9865, 4294901760
    %9867 = vmatpush.msra.mxu0 %v9866
    %v9868 = vand.u32 %v7326, 4294901760
    %9869 = vmatmul.f32.gmra.mxu0 %v9868
    %v9870 = vpop.f32.mrf.mxu0
    %v9871 = vadd.f32 %v9784, %v9870
    %v9872 = vand.u32 %v7328, 4294901760
    %9873 = vmatmul.f32.gmra.mxu0 %v9872
    %v9874 = vpop.f32.mrf.mxu0
    %v9875 = vadd.f32 %v9790, %v9874
    %v9876 = vand.u32 %v7330, 4294901760
    %9877 = vmatmul.f32.gmra.mxu0 %v9876
    %v9878 = vpop.f32.mrf.mxu0
    %v9879 = vadd.f32 %v9796, %v9878
    %v9880 = vand.u32 %v7332, 4294901760
    %9881 = vmatmul.f32.gmra.mxu0 %v9880
    %v9882 = vpop.f32.mrf.mxu0
    %v9883 = vadd.f32 %v9802, %v9882
    %9884 = vdwg.mxu0
    %v9885 = vand.u32 %v7397, 4294901760
    %9886 = vmatpush.msra.mxu0 %v9885
    %v9887 = vand.u32 %v7393, 4294901760
    %9888 = vmatpush.msra.mxu0 %v9887
    %v9889 = vand.u32 %v7389, 4294901760
    %9890 = vmatpush.msra.mxu0 %v9889
    %v9891 = vand.u32 %v7385, 4294901760
    %9892 = vmatpush.msra.mxu0 %v9891
    %v9893 = vand.u32 %v7381, 4294901760
    %9894 = vmatpush.msra.mxu0 %v9893
    %v9895 = vand.u32 %v7377, 4294901760
    %9896 = vmatpush.msra.mxu0 %v9895
    %v9897 = vand.u32 %v7373, 4294901760
    %9898 = vmatpush.msra.mxu0 %v9897
    %v9899 = vand.u32 %v7369, 4294901760
    %9900 = vmatpush.msra.mxu0 %v9899
    %v9901 = vand.u32 %v7365, 4294901760
    %9902 = vmatpush.msra.mxu0 %v9901
    %v9903 = vand.u32 %v7361, 4294901760
    %9904 = vmatpush.msra.mxu0 %v9903
    %v9905 = vand.u32 %v7357, 4294901760
    %9906 = vmatpush.msra.mxu0 %v9905
    %v9907 = vand.u32 %v7353, 4294901760
    %9908 = vmatpush.msra.mxu0 %v9907
    %v9909 = vand.u32 %v7349, 4294901760
    %9910 = vmatpush.msra.mxu0 %v9909
    %v9911 = vand.u32 %v7345, 4294901760
    %9912 = vmatpush.msra.mxu0 %v9911
    %v9913 = vand.u32 %v7341, 4294901760
    %9914 = vmatpush.msra.mxu0 %v9913
    %v9915 = vand.u32 %v7337, 4294901760
    %9916 = vmatpush.msra.mxu0 %v9915
    %v9917 = vand.u32 %v7326, 4294901760
    %9918 = vmatmul.f32.gmra.mxu0 %v9917
    %v9919 = vpop.f32.mrf.mxu0
    %v9920 = vadd.f32 %v9871, %v9919
    %v9921 = vand.u32 %v7328, 4294901760
    %9922 = vmatmul.f32.gmra.mxu0 %v9921
    %v9923 = vpop.f32.mrf.mxu0
    %v9924 = vadd.f32 %v9875, %v9923
    %v9925 = vand.u32 %v7330, 4294901760
    %9926 = vmatmul.f32.gmra.mxu0 %v9925
    %v9927 = vpop.f32.mrf.mxu0
    %v9928 = vadd.f32 %v9879, %v9927
    %v9929 = vand.u32 %v7332, 4294901760
    %9930 = vmatmul.f32.gmra.mxu0 %v9929
    %v9931 = vpop.f32.mrf.mxu0
    %v9932 = vadd.f32 %v9883, %v9931
    %9933 = vdwg.mxu0
    %9934 = vmatpush.msra.mxu0 0.0
    %9935 = vmatpush.msra.mxu0 0.0
    %9936 = vmatpush.msra.mxu0 0.0
    %9937 = vmatpush.msra.mxu0 0.0
    %9938 = vmatpush.msra.mxu0 0.0
    %9939 = vmatpush.msra.mxu0 0.0
    %9940 = vmatpush.msra.mxu0 0.0
    %9941 = vmatpush.msra.mxu0 0.0
    %9942 = vmatpush.msra.mxu0 0.0
    %9943 = vmatpush.msra.mxu0 0.0
    %9944 = vmatpush.msra.mxu0 0.0
    %9945 = vmatpush.msra.mxu0 0.0
    %9946 = vmatpush.msra.mxu0 0.0
    %9947 = vmatpush.msra.mxu0 0.0
    %v9948 = vand.u32 %v7405, 4294901760
    %9949 = vmatpush.msra.mxu0 %v9948
    %v9950 = vand.u32 %v7401, 4294901760
    %9951 = vmatpush.msra.mxu0 %v9950
    %v9952 = vand.u32 %v7431, 4294901760
    %v9953 = vsub.f32 %v7431, %v9952
    %v9954 = vand.u32 %v9953, 4294901760
    %v9955 = vsub.f32 %v9953, %v9954
    %v9956 = vand.u32 %v9955, 4294901760
    %9957 = vmatmul.f32.gmra.mxu0 %v9956
    %v9958 = vpop.f32.mrf.mxu0
    %v9959 = vadd.f32 %v9920, %v9958
    %v9960 = vand.u32 %v7434, 4294901760
    %v9961 = vsub.f32 %v7434, %v9960
    %v9962 = vand.u32 %v9961, 4294901760
    %v9963 = vsub.f32 %v9961, %v9962
    %v9964 = vand.u32 %v9963, 4294901760
    %9965 = vmatmul.f32.gmra.mxu0 %v9964
    %v9966 = vpop.f32.mrf.mxu0
    %v9967 = vadd.f32 %v9924, %v9966
    %v9968 = vand.u32 %v7437, 4294901760
    %v9969 = vsub.f32 %v7437, %v9968
    %v9970 = vand.u32 %v9969, 4294901760
    %v9971 = vsub.f32 %v9969, %v9970
    %v9972 = vand.u32 %v9971, 4294901760
    %9973 = vmatmul.f32.gmra.mxu0 %v9972
    %v9974 = vpop.f32.mrf.mxu0
    %v9975 = vadd.f32 %v9928, %v9974
    %v9976 = vand.u32 %v7440, 4294901760
    %v9977 = vsub.f32 %v7440, %v9976
    %v9978 = vand.u32 %v9977, 4294901760
    %v9979 = vsub.f32 %v9977, %v9978
    %v9980 = vand.u32 %v9979, 4294901760
    %9981 = vmatmul.f32.gmra.mxu0 %v9980
    %v9982 = vpop.f32.mrf.mxu0
    %v9983 = vadd.f32 %v9932, %v9982
    %9984 = vdwg.mxu0
    %9985 = vmatpush.msra.mxu0 0.0
    %9986 = vmatpush.msra.mxu0 0.0
    %9987 = vmatpush.msra.mxu0 0.0
    %9988 = vmatpush.msra.mxu0 0.0
    %9989 = vmatpush.msra.mxu0 0.0
    %9990 = vmatpush.msra.mxu0 0.0
    %9991 = vmatpush.msra.mxu0 0.0
    %9992 = vmatpush.msra.mxu0 0.0
    %9993 = vmatpush.msra.mxu0 0.0
    %9994 = vmatpush.msra.mxu0 0.0
    %9995 = vmatpush.msra.mxu0 0.0
    %9996 = vmatpush.msra.mxu0 0.0
    %9997 = vmatpush.msra.mxu0 0.0
    %9998 = vmatpush.msra.mxu0 0.0
    %v9999 = vand.u32 %v7405, 4294901760
    %v10000 = vsub.f32 %v7405, %v9999
    %v10001 = vand.u32 %v10000, 4294901760
    %v10002 = vsub.f32 %v10000, %v10001
    %v10003 = vand.u32 %v10002, 4294901760
    %10004 = vmatpush.msra.mxu0 %v10003
    %v10005 = vand.u32 %v7401, 4294901760
    %v10006 = vsub.f32 %v7401, %v10005
    %v10007 = vand.u32 %v10006, 4294901760
    %v10008 = vsub.f32 %v10006, %v10007
    %v10009 = vand.u32 %v10008, 4294901760
    %10010 = vmatpush.msra.mxu0 %v10009
    %v10011 = vand.u32 %v7431, 4294901760
    %10012 = vmatmul.f32.gmra.mxu0 %v10011
    %v10013 = vpop.f32.mrf.mxu0
    %v10014 = vadd.f32 %v9959, %v10013
    %v10015 = vand.u32 %v7434, 4294901760
    %10016 = vmatmul.f32.gmra.mxu0 %v10015
    %v10017 = vpop.f32.mrf.mxu0
    %v10018 = vadd.f32 %v9967, %v10017
    %v10019 = vand.u32 %v7437, 4294901760
    %10020 = vmatmul.f32.gmra.mxu0 %v10019
    %v10021 = vpop.f32.mrf.mxu0
    %v10022 = vadd.f32 %v9975, %v10021
    %v10023 = vand.u32 %v7440, 4294901760
    %10024 = vmatmul.f32.gmra.mxu0 %v10023
    %v10025 = vpop.f32.mrf.mxu0
    %v10026 = vadd.f32 %v9983, %v10025
    %10027 = vdwg.mxu0
    %10028 = vmatpush.msra.mxu0 0.0
    %10029 = vmatpush.msra.mxu0 0.0
    %10030 = vmatpush.msra.mxu0 0.0
    %10031 = vmatpush.msra.mxu0 0.0
    %10032 = vmatpush.msra.mxu0 0.0
    %10033 = vmatpush.msra.mxu0 0.0
    %10034 = vmatpush.msra.mxu0 0.0
    %10035 = vmatpush.msra.mxu0 0.0
    %10036 = vmatpush.msra.mxu0 0.0
    %10037 = vmatpush.msra.mxu0 0.0
    %10038 = vmatpush.msra.mxu0 0.0
    %10039 = vmatpush.msra.mxu0 0.0
    %10040 = vmatpush.msra.mxu0 0.0
    %10041 = vmatpush.msra.mxu0 0.0
    %v10042 = vand.u32 %v7405, 4294901760
    %v10043 = vsub.f32 %v7405, %v10042
    %10044 = vmatpush.msra.mxu0 %v10043
    %v10045 = vand.u32 %v7401, 4294901760
    %v10046 = vsub.f32 %v7401, %v10045
    %10047 = vmatpush.msra.mxu0 %v10046
    %v10048 = vand.u32 %v7431, 4294901760
    %v10049 = vsub.f32 %v7431, %v10048
    %10050 = vmatmul.f32.gmra.mxu0 %v10049
    %v10051 = vpop.f32.mrf.mxu0
    %v10052 = vadd.f32 %v10014, %v10051
    %v10053 = vand.u32 %v7434, 4294901760
    %v10054 = vsub.f32 %v7434, %v10053
    %10055 = vmatmul.f32.gmra.mxu0 %v10054
    %v10056 = vpop.f32.mrf.mxu0
    %v10057 = vadd.f32 %v10018, %v10056
    %v10058 = vand.u32 %v7437, 4294901760
    %v10059 = vsub.f32 %v7437, %v10058
    %10060 = vmatmul.f32.gmra.mxu0 %v10059
    %v10061 = vpop.f32.mrf.mxu0
    %v10062 = vadd.f32 %v10022, %v10061
    %v10063 = vand.u32 %v7440, 4294901760
    %v10064 = vsub.f32 %v7440, %v10063
    %10065 = vmatmul.f32.gmra.mxu0 %v10064
    %v10066 = vpop.f32.mrf.mxu0
    %v10067 = vadd.f32 %v10026, %v10066
    %10068 = vdwg.mxu0
    %10069 = vmatpush.msra.mxu0 0.0
    %10070 = vmatpush.msra.mxu0 0.0
    %10071 = vmatpush.msra.mxu0 0.0
    %10072 = vmatpush.msra.mxu0 0.0
    %10073 = vmatpush.msra.mxu0 0.0
    %10074 = vmatpush.msra.mxu0 0.0
    %10075 = vmatpush.msra.mxu0 0.0
    %10076 = vmatpush.msra.mxu0 0.0
    %10077 = vmatpush.msra.mxu0 0.0
    %10078 = vmatpush.msra.mxu0 0.0
    %10079 = vmatpush.msra.mxu0 0.0
    %10080 = vmatpush.msra.mxu0 0.0
    %10081 = vmatpush.msra.mxu0 0.0
    %10082 = vmatpush.msra.mxu0 0.0
    %v10083 = vand.u32 %v7405, 4294901760
    %10084 = vmatpush.msra.mxu0 %v10083
    %v10085 = vand.u32 %v7401, 4294901760
    %10086 = vmatpush.msra.mxu0 %v10085
    %v10087 = vand.u32 %v7431, 4294901760
    %v10088 = vsub.f32 %v7431, %v10087
    %v10089 = vand.u32 %v10088, 4294901760
    %10090 = vmatmul.f32.gmra.mxu0 %v10089
    %v10091 = vpop.f32.mrf.mxu0
    %v10092 = vadd.f32 %v10052, %v10091
    %v10093 = vand.u32 %v7434, 4294901760
    %v10094 = vsub.f32 %v7434, %v10093
    %v10095 = vand.u32 %v10094, 4294901760
    %10096 = vmatmul.f32.gmra.mxu0 %v10095
    %v10097 = vpop.f32.mrf.mxu0
    %v10098 = vadd.f32 %v10057, %v10097
    %v10099 = vand.u32 %v7437, 4294901760
    %v10100 = vsub.f32 %v7437, %v10099
    %v10101 = vand.u32 %v10100, 4294901760
    %10102 = vmatmul.f32.gmra.mxu0 %v10101
    %v10103 = vpop.f32.mrf.mxu0
    %v10104 = vadd.f32 %v10062, %v10103
    %v10105 = vand.u32 %v7440, 4294901760
    %v10106 = vsub.f32 %v7440, %v10105
    %v10107 = vand.u32 %v10106, 4294901760
    %10108 = vmatmul.f32.gmra.mxu0 %v10107
    %v10109 = vpop.f32.mrf.mxu0
    %v10110 = vadd.f32 %v10067, %v10109
    %10111 = vdwg.mxu0
    %10112 = vmatpush.msra.mxu0 0.0
    %10113 = vmatpush.msra.mxu0 0.0
    %10114 = vmatpush.msra.mxu0 0.0
    %10115 = vmatpush.msra.mxu0 0.0
    %10116 = vmatpush.msra.mxu0 0.0
    %10117 = vmatpush.msra.mxu0 0.0
    %10118 = vmatpush.msra.mxu0 0.0
    %10119 = vmatpush.msra.mxu0 0.0
    %10120 = vmatpush.msra.mxu0 0.0
    %10121 = vmatpush.msra.mxu0 0.0
    %10122 = vmatpush.msra.mxu0 0.0
    %10123 = vmatpush.msra.mxu0 0.0
    %10124 = vmatpush.msra.mxu0 0.0
    %10125 = vmatpush.msra.mxu0 0.0
    %v10126 = vand.u32 %v7405, 4294901760
    %v10127 = vsub.f32 %v7405, %v10126
    %v10128 = vand.u32 %v10127, 4294901760
    %10129 = vmatpush.msra.mxu0 %v10128
    %v10130 = vand.u32 %v7401, 4294901760
    %v10131 = vsub.f32 %v7401, %v10130
    %v10132 = vand.u32 %v10131, 4294901760
    %10133 = vmatpush.msra.mxu0 %v10132
    %v10134 = vand.u32 %v7431, 4294901760
    %10135 = vmatmul.f32.gmra.mxu0 %v10134
    %v10136 = vpop.f32.mrf.mxu0
    %v10137 = vadd.f32 %v10092, %v10136
    %v10138 = vand.u32 %v7434, 4294901760
    %10139 = vmatmul.f32.gmra.mxu0 %v10138
    %v10140 = vpop.f32.mrf.mxu0
    %v10141 = vadd.f32 %v10098, %v10140
    %v10142 = vand.u32 %v7437, 4294901760
    %10143 = vmatmul.f32.gmra.mxu0 %v10142
    %v10144 = vpop.f32.mrf.mxu0
    %v10145 = vadd.f32 %v10104, %v10144
    %v10146 = vand.u32 %v7440, 4294901760
    %10147 = vmatmul.f32.gmra.mxu0 %v10146
    %v10148 = vpop.f32.mrf.mxu0
    %v10149 = vadd.f32 %v10110, %v10148
    %10150 = vdwg.mxu0
    %10151 = vmatpush.msra.mxu0 0.0
    %10152 = vmatpush.msra.mxu0 0.0
    %10153 = vmatpush.msra.mxu0 0.0
    %10154 = vmatpush.msra.mxu0 0.0
    %10155 = vmatpush.msra.mxu0 0.0
    %10156 = vmatpush.msra.mxu0 0.0
    %10157 = vmatpush.msra.mxu0 0.0
    %10158 = vmatpush.msra.mxu0 0.0
    %10159 = vmatpush.msra.mxu0 0.0
    %10160 = vmatpush.msra.mxu0 0.0
    %10161 = vmatpush.msra.mxu0 0.0
    %10162 = vmatpush.msra.mxu0 0.0
    %10163 = vmatpush.msra.mxu0 0.0
    %10164 = vmatpush.msra.mxu0 0.0
    %v10165 = vand.u32 %v7405, 4294901760
    %10166 = vmatpush.msra.mxu0 %v10165
    %v10167 = vand.u32 %v7401, 4294901760
    %10168 = vmatpush.msra.mxu0 %v10167
    %v10169 = vand.u32 %v7431, 4294901760
    %10170 = vmatmul.f32.gmra.mxu0 %v10169
    %v10171 = vpop.f32.mrf.mxu0
    %v10172 = vadd.f32 %v10137, %v10171
    %v10173 = vand.u32 %v7434, 4294901760
    %10174 = vmatmul.f32.gmra.mxu0 %v10173
    %v10175 = vpop.f32.mrf.mxu0
    %v10176 = vadd.f32 %v10141, %v10175
    %v10177 = vand.u32 %v7437, 4294901760
    %10178 = vmatmul.f32.gmra.mxu0 %v10177
    %v10179 = vpop.f32.mrf.mxu0
    %v10180 = vadd.f32 %v10145, %v10179
    %v10181 = vand.u32 %v7440, 4294901760
    %10182 = vmatmul.f32.gmra.mxu0 %v10181
    %v10183 = vpop.f32.mrf.mxu0
    %v10184 = vadd.f32 %v10149, %v10183
    %10185 = vdwg.mxu0
    %v10186 = vld [vmem:[%s12] sm:$0x1]
    %v10187 = vld [vmem:[#allocation3] sm:$0x1]
    %10189 = vset.pattern.permute.xlu0 0
    %10190 = vperm.xlu0 %10189, %v10187
    %v10191 = vpop.permute.xlu0 %10190
    %v10193 = vperm.slane %v10191, 0
    %vm10194 = vcmask 261120
    %v10196 = vsel %vm10194, %v10186, 0
    %10198 = vmatpush.msra.mxu0 0.0
    %10199 = vmatpush.msra.mxu0 0.0
    %10200 = vmatpush.msra.mxu0 0.0
    %10201 = vmatpush.msra.mxu0 0.0
    %10202 = vmatpush.msra.mxu0 0.0
    %10203 = vmatpush.msra.mxu0 0.0
    %10204 = vmatpush.msra.mxu0 0.0
    %10205 = vmatpush.msra.mxu0 0.0
    %10206 = vmatpush.msra.mxu0 0.0
    %10207 = vmatpush.msra.mxu0 0.0
    %10208 = vmatpush.msra.mxu0 0.0
    %10209 = vmatpush.msra.mxu0 0.0
    %v10210 = vand.u32 %v8126, 4294901760
    %10211 = vmatpush.msra.mxu0 %v10210
    %v10212 = vand.u32 %v8122, 4294901760
    %10213 = vmatpush.msra.mxu0 %v10212
    %v10214 = vand.u32 %v8118, 4294901760
    %10215 = vmatpush.msra.mxu0 %v10214
    %v10216 = vand.u32 %v8114, 4294901760
    %10217 = vmatpush.msra.mxu0 %v10216
    %v10218 = vand.u32 %v10196, 4294901760
    %v10219 = vsub.f32 %v10196, %v10218
    %v10220 = vand.u32 %v10219, 4294901760
    %v10221 = vsub.f32 %v10219, %v10220
    %v10222 = vand.u32 %v10221, 4294901760
    %10223 = vmatmul.f32.gmra.mxu0 %v10222
    %v10224 = vpop.f32.mrf.mxu0
    %v10225 = vadd.f32 %v10193, %v10224
    %10226 = vdwg.mxu0
    %10227 = vmatpush.msra.mxu0 0.0
    %10228 = vmatpush.msra.mxu0 0.0
    %10229 = vmatpush.msra.mxu0 0.0
    %10230 = vmatpush.msra.mxu0 0.0
    %10231 = vmatpush.msra.mxu0 0.0
    %10232 = vmatpush.msra.mxu0 0.0
    %10233 = vmatpush.msra.mxu0 0.0
    %10234 = vmatpush.msra.mxu0 0.0
    %10235 = vmatpush.msra.mxu0 0.0
    %10236 = vmatpush.msra.mxu0 0.0
    %10237 = vmatpush.msra.mxu0 0.0
    %10238 = vmatpush.msra.mxu0 0.0
    %v10239 = vand.u32 %v8126, 4294901760
    %v10240 = vsub.f32 %v8126, %v10239
    %v10241 = vand.u32 %v10240, 4294901760
    %v10242 = vsub.f32 %v10240, %v10241
    %v10243 = vand.u32 %v10242, 4294901760
    %10244 = vmatpush.msra.mxu0 %v10243
    %v10245 = vand.u32 %v8122, 4294901760
    %v10246 = vsub.f32 %v8122, %v10245
    %v10247 = vand.u32 %v10246, 4294901760
    %v10248 = vsub.f32 %v10246, %v10247
    %v10249 = vand.u32 %v10248, 4294901760
    %10250 = vmatpush.msra.mxu0 %v10249
    %v10251 = vand.u32 %v8118, 4294901760
    %v10252 = vsub.f32 %v8118, %v10251
    %v10253 = vand.u32 %v10252, 4294901760
    %v10254 = vsub.f32 %v10252, %v10253
    %v10255 = vand.u32 %v10254, 4294901760
    %10256 = vmatpush.msra.mxu0 %v10255
    %v10257 = vand.u32 %v8114, 4294901760
    %v10258 = vsub.f32 %v8114, %v10257
    %v10259 = vand.u32 %v10258, 4294901760
    %v10260 = vsub.f32 %v10258, %v10259
    %v10261 = vand.u32 %v10260, 4294901760
    %10262 = vmatpush.msra.mxu0 %v10261
    %v10263 = vand.u32 %v10196, 4294901760
    %10264 = vmatmul.f32.gmra.mxu0 %v10263
    %v10265 = vpop.f32.mrf.mxu0
    %v10266 = vadd.f32 %v10225, %v10265
    %10267 = vdwg.mxu0
    %10268 = vmatpush.msra.mxu0 0.0
    %10269 = vmatpush.msra.mxu0 0.0
    %10270 = vmatpush.msra.mxu0 0.0
    %10271 = vmatpush.msra.mxu0 0.0
    %10272 = vmatpush.msra.mxu0 0.0
    %10273 = vmatpush.msra.mxu0 0.0
    %10274 = vmatpush.msra.mxu0 0.0
    %10275 = vmatpush.msra.mxu0 0.0
    %10276 = vmatpush.msra.mxu0 0.0
    %10277 = vmatpush.msra.mxu0 0.0
    %10278 = vmatpush.msra.mxu0 0.0
    %10279 = vmatpush.msra.mxu0 0.0
    %v10280 = vand.u32 %v8126, 4294901760
    %v10281 = vsub.f32 %v8126, %v10280
    %10282 = vmatpush.msra.mxu0 %v10281
    %v10283 = vand.u32 %v8122, 4294901760
    %v10284 = vsub.f32 %v8122, %v10283
    %10285 = vmatpush.msra.mxu0 %v10284
    %v10286 = vand.u32 %v8118, 4294901760
    %v10287 = vsub.f32 %v8118, %v10286
    %10288 = vmatpush.msra.mxu0 %v10287
    %v10289 = vand.u32 %v8114, 4294901760
    %v10290 = vsub.f32 %v8114, %v10289
    %10291 = vmatpush.msra.mxu0 %v10290
    %v10292 = vand.u32 %v10196, 4294901760
    %v10293 = vsub.f32 %v10196, %v10292
    %10294 = vmatmul.f32.gmra.mxu0 %v10293
    %v10295 = vpop.f32.mrf.mxu0
    %v10296 = vadd.f32 %v10266, %v10295
    %10297 = vdwg.mxu0
    %10298 = vmatpush.msra.mxu0 0.0
    %10299 = vmatpush.msra.mxu0 0.0
    %10300 = vmatpush.msra.mxu0 0.0
    %10301 = vmatpush.msra.mxu0 0.0
    %10302 = vmatpush.msra.mxu0 0.0
    %10303 = vmatpush.msra.mxu0 0.0
    %10304 = vmatpush.msra.mxu0 0.0
    %10305 = vmatpush.msra.mxu0 0.0
    %10306 = vmatpush.msra.mxu0 0.0
    %10307 = vmatpush.msra.mxu0 0.0
    %10308 = vmatpush.msra.mxu0 0.0
    %10309 = vmatpush.msra.mxu0 0.0
    %v10310 = vand.u32 %v8126, 4294901760
    %10311 = vmatpush.msra.mxu0 %v10310
    %v10312 = vand.u32 %v8122, 4294901760
    %10313 = vmatpush.msra.mxu0 %v10312
    %v10314 = vand.u32 %v8118, 4294901760
    %10315 = vmatpush.msra.mxu0 %v10314
    %v10316 = vand.u32 %v8114, 4294901760
    %10317 = vmatpush.msra.mxu0 %v10316
    %v10318 = vand.u32 %v10196, 4294901760
    %v10319 = vsub.f32 %v10196, %v10318
    %v10320 = vand.u32 %v10319, 4294901760
    %10321 = vmatmul.f32.gmra.mxu0 %v10320
    %v10322 = vpop.f32.mrf.mxu0
    %v10323 = vadd.f32 %v10296, %v10322
    %10324 = vdwg.mxu0
    %10325 = vmatpush.msra.mxu0 0.0
    %10326 = vmatpush.msra.mxu0 0.0
    %10327 = vmatpush.msra.mxu0 0.0
    %10328 = vmatpush.msra.mxu0 0.0
    %10329 = vmatpush.msra.mxu0 0.0
    %10330 = vmatpush.msra.mxu0 0.0
    %10331 = vmatpush.msra.mxu0 0.0
    %10332 = vmatpush.msra.mxu0 0.0
    %10333 = vmatpush.msra.mxu0 0.0
    %10334 = vmatpush.msra.mxu0 0.0
    %10335 = vmatpush.msra.mxu0 0.0
    %10336 = vmatpush.msra.mxu0 0.0
    %v10337 = vand.u32 %v8126, 4294901760
    %v10338 = vsub.f32 %v8126, %v10337
    %v10339 = vand.u32 %v10338, 4294901760
    %10340 = vmatpush.msra.mxu0 %v10339
    %v10341 = vand.u32 %v8122, 4294901760
    %v10342 = vsub.f32 %v8122, %v10341
    %v10343 = vand.u32 %v10342, 4294901760
    %10344 = vmatpush.msra.mxu0 %v10343
    %v10345 = vand.u32 %v8118, 4294901760
    %v10346 = vsub.f32 %v8118, %v10345
    %v10347 = vand.u32 %v10346, 4294901760
    %10348 = vmatpush.msra.mxu0 %v10347
    %v10349 = vand.u32 %v8114, 4294901760
    %v10350 = vsub.f32 %v8114, %v10349
    %v10351 = vand.u32 %v10350, 4294901760
    %10352 = vmatpush.msra.mxu0 %v10351
    %v10353 = vand.u32 %v10196, 4294901760
    %10354 = vmatmul.f32.gmra.mxu0 %v10353
    %v10355 = vpop.f32.mrf.mxu0
    %v10356 = vadd.f32 %v10323, %v10355
    %10357 = vdwg.mxu0
    %10358 = vmatpush.msra.mxu0 0.0
    %10359 = vmatpush.msra.mxu0 0.0
    %10360 = vmatpush.msra.mxu0 0.0
    %10361 = vmatpush.msra.mxu0 0.0
    %10362 = vmatpush.msra.mxu0 0.0
    %10363 = vmatpush.msra.mxu0 0.0
    %10364 = vmatpush.msra.mxu0 0.0
    %10365 = vmatpush.msra.mxu0 0.0
    %10366 = vmatpush.msra.mxu0 0.0
    %10367 = vmatpush.msra.mxu0 0.0
    %10368 = vmatpush.msra.mxu0 0.0
    %10369 = vmatpush.msra.mxu0 0.0
    %v10370 = vand.u32 %v8126, 4294901760
    %10371 = vmatpush.msra.mxu0 %v10370
    %v10372 = vand.u32 %v8122, 4294901760
    %10373 = vmatpush.msra.mxu0 %v10372
    %v10374 = vand.u32 %v8118, 4294901760
    %10375 = vmatpush.msra.mxu0 %v10374
    %v10376 = vand.u32 %v8114, 4294901760
    %10377 = vmatpush.msra.mxu0 %v10376
    %v10378 = vand.u32 %v10196, 4294901760
    %10379 = vmatmul.f32.gmra.mxu0 %v10378
    %v10380 = vpop.f32.mrf.mxu0
    %v10381 = vadd.f32 %v10356, %v10380
    %10382 = vdwg.mxu0
    %10383 = vmatpush.msra.mxu0 0.0
    %10384 = vmatpush.msra.mxu0 0.0
    %10385 = vmatpush.msra.mxu0 0.0
    %10386 = vmatpush.msra.mxu0 0.0
    %10387 = vmatpush.msra.mxu0 0.0
    %10388 = vmatpush.msra.mxu0 0.0
    %10389 = vmatpush.msra.mxu0 0.0
    %10390 = vmatpush.msra.mxu0 0.0
    %10391 = vmatpush.msra.mxu0 0.0
    %10392 = vmatpush.msra.mxu0 0.0
    %10393 = vmatpush.msra.mxu0 0.0
    %10394 = vmatpush.msra.mxu0 0.0
    %v10395 = vand.u32 %v8812, 4294901760
    %10396 = vmatpush.msra.mxu0 %v10395
    %v10397 = vand.u32 %v8808, 4294901760
    %10398 = vmatpush.msra.mxu0 %v10397
    %v10399 = vand.u32 %v8804, 4294901760
    %10400 = vmatpush.msra.mxu0 %v10399
    %v10401 = vand.u32 %v8800, 4294901760
    %10402 = vmatpush.msra.mxu0 %v10401
    %v10403 = vand.u32 %v10196, 4294901760
    %v10404 = vsub.f32 %v10196, %v10403
    %v10405 = vand.u32 %v10404, 4294901760
    %v10406 = vsub.f32 %v10404, %v10405
    %v10407 = vand.u32 %v10406, 4294901760
    %10408 = vmatmul.f32.gmra.mxu0 %v10407
    %v10409 = vpop.f32.mrf.mxu0
    %v10410 = vadd.f32 %v10193, %v10409
    %10411 = vdwg.mxu0
    %10412 = vmatpush.msra.mxu0 0.0
    %10413 = vmatpush.msra.mxu0 0.0
    %10414 = vmatpush.msra.mxu0 0.0
    %10415 = vmatpush.msra.mxu0 0.0
    %10416 = vmatpush.msra.mxu0 0.0
    %10417 = vmatpush.msra.mxu0 0.0
    %10418 = vmatpush.msra.mxu0 0.0
    %10419 = vmatpush.msra.mxu0 0.0
    %10420 = vmatpush.msra.mxu0 0.0
    %10421 = vmatpush.msra.mxu0 0.0
    %10422 = vmatpush.msra.mxu0 0.0
    %10423 = vmatpush.msra.mxu0 0.0
    %v10424 = vand.u32 %v8812, 4294901760
    %v10425 = vsub.f32 %v8812, %v10424
    %v10426 = vand.u32 %v10425, 4294901760
    %v10427 = vsub.f32 %v10425, %v10426
    %v10428 = vand.u32 %v10427, 4294901760
    %10429 = vmatpush.msra.mxu0 %v10428
    %v10430 = vand.u32 %v8808, 4294901760
    %v10431 = vsub.f32 %v8808, %v10430
    %v10432 = vand.u32 %v10431, 4294901760
    %v10433 = vsub.f32 %v10431, %v10432
    %v10434 = vand.u32 %v10433, 4294901760
    %10435 = vmatpush.msra.mxu0 %v10434
    %v10436 = vand.u32 %v8804, 4294901760
    %v10437 = vsub.f32 %v8804, %v10436
    %v10438 = vand.u32 %v10437, 4294901760
    %v10439 = vsub.f32 %v10437, %v10438
    %v10440 = vand.u32 %v10439, 4294901760
    %10441 = vmatpush.msra.mxu0 %v10440
    %v10442 = vand.u32 %v8800, 4294901760
    %v10443 = vsub.f32 %v8800, %v10442
    %v10444 = vand.u32 %v10443, 4294901760
    %v10445 = vsub.f32 %v10443, %v10444
    %v10446 = vand.u32 %v10445, 4294901760
    %10447 = vmatpush.msra.mxu0 %v10446
    %v10448 = vand.u32 %v10196, 4294901760
    %10449 = vmatmul.f32.gmra.mxu0 %v10448
    %v10450 = vpop.f32.mrf.mxu0
    %v10451 = vadd.f32 %v10410, %v10450
    %10452 = vdwg.mxu0
    %10453 = vmatpush.msra.mxu0 0.0
    %10454 = vmatpush.msra.mxu0 0.0
    %10455 = vmatpush.msra.mxu0 0.0
    %10456 = vmatpush.msra.mxu0 0.0
    %10457 = vmatpush.msra.mxu0 0.0
    %10458 = vmatpush.msra.mxu0 0.0
    %10459 = vmatpush.msra.mxu0 0.0
    %10460 = vmatpush.msra.mxu0 0.0
    %10461 = vmatpush.msra.mxu0 0.0
    %10462 = vmatpush.msra.mxu0 0.0
    %10463 = vmatpush.msra.mxu0 0.0
    %10464 = vmatpush.msra.mxu0 0.0
    %v10465 = vand.u32 %v8812, 4294901760
    %v10466 = vsub.f32 %v8812, %v10465
    %10467 = vmatpush.msra.mxu0 %v10466
    %v10468 = vand.u32 %v8808, 4294901760
    %v10469 = vsub.f32 %v8808, %v10468
    %10470 = vmatpush.msra.mxu0 %v10469
    %v10471 = vand.u32 %v8804, 4294901760
    %v10472 = vsub.f32 %v8804, %v10471
    %10473 = vmatpush.msra.mxu0 %v10472
    %v10474 = vand.u32 %v8800, 4294901760
    %v10475 = vsub.f32 %v8800, %v10474
    %10476 = vmatpush.msra.mxu0 %v10475
    %v10477 = vand.u32 %v10196, 4294901760
    %v10478 = vsub.f32 %v10196, %v10477
    %10479 = vmatmul.f32.gmra.mxu0 %v10478
    %v10480 = vpop.f32.mrf.mxu0
    %v10481 = vadd.f32 %v10451, %v10480
    %10482 = vdwg.mxu0
    %10483 = vmatpush.msra.mxu0 0.0
    %10484 = vmatpush.msra.mxu0 0.0
    %10485 = vmatpush.msra.mxu0 0.0
    %10486 = vmatpush.msra.mxu0 0.0
    %10487 = vmatpush.msra.mxu0 0.0
    %10488 = vmatpush.msra.mxu0 0.0
    %10489 = vmatpush.msra.mxu0 0.0
    %10490 = vmatpush.msra.mxu0 0.0
    %10491 = vmatpush.msra.mxu0 0.0
    %10492 = vmatpush.msra.mxu0 0.0
    %10493 = vmatpush.msra.mxu0 0.0
    %10494 = vmatpush.msra.mxu0 0.0
    %v10495 = vand.u32 %v8812, 4294901760
    %10496 = vmatpush.msra.mxu0 %v10495
    %v10497 = vand.u32 %v8808, 4294901760
    %10498 = vmatpush.msra.mxu0 %v10497
    %v10499 = vand.u32 %v8804, 4294901760
    %10500 = vmatpush.msra.mxu0 %v10499
    %v10501 = vand.u32 %v8800, 4294901760
    %10502 = vmatpush.msra.mxu0 %v10501
    %v10503 = vand.u32 %v10196, 4294901760
    %v10504 = vsub.f32 %v10196, %v10503
    %v10505 = vand.u32 %v10504, 4294901760
    %10506 = vmatmul.f32.gmra.mxu0 %v10505
    %v10507 = vpop.f32.mrf.mxu0
    %v10508 = vadd.f32 %v10481, %v10507
    %10509 = vdwg.mxu0
    %10510 = vmatpush.msra.mxu0 0.0
    %10511 = vmatpush.msra.mxu0 0.0
    %10512 = vmatpush.msra.mxu0 0.0
    %10513 = vmatpush.msra.mxu0 0.0
    %10514 = vmatpush.msra.mxu0 0.0
    %10515 = vmatpush.msra.mxu0 0.0
    %10516 = vmatpush.msra.mxu0 0.0
    %10517 = vmatpush.msra.mxu0 0.0
    %10518 = vmatpush.msra.mxu0 0.0
    %10519 = vmatpush.msra.mxu0 0.0
    %10520 = vmatpush.msra.mxu0 0.0
    %10521 = vmatpush.msra.mxu0 0.0
    %v10522 = vand.u32 %v8812, 4294901760
    %v10523 = vsub.f32 %v8812, %v10522
    %v10524 = vand.u32 %v10523, 4294901760
    %10525 = vmatpush.msra.mxu0 %v10524
    %v10526 = vand.u32 %v8808, 4294901760
    %v10527 = vsub.f32 %v8808, %v10526
    %v10528 = vand.u32 %v10527, 4294901760
    %10529 = vmatpush.msra.mxu0 %v10528
    %v10530 = vand.u32 %v8804, 4294901760
    %v10531 = vsub.f32 %v8804, %v10530
    %v10532 = vand.u32 %v10531, 4294901760
    %10533 = vmatpush.msra.mxu0 %v10532
    %v10534 = vand.u32 %v8800, 4294901760
    %v10535 = vsub.f32 %v8800, %v10534
    %v10536 = vand.u32 %v10535, 4294901760
    %10537 = vmatpush.msra.mxu0 %v10536
    %v10538 = vand.u32 %v10196, 4294901760
    %10539 = vmatmul.f32.gmra.mxu0 %v10538
    %v10540 = vpop.f32.mrf.mxu0
    %v10541 = vadd.f32 %v10508, %v10540
    %10542 = vdwg.mxu0
    %10543 = vmatpush.msra.mxu0 0.0
    %10544 = vmatpush.msra.mxu0 0.0
    %10545 = vmatpush.msra.mxu0 0.0
    %10546 = vmatpush.msra.mxu0 0.0
    %10547 = vmatpush.msra.mxu0 0.0
    %10548 = vmatpush.msra.mxu0 0.0
    %10549 = vmatpush.msra.mxu0 0.0
    %10550 = vmatpush.msra.mxu0 0.0
    %10551 = vmatpush.msra.mxu0 0.0
    %10552 = vmatpush.msra.mxu0 0.0
    %10553 = vmatpush.msra.mxu0 0.0
    %10554 = vmatpush.msra.mxu0 0.0
    %v10555 = vand.u32 %v8812, 4294901760
    %10556 = vmatpush.msra.mxu0 %v10555
    %v10557 = vand.u32 %v8808, 4294901760
    %10558 = vmatpush.msra.mxu0 %v10557
    %v10559 = vand.u32 %v8804, 4294901760
    %10560 = vmatpush.msra.mxu0 %v10559
    %v10561 = vand.u32 %v8800, 4294901760
    %10562 = vmatpush.msra.mxu0 %v10561
    %v10563 = vand.u32 %v10196, 4294901760
    %10564 = vmatmul.f32.gmra.mxu0 %v10563
    %v10565 = vpop.f32.mrf.mxu0
    %v10566 = vadd.f32 %v10541, %v10565
    %10567 = vdwg.mxu0
    %10568 = vmatpush.msra.mxu0 0.0
    %10569 = vmatpush.msra.mxu0 0.0
    %10570 = vmatpush.msra.mxu0 0.0
    %10571 = vmatpush.msra.mxu0 0.0
    %10572 = vmatpush.msra.mxu0 0.0
    %10573 = vmatpush.msra.mxu0 0.0
    %10574 = vmatpush.msra.mxu0 0.0
    %10575 = vmatpush.msra.mxu0 0.0
    %10576 = vmatpush.msra.mxu0 0.0
    %10577 = vmatpush.msra.mxu0 0.0
    %10578 = vmatpush.msra.mxu0 0.0
    %10579 = vmatpush.msra.mxu0 0.0
    %v10580 = vand.u32 %v9498, 4294901760
    %10581 = vmatpush.msra.mxu0 %v10580
    %v10582 = vand.u32 %v9494, 4294901760
    %10583 = vmatpush.msra.mxu0 %v10582
    %v10584 = vand.u32 %v9490, 4294901760
    %10585 = vmatpush.msra.mxu0 %v10584
    %v10586 = vand.u32 %v9486, 4294901760
    %10587 = vmatpush.msra.mxu0 %v10586
    %v10588 = vand.u32 %v10196, 4294901760
    %v10589 = vsub.f32 %v10196, %v10588
    %v10590 = vand.u32 %v10589, 4294901760
    %v10591 = vsub.f32 %v10589, %v10590
    %v10592 = vand.u32 %v10591, 4294901760
    %10593 = vmatmul.f32.gmra.mxu0 %v10592
    %v10594 = vpop.f32.mrf.mxu0
    %v10595 = vadd.f32 %v10193, %v10594
    %10596 = vdwg.mxu0
    %10597 = vmatpush.msra.mxu0 0.0
    %10598 = vmatpush.msra.mxu0 0.0
    %10599 = vmatpush.msra.mxu0 0.0
    %10600 = vmatpush.msra.mxu0 0.0
    %10601 = vmatpush.msra.mxu0 0.0
    %10602 = vmatpush.msra.mxu0 0.0
    %10603 = vmatpush.msra.mxu0 0.0
    %10604 = vmatpush.msra.mxu0 0.0
    %10605 = vmatpush.msra.mxu0 0.0
    %10606 = vmatpush.msra.mxu0 0.0
    %10607 = vmatpush.msra.mxu0 0.0
    %10608 = vmatpush.msra.mxu0 0.0
    %v10609 = vand.u32 %v9498, 4294901760
    %v10610 = vsub.f32 %v9498, %v10609
    %v10611 = vand.u32 %v10610, 4294901760
    %v10612 = vsub.f32 %v10610, %v10611
    %v10613 = vand.u32 %v10612, 4294901760
    %10614 = vmatpush.msra.mxu0 %v10613
    %v10615 = vand.u32 %v9494, 4294901760
    %v10616 = vsub.f32 %v9494, %v10615
    %v10617 = vand.u32 %v10616, 4294901760
    %v10618 = vsub.f32 %v10616, %v10617
    %v10619 = vand.u32 %v10618, 4294901760
    %10620 = vmatpush.msra.mxu0 %v10619
    %v10621 = vand.u32 %v9490, 4294901760
    %v10622 = vsub.f32 %v9490, %v10621
    %v10623 = vand.u32 %v10622, 4294901760
    %v10624 = vsub.f32 %v10622, %v10623
    %v10625 = vand.u32 %v10624, 4294901760
    %10626 = vmatpush.msra.mxu0 %v10625
    %v10627 = vand.u32 %v9486, 4294901760
    %v10628 = vsub.f32 %v9486, %v10627
    %v10629 = vand.u32 %v10628, 4294901760
    %v10630 = vsub.f32 %v10628, %v10629
    %v10631 = vand.u32 %v10630, 4294901760
    %10632 = vmatpush.msra.mxu0 %v10631
    %v10633 = vand.u32 %v10196, 4294901760
    %10634 = vmatmul.f32.gmra.mxu0 %v10633
    %v10635 = vpop.f32.mrf.mxu0
    %v10636 = vadd.f32 %v10595, %v10635
    %10637 = vdwg.mxu0
    %10638 = vmatpush.msra.mxu0 0.0
    %10639 = vmatpush.msra.mxu0 0.0
    %10640 = vmatpush.msra.mxu0 0.0
    %10641 = vmatpush.msra.mxu0 0.0
    %10642 = vmatpush.msra.mxu0 0.0
    %10643 = vmatpush.msra.mxu0 0.0
    %10644 = vmatpush.msra.mxu0 0.0
    %10645 = vmatpush.msra.mxu0 0.0
    %10646 = vmatpush.msra.mxu0 0.0
    %10647 = vmatpush.msra.mxu0 0.0
    %10648 = vmatpush.msra.mxu0 0.0
    %10649 = vmatpush.msra.mxu0 0.0
    %v10650 = vand.u32 %v9498, 4294901760
    %v10651 = vsub.f32 %v9498, %v10650
    %10652 = vmatpush.msra.mxu0 %v10651
    %v10653 = vand.u32 %v9494, 4294901760
    %v10654 = vsub.f32 %v9494, %v10653
    %10655 = vmatpush.msra.mxu0 %v10654
    %v10656 = vand.u32 %v9490, 4294901760
    %v10657 = vsub.f32 %v9490, %v10656
    %10658 = vmatpush.msra.mxu0 %v10657
    %v10659 = vand.u32 %v9486, 4294901760
    %v10660 = vsub.f32 %v9486, %v10659
    %10661 = vmatpush.msra.mxu0 %v10660
    %v10662 = vand.u32 %v10196, 4294901760
    %v10663 = vsub.f32 %v10196, %v10662
    %10664 = vmatmul.f32.gmra.mxu0 %v10663
    %v10665 = vpop.f32.mrf.mxu0
    %v10666 = vadd.f32 %v10636, %v10665
    %10667 = vdwg.mxu0
    %10668 = vmatpush.msra.mxu0 0.0
    %10669 = vmatpush.msra.mxu0 0.0
    %10670 = vmatpush.msra.mxu0 0.0
    %10671 = vmatpush.msra.mxu0 0.0
    %10672 = vmatpush.msra.mxu0 0.0
    %10673 = vmatpush.msra.mxu0 0.0
    %10674 = vmatpush.msra.mxu0 0.0
    %10675 = vmatpush.msra.mxu0 0.0
    %10676 = vmatpush.msra.mxu0 0.0
    %10677 = vmatpush.msra.mxu0 0.0
    %10678 = vmatpush.msra.mxu0 0.0
    %10679 = vmatpush.msra.mxu0 0.0
    %v10680 = vand.u32 %v9498, 4294901760
    %10681 = vmatpush.msra.mxu0 %v10680
    %v10682 = vand.u32 %v9494, 4294901760
    %10683 = vmatpush.msra.mxu0 %v10682
    %v10684 = vand.u32 %v9490, 4294901760
    %10685 = vmatpush.msra.mxu0 %v10684
    %v10686 = vand.u32 %v9486, 4294901760
    %10687 = vmatpush.msra.mxu0 %v10686
    %v10688 = vand.u32 %v10196, 4294901760
    %v10689 = vsub.f32 %v10196, %v10688
    %v10690 = vand.u32 %v10689, 4294901760
    %10691 = vmatmul.f32.gmra.mxu0 %v10690
    %v10692 = vpop.f32.mrf.mxu0
    %v10693 = vadd.f32 %v10666, %v10692
    %10694 = vdwg.mxu0
    %10695 = vmatpush.msra.mxu0 0.0
    %10696 = vmatpush.msra.mxu0 0.0
    %10697 = vmatpush.msra.mxu0 0.0
    %10698 = vmatpush.msra.mxu0 0.0
    %10699 = vmatpush.msra.mxu0 0.0
    %10700 = vmatpush.msra.mxu0 0.0
    %10701 = vmatpush.msra.mxu0 0.0
    %10702 = vmatpush.msra.mxu0 0.0
    %10703 = vmatpush.msra.mxu0 0.0
    %10704 = vmatpush.msra.mxu0 0.0
    %10705 = vmatpush.msra.mxu0 0.0
    %10706 = vmatpush.msra.mxu0 0.0
    %v10707 = vand.u32 %v9498, 4294901760
    %v10708 = vsub.f32 %v9498, %v10707
    %v10709 = vand.u32 %v10708, 4294901760
    %10710 = vmatpush.msra.mxu0 %v10709
    %v10711 = vand.u32 %v9494, 4294901760
    %v10712 = vsub.f32 %v9494, %v10711
    %v10713 = vand.u32 %v10712, 4294901760
    %10714 = vmatpush.msra.mxu0 %v10713
    %v10715 = vand.u32 %v9490, 4294901760
    %v10716 = vsub.f32 %v9490, %v10715
    %v10717 = vand.u32 %v10716, 4294901760
    %10718 = vmatpush.msra.mxu0 %v10717
    %v10719 = vand.u32 %v9486, 4294901760
    %v10720 = vsub.f32 %v9486, %v10719
    %v10721 = vand.u32 %v10720, 4294901760
    %10722 = vmatpush.msra.mxu0 %v10721
    %v10723 = vand.u32 %v10196, 4294901760
    %10724 = vmatmul.f32.gmra.mxu0 %v10723
    %v10725 = vpop.f32.mrf.mxu0
    %v10726 = vadd.f32 %v10693, %v10725
    %10727 = vdwg.mxu0
    %10728 = vmatpush.msra.mxu0 0.0
    %10729 = vmatpush.msra.mxu0 0.0
    %10730 = vmatpush.msra.mxu0 0.0
    %10731 = vmatpush.msra.mxu0 0.0
    %10732 = vmatpush.msra.mxu0 0.0
    %10733 = vmatpush.msra.mxu0 0.0
    %10734 = vmatpush.msra.mxu0 0.0
    %10735 = vmatpush.msra.mxu0 0.0
    %10736 = vmatpush.msra.mxu0 0.0
    %10737 = vmatpush.msra.mxu0 0.0
    %10738 = vmatpush.msra.mxu0 0.0
    %10739 = vmatpush.msra.mxu0 0.0
    %v10740 = vand.u32 %v9498, 4294901760
    %10741 = vmatpush.msra.mxu0 %v10740
    %v10742 = vand.u32 %v9494, 4294901760
    %10743 = vmatpush.msra.mxu0 %v10742
    %v10744 = vand.u32 %v9490, 4294901760
    %10745 = vmatpush.msra.mxu0 %v10744
    %v10746 = vand.u32 %v9486, 4294901760
    %10747 = vmatpush.msra.mxu0 %v10746
    %v10748 = vand.u32 %v10196, 4294901760
    %10749 = vmatmul.f32.gmra.mxu0 %v10748
    %v10750 = vpop.f32.mrf.mxu0
    %v10751 = vadd.f32 %v10726, %v10750
    %10752 = vdwg.mxu0
    %10753 = vmatpush.msra.mxu0 0.0
    %10754 = vmatpush.msra.mxu0 0.0
    %10755 = vmatpush.msra.mxu0 0.0
    %10756 = vmatpush.msra.mxu0 0.0
    %10757 = vmatpush.msra.mxu0 0.0
    %10758 = vmatpush.msra.mxu0 0.0
    %10759 = vmatpush.msra.mxu0 0.0
    %10760 = vmatpush.msra.mxu0 0.0
    %10761 = vmatpush.msra.mxu0 0.0
    %10762 = vmatpush.msra.mxu0 0.0
    %10763 = vmatpush.msra.mxu0 0.0
    %10764 = vmatpush.msra.mxu0 0.0
    %v10765 = vand.u32 %v10184, 4294901760
    %10766 = vmatpush.msra.mxu0 %v10765
    %v10767 = vand.u32 %v10180, 4294901760
    %10768 = vmatpush.msra.mxu0 %v10767
    %v10769 = vand.u32 %v10176, 4294901760
    %10770 = vmatpush.msra.mxu0 %v10769
    %v10771 = vand.u32 %v10172, 4294901760
    %10772 = vmatpush.msra.mxu0 %v10771
    %v10773 = vand.u32 %v10196, 4294901760
    %v10774 = vsub.f32 %v10196, %v10773
    %v10775 = vand.u32 %v10774, 4294901760
    %v10776 = vsub.f32 %v10774, %v10775
    %v10777 = vand.u32 %v10776, 4294901760
    %10778 = vmatmul.f32.gmra.mxu0 %v10777
    %v10779 = vpop.f32.mrf.mxu0
    %v10780 = vadd.f32 %v10193, %v10779
    %10781 = vdwg.mxu0
    %10782 = vmatpush.msra.mxu0 0.0
    %10783 = vmatpush.msra.mxu0 0.0
    %10784 = vmatpush.msra.mxu0 0.0
    %10785 = vmatpush.msra.mxu0 0.0
    %10786 = vmatpush.msra.mxu0 0.0
    %10787 = vmatpush.msra.mxu0 0.0
    %10788 = vmatpush.msra.mxu0 0.0
    %10789 = vmatpush.msra.mxu0 0.0
    %10790 = vmatpush.msra.mxu0 0.0
    %10791 = vmatpush.msra.mxu0 0.0
    %10792 = vmatpush.msra.mxu0 0.0
    %10793 = vmatpush.msra.mxu0 0.0
    %v10794 = vand.u32 %v10184, 4294901760
    %v10795 = vsub.f32 %v10184, %v10794
    %v10796 = vand.u32 %v10795, 4294901760
    %v10797 = vsub.f32 %v10795, %v10796
    %v10798 = vand.u32 %v10797, 4294901760
    %10799 = vmatpush.msra.mxu0 %v10798
    %v10800 = vand.u32 %v10180, 4294901760
    %v10801 = vsub.f32 %v10180, %v10800
    %v10802 = vand.u32 %v10801, 4294901760
    %v10803 = vsub.f32 %v10801, %v10802
    %v10804 = vand.u32 %v10803, 4294901760
    %10805 = vmatpush.msra.mxu0 %v10804
    %v10806 = vand.u32 %v10176, 4294901760
    %v10807 = vsub.f32 %v10176, %v10806
    %v10808 = vand.u32 %v10807, 4294901760
    %v10809 = vsub.f32 %v10807, %v10808
    %v10810 = vand.u32 %v10809, 4294901760
    %10811 = vmatpush.msra.mxu0 %v10810
    %v10812 = vand.u32 %v10172, 4294901760
    %v10813 = vsub.f32 %v10172, %v10812
    %v10814 = vand.u32 %v10813, 4294901760
    %v10815 = vsub.f32 %v10813, %v10814
    %v10816 = vand.u32 %v10815, 4294901760
    %10817 = vmatpush.msra.mxu0 %v10816
    %v10818 = vand.u32 %v10196, 4294901760
    %10819 = vmatmul.f32.gmra.mxu0 %v10818
    %v10820 = vpop.f32.mrf.mxu0
    %v10821 = vadd.f32 %v10780, %v10820
    %10822 = vdwg.mxu0
    %10823 = vmatpush.msra.mxu0 0.0
    %10824 = vmatpush.msra.mxu0 0.0
    %10825 = vmatpush.msra.mxu0 0.0
    %10826 = vmatpush.msra.mxu0 0.0
    %10827 = vmatpush.msra.mxu0 0.0
    %10828 = vmatpush.msra.mxu0 0.0
    %10829 = vmatpush.msra.mxu0 0.0
    %10830 = vmatpush.msra.mxu0 0.0
    %10831 = vmatpush.msra.mxu0 0.0
    %10832 = vmatpush.msra.mxu0 0.0
    %10833 = vmatpush.msra.mxu0 0.0
    %10834 = vmatpush.msra.mxu0 0.0
    %v10835 = vand.u32 %v10184, 4294901760
    %v10836 = vsub.f32 %v10184, %v10835
    %10837 = vmatpush.msra.mxu0 %v10836
    %v10838 = vand.u32 %v10180, 4294901760
    %v10839 = vsub.f32 %v10180, %v10838
    %10840 = vmatpush.msra.mxu0 %v10839
    %v10841 = vand.u32 %v10176, 4294901760
    %v10842 = vsub.f32 %v10176, %v10841
    %10843 = vmatpush.msra.mxu0 %v10842
    %v10844 = vand.u32 %v10172, 4294901760
    %v10845 = vsub.f32 %v10172, %v10844
    %10846 = vmatpush.msra.mxu0 %v10845
    %v10847 = vand.u32 %v10196, 4294901760
    %v10848 = vsub.f32 %v10196, %v10847
    %10849 = vmatmul.f32.gmra.mxu0 %v10848
    %v10850 = vpop.f32.mrf.mxu0
    %v10851 = vadd.f32 %v10821, %v10850
    %10852 = vdwg.mxu0
    %10853 = vmatpush.msra.mxu0 0.0
    %10854 = vmatpush.msra.mxu0 0.0
    %10855 = vmatpush.msra.mxu0 0.0
    %10856 = vmatpush.msra.mxu0 0.0
    %10857 = vmatpush.msra.mxu0 0.0
    %10858 = vmatpush.msra.mxu0 0.0
    %10859 = vmatpush.msra.mxu0 0.0
    %10860 = vmatpush.msra.mxu0 0.0
    %10861 = vmatpush.msra.mxu0 0.0
    %10862 = vmatpush.msra.mxu0 0.0
    %10863 = vmatpush.msra.mxu0 0.0
    %10864 = vmatpush.msra.mxu0 0.0
    %v10865 = vand.u32 %v10184, 4294901760
    %10866 = vmatpush.msra.mxu0 %v10865
    %v10867 = vand.u32 %v10180, 4294901760
    %10868 = vmatpush.msra.mxu0 %v10867
    %v10869 = vand.u32 %v10176, 4294901760
    %10870 = vmatpush.msra.mxu0 %v10869
    %v10871 = vand.u32 %v10172, 4294901760
    %10872 = vmatpush.msra.mxu0 %v10871
    %v10873 = vand.u32 %v10196, 4294901760
    %v10874 = vsub.f32 %v10196, %v10873
    %v10875 = vand.u32 %v10874, 4294901760
    %10876 = vmatmul.f32.gmra.mxu0 %v10875
    %v10877 = vpop.f32.mrf.mxu0
    %v10878 = vadd.f32 %v10851, %v10877
    %10879 = vdwg.mxu0
    %10880 = vmatpush.msra.mxu0 0.0
    %10881 = vmatpush.msra.mxu0 0.0
    %10882 = vmatpush.msra.mxu0 0.0
    %10883 = vmatpush.msra.mxu0 0.0
    %10884 = vmatpush.msra.mxu0 0.0
    %10885 = vmatpush.msra.mxu0 0.0
    %10886 = vmatpush.msra.mxu0 0.0
    %10887 = vmatpush.msra.mxu0 0.0
    %10888 = vmatpush.msra.mxu0 0.0
    %10889 = vmatpush.msra.mxu0 0.0
    %10890 = vmatpush.msra.mxu0 0.0
    %10891 = vmatpush.msra.mxu0 0.0
    %v10892 = vand.u32 %v10184, 4294901760
    %v10893 = vsub.f32 %v10184, %v10892
    %v10894 = vand.u32 %v10893, 4294901760
    %10895 = vmatpush.msra.mxu0 %v10894
    %v10896 = vand.u32 %v10180, 4294901760
    %v10897 = vsub.f32 %v10180, %v10896
    %v10898 = vand.u32 %v10897, 4294901760
    %10899 = vmatpush.msra.mxu0 %v10898
    %v10900 = vand.u32 %v10176, 4294901760
    %v10901 = vsub.f32 %v10176, %v10900
    %v10902 = vand.u32 %v10901, 4294901760
    %10903 = vmatpush.msra.mxu0 %v10902
    %v10904 = vand.u32 %v10172, 4294901760
    %v10905 = vsub.f32 %v10172, %v10904
    %v10906 = vand.u32 %v10905, 4294901760
    %10907 = vmatpush.msra.mxu0 %v10906
    %v10908 = vand.u32 %v10196, 4294901760
    %10909 = vmatmul.f32.gmra.mxu0 %v10908
    %v10910 = vpop.f32.mrf.mxu0
    %v10911 = vadd.f32 %v10878, %v10910
    %10912 = vdwg.mxu0
    %10913 = vmatpush.msra.mxu0 0.0
    %10914 = vmatpush.msra.mxu0 0.0
    %10915 = vmatpush.msra.mxu0 0.0
    %10916 = vmatpush.msra.mxu0 0.0
    %10917 = vmatpush.msra.mxu0 0.0
    %10918 = vmatpush.msra.mxu0 0.0
    %10919 = vmatpush.msra.mxu0 0.0
    %10920 = vmatpush.msra.mxu0 0.0
    %10921 = vmatpush.msra.mxu0 0.0
    %10922 = vmatpush.msra.mxu0 0.0
    %10923 = vmatpush.msra.mxu0 0.0
    %10924 = vmatpush.msra.mxu0 0.0
    %v10925 = vand.u32 %v10184, 4294901760
    %10926 = vmatpush.msra.mxu0 %v10925
    %v10927 = vand.u32 %v10180, 4294901760
    %10928 = vmatpush.msra.mxu0 %v10927
    %v10929 = vand.u32 %v10176, 4294901760
    %10930 = vmatpush.msra.mxu0 %v10929
    %v10931 = vand.u32 %v10172, 4294901760
    %10932 = vmatpush.msra.mxu0 %v10931
    %v10933 = vand.u32 %v10196, 4294901760
    %10934 = vmatmul.f32.gmra.mxu0 %v10933
    %v10935 = vpop.f32.mrf.mxu0
    %v10936 = vadd.f32 %v10911, %v10935
    %10937 = vdwg.mxu0
    %v10938 = vxor.u32 %v10381, 2147483648
    %v10939 = vxor.u32 %v10566, 2147483648
    %v10940 = vxor.u32 %v10751, 2147483648
    %v10941 = vxor.u32 %v10936, 2147483648
    %v10942 = vmul.f32 %v10938, 1.442695
    %v10943 = vpow.pop %v10942
    %v10944 = vmul.f32 %v10939, 1.442695
    %v10945 = vpow.pop %v10944
    %v10946 = vmul.f32 %v10940, 1.442695
    %v10947 = vpow.pop %v10946
    %v10948 = vmul.f32 %v10941, 1.442695
    %v10949 = vpow.pop %v10948
    %v10950 = vadd.f32 %v10943, 1.0
    %v10951 = vadd.f32 %v10945, 1.0
    %v10952 = vadd.f32 %v10947, 1.0
    %v10953 = vadd.f32 %v10949, 1.0
    %v10954 = vrcp.pop %v10950
    %v10955 = vmul.f32 %v10950, %v10954
    %v10956 = vsub.f32 1.0, %v10955
    %v10957 = vmul.f32 %v10954, %v10956
    %v10958 = vadd.f32 %v10954, %v10957
    %vm10959 = vweird.f32 %v10950
    %vm10960 = vweird.f32 %v10954
    %vm10961 = vmor %vm10959, %vm10960
    %v10962 = vsel %vm10961, %v10954, %v10958
    %v10963 = vand.u32 2147483647, %v10950
    %vm10964 = vcmp.eq.f32.partialorder %v10963, 8.507059e+37
    %v10965 = vand.u32 %v10950, 2147483648
    %v10966 = vor.u32 1.1754944e-38, %v10965
    %v10967 = vsel %vm10964, %v10966, %v10962
    %v10968 = vmul.f32 1.0, %v10967
    %v10969 = vrcp.pop %v10951
    %v10970 = vmul.f32 %v10951, %v10969
    %v10971 = vsub.f32 1.0, %v10970
    %v10972 = vmul.f32 %v10969, %v10971
    %v10973 = vadd.f32 %v10969, %v10972
    %vm10974 = vweird.f32 %v10951
    %vm10975 = vweird.f32 %v10969
    %vm10976 = vmor %vm10974, %vm10975
    %v10977 = vsel %vm10976, %v10969, %v10973
    %v10978 = vand.u32 2147483647, %v10951
    %vm10979 = vcmp.eq.f32.partialorder %v10978, 8.507059e+37
    %v10980 = vand.u32 %v10951, 2147483648
    %v10981 = vor.u32 1.1754944e-38, %v10980
    %v10982 = vsel %vm10979, %v10981, %v10977
    %v10983 = vmul.f32 1.0, %v10982
    %v10984 = vrcp.pop %v10952
    %v10985 = vmul.f32 %v10952, %v10984
    %v10986 = vsub.f32 1.0, %v10985
    %v10987 = vmul.f32 %v10984, %v10986
    %v10988 = vadd.f32 %v10984, %v10987
    %vm10989 = vweird.f32 %v10952
    %vm10990 = vweird.f32 %v10984
    %vm10991 = vmor %vm10989, %vm10990
    %v10992 = vsel %vm10991, %v10984, %v10988
    %v10993 = vand.u32 2147483647, %v10952
    %vm10994 = vcmp.eq.f32.partialorder %v10993, 8.507059e+37
    %v10995 = vand.u32 %v10952, 2147483648
    %v10996 = vor.u32 1.1754944e-38, %v10995
    %v10997 = vsel %vm10994, %v10996, %v10992
    %v10998 = vmul.f32 1.0, %v10997
    %v10999 = vrcp.pop %v10953
    %v11000 = vmul.f32 %v10953, %v10999
    %v11001 = vsub.f32 1.0, %v11000
    %v11002 = vmul.f32 %v10999, %v11001
    %v11003 = vadd.f32 %v10999, %v11002
    %vm11004 = vweird.f32 %v10953
    %vm11005 = vweird.f32 %v10999
    %vm11006 = vmor %vm11004, %vm11005
    %v11007 = vsel %vm11006, %v10999, %v11003
    %v11008 = vand.u32 2147483647, %v10953
    %vm11009 = vcmp.eq.f32.partialorder %v11008, 8.507059e+37
    %v11010 = vand.u32 %v10953, 2147483648
    %v11011 = vor.u32 1.1754944e-38, %v11010
    %v11012 = vsel %vm11009, %v11011, %v11007
    %v11013 = vmul.f32 1.0, %v11012
    %v11018 = vrot.slane %v10983, 7
    %v11019 = vrot.slane %v10998, 6
    %v11020 = vrot.slane %v11013, 5
    %vm11021 = vcmask 1040384
    %v11022 = vsel %vm11021, %v10968, %v11018
    %vm11023 = vcmask 1042434
    %v11024 = vsel %vm11023, %v11019, %v11020
    %vm11025 = vcmask 1041408
    %v11026 = vsel %vm11025, %v11022, %v11024
    %v11028 = vlaneseq
    %vm11029 = vcmp.ge.s32.totalorder %v11028, 0
    %vm11030 = vcmp.lt.s32.totalorder %v11028, 512
    %vm11031 = vmand %vm11029, %vm11030
    %11032 = vst.msk [vmem:[#allocation12] sm:$0xf] %vm11031, %v11026
    // Predicated region
    $region74: #{tpu_custom_call.1} parent=1 // pred_check
      _
    $region75: #{tpu_custom_call.1} parent=1 // pred_check_branch
      %11034 = sbr.rel (0) target = $region77
    $region76: #{tpu_custom_call.1} parent=1 // pred_region
      %11036 = vsyncadd [#allocation6], 0
      %s11038 = sshll.u32 [#allocation12], 4
      %s11039 = int_to_ptr.vmem [resolvable:$true] %s11038
      %s11040 = sshll.u32 %s14, 4
      %s11041 = int_to_ptr.hbm [resolvable:$true] %s11040
      %11043 = dma.vmem_to_hbm [thread:$0]  %s11039, 64, %s11041, [#allocation6]
    $region77: #{tpu_custom_call.1} parent=1 // pred_fallthru
      _
    // Predicated region
    $region78: #{tpu_custom_call.1} parent=1 // pred_check
      _
    $region79: #{tpu_custom_call.1} parent=1 // pred_check_branch
      %11045 = sbr.rel (0) target = $region81
    $region80: #{tpu_custom_call.1} parent=1 // pred_region
      %11047 = dma.done [#allocation6], 64
    $region81: #{tpu_custom_call.1} parent=1 // pred_fallthru
      _
    %11048 = vsyncpa [#allocation5], 1
    %11049 = vsyncpa [#allocation8], 1
    %11050 = vsyncpa [#allocation11], 1
    %11051 = vsyncpa [#allocation6], 1

</llo_original>
